<compile_context>
chip_gen: v6e
topology: v6e:2x2x1
jax: 0.10.0
libtpu: 0.0.40
codegen_flags: <defaults>
</compile_context>

<pallas_src>
import functools
import math

import jax
import jax.numpy as jnp
from jax.experimental import pallas as pl
from jax.experimental.pallas import tpu as pltpu


# ----------------------------- fused Pallas kernel ------------------------------

def _bert_fused_kernel(
    x_ref, bias_ref, emb_g_ref, emb_b_ref,
    wq_ref, bq_ref, wk_ref, bk_ref, wv_ref, bv_ref,
    wo_ref, bo_ref, ln1_g_ref, ln1_b_ref,
    wi_ref, bi_ref, wout_ref, bout_ref, ln2_g_ref, ln2_b_ref,
    pool_w_ref, pool_b_ref, cls_w_ref, cls_b_ref,
    logits_ref,
    *, num_layers, num_heads, scale):
  """Full mini-BERT forward for one batch element (one grid step)."""

  def layer_norm(x, g, b):
    mean = jnp.mean(x, axis=-1, keepdims=True)
    var = jnp.mean((x - mean) ** 2, axis=-1, keepdims=True)
    return (x - mean) * jax.lax.rsqrt(var + 1e-12) * g + b

  def gelu(y):
    # TODO(synk): HF BERT uses exact erf GELU; tanh approximation used here.
    c = 0.7978845608028654  # sqrt(2/pi)
    return 0.5 * y * (1.0 + jnp.tanh(c * (y + 0.044715 * y * y * y)))

  nt_dims = (((1,), (1,)), ((), ()))  # lhs @ rhs.T without materializing a transpose

  bias = bias_ref[...]                                           # (1, S) mask bias
  x = layer_norm(x_ref[...].astype(jnp.float32),
                 emb_g_ref[...], emb_b_ref[...])                 # (S, H)
  # embedding dropout (eval) = identity

  for l in range(num_layers):
    # ---- self-attention (all heads, statically unrolled, no lane slicing) ----
    attn = jnp.zeros_like(x)                                     # (S, H)
    for h in range(num_heads):
      q = jnp.dot(x, wq_ref[l, h], preferred_element_type=jnp.float32) + bq_ref[l, h]
      k = jnp.dot(x, wk_ref[l, h], preferred_element_type=jnp.float32) + bk_ref[l, h]
      v = jnp.dot(x, wv_ref[l, h], preferred_element_type=jnp.float32) + bv_ref[l, h]
      s = jax.lax.dot_general(q, k, nt_dims,
                              preferred_element_type=jnp.float32) * scale  # (S, S)
      s = s + bias
      m = jnp.max(s, axis=-1, keepdims=True)
      p = jnp.exp(s - m)
      p = p / jnp.sum(p, axis=-1, keepdims=True)
      ctx = jnp.dot(p, v, preferred_element_type=jnp.float32)    # (S, Dh)
      attn = attn + jnp.dot(ctx, wo_ref[l, h],
                            preferred_element_type=jnp.float32)  # += ctx_h @ Wo[h]
    attn = attn + bo_ref[l]
    # attention-output dropout (eval) = identity
    hid = layer_norm(attn + x, ln1_g_ref[l], ln1_b_ref[l])       # (S, H)

    # ---- feed-forward ----
    inter = gelu(jnp.dot(hid, wi_ref[l],
                         preferred_element_type=jnp.float32) + bi_ref[l])   # (S, I)
    out = jnp.dot(inter, wout_ref[l],
                  preferred_element_type=jnp.float32) + bout_ref[l]         # (S, H)
    # FFN-output dropout (eval) = identity
    x = layer_norm(out + hid, ln2_g_ref[l], ln2_b_ref[l])

  # ---- pooler (tanh dense on [CLS]) + classifier (lane-padded output) ----
  # Computing all S rows is free (M pads to 8 sublanes anyway); keep row 0.
  pooled = jnp.tanh(jnp.dot(x, pool_w_ref[...],
                            preferred_element_type=jnp.float32) + pool_b_ref[...])
  # classifier-input dropout (eval) = identity
  logits = jnp.dot(pooled, cls_w_ref[...],
                   preferred_element_type=jnp.float32) + cls_b_ref[...]     # (S, NPAD)
  logits_ref[...] = logits[0:1, :].astype(logits_ref.dtype)


# ------------------------------ forward wrapper ---------------------------------

def base_model_forward(params, ids, token_type, mask):
  """Equivalent of BaseModel.forward(ids, type, mask) -> logits (B, num_labels)."""
  B, S = ids.shape
  H = params["word_emb"].shape[1]
  L = params["num_layers"]
  nH = params["num_heads"]
  Dh = H // nH
  I = params["wi"].shape[-1]
  NPAD = params["cls_w"].shape[-1]

  # --- BERT embeddings: gathers in plain JAX (no clean Pallas gather at this scale) ---
  pos = jnp.arange(S)
  x_emb = (params["word_emb"][ids]
           + params["pos_emb"][pos][None, :, :]
           + params["type_emb"][token_type]).astype(jnp.float32)          # (B, S, H)

  # extended attention mask bias, as in BertModel: (1 - mask) * -10000
  bias = ((1.0 - mask.astype(jnp.float32)) * -10000.0).reshape(B, 1, S)

  def full(shape):  # whole-array block, same block every grid step -> VMEM-resident
    return pl.BlockSpec(shape, lambda b, _s=shape: (0,) * len(_s))

  kernel = functools.partial(_bert_fused_kernel, num_layers=L, num_heads=nH,
                             scale=1.0 / math.sqrt(Dh))

  logits_pad = pl.pallas_call(
      kernel,
      out_shape=jax.ShapeDtypeStruct((B, 1, NPAD), jnp.float32),
      grid=(B,),
      in_specs=[
          pl.BlockSpec((None, S, H), lambda b: (b, 0, 0)),      # x_emb
          pl.BlockSpec((None, 1, S), lambda b: (b, 0, 0)),      # mask bias
          full((1, H)), full((1, H)),                           # embedding LN
          full((L, nH, H, Dh)), full((L, nH, 1, Dh)),           # Wq, bq (per-head)
          full((L, nH, H, Dh)), full((L, nH, 1, Dh)),           # Wk, bk
          full((L, nH, H, Dh)), full((L, nH, 1, Dh)),           # Wv, bv
          full((L, nH, Dh, H)), full((L, 1, H)),                # Wo (per-head rows), bo
          full((L, 1, H)), full((L, 1, H)),                     # LN1
          full((L, H, I)), full((L, 1, I)),                     # Wi, bi
          full((L, I, H)), full((L, 1, H)),                     # Wout, bout
          full((L, 1, H)), full((L, 1, H)),                     # LN2
          full((H, H)), full((1, H)),                           # pooler
          full((H, NPAD)), full((1, NPAD)),                     # classifier (lane-padded)
      ],
      out_specs=pl.BlockSpec((None, 1, NPAD), lambda b: (b, 0, 0)),
      compiler_params=pltpu.CompilerParams(
          # toy per-step work: keep it on one TC rather than paying cross-TC overhead
          dimension_semantics=("arbitrary",)),
  )(x_emb, bias,
    params["emb_ln_g"], params["emb_ln_b"],
    params["wq"], params["bq"], params["wk"], params["bk"],
    params["wv"], params["bv"], params["wo"], params["bo"],
    params["ln1_g"], params["ln1_b"],
    params["wi"], params["bi"], params["wout"], params["bout"],
    params["ln2_g"], params["ln2_b"],
    params["pooler_w"], params["pooler_b"],
    params["cls_w"], params["cls_b"])

  return logits_pad.reshape(B, NPAD)[:, :params["num_labels"]]


# ------------------------------ param init ---------------------------------

def init_params(key, vocab=100, H=32, num_heads=4, num_layers=2,
                intermediate=64, max_pos=32, type_vocab=2, num_labels=2,
                lane_pad=128):
  std = 0.02
  keys = iter(jax.random.split(key, 256))
  Dh = H // num_heads

  def nrm(shape):
    return (std * jax.random.normal(next(keys), shape)).astype(jnp.float32)

  layers = []
  for _ in range(num_layers):
    layers.append(dict(
        q_w=nrm((H, H)), q_b=jnp.zeros((H,), jnp.float32),
        k_w=nrm((H, H)), k_b=jnp.zeros((H,), jnp.float32),
        v_w=nrm((H, H)), v_b=jnp.zeros((H,), jnp.float32),
        o_w=nrm((H, H)), o_b=jnp.zeros((H,), jnp.float32),
        ln1_g=jnp.ones((H,), jnp.float32), ln1_b=jnp.zeros((H,), jnp.float32),
        i_w=nrm((H, intermediate)), i_b=jnp.zeros((intermediate,), jnp.float32),
        out_w=nrm((intermediate, H)), out_b=jnp.zeros((H,), jnp.float32),
        ln2_g=jnp.ones((H,), jnp.float32), ln2_b=jnp.zeros((H,), jnp.float32),
    ))

  def split_out_heads(w):   # (H, H) -> (nH, H, Dh): per-head output-column blocks
    return w.reshape(H, num_heads, Dh).transpose(1, 0, 2)

  def split_in_heads(w):    # (H, H) -> (nH, Dh, H): per-head input-row blocks
    return w.reshape(num_heads, Dh, H)

  params = {
      "num_heads": num_heads,
      "num_layers": num_layers,
      "num_labels": num_labels,
      "word_emb": nrm((vocab, H)),
      "pos_emb": nrm((max_pos, H)),
      "type_emb": nrm((type_vocab, H)),
      "emb_ln_g": jnp.ones((1, H), jnp.float32),
      "emb_ln_b": jnp.zeros((1, H), jnp.float32),
      "wq": jnp.stack([split_out_heads(l["q_w"]) for l in layers]),            # (L,nH,H,Dh)
      "bq": jnp.stack([l["q_b"].reshape(num_heads, 1, Dh) for l in layers]),   # (L,nH,1,Dh)
      "wk": jnp.stack([split_out_heads(l["k_w"]) for l in layers]),
      "bk": jnp.stack([l["k_b"].reshape(num_heads, 1, Dh) for l in layers]),
      "wv": jnp.stack([split_out_heads(l["v_w"]) for l in layers]),
      "bv": jnp.stack([l["v_b"].reshape(num_heads, 1, Dh) for l in layers]),
      "wo": jnp.stack([split_in_heads(l["o_w"]) for l in layers]),             # (L,nH,Dh,H)
      "bo": jnp.stack([l["o_b"].reshape(1, H) for l in layers]),               # (L,1,H)
      "ln1_g": jnp.stack([l["ln1_g"].reshape(1, H) for l in layers]),
      "ln1_b": jnp.stack([l["ln1_b"].reshape(1, H) for l in layers]),
      "wi": jnp.stack([l["i_w"] for l in layers]),                             # (L,H,I)
      "bi": jnp.stack([l["i_b"].reshape(1, intermediate) for l in layers]),
      "wout": jnp.stack([l["out_w"] for l in layers]),                         # (L,I,H)
      "bout": jnp.stack([l["out_b"].reshape(1, H) for l in layers]),
      "ln2_g": jnp.stack([l["ln2_g"].reshape(1, H) for l in layers]),
      "ln2_b": jnp.stack([l["ln2_b"].reshape(1, H) for l in layers]),
      "pooler_w": nrm((H, H)),
      "pooler_b": jnp.zeros((1, H), jnp.float32),
  }

  # Lane-padded classifier: compute num_labels of `lane_pad` lanes, slice outside.
  cls_w = nrm((H, num_labels))
  params["cls_w"] = jnp.zeros((H, lane_pad), jnp.float32).at[:, :num_labels].set(cls_w)
  params["cls_b"] = jnp.zeros((1, lane_pad), jnp.float32)   # init_weight(): classifier bias zeroed
  return params


# --------------------------------- main -------------------------------------

if __name__ == "__main__":
  B, S, VOCAB = 2, 8, 100
  key = jax.random.PRNGKey(0)
  k_ids, k_type, k_params = jax.random.split(key, 3)

  ids = jax.random.randint(k_ids, (B, S), 0, VOCAB, dtype=jnp.int32)
  token_type = jax.random.randint(k_type, (B, S), 0, 2, dtype=jnp.int32)
  mask = jnp.ones((B, S), dtype=jnp.int32).at[1, 6:].set(0)   # pad tail of 2nd sequence

  params = init_params(k_params, vocab=VOCAB, H=32, num_heads=4,
                       num_layers=2, intermediate=64, max_pos=S,
                       type_vocab=2, num_labels=2)

  logits = base_model_forward(params, ids, token_type, mask)
  logits = jax.block_until_ready(logits)
  assert logits.shape == (B, 2) and logits.dtype == jnp.float32
  print("KERNEL_OK")
</pallas_src>

<mosaic_0001>
module attributes {stable_mosaic.version = 11 : i64} {
  func.func @_bert_fused_kernel(%arg0: i32, %arg1: memref<1x8x32xf32, #tpu.memory_space<vmem>>, %arg2: memref<1x1x8xf32, #tpu.memory_space<vmem>>, %arg3: memref<1x32xf32, #tpu.memory_space<vmem>>, %arg4: memref<1x32xf32, #tpu.memory_space<vmem>>, %arg5: memref<2x4x32x8xf32, #tpu.memory_space<vmem>>, %arg6: memref<2x4x1x8xf32, #tpu.memory_space<vmem>>, %arg7: memref<2x4x32x8xf32, #tpu.memory_space<vmem>>, %arg8: memref<2x4x1x8xf32, #tpu.memory_space<vmem>>, %arg9: memref<2x4x32x8xf32, #tpu.memory_space<vmem>>, %arg10: memref<2x4x1x8xf32, #tpu.memory_space<vmem>>, %arg11: memref<2x4x8x32xf32, #tpu.memory_space<vmem>>, %arg12: memref<2x1x32xf32, #tpu.memory_space<vmem>>, %arg13: memref<2x1x32xf32, #tpu.memory_space<vmem>>, %arg14: memref<2x1x32xf32, #tpu.memory_space<vmem>>, %arg15: memref<2x32x64xf32, #tpu.memory_space<vmem>>, %arg16: memref<2x1x64xf32, #tpu.memory_space<vmem>>, %arg17: memref<2x64x32xf32, #tpu.memory_space<vmem>>, %arg18: memref<2x1x32xf32, #tpu.memory_space<vmem>>, %arg19: memref<2x1x32xf32, #tpu.memory_space<vmem>>, %arg20: memref<2x1x32xf32, #tpu.memory_space<vmem>>, %arg21: memref<32x32xf32, #tpu.memory_space<vmem>>, %arg22: memref<1x32xf32, #tpu.memory_space<vmem>>, %arg23: memref<32x128xf32, #tpu.memory_space<vmem>>, %arg24: memref<1x128xf32, #tpu.memory_space<vmem>>, %arg25: memref<1x1x128xf32, #tpu.memory_space<vmem>>) attributes {dimension_semantics = [#tpu.dimension_semantics<arbitrary>], iteration_bounds = array<i64: 2>, scalar_prefetch = 0 : i64, scratch_operands = 0 : i64, tpu.core_type = #tpu.core_type<tc>, window_params = [{transform_indices = @transform_0, window_bounds = array<i64: 1, 8, 32>}, {transform_indices = @transform_1, window_bounds = array<i64: 1, 1, 8>}, {pipeline_mode = #tpu.pipeline_mode<synchronous>, transform_indices = @transform_2, window_bounds = array<i64: 1, 32>}, {pipeline_mode = #tpu.pipeline_mode<synchronous>, transform_indices = @transform_3, window_bounds = array<i64: 1, 32>}, {pipeline_mode = #tpu.pipeline_mode<synchronous>, transform_indices = @transform_4, window_bounds = array<i64: 2, 4, 32, 8>}, {pipeline_mode = #tpu.pipeline_mode<synchronous>, transform_indices = @transform_5, window_bounds = array<i64: 2, 4, 1, 8>}, {pipeline_mode = #tpu.pipeline_mode<synchronous>, transform_indices = @transform_6, window_bounds = array<i64: 2, 4, 32, 8>}, {pipeline_mode = #tpu.pipeline_mode<synchronous>, transform_indices = @transform_7, window_bounds = array<i64: 2, 4, 1, 8>}, {pipeline_mode = #tpu.pipeline_mode<synchronous>, transform_indices = @transform_8, window_bounds = array<i64: 2, 4, 32, 8>}, {pipeline_mode = #tpu.pipeline_mode<synchronous>, transform_indices = @transform_9, window_bounds = array<i64: 2, 4, 1, 8>}, {pipeline_mode = #tpu.pipeline_mode<synchronous>, transform_indices = @transform_10, window_bounds = array<i64: 2, 4, 8, 32>}, {pipeline_mode = #tpu.pipeline_mode<synchronous>, transform_indices = @transform_11, window_bounds = array<i64: 2, 1, 32>}, {pipeline_mode = #tpu.pipeline_mode<synchronous>, transform_indices = @transform_12, window_bounds = array<i64: 2, 1, 32>}, {pipeline_mode = #tpu.pipeline_mode<synchronous>, transform_indices = @transform_13, window_bounds = array<i64: 2, 1, 32>}, {pipeline_mode = #tpu.pipeline_mode<synchronous>, transform_indices = @transform_14, window_bounds = array<i64: 2, 32, 64>}, {pipeline_mode = #tpu.pipeline_mode<synchronous>, transform_indices = @transform_15, window_bounds = array<i64: 2, 1, 64>}, {pipeline_mode = #tpu.pipeline_mode<synchronous>, transform_indices = @transform_16, window_bounds = array<i64: 2, 64, 32>}, {pipeline_mode = #tpu.pipeline_mode<synchronous>, transform_indices = @transform_17, window_bounds = array<i64: 2, 1, 32>}, {pipeline_mode = #tpu.pipeline_mode<synchronous>, transform_indices = @transform_18, window_bounds = array<i64: 2, 1, 32>}, {pipeline_mode = #tpu.pipeline_mode<synchronous>, transform_indices = @transform_19, window_bounds = array<i64: 2, 1, 32>}, {pipeline_mode = #tpu.pipeline_mode<synchronous>, transform_indices = @transform_20, window_bounds = array<i64: 32, 32>}, {pipeline_mode = #tpu.pipeline_mode<synchronous>, transform_indices = @transform_21, window_bounds = array<i64: 1, 32>}, {pipeline_mode = #tpu.pipeline_mode<synchronous>, transform_indices = @transform_22, window_bounds = array<i64: 32, 128>}, {pipeline_mode = #tpu.pipeline_mode<synchronous>, transform_indices = @transform_23, window_bounds = array<i64: 1, 128>}, {transform_indices = @transform_24, window_bounds = array<i64: 1, 1, 128>}]} {
    %c0 = arith.constant 0 : index
    %c0_0 = arith.constant 0 : index
    %c0_1 = arith.constant 0 : index
    %0 = vector.load %arg2[%c0, %c0_0, %c0_1] : memref<1x1x8xf32, #tpu.memory_space<vmem>>, vector<1x1x8xf32>
    %1 = vector.shape_cast %0 : vector<1x1x8xf32> to vector<1x8xf32>
    %c0_2 = arith.constant 0 : index
    %c0_3 = arith.constant 0 : index
    %c0_4 = arith.constant 0 : index
    %2 = vector.load %arg1[%c0_2, %c0_3, %c0_4] : memref<1x8x32xf32, #tpu.memory_space<vmem>>, vector<1x8x32xf32>
    %3 = vector.shape_cast %2 : vector<1x8x32xf32> to vector<8x32xf32>
    %c0_5 = arith.constant 0 : index
    %c0_6 = arith.constant 0 : index
    %4 = vector.load %arg3[%c0_5, %c0_6] : memref<1x32xf32, #tpu.memory_space<vmem>>, vector<1x32xf32>
    %c0_7 = arith.constant 0 : index
    %c0_8 = arith.constant 0 : index
    %5 = vector.load %arg4[%c0_7, %c0_8] : memref<1x32xf32, #tpu.memory_space<vmem>>, vector<1x32xf32>
    %cst = arith.constant dense<0.000000e+00> : vector<8xf32>
    %6 = vector.multi_reduction <add>, %3, %cst [1] : vector<8x32xf32> to vector<8xf32>
    %7 = vector.shape_cast %6 : vector<8xf32> to vector<8x1xf32>
    %cst_9 = arith.constant 3.200000e+01 : f32
    %8 = vector.broadcast %cst_9 : f32 to vector<8x1xf32>
    %9 = arith.divf %7, %8 : vector<8x1xf32>
    %10 = vector.broadcast %9 : vector<8x1xf32> to vector<8x32xf32>
    %11 = arith.subf %3, %10 : vector<8x32xf32>
    %12 = arith.mulf %11, %11 : vector<8x32xf32>
    %cst_10 = arith.constant dense<0.000000e+00> : vector<8xf32>
    %13 = vector.multi_reduction <add>, %12, %cst_10 [1] : vector<8x32xf32> to vector<8xf32>
    %14 = vector.shape_cast %13 : vector<8xf32> to vector<8x1xf32>
    %cst_11 = arith.constant 3.200000e+01 : f32
    %15 = vector.broadcast %cst_11 : f32 to vector<8x1xf32>
    %16 = arith.divf %14, %15 : vector<8x1xf32>
    %17 = vector.broadcast %9 : vector<8x1xf32> to vector<8x32xf32>
    %18 = arith.subf %3, %17 : vector<8x32xf32>
    %cst_12 = arith.constant 9.99999996E-13 : f32
    %19 = vector.broadcast %cst_12 : f32 to vector<8x1xf32>
    %20 = arith.addf %16, %19 : vector<8x1xf32>
    %21 = math.rsqrt %20 : vector<8x1xf32>
    %22 = vector.broadcast %21 : vector<8x1xf32> to vector<8x32xf32>
    %23 = arith.mulf %18, %22 : vector<8x32xf32>
    %24 = vector.broadcast %4 : vector<1x32xf32> to vector<8x32xf32>
    %25 = arith.mulf %23, %24 : vector<8x32xf32>
    %26 = vector.broadcast %5 : vector<1x32xf32> to vector<8x32xf32>
    %27 = arith.addf %25, %26 : vector<8x32xf32>
    %cst_13 = arith.constant 0.000000e+00 : f32
    %28 = vector.broadcast %cst_13 : f32 to vector<8x32xf32>
    %c0_14 = arith.constant 0 : index
    %c0_15 = arith.constant 0 : index
    %c0_16 = arith.constant 0 : index
    %c0_17 = arith.constant 0 : index
    %29 = vector.load %arg5[%c0_14, %c0_15, %c0_16, %c0_17] : memref<2x4x32x8xf32, #tpu.memory_space<vmem>>, vector<1x1x32x8xf32>
    %30 = vector.shape_cast %29 : vector<1x1x32x8xf32> to vector<32x8xf32>
    %cst_18 = arith.constant dense<0.000000e+00> : vector<8x8xf32>
    %31 = tpu.matmul %27, %30, %cst_18 {dimension_numbers = #tpu.dot_dimension_numbers<[1], [0], [0], [1], [0, 0, 1, 1], [], []>} : vector<8x32xf32>, vector<32x8xf32>, vector<8x8xf32> -> vector<8x8xf32>
    %c0_19 = arith.constant 0 : index
    %c0_20 = arith.constant 0 : index
    %c0_21 = arith.constant 0 : index
    %c0_22 = arith.constant 0 : index
    %32 = vector.load %arg6[%c0_19, %c0_20, %c0_21, %c0_22] : memref<2x4x1x8xf32, #tpu.memory_space<vmem>>, vector<1x1x1x8xf32>
    %33 = vector.shape_cast %32 : vector<1x1x1x8xf32> to vector<1x8xf32>
    %34 = vector.broadcast %33 : vector<1x8xf32> to vector<8x8xf32>
    %35 = arith.addf %31, %34 : vector<8x8xf32>
    %c0_23 = arith.constant 0 : index
    %c0_24 = arith.constant 0 : index
    %c0_25 = arith.constant 0 : index
    %c0_26 = arith.constant 0 : index
    %36 = vector.load %arg7[%c0_23, %c0_24, %c0_25, %c0_26] : memref<2x4x32x8xf32, #tpu.memory_space<vmem>>, vector<1x1x32x8xf32>
    %37 = vector.shape_cast %36 : vector<1x1x32x8xf32> to vector<32x8xf32>
    %cst_27 = arith.constant dense<0.000000e+00> : vector<8x8xf32>
    %38 = tpu.matmul %27, %37, %cst_27 {dimension_numbers = #tpu.dot_dimension_numbers<[1], [0], [0], [1], [0, 0, 1, 1], [], []>} : vector<8x32xf32>, vector<32x8xf32>, vector<8x8xf32> -> vector<8x8xf32>
    %c0_28 = arith.constant 0 : index
    %c0_29 = arith.constant 0 : index
    %c0_30 = arith.constant 0 : index
    %c0_31 = arith.constant 0 : index
    %39 = vector.load %arg8[%c0_28, %c0_29, %c0_30, %c0_31] : memref<2x4x1x8xf32, #tpu.memory_space<vmem>>, vector<1x1x1x8xf32>
    %40 = vector.shape_cast %39 : vector<1x1x1x8xf32> to vector<1x8xf32>
    %41 = vector.broadcast %40 : vector<1x8xf32> to vector<8x8xf32>
    %42 = arith.addf %38, %41 : vector<8x8xf32>
    %c0_32 = arith.constant 0 : index
    %c0_33 = arith.constant 0 : index
    %c0_34 = arith.constant 0 : index
    %c0_35 = arith.constant 0 : index
    %43 = vector.load %arg9[%c0_32, %c0_33, %c0_34, %c0_35] : memref<2x4x32x8xf32, #tpu.memory_space<vmem>>, vector<1x1x32x8xf32>
    %44 = vector.shape_cast %43 : vector<1x1x32x8xf32> to vector<32x8xf32>
    %cst_36 = arith.constant dense<0.000000e+00> : vector<8x8xf32>
    %45 = tpu.matmul %27, %44, %cst_36 {dimension_numbers = #tpu.dot_dimension_numbers<[1], [0], [0], [1], [0, 0, 1, 1], [], []>} : vector<8x32xf32>, vector<32x8xf32>, vector<8x8xf32> -> vector<8x8xf32>
    %c0_37 = arith.constant 0 : index
    %c0_38 = arith.constant 0 : index
    %c0_39 = arith.constant 0 : index
    %c0_40 = arith.constant 0 : index
    %46 = vector.load %arg10[%c0_37, %c0_38, %c0_39, %c0_40] : memref<2x4x1x8xf32, #tpu.memory_space<vmem>>, vector<1x1x1x8xf32>
    %47 = vector.shape_cast %46 : vector<1x1x1x8xf32> to vector<1x8xf32>
    %48 = vector.broadcast %47 : vector<1x8xf32> to vector<8x8xf32>
    %49 = arith.addf %45, %48 : vector<8x8xf32>
    %cst_41 = arith.constant dense<0.000000e+00> : vector<8x8xf32>
    %50 = tpu.matmul %35, %42, %cst_41 {dimension_numbers = #tpu.dot_dimension_numbers<[1], [1], [0], [0], [0, 0, 1, 0], [], []>} : vector<8x8xf32>, vector<8x8xf32>, vector<8x8xf32> -> vector<8x8xf32>
    %cst_42 = arith.constant 0.353553385 : f32
    %51 = vector.broadcast %cst_42 : f32 to vector<8x8xf32>
    %52 = arith.mulf %50, %51 : vector<8x8xf32>
    %53 = vector.broadcast %1 : vector<1x8xf32> to vector<8x8xf32>
    %54 = arith.addf %52, %53 : vector<8x8xf32>
    %cst_43 = arith.constant dense<0xFF800000> : vector<8xf32>
    %55 = vector.multi_reduction <maximumf>, %54, %cst_43 [1] : vector<8x8xf32> to vector<8xf32>
    %56 = vector.shape_cast %55 : vector<8xf32> to vector<8x1xf32>
    %57 = vector.broadcast %56 : vector<8x1xf32> to vector<8x8xf32>
    %58 = arith.subf %54, %57 : vector<8x8xf32>
    %59 = math.exp %58 : vector<8x8xf32>
    %cst_44 = arith.constant dense<0.000000e+00> : vector<8xf32>
    %60 = vector.multi_reduction <add>, %59, %cst_44 [1] : vector<8x8xf32> to vector<8xf32>
    %61 = vector.shape_cast %60 : vector<8xf32> to vector<8x1xf32>
    %62 = vector.broadcast %61 : vector<8x1xf32> to vector<8x8xf32>
    %63 = arith.divf %59, %62 : vector<8x8xf32>
    %cst_45 = arith.constant dense<0.000000e+00> : vector<8x8xf32>
    %64 = tpu.matmul %63, %49, %cst_45 {dimension_numbers = #tpu.dot_dimension_numbers<[1], [0], [0], [1], [0, 0, 1, 1], [], []>} : vector<8x8xf32>, vector<8x8xf32>, vector<8x8xf32> -> vector<8x8xf32>
    %c0_46 = arith.constant 0 : index
    %c0_47 = arith.constant 0 : index
    %c0_48 = arith.constant 0 : index
    %c0_49 = arith.constant 0 : index
    %65 = vector.load %arg11[%c0_46, %c0_47, %c0_48, %c0_49] : memref<2x4x8x32xf32, #tpu.memory_space<vmem>>, vector<1x1x8x32xf32>
    %66 = vector.shape_cast %65 : vector<1x1x8x32xf32> to vector<8x32xf32>
    %cst_50 = arith.constant dense<0.000000e+00> : vector<8x32xf32>
    %67 = tpu.matmul %64, %66, %cst_50 {dimension_numbers = #tpu.dot_dimension_numbers<[1], [0], [0], [1], [0, 0, 1, 1], [], []>} : vector<8x8xf32>, vector<8x32xf32>, vector<8x32xf32> -> vector<8x32xf32>
    %68 = arith.addf %28, %67 : vector<8x32xf32>
    %c0_51 = arith.constant 0 : index
    %c1 = arith.constant 1 : index
    %c0_52 = arith.constant 0 : index
    %c0_53 = arith.constant 0 : index
    %69 = vector.load %arg5[%c0_51, %c1, %c0_52, %c0_53] : memref<2x4x32x8xf32, #tpu.memory_space<vmem>>, vector<1x1x32x8xf32>
    %70 = vector.shape_cast %69 : vector<1x1x32x8xf32> to vector<32x8xf32>
    %cst_54 = arith.constant dense<0.000000e+00> : vector<8x8xf32>
    %71 = tpu.matmul %27, %70, %cst_54 {dimension_numbers = #tpu.dot_dimension_numbers<[1], [0], [0], [1], [0, 0, 1, 1], [], []>} : vector<8x32xf32>, vector<32x8xf32>, vector<8x8xf32> -> vector<8x8xf32>
    %c0_55 = arith.constant 0 : index
    %c1_56 = arith.constant 1 : index
    %c0_57 = arith.constant 0 : index
    %c0_58 = arith.constant 0 : index
    %72 = vector.load %arg6[%c0_55, %c1_56, %c0_57, %c0_58] : memref<2x4x1x8xf32, #tpu.memory_space<vmem>>, vector<1x1x1x8xf32>
    %73 = vector.shape_cast %72 : vector<1x1x1x8xf32> to vector<1x8xf32>
    %74 = vector.broadcast %73 : vector<1x8xf32> to vector<8x8xf32>
    %75 = arith.addf %71, %74 : vector<8x8xf32>
    %c0_59 = arith.constant 0 : index
    %c1_60 = arith.constant 1 : index
    %c0_61 = arith.constant 0 : index
    %c0_62 = arith.constant 0 : index
    %76 = vector.load %arg7[%c0_59, %c1_60, %c0_61, %c0_62] : memref<2x4x32x8xf32, #tpu.memory_space<vmem>>, vector<1x1x32x8xf32>
    %77 = vector.shape_cast %76 : vector<1x1x32x8xf32> to vector<32x8xf32>
    %cst_63 = arith.constant dense<0.000000e+00> : vector<8x8xf32>
    %78 = tpu.matmul %27, %77, %cst_63 {dimension_numbers = #tpu.dot_dimension_numbers<[1], [0], [0], [1], [0, 0, 1, 1], [], []>} : vector<8x32xf32>, vector<32x8xf32>, vector<8x8xf32> -> vector<8x8xf32>
    %c0_64 = arith.constant 0 : index
    %c1_65 = arith.constant 1 : index
    %c0_66 = arith.constant 0 : index
    %c0_67 = arith.constant 0 : index
    %79 = vector.load %arg8[%c0_64, %c1_65, %c0_66, %c0_67] : memref<2x4x1x8xf32, #tpu.memory_space<vmem>>, vector<1x1x1x8xf32>
    %80 = vector.shape_cast %79 : vector<1x1x1x8xf32> to vector<1x8xf32>
    %81 = vector.broadcast %80 : vector<1x8xf32> to vector<8x8xf32>
    %82 = arith.addf %78, %81 : vector<8x8xf32>
    %c0_68 = arith.constant 0 : index
    %c1_69 = arith.constant 1 : index
    %c0_70 = arith.constant 0 : index
    %c0_71 = arith.constant 0 : index
    %83 = vector.load %arg9[%c0_68, %c1_69, %c0_70, %c0_71] : memref<2x4x32x8xf32, #tpu.memory_space<vmem>>, vector<1x1x32x8xf32>
    %84 = vector.shape_cast %83 : vector<1x1x32x8xf32> to vector<32x8xf32>
    %cst_72 = arith.constant dense<0.000000e+00> : vector<8x8xf32>
    %85 = tpu.matmul %27, %84, %cst_72 {dimension_numbers = #tpu.dot_dimension_numbers<[1], [0], [0], [1], [0, 0, 1, 1], [], []>} : vector<8x32xf32>, vector<32x8xf32>, vector<8x8xf32> -> vector<8x8xf32>
    %c0_73 = arith.constant 0 : index
    %c1_74 = arith.constant 1 : index
    %c0_75 = arith.constant 0 : index
    %c0_76 = arith.constant 0 : index
    %86 = vector.load %arg10[%c0_73, %c1_74, %c0_75, %c0_76] : memref<2x4x1x8xf32, #tpu.memory_space<vmem>>, vector<1x1x1x8xf32>
    %87 = vector.shape_cast %86 : vector<1x1x1x8xf32> to vector<1x8xf32>
    %88 = vector.broadcast %87 : vector<1x8xf32> to vector<8x8xf32>
    %89 = arith.addf %85, %88 : vector<8x8xf32>
    %cst_77 = arith.constant dense<0.000000e+00> : vector<8x8xf32>
    %90 = tpu.matmul %75, %82, %cst_77 {dimension_numbers = #tpu.dot_dimension_numbers<[1], [1], [0], [0], [0, 0, 1, 0], [], []>} : vector<8x8xf32>, vector<8x8xf32>, vector<8x8xf32> -> vector<8x8xf32>
    %cst_78 = arith.constant 0.353553385 : f32
    %91 = vector.broadcast %cst_78 : f32 to vector<8x8xf32>
    %92 = arith.mulf %90, %91 : vector<8x8xf32>
    %93 = vector.broadcast %1 : vector<1x8xf32> to vector<8x8xf32>
    %94 = arith.addf %92, %93 : vector<8x8xf32>
    %cst_79 = arith.constant dense<0xFF800000> : vector<8xf32>
    %95 = vector.multi_reduction <maximumf>, %94, %cst_79 [1] : vector<8x8xf32> to vector<8xf32>
    %96 = vector.shape_cast %95 : vector<8xf32> to vector<8x1xf32>
    %97 = vector.broadcast %96 : vector<8x1xf32> to vector<8x8xf32>
    %98 = arith.subf %94, %97 : vector<8x8xf32>
    %99 = math.exp %98 : vector<8x8xf32>
    %cst_80 = arith.constant dense<0.000000e+00> : vector<8xf32>
    %100 = vector.multi_reduction <add>, %99, %cst_80 [1] : vector<8x8xf32> to vector<8xf32>
    %101 = vector.shape_cast %100 : vector<8xf32> to vector<8x1xf32>
    %102 = vector.broadcast %101 : vector<8x1xf32> to vector<8x8xf32>
    %103 = arith.divf %99, %102 : vector<8x8xf32>
    %cst_81 = arith.constant dense<0.000000e+00> : vector<8x8xf32>
    %104 = tpu.matmul %103, %89, %cst_81 {dimension_numbers = #tpu.dot_dimension_numbers<[1], [0], [0], [1], [0, 0, 1, 1], [], []>} : vector<8x8xf32>, vector<8x8xf32>, vector<8x8xf32> -> vector<8x8xf32>
    %c0_82 = arith.constant 0 : index
    %c1_83 = arith.constant 1 : index
    %c0_84 = arith.constant 0 : index
    %c0_85 = arith.constant 0 : index
    %105 = vector.load %arg11[%c0_82, %c1_83, %c0_84, %c0_85] : memref<2x4x8x32xf32, #tpu.memory_space<vmem>>, vector<1x1x8x32xf32>
    %106 = vector.shape_cast %105 : vector<1x1x8x32xf32> to vector<8x32xf32>
    %cst_86 = arith.constant dense<0.000000e+00> : vector<8x32xf32>
    %107 = tpu.matmul %104, %106, %cst_86 {dimension_numbers = #tpu.dot_dimension_numbers<[1], [0], [0], [1], [0, 0, 1, 1], [], []>} : vector<8x8xf32>, vector<8x32xf32>, vector<8x32xf32> -> vector<8x32xf32>
    %108 = arith.addf %68, %107 : vector<8x32xf32>
    %c0_87 = arith.constant 0 : index
    %c2 = arith.constant 2 : index
    %c0_88 = arith.constant 0 : index
    %c0_89 = arith.constant 0 : index
    %109 = vector.load %arg5[%c0_87, %c2, %c0_88, %c0_89] : memref<2x4x32x8xf32, #tpu.memory_space<vmem>>, vector<1x1x32x8xf32>
    %110 = vector.shape_cast %109 : vector<1x1x32x8xf32> to vector<32x8xf32>
    %cst_90 = arith.constant dense<0.000000e+00> : vector<8x8xf32>
    %111 = tpu.matmul %27, %110, %cst_90 {dimension_numbers = #tpu.dot_dimension_numbers<[1], [0], [0], [1], [0, 0, 1, 1], [], []>} : vector<8x32xf32>, vector<32x8xf32>, vector<8x8xf32> -> vector<8x8xf32>
    %c0_91 = arith.constant 0 : index
    %c2_92 = arith.constant 2 : index
    %c0_93 = arith.constant 0 : index
    %c0_94 = arith.constant 0 : index
    %112 = vector.load %arg6[%c0_91, %c2_92, %c0_93, %c0_94] : memref<2x4x1x8xf32, #tpu.memory_space<vmem>>, vector<1x1x1x8xf32>
    %113 = vector.shape_cast %112 : vector<1x1x1x8xf32> to vector<1x8xf32>
    %114 = vector.broadcast %113 : vector<1x8xf32> to vector<8x8xf32>
    %115 = arith.addf %111, %114 : vector<8x8xf32>
    %c0_95 = arith.constant 0 : index
    %c2_96 = arith.constant 2 : index
    %c0_97 = arith.constant 0 : index
    %c0_98 = arith.constant 0 : index
    %116 = vector.load %arg7[%c0_95, %c2_96, %c0_97, %c0_98] : memref<2x4x32x8xf32, #tpu.memory_space<vmem>>, vector<1x1x32x8xf32>
    %117 = vector.shape_cast %116 : vector<1x1x32x8xf32> to vector<32x8xf32>
    %cst_99 = arith.constant dense<0.000000e+00> : vector<8x8xf32>
    %118 = tpu.matmul %27, %117, %cst_99 {dimension_numbers = #tpu.dot_dimension_numbers<[1], [0], [0], [1], [0, 0, 1, 1], [], []>} : vector<8x32xf32>, vector<32x8xf32>, vector<8x8xf32> -> vector<8x8xf32>
    %c0_100 = arith.constant 0 : index
    %c2_101 = arith.constant 2 : index
    %c0_102 = arith.constant 0 : index
    %c0_103 = arith.constant 0 : index
    %119 = vector.load %arg8[%c0_100, %c2_101, %c0_102, %c0_103] : memref<2x4x1x8xf32, #tpu.memory_space<vmem>>, vector<1x1x1x8xf32>
    %120 = vector.shape_cast %119 : vector<1x1x1x8xf32> to vector<1x8xf32>
    %121 = vector.broadcast %120 : vector<1x8xf32> to vector<8x8xf32>
    %122 = arith.addf %118, %121 : vector<8x8xf32>
    %c0_104 = arith.constant 0 : index
    %c2_105 = arith.constant 2 : index
    %c0_106 = arith.constant 0 : index
    %c0_107 = arith.constant 0 : index
    %123 = vector.load %arg9[%c0_104, %c2_105, %c0_106, %c0_107] : memref<2x4x32x8xf32, #tpu.memory_space<vmem>>, vector<1x1x32x8xf32>
    %124 = vector.shape_cast %123 : vector<1x1x32x8xf32> to vector<32x8xf32>
    %cst_108 = arith.constant dense<0.000000e+00> : vector<8x8xf32>
    %125 = tpu.matmul %27, %124, %cst_108 {dimension_numbers = #tpu.dot_dimension_numbers<[1], [0], [0], [1], [0, 0, 1, 1], [], []>} : vector<8x32xf32>, vector<32x8xf32>, vector<8x8xf32> -> vector<8x8xf32>
    %c0_109 = arith.constant 0 : index
    %c2_110 = arith.constant 2 : index
    %c0_111 = arith.constant 0 : index
    %c0_112 = arith.constant 0 : index
    %126 = vector.load %arg10[%c0_109, %c2_110, %c0_111, %c0_112] : memref<2x4x1x8xf32, #tpu.memory_space<vmem>>, vector<1x1x1x8xf32>
    %127 = vector.shape_cast %126 : vector<1x1x1x8xf32> to vector<1x8xf32>
    %128 = vector.broadcast %127 : vector<1x8xf32> to vector<8x8xf32>
    %129 = arith.addf %125, %128 : vector<8x8xf32>
    %cst_113 = arith.constant dense<0.000000e+00> : vector<8x8xf32>
    %130 = tpu.matmul %115, %122, %cst_113 {dimension_numbers = #tpu.dot_dimension_numbers<[1], [1], [0], [0], [0, 0, 1, 0], [], []>} : vector<8x8xf32>, vector<8x8xf32>, vector<8x8xf32> -> vector<8x8xf32>
    %cst_114 = arith.constant 0.353553385 : f32
    %131 = vector.broadcast %cst_114 : f32 to vector<8x8xf32>
    %132 = arith.mulf %130, %131 : vector<8x8xf32>
    %133 = vector.broadcast %1 : vector<1x8xf32> to vector<8x8xf32>
    %134 = arith.addf %132, %133 : vector<8x8xf32>
    %cst_115 = arith.constant dense<0xFF800000> : vector<8xf32>
    %135 = vector.multi_reduction <maximumf>, %134, %cst_115 [1] : vector<8x8xf32> to vector<8xf32>
    %136 = vector.shape_cast %135 : vector<8xf32> to vector<8x1xf32>
    %137 = vector.broadcast %136 : vector<8x1xf32> to vector<8x8xf32>
    %138 = arith.subf %134, %137 : vector<8x8xf32>
    %139 = math.exp %138 : vector<8x8xf32>
    %cst_116 = arith.constant dense<0.000000e+00> : vector<8xf32>
    %140 = vector.multi_reduction <add>, %139, %cst_116 [1] : vector<8x8xf32> to vector<8xf32>
    %141 = vector.shape_cast %140 : vector<8xf32> to vector<8x1xf32>
    %142 = vector.broadcast %141 : vector<8x1xf32> to vector<8x8xf32>
    %143 = arith.divf %139, %142 : vector<8x8xf32>
    %cst_117 = arith.constant dense<0.000000e+00> : vector<8x8xf32>
    %144 = tpu.matmul %143, %129, %cst_117 {dimension_numbers = #tpu.dot_dimension_numbers<[1], [0], [0], [1], [0, 0, 1, 1], [], []>} : vector<8x8xf32>, vector<8x8xf32>, vector<8x8xf32> -> vector<8x8xf32>
    %c0_118 = arith.constant 0 : index
    %c2_119 = arith.constant 2 : index
    %c0_120 = arith.constant 0 : index
    %c0_121 = arith.constant 0 : index
    %145 = vector.load %arg11[%c0_118, %c2_119, %c0_120, %c0_121] : memref<2x4x8x32xf32, #tpu.memory_space<vmem>>, vector<1x1x8x32xf32>
    %146 = vector.shape_cast %145 : vector<1x1x8x32xf32> to vector<8x32xf32>
    %cst_122 = arith.constant dense<0.000000e+00> : vector<8x32xf32>
    %147 = tpu.matmul %144, %146, %cst_122 {dimension_numbers = #tpu.dot_dimension_numbers<[1], [0], [0], [1], [0, 0, 1, 1], [], []>} : vector<8x8xf32>, vector<8x32xf32>, vector<8x32xf32> -> vector<8x32xf32>
    %148 = arith.addf %108, %147 : vector<8x32xf32>
    %c0_123 = arith.constant 0 : index
    %c3 = arith.constant 3 : index
    %c0_124 = arith.constant 0 : index
    %c0_125 = arith.constant 0 : index
    %149 = vector.load %arg5[%c0_123, %c3, %c0_124, %c0_125] : memref<2x4x32x8xf32, #tpu.memory_space<vmem>>, vector<1x1x32x8xf32>
    %150 = vector.shape_cast %149 : vector<1x1x32x8xf32> to vector<32x8xf32>
    %cst_126 = arith.constant dense<0.000000e+00> : vector<8x8xf32>
    %151 = tpu.matmul %27, %150, %cst_126 {dimension_numbers = #tpu.dot_dimension_numbers<[1], [0], [0], [1], [0, 0, 1, 1], [], []>} : vector<8x32xf32>, vector<32x8xf32>, vector<8x8xf32> -> vector<8x8xf32>
    %c0_127 = arith.constant 0 : index
    %c3_128 = arith.constant 3 : index
    %c0_129 = arith.constant 0 : index
    %c0_130 = arith.constant 0 : index
    %152 = vector.load %arg6[%c0_127, %c3_128, %c0_129, %c0_130] : memref<2x4x1x8xf32, #tpu.memory_space<vmem>>, vector<1x1x1x8xf32>
    %153 = vector.shape_cast %152 : vector<1x1x1x8xf32> to vector<1x8xf32>
    %154 = vector.broadcast %153 : vector<1x8xf32> to vector<8x8xf32>
    %155 = arith.addf %151, %154 : vector<8x8xf32>
    %c0_131 = arith.constant 0 : index
    %c3_132 = arith.constant 3 : index
    %c0_133 = arith.constant 0 : index
    %c0_134 = arith.constant 0 : index
    %156 = vector.load %arg7[%c0_131, %c3_132, %c0_133, %c0_134] : memref<2x4x32x8xf32, #tpu.memory_space<vmem>>, vector<1x1x32x8xf32>
    %157 = vector.shape_cast %156 : vector<1x1x32x8xf32> to vector<32x8xf32>
    %cst_135 = arith.constant dense<0.000000e+00> : vector<8x8xf32>
    %158 = tpu.matmul %27, %157, %cst_135 {dimension_numbers = #tpu.dot_dimension_numbers<[1], [0], [0], [1], [0, 0, 1, 1], [], []>} : vector<8x32xf32>, vector<32x8xf32>, vector<8x8xf32> -> vector<8x8xf32>
    %c0_136 = arith.constant 0 : index
    %c3_137 = arith.constant 3 : index
    %c0_138 = arith.constant 0 : index
    %c0_139 = arith.constant 0 : index
    %159 = vector.load %arg8[%c0_136, %c3_137, %c0_138, %c0_139] : memref<2x4x1x8xf32, #tpu.memory_space<vmem>>, vector<1x1x1x8xf32>
    %160 = vector.shape_cast %159 : vector<1x1x1x8xf32> to vector<1x8xf32>
    %161 = vector.broadcast %160 : vector<1x8xf32> to vector<8x8xf32>
    %162 = arith.addf %158, %161 : vector<8x8xf32>
    %c0_140 = arith.constant 0 : index
    %c3_141 = arith.constant 3 : index
    %c0_142 = arith.constant 0 : index
    %c0_143 = arith.constant 0 : index
    %163 = vector.load %arg9[%c0_140, %c3_141, %c0_142, %c0_143] : memref<2x4x32x8xf32, #tpu.memory_space<vmem>>, vector<1x1x32x8xf32>
    %164 = vector.shape_cast %163 : vector<1x1x32x8xf32> to vector<32x8xf32>
    %cst_144 = arith.constant dense<0.000000e+00> : vector<8x8xf32>
    %165 = tpu.matmul %27, %164, %cst_144 {dimension_numbers = #tpu.dot_dimension_numbers<[1], [0], [0], [1], [0, 0, 1, 1], [], []>} : vector<8x32xf32>, vector<32x8xf32>, vector<8x8xf32> -> vector<8x8xf32>
    %c0_145 = arith.constant 0 : index
    %c3_146 = arith.constant 3 : index
    %c0_147 = arith.constant 0 : index
    %c0_148 = arith.constant 0 : index
    %166 = vector.load %arg10[%c0_145, %c3_146, %c0_147, %c0_148] : memref<2x4x1x8xf32, #tpu.memory_space<vmem>>, vector<1x1x1x8xf32>
    %167 = vector.shape_cast %166 : vector<1x1x1x8xf32> to vector<1x8xf32>
    %168 = vector.broadcast %167 : vector<1x8xf32> to vector<8x8xf32>
    %169 = arith.addf %165, %168 : vector<8x8xf32>
    %cst_149 = arith.constant dense<0.000000e+00> : vector<8x8xf32>
    %170 = tpu.matmul %155, %162, %cst_149 {dimension_numbers = #tpu.dot_dimension_numbers<[1], [1], [0], [0], [0, 0, 1, 0], [], []>} : vector<8x8xf32>, vector<8x8xf32>, vector<8x8xf32> -> vector<8x8xf32>
    %cst_150 = arith.constant 0.353553385 : f32
    %171 = vector.broadcast %cst_150 : f32 to vector<8x8xf32>
    %172 = arith.mulf %170, %171 : vector<8x8xf32>
    %173 = vector.broadcast %1 : vector<1x8xf32> to vector<8x8xf32>
    %174 = arith.addf %172, %173 : vector<8x8xf32>
    %cst_151 = arith.constant dense<0xFF800000> : vector<8xf32>
    %175 = vector.multi_reduction <maximumf>, %174, %cst_151 [1] : vector<8x8xf32> to vector<8xf32>
    %176 = vector.shape_cast %175 : vector<8xf32> to vector<8x1xf32>
    %177 = vector.broadcast %176 : vector<8x1xf32> to vector<8x8xf32>
    %178 = arith.subf %174, %177 : vector<8x8xf32>
    %179 = math.exp %178 : vector<8x8xf32>
    %cst_152 = arith.constant dense<0.000000e+00> : vector<8xf32>
    %180 = vector.multi_reduction <add>, %179, %cst_152 [1] : vector<8x8xf32> to vector<8xf32>
    %181 = vector.shape_cast %180 : vector<8xf32> to vector<8x1xf32>
    %182 = vector.broadcast %181 : vector<8x1xf32> to vector<8x8xf32>
    %183 = arith.divf %179, %182 : vector<8x8xf32>
    %cst_153 = arith.constant dense<0.000000e+00> : vector<8x8xf32>
    %184 = tpu.matmul %183, %169, %cst_153 {dimension_numbers = #tpu.dot_dimension_numbers<[1], [0], [0], [1], [0, 0, 1, 1], [], []>} : vector<8x8xf32>, vector<8x8xf32>, vector<8x8xf32> -> vector<8x8xf32>
    %c0_154 = arith.constant 0 : index
    %c3_155 = arith.constant 3 : index
    %c0_156 = arith.constant 0 : index
    %c0_157 = arith.constant 0 : index
    %185 = vector.load %arg11[%c0_154, %c3_155, %c0_156, %c0_157] : memref<2x4x8x32xf32, #tpu.memory_space<vmem>>, vector<1x1x8x32xf32>
    %186 = vector.shape_cast %185 : vector<1x1x8x32xf32> to vector<8x32xf32>
    %cst_158 = arith.constant dense<0.000000e+00> : vector<8x32xf32>
    %187 = tpu.matmul %184, %186, %cst_158 {dimension_numbers = #tpu.dot_dimension_numbers<[1], [0], [0], [1], [0, 0, 1, 1], [], []>} : vector<8x8xf32>, vector<8x32xf32>, vector<8x32xf32> -> vector<8x32xf32>
    %188 = arith.addf %148, %187 : vector<8x32xf32>
    %c0_159 = arith.constant 0 : index
    %c0_160 = arith.constant 0 : index
    %c0_161 = arith.constant 0 : index
    %189 = vector.load %arg12[%c0_159, %c0_160, %c0_161] : memref<2x1x32xf32, #tpu.memory_space<vmem>>, vector<1x1x32xf32>
    %190 = vector.shape_cast %189 : vector<1x1x32xf32> to vector<1x32xf32>
    %191 = vector.broadcast %190 : vector<1x32xf32> to vector<8x32xf32>
    %192 = arith.addf %188, %191 : vector<8x32xf32>
    %193 = arith.addf %192, %27 : vector<8x32xf32>
    %c0_162 = arith.constant 0 : index
    %c0_163 = arith.constant 0 : index
    %c0_164 = arith.constant 0 : index
    %194 = vector.load %arg13[%c0_162, %c0_163, %c0_164] : memref<2x1x32xf32, #tpu.memory_space<vmem>>, vector<1x1x32xf32>
    %195 = vector.shape_cast %194 : vector<1x1x32xf32> to vector<1x32xf32>
    %c0_165 = arith.constant 0 : index
    %c0_166 = arith.constant 0 : index
    %c0_167 = arith.constant 0 : index
    %196 = vector.load %arg14[%c0_165, %c0_166, %c0_167] : memref<2x1x32xf32, #tpu.memory_space<vmem>>, vector<1x1x32xf32>
    %197 = vector.shape_cast %196 : vector<1x1x32xf32> to vector<1x32xf32>
    %cst_168 = arith.constant dense<0.000000e+00> : vector<8xf32>
    %198 = vector.multi_reduction <add>, %193, %cst_168 [1] : vector<8x32xf32> to vector<8xf32>
    %199 = vector.shape_cast %198 : vector<8xf32> to vector<8x1xf32>
    %cst_169 = arith.constant 3.200000e+01 : f32
    %200 = vector.broadcast %cst_169 : f32 to vector<8x1xf32>
    %201 = arith.divf %199, %200 : vector<8x1xf32>
    %202 = vector.broadcast %201 : vector<8x1xf32> to vector<8x32xf32>
    %203 = arith.subf %193, %202 : vector<8x32xf32>
    %204 = arith.mulf %203, %203 : vector<8x32xf32>
    %cst_170 = arith.constant dense<0.000000e+00> : vector<8xf32>
    %205 = vector.multi_reduction <add>, %204, %cst_170 [1] : vector<8x32xf32> to vector<8xf32>
    %206 = vector.shape_cast %205 : vector<8xf32> to vector<8x1xf32>
    %cst_171 = arith.constant 3.200000e+01 : f32
    %207 = vector.broadcast %cst_171 : f32 to vector<8x1xf32>
    %208 = arith.divf %206, %207 : vector<8x1xf32>
    %209 = vector.broadcast %201 : vector<8x1xf32> to vector<8x32xf32>
    %210 = arith.subf %193, %209 : vector<8x32xf32>
    %cst_172 = arith.constant 9.99999996E-13 : f32
    %211 = vector.broadcast %cst_172 : f32 to vector<8x1xf32>
    %212 = arith.addf %208, %211 : vector<8x1xf32>
    %213 = math.rsqrt %212 : vector<8x1xf32>
    %214 = vector.broadcast %213 : vector<8x1xf32> to vector<8x32xf32>
    %215 = arith.mulf %210, %214 : vector<8x32xf32>
    %216 = vector.broadcast %195 : vector<1x32xf32> to vector<8x32xf32>
    %217 = arith.mulf %215, %216 : vector<8x32xf32>
    %218 = vector.broadcast %197 : vector<1x32xf32> to vector<8x32xf32>
    %219 = arith.addf %217, %218 : vector<8x32xf32>
    %c0_173 = arith.constant 0 : index
    %c0_174 = arith.constant 0 : index
    %c0_175 = arith.constant 0 : index
    %220 = vector.load %arg15[%c0_173, %c0_174, %c0_175] : memref<2x32x64xf32, #tpu.memory_space<vmem>>, vector<1x32x64xf32>
    %221 = vector.shape_cast %220 : vector<1x32x64xf32> to vector<32x64xf32>
    %cst_176 = arith.constant dense<0.000000e+00> : vector<8x64xf32>
    %222 = tpu.matmul %219, %221, %cst_176 {dimension_numbers = #tpu.dot_dimension_numbers<[1], [0], [0], [1], [0, 0, 1, 1], [], []>} : vector<8x32xf32>, vector<32x64xf32>, vector<8x64xf32> -> vector<8x64xf32>
    %c0_177 = arith.constant 0 : index
    %c0_178 = arith.constant 0 : index
    %c0_179 = arith.constant 0 : index
    %223 = vector.load %arg16[%c0_177, %c0_178, %c0_179] : memref<2x1x64xf32, #tpu.memory_space<vmem>>, vector<1x1x64xf32>
    %224 = vector.shape_cast %223 : vector<1x1x64xf32> to vector<1x64xf32>
    %225 = vector.broadcast %224 : vector<1x64xf32> to vector<8x64xf32>
    %226 = arith.addf %222, %225 : vector<8x64xf32>
    %cst_180 = arith.constant 5.000000e-01 : f32
    %227 = vector.broadcast %cst_180 : f32 to vector<8x64xf32>
    %228 = arith.mulf %227, %226 : vector<8x64xf32>
    %cst_181 = arith.constant 4.471500e-02 : f32
    %229 = vector.broadcast %cst_181 : f32 to vector<8x64xf32>
    %230 = arith.mulf %229, %226 : vector<8x64xf32>
    %231 = arith.mulf %230, %226 : vector<8x64xf32>
    %232 = arith.mulf %231, %226 : vector<8x64xf32>
    %233 = arith.addf %226, %232 : vector<8x64xf32>
    %cst_182 = arith.constant 0.797884583 : f32
    %234 = vector.broadcast %cst_182 : f32 to vector<8x64xf32>
    %235 = arith.mulf %234, %233 : vector<8x64xf32>
    %236 = math.tanh %235 : vector<8x64xf32>
    %cst_183 = arith.constant 1.000000e+00 : f32
    %237 = vector.broadcast %cst_183 : f32 to vector<8x64xf32>
    %238 = arith.addf %237, %236 : vector<8x64xf32>
    %239 = arith.mulf %228, %238 : vector<8x64xf32>
    %c0_184 = arith.constant 0 : index
    %c0_185 = arith.constant 0 : index
    %c0_186 = arith.constant 0 : index
    %240 = vector.load %arg17[%c0_184, %c0_185, %c0_186] : memref<2x64x32xf32, #tpu.memory_space<vmem>>, vector<1x64x32xf32>
    %241 = vector.shape_cast %240 : vector<1x64x32xf32> to vector<64x32xf32>
    %cst_187 = arith.constant dense<0.000000e+00> : vector<8x32xf32>
    %242 = tpu.matmul %239, %241, %cst_187 {dimension_numbers = #tpu.dot_dimension_numbers<[1], [0], [0], [1], [0, 0, 1, 1], [], []>} : vector<8x64xf32>, vector<64x32xf32>, vector<8x32xf32> -> vector<8x32xf32>
    %c0_188 = arith.constant 0 : index
    %c0_189 = arith.constant 0 : index
    %c0_190 = arith.constant 0 : index
    %243 = vector.load %arg18[%c0_188, %c0_189, %c0_190] : memref<2x1x32xf32, #tpu.memory_space<vmem>>, vector<1x1x32xf32>
    %244 = vector.shape_cast %243 : vector<1x1x32xf32> to vector<1x32xf32>
    %245 = vector.broadcast %244 : vector<1x32xf32> to vector<8x32xf32>
    %246 = arith.addf %242, %245 : vector<8x32xf32>
    %247 = arith.addf %246, %219 : vector<8x32xf32>
    %c0_191 = arith.constant 0 : index
    %c0_192 = arith.constant 0 : index
    %c0_193 = arith.constant 0 : index
    %248 = vector.load %arg19[%c0_191, %c0_192, %c0_193] : memref<2x1x32xf32, #tpu.memory_space<vmem>>, vector<1x1x32xf32>
    %249 = vector.shape_cast %248 : vector<1x1x32xf32> to vector<1x32xf32>
    %c0_194 = arith.constant 0 : index
    %c0_195 = arith.constant 0 : index
    %c0_196 = arith.constant 0 : index
    %250 = vector.load %arg20[%c0_194, %c0_195, %c0_196] : memref<2x1x32xf32, #tpu.memory_space<vmem>>, vector<1x1x32xf32>
    %251 = vector.shape_cast %250 : vector<1x1x32xf32> to vector<1x32xf32>
    %cst_197 = arith.constant dense<0.000000e+00> : vector<8xf32>
    %252 = vector.multi_reduction <add>, %247, %cst_197 [1] : vector<8x32xf32> to vector<8xf32>
    %253 = vector.shape_cast %252 : vector<8xf32> to vector<8x1xf32>
    %cst_198 = arith.constant 3.200000e+01 : f32
    %254 = vector.broadcast %cst_198 : f32 to vector<8x1xf32>
    %255 = arith.divf %253, %254 : vector<8x1xf32>
    %256 = vector.broadcast %255 : vector<8x1xf32> to vector<8x32xf32>
    %257 = arith.subf %247, %256 : vector<8x32xf32>
    %258 = arith.mulf %257, %257 : vector<8x32xf32>
    %cst_199 = arith.constant dense<0.000000e+00> : vector<8xf32>
    %259 = vector.multi_reduction <add>, %258, %cst_199 [1] : vector<8x32xf32> to vector<8xf32>
    %260 = vector.shape_cast %259 : vector<8xf32> to vector<8x1xf32>
    %cst_200 = arith.constant 3.200000e+01 : f32
    %261 = vector.broadcast %cst_200 : f32 to vector<8x1xf32>
    %262 = arith.divf %260, %261 : vector<8x1xf32>
    %263 = vector.broadcast %255 : vector<8x1xf32> to vector<8x32xf32>
    %264 = arith.subf %247, %263 : vector<8x32xf32>
    %cst_201 = arith.constant 9.99999996E-13 : f32
    %265 = vector.broadcast %cst_201 : f32 to vector<8x1xf32>
    %266 = arith.addf %262, %265 : vector<8x1xf32>
    %267 = math.rsqrt %266 : vector<8x1xf32>
    %268 = vector.broadcast %267 : vector<8x1xf32> to vector<8x32xf32>
    %269 = arith.mulf %264, %268 : vector<8x32xf32>
    %270 = vector.broadcast %249 : vector<1x32xf32> to vector<8x32xf32>
    %271 = arith.mulf %269, %270 : vector<8x32xf32>
    %272 = vector.broadcast %251 : vector<1x32xf32> to vector<8x32xf32>
    %273 = arith.addf %271, %272 : vector<8x32xf32>
    %cst_202 = arith.constant 0.000000e+00 : f32
    %274 = vector.broadcast %cst_202 : f32 to vector<8x32xf32>
    %c1_203 = arith.constant 1 : index
    %c0_204 = arith.constant 0 : index
    %c0_205 = arith.constant 0 : index
    %c0_206 = arith.constant 0 : index
    %275 = vector.load %arg5[%c1_203, %c0_204, %c0_205, %c0_206] : memref<2x4x32x8xf32, #tpu.memory_space<vmem>>, vector<1x1x32x8xf32>
    %276 = vector.shape_cast %275 : vector<1x1x32x8xf32> to vector<32x8xf32>
    %cst_207 = arith.constant dense<0.000000e+00> : vector<8x8xf32>
    %277 = tpu.matmul %273, %276, %cst_207 {dimension_numbers = #tpu.dot_dimension_numbers<[1], [0], [0], [1], [0, 0, 1, 1], [], []>} : vector<8x32xf32>, vector<32x8xf32>, vector<8x8xf32> -> vector<8x8xf32>
    %c1_208 = arith.constant 1 : index
    %c0_209 = arith.constant 0 : index
    %c0_210 = arith.constant 0 : index
    %c0_211 = arith.constant 0 : index
    %278 = vector.load %arg6[%c1_208, %c0_209, %c0_210, %c0_211] : memref<2x4x1x8xf32, #tpu.memory_space<vmem>>, vector<1x1x1x8xf32>
    %279 = vector.shape_cast %278 : vector<1x1x1x8xf32> to vector<1x8xf32>
    %280 = vector.broadcast %279 : vector<1x8xf32> to vector<8x8xf32>
    %281 = arith.addf %277, %280 : vector<8x8xf32>
    %c1_212 = arith.constant 1 : index
    %c0_213 = arith.constant 0 : index
    %c0_214 = arith.constant 0 : index
    %c0_215 = arith.constant 0 : index
    %282 = vector.load %arg7[%c1_212, %c0_213, %c0_214, %c0_215] : memref<2x4x32x8xf32, #tpu.memory_space<vmem>>, vector<1x1x32x8xf32>
    %283 = vector.shape_cast %282 : vector<1x1x32x8xf32> to vector<32x8xf32>
    %cst_216 = arith.constant dense<0.000000e+00> : vector<8x8xf32>
    %284 = tpu.matmul %273, %283, %cst_216 {dimension_numbers = #tpu.dot_dimension_numbers<[1], [0], [0], [1], [0, 0, 1, 1], [], []>} : vector<8x32xf32>, vector<32x8xf32>, vector<8x8xf32> -> vector<8x8xf32>
    %c1_217 = arith.constant 1 : index
    %c0_218 = arith.constant 0 : index
    %c0_219 = arith.constant 0 : index
    %c0_220 = arith.constant 0 : index
    %285 = vector.load %arg8[%c1_217, %c0_218, %c0_219, %c0_220] : memref<2x4x1x8xf32, #tpu.memory_space<vmem>>, vector<1x1x1x8xf32>
    %286 = vector.shape_cast %285 : vector<1x1x1x8xf32> to vector<1x8xf32>
    %287 = vector.broadcast %286 : vector<1x8xf32> to vector<8x8xf32>
    %288 = arith.addf %284, %287 : vector<8x8xf32>
    %c1_221 = arith.constant 1 : index
    %c0_222 = arith.constant 0 : index
    %c0_223 = arith.constant 0 : index
    %c0_224 = arith.constant 0 : index
    %289 = vector.load %arg9[%c1_221, %c0_222, %c0_223, %c0_224] : memref<2x4x32x8xf32, #tpu.memory_space<vmem>>, vector<1x1x32x8xf32>
    %290 = vector.shape_cast %289 : vector<1x1x32x8xf32> to vector<32x8xf32>
    %cst_225 = arith.constant dense<0.000000e+00> : vector<8x8xf32>
    %291 = tpu.matmul %273, %290, %cst_225 {dimension_numbers = #tpu.dot_dimension_numbers<[1], [0], [0], [1], [0, 0, 1, 1], [], []>} : vector<8x32xf32>, vector<32x8xf32>, vector<8x8xf32> -> vector<8x8xf32>
    %c1_226 = arith.constant 1 : index
    %c0_227 = arith.constant 0 : index
    %c0_228 = arith.constant 0 : index
    %c0_229 = arith.constant 0 : index
    %292 = vector.load %arg10[%c1_226, %c0_227, %c0_228, %c0_229] : memref<2x4x1x8xf32, #tpu.memory_space<vmem>>, vector<1x1x1x8xf32>
    %293 = vector.shape_cast %292 : vector<1x1x1x8xf32> to vector<1x8xf32>
    %294 = vector.broadcast %293 : vector<1x8xf32> to vector<8x8xf32>
    %295 = arith.addf %291, %294 : vector<8x8xf32>
    %cst_230 = arith.constant dense<0.000000e+00> : vector<8x8xf32>
    %296 = tpu.matmul %281, %288, %cst_230 {dimension_numbers = #tpu.dot_dimension_numbers<[1], [1], [0], [0], [0, 0, 1, 0], [], []>} : vector<8x8xf32>, vector<8x8xf32>, vector<8x8xf32> -> vector<8x8xf32>
    %cst_231 = arith.constant 0.353553385 : f32
    %297 = vector.broadcast %cst_231 : f32 to vector<8x8xf32>
    %298 = arith.mulf %296, %297 : vector<8x8xf32>
    %299 = vector.broadcast %1 : vector<1x8xf32> to vector<8x8xf32>
    %300 = arith.addf %298, %299 : vector<8x8xf32>
    %cst_232 = arith.constant dense<0xFF800000> : vector<8xf32>
    %301 = vector.multi_reduction <maximumf>, %300, %cst_232 [1] : vector<8x8xf32> to vector<8xf32>
    %302 = vector.shape_cast %301 : vector<8xf32> to vector<8x1xf32>
    %303 = vector.broadcast %302 : vector<8x1xf32> to vector<8x8xf32>
    %304 = arith.subf %300, %303 : vector<8x8xf32>
    %305 = math.exp %304 : vector<8x8xf32>
    %cst_233 = arith.constant dense<0.000000e+00> : vector<8xf32>
    %306 = vector.multi_reduction <add>, %305, %cst_233 [1] : vector<8x8xf32> to vector<8xf32>
    %307 = vector.shape_cast %306 : vector<8xf32> to vector<8x1xf32>
    %308 = vector.broadcast %307 : vector<8x1xf32> to vector<8x8xf32>
    %309 = arith.divf %305, %308 : vector<8x8xf32>
    %cst_234 = arith.constant dense<0.000000e+00> : vector<8x8xf32>
    %310 = tpu.matmul %309, %295, %cst_234 {dimension_numbers = #tpu.dot_dimension_numbers<[1], [0], [0], [1], [0, 0, 1, 1], [], []>} : vector<8x8xf32>, vector<8x8xf32>, vector<8x8xf32> -> vector<8x8xf32>
    %c1_235 = arith.constant 1 : index
    %c0_236 = arith.constant 0 : index
    %c0_237 = arith.constant 0 : index
    %c0_238 = arith.constant 0 : index
    %311 = vector.load %arg11[%c1_235, %c0_236, %c0_237, %c0_238] : memref<2x4x8x32xf32, #tpu.memory_space<vmem>>, vector<1x1x8x32xf32>
    %312 = vector.shape_cast %311 : vector<1x1x8x32xf32> to vector<8x32xf32>
    %cst_239 = arith.constant dense<0.000000e+00> : vector<8x32xf32>
    %313 = tpu.matmul %310, %312, %cst_239 {dimension_numbers = #tpu.dot_dimension_numbers<[1], [0], [0], [1], [0, 0, 1, 1], [], []>} : vector<8x8xf32>, vector<8x32xf32>, vector<8x32xf32> -> vector<8x32xf32>
    %314 = arith.addf %274, %313 : vector<8x32xf32>
    %c1_240 = arith.constant 1 : index
    %c1_241 = arith.constant 1 : index
    %c0_242 = arith.constant 0 : index
    %c0_243 = arith.constant 0 : index
    %315 = vector.load %arg5[%c1_240, %c1_241, %c0_242, %c0_243] : memref<2x4x32x8xf32, #tpu.memory_space<vmem>>, vector<1x1x32x8xf32>
    %316 = vector.shape_cast %315 : vector<1x1x32x8xf32> to vector<32x8xf32>
    %cst_244 = arith.constant dense<0.000000e+00> : vector<8x8xf32>
    %317 = tpu.matmul %273, %316, %cst_244 {dimension_numbers = #tpu.dot_dimension_numbers<[1], [0], [0], [1], [0, 0, 1, 1], [], []>} : vector<8x32xf32>, vector<32x8xf32>, vector<8x8xf32> -> vector<8x8xf32>
    %c1_245 = arith.constant 1 : index
    %c1_246 = arith.constant 1 : index
    %c0_247 = arith.constant 0 : index
    %c0_248 = arith.constant 0 : index
    %318 = vector.load %arg6[%c1_245, %c1_246, %c0_247, %c0_248] : memref<2x4x1x8xf32, #tpu.memory_space<vmem>>, vector<1x1x1x8xf32>
    %319 = vector.shape_cast %318 : vector<1x1x1x8xf32> to vector<1x8xf32>
    %320 = vector.broadcast %319 : vector<1x8xf32> to vector<8x8xf32>
    %321 = arith.addf %317, %320 : vector<8x8xf32>
    %c1_249 = arith.constant 1 : index
    %c1_250 = arith.constant 1 : index
    %c0_251 = arith.constant 0 : index
    %c0_252 = arith.constant 0 : index
    %322 = vector.load %arg7[%c1_249, %c1_250, %c0_251, %c0_252] : memref<2x4x32x8xf32, #tpu.memory_space<vmem>>, vector<1x1x32x8xf32>
    %323 = vector.shape_cast %322 : vector<1x1x32x8xf32> to vector<32x8xf32>
    %cst_253 = arith.constant dense<0.000000e+00> : vector<8x8xf32>
    %324 = tpu.matmul %273, %323, %cst_253 {dimension_numbers = #tpu.dot_dimension_numbers<[1], [0], [0], [1], [0, 0, 1, 1], [], []>} : vector<8x32xf32>, vector<32x8xf32>, vector<8x8xf32> -> vector<8x8xf32>
    %c1_254 = arith.constant 1 : index
    %c1_255 = arith.constant 1 : index
    %c0_256 = arith.constant 0 : index
    %c0_257 = arith.constant 0 : index
    %325 = vector.load %arg8[%c1_254, %c1_255, %c0_256, %c0_257] : memref<2x4x1x8xf32, #tpu.memory_space<vmem>>, vector<1x1x1x8xf32>
    %326 = vector.shape_cast %325 : vector<1x1x1x8xf32> to vector<1x8xf32>
    %327 = vector.broadcast %326 : vector<1x8xf32> to vector<8x8xf32>
    %328 = arith.addf %324, %327 : vector<8x8xf32>
    %c1_258 = arith.constant 1 : index
    %c1_259 = arith.constant 1 : index
    %c0_260 = arith.constant 0 : index
    %c0_261 = arith.constant 0 : index
    %329 = vector.load %arg9[%c1_258, %c1_259, %c0_260, %c0_261] : memref<2x4x32x8xf32, #tpu.memory_space<vmem>>, vector<1x1x32x8xf32>
    %330 = vector.shape_cast %329 : vector<1x1x32x8xf32> to vector<32x8xf32>
    %cst_262 = arith.constant dense<0.000000e+00> : vector<8x8xf32>
    %331 = tpu.matmul %273, %330, %cst_262 {dimension_numbers = #tpu.dot_dimension_numbers<[1], [0], [0], [1], [0, 0, 1, 1], [], []>} : vector<8x32xf32>, vector<32x8xf32>, vector<8x8xf32> -> vector<8x8xf32>
    %c1_263 = arith.constant 1 : index
    %c1_264 = arith.constant 1 : index
    %c0_265 = arith.constant 0 : index
    %c0_266 = arith.constant 0 : index
    %332 = vector.load %arg10[%c1_263, %c1_264, %c0_265, %c0_266] : memref<2x4x1x8xf32, #tpu.memory_space<vmem>>, vector<1x1x1x8xf32>
    %333 = vector.shape_cast %332 : vector<1x1x1x8xf32> to vector<1x8xf32>
    %334 = vector.broadcast %333 : vector<1x8xf32> to vector<8x8xf32>
    %335 = arith.addf %331, %334 : vector<8x8xf32>
    %cst_267 = arith.constant dense<0.000000e+00> : vector<8x8xf32>
    %336 = tpu.matmul %321, %328, %cst_267 {dimension_numbers = #tpu.dot_dimension_numbers<[1], [1], [0], [0], [0, 0, 1, 0], [], []>} : vector<8x8xf32>, vector<8x8xf32>, vector<8x8xf32> -> vector<8x8xf32>
    %cst_268 = arith.constant 0.353553385 : f32
    %337 = vector.broadcast %cst_268 : f32 to vector<8x8xf32>
    %338 = arith.mulf %336, %337 : vector<8x8xf32>
    %339 = vector.broadcast %1 : vector<1x8xf32> to vector<8x8xf32>
    %340 = arith.addf %338, %339 : vector<8x8xf32>
    %cst_269 = arith.constant dense<0xFF800000> : vector<8xf32>
    %341 = vector.multi_reduction <maximumf>, %340, %cst_269 [1] : vector<8x8xf32> to vector<8xf32>
    %342 = vector.shape_cast %341 : vector<8xf32> to vector<8x1xf32>
    %343 = vector.broadcast %342 : vector<8x1xf32> to vector<8x8xf32>
    %344 = arith.subf %340, %343 : vector<8x8xf32>
    %345 = math.exp %344 : vector<8x8xf32>
    %cst_270 = arith.constant dense<0.000000e+00> : vector<8xf32>
    %346 = vector.multi_reduction <add>, %345, %cst_270 [1] : vector<8x8xf32> to vector<8xf32>
    %347 = vector.shape_cast %346 : vector<8xf32> to vector<8x1xf32>
    %348 = vector.broadcast %347 : vector<8x1xf32> to vector<8x8xf32>
    %349 = arith.divf %345, %348 : vector<8x8xf32>
    %cst_271 = arith.constant dense<0.000000e+00> : vector<8x8xf32>
    %350 = tpu.matmul %349, %335, %cst_271 {dimension_numbers = #tpu.dot_dimension_numbers<[1], [0], [0], [1], [0, 0, 1, 1], [], []>} : vector<8x8xf32>, vector<8x8xf32>, vector<8x8xf32> -> vector<8x8xf32>
    %c1_272 = arith.constant 1 : index
    %c1_273 = arith.constant 1 : index
    %c0_274 = arith.constant 0 : index
    %c0_275 = arith.constant 0 : index
    %351 = vector.load %arg11[%c1_272, %c1_273, %c0_274, %c0_275] : memref<2x4x8x32xf32, #tpu.memory_space<vmem>>, vector<1x1x8x32xf32>
    %352 = vector.shape_cast %351 : vector<1x1x8x32xf32> to vector<8x32xf32>
    %cst_276 = arith.constant dense<0.000000e+00> : vector<8x32xf32>
    %353 = tpu.matmul %350, %352, %cst_276 {dimension_numbers = #tpu.dot_dimension_numbers<[1], [0], [0], [1], [0, 0, 1, 1], [], []>} : vector<8x8xf32>, vector<8x32xf32>, vector<8x32xf32> -> vector<8x32xf32>
    %354 = arith.addf %314, %353 : vector<8x32xf32>
    %c1_277 = arith.constant 1 : index
    %c2_278 = arith.constant 2 : index
    %c0_279 = arith.constant 0 : index
    %c0_280 = arith.constant 0 : index
    %355 = vector.load %arg5[%c1_277, %c2_278, %c0_279, %c0_280] : memref<2x4x32x8xf32, #tpu.memory_space<vmem>>, vector<1x1x32x8xf32>
    %356 = vector.shape_cast %355 : vector<1x1x32x8xf32> to vector<32x8xf32>
    %cst_281 = arith.constant dense<0.000000e+00> : vector<8x8xf32>
    %357 = tpu.matmul %273, %356, %cst_281 {dimension_numbers = #tpu.dot_dimension_numbers<[1], [0], [0], [1], [0, 0, 1, 1], [], []>} : vector<8x32xf32>, vector<32x8xf32>, vector<8x8xf32> -> vector<8x8xf32>
    %c1_282 = arith.constant 1 : index
    %c2_283 = arith.constant 2 : index
    %c0_284 = arith.constant 0 : index
    %c0_285 = arith.constant 0 : index
    %358 = vector.load %arg6[%c1_282, %c2_283, %c0_284, %c0_285] : memref<2x4x1x8xf32, #tpu.memory_space<vmem>>, vector<1x1x1x8xf32>
    %359 = vector.shape_cast %358 : vector<1x1x1x8xf32> to vector<1x8xf32>
    %360 = vector.broadcast %359 : vector<1x8xf32> to vector<8x8xf32>
    %361 = arith.addf %357, %360 : vector<8x8xf32>
    %c1_286 = arith.constant 1 : index
    %c2_287 = arith.constant 2 : index
    %c0_288 = arith.constant 0 : index
    %c0_289 = arith.constant 0 : index
    %362 = vector.load %arg7[%c1_286, %c2_287, %c0_288, %c0_289] : memref<2x4x32x8xf32, #tpu.memory_space<vmem>>, vector<1x1x32x8xf32>
    %363 = vector.shape_cast %362 : vector<1x1x32x8xf32> to vector<32x8xf32>
    %cst_290 = arith.constant dense<0.000000e+00> : vector<8x8xf32>
    %364 = tpu.matmul %273, %363, %cst_290 {dimension_numbers = #tpu.dot_dimension_numbers<[1], [0], [0], [1], [0, 0, 1, 1], [], []>} : vector<8x32xf32>, vector<32x8xf32>, vector<8x8xf32> -> vector<8x8xf32>
    %c1_291 = arith.constant 1 : index
    %c2_292 = arith.constant 2 : index
    %c0_293 = arith.constant 0 : index
    %c0_294 = arith.constant 0 : index
    %365 = vector.load %arg8[%c1_291, %c2_292, %c0_293, %c0_294] : memref<2x4x1x8xf32, #tpu.memory_space<vmem>>, vector<1x1x1x8xf32>
    %366 = vector.shape_cast %365 : vector<1x1x1x8xf32> to vector<1x8xf32>
    %367 = vector.broadcast %366 : vector<1x8xf32> to vector<8x8xf32>
    %368 = arith.addf %364, %367 : vector<8x8xf32>
    %c1_295 = arith.constant 1 : index
    %c2_296 = arith.constant 2 : index
    %c0_297 = arith.constant 0 : index
    %c0_298 = arith.constant 0 : index
    %369 = vector.load %arg9[%c1_295, %c2_296, %c0_297, %c0_298] : memref<2x4x32x8xf32, #tpu.memory_space<vmem>>, vector<1x1x32x8xf32>
    %370 = vector.shape_cast %369 : vector<1x1x32x8xf32> to vector<32x8xf32>
    %cst_299 = arith.constant dense<0.000000e+00> : vector<8x8xf32>
    %371 = tpu.matmul %273, %370, %cst_299 {dimension_numbers = #tpu.dot_dimension_numbers<[1], [0], [0], [1], [0, 0, 1, 1], [], []>} : vector<8x32xf32>, vector<32x8xf32>, vector<8x8xf32> -> vector<8x8xf32>
    %c1_300 = arith.constant 1 : index
    %c2_301 = arith.constant 2 : index
    %c0_302 = arith.constant 0 : index
    %c0_303 = arith.constant 0 : index
    %372 = vector.load %arg10[%c1_300, %c2_301, %c0_302, %c0_303] : memref<2x4x1x8xf32, #tpu.memory_space<vmem>>, vector<1x1x1x8xf32>
    %373 = vector.shape_cast %372 : vector<1x1x1x8xf32> to vector<1x8xf32>
    %374 = vector.broadcast %373 : vector<1x8xf32> to vector<8x8xf32>
    %375 = arith.addf %371, %374 : vector<8x8xf32>
    %cst_304 = arith.constant dense<0.000000e+00> : vector<8x8xf32>
    %376 = tpu.matmul %361, %368, %cst_304 {dimension_numbers = #tpu.dot_dimension_numbers<[1], [1], [0], [0], [0, 0, 1, 0], [], []>} : vector<8x8xf32>, vector<8x8xf32>, vector<8x8xf32> -> vector<8x8xf32>
    %cst_305 = arith.constant 0.353553385 : f32
    %377 = vector.broadcast %cst_305 : f32 to vector<8x8xf32>
    %378 = arith.mulf %376, %377 : vector<8x8xf32>
    %379 = vector.broadcast %1 : vector<1x8xf32> to vector<8x8xf32>
    %380 = arith.addf %378, %379 : vector<8x8xf32>
    %cst_306 = arith.constant dense<0xFF800000> : vector<8xf32>
    %381 = vector.multi_reduction <maximumf>, %380, %cst_306 [1] : vector<8x8xf32> to vector<8xf32>
    %382 = vector.shape_cast %381 : vector<8xf32> to vector<8x1xf32>
    %383 = vector.broadcast %382 : vector<8x1xf32> to vector<8x8xf32>
    %384 = arith.subf %380, %383 : vector<8x8xf32>
    %385 = math.exp %384 : vector<8x8xf32>
    %cst_307 = arith.constant dense<0.000000e+00> : vector<8xf32>
    %386 = vector.multi_reduction <add>, %385, %cst_307 [1] : vector<8x8xf32> to vector<8xf32>
    %387 = vector.shape_cast %386 : vector<8xf32> to vector<8x1xf32>
    %388 = vector.broadcast %387 : vector<8x1xf32> to vector<8x8xf32>
    %389 = arith.divf %385, %388 : vector<8x8xf32>
    %cst_308 = arith.constant dense<0.000000e+00> : vector<8x8xf32>
    %390 = tpu.matmul %389, %375, %cst_308 {dimension_numbers = #tpu.dot_dimension_numbers<[1], [0], [0], [1], [0, 0, 1, 1], [], []>} : vector<8x8xf32>, vector<8x8xf32>, vector<8x8xf32> -> vector<8x8xf32>
    %c1_309 = arith.constant 1 : index
    %c2_310 = arith.constant 2 : index
    %c0_311 = arith.constant 0 : index
    %c0_312 = arith.constant 0 : index
    %391 = vector.load %arg11[%c1_309, %c2_310, %c0_311, %c0_312] : memref<2x4x8x32xf32, #tpu.memory_space<vmem>>, vector<1x1x8x32xf32>
    %392 = vector.shape_cast %391 : vector<1x1x8x32xf32> to vector<8x32xf32>
    %cst_313 = arith.constant dense<0.000000e+00> : vector<8x32xf32>
    %393 = tpu.matmul %390, %392, %cst_313 {dimension_numbers = #tpu.dot_dimension_numbers<[1], [0], [0], [1], [0, 0, 1, 1], [], []>} : vector<8x8xf32>, vector<8x32xf32>, vector<8x32xf32> -> vector<8x32xf32>
    %394 = arith.addf %354, %393 : vector<8x32xf32>
    %c1_314 = arith.constant 1 : index
    %c3_315 = arith.constant 3 : index
    %c0_316 = arith.constant 0 : index
    %c0_317 = arith.constant 0 : index
    %395 = vector.load %arg5[%c1_314, %c3_315, %c0_316, %c0_317] : memref<2x4x32x8xf32, #tpu.memory_space<vmem>>, vector<1x1x32x8xf32>
    %396 = vector.shape_cast %395 : vector<1x1x32x8xf32> to vector<32x8xf32>
    %cst_318 = arith.constant dense<0.000000e+00> : vector<8x8xf32>
    %397 = tpu.matmul %273, %396, %cst_318 {dimension_numbers = #tpu.dot_dimension_numbers<[1], [0], [0], [1], [0, 0, 1, 1], [], []>} : vector<8x32xf32>, vector<32x8xf32>, vector<8x8xf32> -> vector<8x8xf32>
    %c1_319 = arith.constant 1 : index
    %c3_320 = arith.constant 3 : index
    %c0_321 = arith.constant 0 : index
    %c0_322 = arith.constant 0 : index
    %398 = vector.load %arg6[%c1_319, %c3_320, %c0_321, %c0_322] : memref<2x4x1x8xf32, #tpu.memory_space<vmem>>, vector<1x1x1x8xf32>
    %399 = vector.shape_cast %398 : vector<1x1x1x8xf32> to vector<1x8xf32>
    %400 = vector.broadcast %399 : vector<1x8xf32> to vector<8x8xf32>
    %401 = arith.addf %397, %400 : vector<8x8xf32>
    %c1_323 = arith.constant 1 : index
    %c3_324 = arith.constant 3 : index
    %c0_325 = arith.constant 0 : index
    %c0_326 = arith.constant 0 : index
    %402 = vector.load %arg7[%c1_323, %c3_324, %c0_325, %c0_326] : memref<2x4x32x8xf32, #tpu.memory_space<vmem>>, vector<1x1x32x8xf32>
    %403 = vector.shape_cast %402 : vector<1x1x32x8xf32> to vector<32x8xf32>
    %cst_327 = arith.constant dense<0.000000e+00> : vector<8x8xf32>
    %404 = tpu.matmul %273, %403, %cst_327 {dimension_numbers = #tpu.dot_dimension_numbers<[1], [0], [0], [1], [0, 0, 1, 1], [], []>} : vector<8x32xf32>, vector<32x8xf32>, vector<8x8xf32> -> vector<8x8xf32>
    %c1_328 = arith.constant 1 : index
    %c3_329 = arith.constant 3 : index
    %c0_330 = arith.constant 0 : index
    %c0_331 = arith.constant 0 : index
    %405 = vector.load %arg8[%c1_328, %c3_329, %c0_330, %c0_331] : memref<2x4x1x8xf32, #tpu.memory_space<vmem>>, vector<1x1x1x8xf32>
    %406 = vector.shape_cast %405 : vector<1x1x1x8xf32> to vector<1x8xf32>
    %407 = vector.broadcast %406 : vector<1x8xf32> to vector<8x8xf32>
    %408 = arith.addf %404, %407 : vector<8x8xf32>
    %c1_332 = arith.constant 1 : index
    %c3_333 = arith.constant 3 : index
    %c0_334 = arith.constant 0 : index
    %c0_335 = arith.constant 0 : index
    %409 = vector.load %arg9[%c1_332, %c3_333, %c0_334, %c0_335] : memref<2x4x32x8xf32, #tpu.memory_space<vmem>>, vector<1x1x32x8xf32>
    %410 = vector.shape_cast %409 : vector<1x1x32x8xf32> to vector<32x8xf32>
    %cst_336 = arith.constant dense<0.000000e+00> : vector<8x8xf32>
    %411 = tpu.matmul %273, %410, %cst_336 {dimension_numbers = #tpu.dot_dimension_numbers<[1], [0], [0], [1], [0, 0, 1, 1], [], []>} : vector<8x32xf32>, vector<32x8xf32>, vector<8x8xf32> -> vector<8x8xf32>
    %c1_337 = arith.constant 1 : index
    %c3_338 = arith.constant 3 : index
    %c0_339 = arith.constant 0 : index
    %c0_340 = arith.constant 0 : index
    %412 = vector.load %arg10[%c1_337, %c3_338, %c0_339, %c0_340] : memref<2x4x1x8xf32, #tpu.memory_space<vmem>>, vector<1x1x1x8xf32>
    %413 = vector.shape_cast %412 : vector<1x1x1x8xf32> to vector<1x8xf32>
    %414 = vector.broadcast %413 : vector<1x8xf32> to vector<8x8xf32>
    %415 = arith.addf %411, %414 : vector<8x8xf32>
    %cst_341 = arith.constant dense<0.000000e+00> : vector<8x8xf32>
    %416 = tpu.matmul %401, %408, %cst_341 {dimension_numbers = #tpu.dot_dimension_numbers<[1], [1], [0], [0], [0, 0, 1, 0], [], []>} : vector<8x8xf32>, vector<8x8xf32>, vector<8x8xf32> -> vector<8x8xf32>
    %cst_342 = arith.constant 0.353553385 : f32
    %417 = vector.broadcast %cst_342 : f32 to vector<8x8xf32>
    %418 = arith.mulf %416, %417 : vector<8x8xf32>
    %419 = vector.broadcast %1 : vector<1x8xf32> to vector<8x8xf32>
    %420 = arith.addf %418, %419 : vector<8x8xf32>
    %cst_343 = arith.constant dense<0xFF800000> : vector<8xf32>
    %421 = vector.multi_reduction <maximumf>, %420, %cst_343 [1] : vector<8x8xf32> to vector<8xf32>
    %422 = vector.shape_cast %421 : vector<8xf32> to vector<8x1xf32>
    %423 = vector.broadcast %422 : vector<8x1xf32> to vector<8x8xf32>
    %424 = arith.subf %420, %423 : vector<8x8xf32>
    %425 = math.exp %424 : vector<8x8xf32>
    %cst_344 = arith.constant dense<0.000000e+00> : vector<8xf32>
    %426 = vector.multi_reduction <add>, %425, %cst_344 [1] : vector<8x8xf32> to vector<8xf32>
    %427 = vector.shape_cast %426 : vector<8xf32> to vector<8x1xf32>
    %428 = vector.broadcast %427 : vector<8x1xf32> to vector<8x8xf32>
    %429 = arith.divf %425, %428 : vector<8x8xf32>
    %cst_345 = arith.constant dense<0.000000e+00> : vector<8x8xf32>
    %430 = tpu.matmul %429, %415, %cst_345 {dimension_numbers = #tpu.dot_dimension_numbers<[1], [0], [0], [1], [0, 0, 1, 1], [], []>} : vector<8x8xf32>, vector<8x8xf32>, vector<8x8xf32> -> vector<8x8xf32>
    %c1_346 = arith.constant 1 : index
    %c3_347 = arith.constant 3 : index
    %c0_348 = arith.constant 0 : index
    %c0_349 = arith.constant 0 : index
    %431 = vector.load %arg11[%c1_346, %c3_347, %c0_348, %c0_349] : memref<2x4x8x32xf32, #tpu.memory_space<vmem>>, vector<1x1x8x32xf32>
    %432 = vector.shape_cast %431 : vector<1x1x8x32xf32> to vector<8x32xf32>
    %cst_350 = arith.constant dense<0.000000e+00> : vector<8x32xf32>
    %433 = tpu.matmul %430, %432, %cst_350 {dimension_numbers = #tpu.dot_dimension_numbers<[1], [0], [0], [1], [0, 0, 1, 1], [], []>} : vector<8x8xf32>, vector<8x32xf32>, vector<8x32xf32> -> vector<8x32xf32>
    %434 = arith.addf %394, %433 : vector<8x32xf32>
    %c1_351 = arith.constant 1 : index
    %c0_352 = arith.constant 0 : index
    %c0_353 = arith.constant 0 : index
    %435 = vector.load %arg12[%c1_351, %c0_352, %c0_353] : memref<2x1x32xf32, #tpu.memory_space<vmem>>, vector<1x1x32xf32>
    %436 = vector.shape_cast %435 : vector<1x1x32xf32> to vector<1x32xf32>
    %437 = vector.broadcast %436 : vector<1x32xf32> to vector<8x32xf32>
    %438 = arith.addf %434, %437 : vector<8x32xf32>
    %439 = arith.addf %438, %273 : vector<8x32xf32>
    %c1_354 = arith.constant 1 : index
    %c0_355 = arith.constant 0 : index
    %c0_356 = arith.constant 0 : index
    %440 = vector.load %arg13[%c1_354, %c0_355, %c0_356] : memref<2x1x32xf32, #tpu.memory_space<vmem>>, vector<1x1x32xf32>
    %441 = vector.shape_cast %440 : vector<1x1x32xf32> to vector<1x32xf32>
    %c1_357 = arith.constant 1 : index
    %c0_358 = arith.constant 0 : index
    %c0_359 = arith.constant 0 : index
    %442 = vector.load %arg14[%c1_357, %c0_358, %c0_359] : memref<2x1x32xf32, #tpu.memory_space<vmem>>, vector<1x1x32xf32>
    %443 = vector.shape_cast %442 : vector<1x1x32xf32> to vector<1x32xf32>
    %cst_360 = arith.constant dense<0.000000e+00> : vector<8xf32>
    %444 = vector.multi_reduction <add>, %439, %cst_360 [1] : vector<8x32xf32> to vector<8xf32>
    %445 = vector.shape_cast %444 : vector<8xf32> to vector<8x1xf32>
    %cst_361 = arith.constant 3.200000e+01 : f32
    %446 = vector.broadcast %cst_361 : f32 to vector<8x1xf32>
    %447 = arith.divf %445, %446 : vector<8x1xf32>
    %448 = vector.broadcast %447 : vector<8x1xf32> to vector<8x32xf32>
    %449 = arith.subf %439, %448 : vector<8x32xf32>
    %450 = arith.mulf %449, %449 : vector<8x32xf32>
    %cst_362 = arith.constant dense<0.000000e+00> : vector<8xf32>
    %451 = vector.multi_reduction <add>, %450, %cst_362 [1] : vector<8x32xf32> to vector<8xf32>
    %452 = vector.shape_cast %451 : vector<8xf32> to vector<8x1xf32>
    %cst_363 = arith.constant 3.200000e+01 : f32
    %453 = vector.broadcast %cst_363 : f32 to vector<8x1xf32>
    %454 = arith.divf %452, %453 : vector<8x1xf32>
    %455 = vector.broadcast %447 : vector<8x1xf32> to vector<8x32xf32>
    %456 = arith.subf %439, %455 : vector<8x32xf32>
    %cst_364 = arith.constant 9.99999996E-13 : f32
    %457 = vector.broadcast %cst_364 : f32 to vector<8x1xf32>
    %458 = arith.addf %454, %457 : vector<8x1xf32>
    %459 = math.rsqrt %458 : vector<8x1xf32>
    %460 = vector.broadcast %459 : vector<8x1xf32> to vector<8x32xf32>
    %461 = arith.mulf %456, %460 : vector<8x32xf32>
    %462 = vector.broadcast %441 : vector<1x32xf32> to vector<8x32xf32>
    %463 = arith.mulf %461, %462 : vector<8x32xf32>
    %464 = vector.broadcast %443 : vector<1x32xf32> to vector<8x32xf32>
    %465 = arith.addf %463, %464 : vector<8x32xf32>
    %c1_365 = arith.constant 1 : index
    %c0_366 = arith.constant 0 : index
    %c0_367 = arith.constant 0 : index
    %466 = vector.load %arg15[%c1_365, %c0_366, %c0_367] : memref<2x32x64xf32, #tpu.memory_space<vmem>>, vector<1x32x64xf32>
    %467 = vector.shape_cast %466 : vector<1x32x64xf32> to vector<32x64xf32>
    %cst_368 = arith.constant dense<0.000000e+00> : vector<8x64xf32>
    %468 = tpu.matmul %465, %467, %cst_368 {dimension_numbers = #tpu.dot_dimension_numbers<[1], [0], [0], [1], [0, 0, 1, 1], [], []>} : vector<8x32xf32>, vector<32x64xf32>, vector<8x64xf32> -> vector<8x64xf32>
    %c1_369 = arith.constant 1 : index
    %c0_370 = arith.constant 0 : index
    %c0_371 = arith.constant 0 : index
    %469 = vector.load %arg16[%c1_369, %c0_370, %c0_371] : memref<2x1x64xf32, #tpu.memory_space<vmem>>, vector<1x1x64xf32>
    %470 = vector.shape_cast %469 : vector<1x1x64xf32> to vector<1x64xf32>
    %471 = vector.broadcast %470 : vector<1x64xf32> to vector<8x64xf32>
    %472 = arith.addf %468, %471 : vector<8x64xf32>
    %cst_372 = arith.constant 5.000000e-01 : f32
    %473 = vector.broadcast %cst_372 : f32 to vector<8x64xf32>
    %474 = arith.mulf %473, %472 : vector<8x64xf32>
    %cst_373 = arith.constant 4.471500e-02 : f32
    %475 = vector.broadcast %cst_373 : f32 to vector<8x64xf32>
    %476 = arith.mulf %475, %472 : vector<8x64xf32>
    %477 = arith.mulf %476, %472 : vector<8x64xf32>
    %478 = arith.mulf %477, %472 : vector<8x64xf32>
    %479 = arith.addf %472, %478 : vector<8x64xf32>
    %cst_374 = arith.constant 0.797884583 : f32
    %480 = vector.broadcast %cst_374 : f32 to vector<8x64xf32>
    %481 = arith.mulf %480, %479 : vector<8x64xf32>
    %482 = math.tanh %481 : vector<8x64xf32>
    %cst_375 = arith.constant 1.000000e+00 : f32
    %483 = vector.broadcast %cst_375 : f32 to vector<8x64xf32>
    %484 = arith.addf %483, %482 : vector<8x64xf32>
    %485 = arith.mulf %474, %484 : vector<8x64xf32>
    %c1_376 = arith.constant 1 : index
    %c0_377 = arith.constant 0 : index
    %c0_378 = arith.constant 0 : index
    %486 = vector.load %arg17[%c1_376, %c0_377, %c0_378] : memref<2x64x32xf32, #tpu.memory_space<vmem>>, vector<1x64x32xf32>
    %487 = vector.shape_cast %486 : vector<1x64x32xf32> to vector<64x32xf32>
    %cst_379 = arith.constant dense<0.000000e+00> : vector<8x32xf32>
    %488 = tpu.matmul %485, %487, %cst_379 {dimension_numbers = #tpu.dot_dimension_numbers<[1], [0], [0], [1], [0, 0, 1, 1], [], []>} : vector<8x64xf32>, vector<64x32xf32>, vector<8x32xf32> -> vector<8x32xf32>
    %c1_380 = arith.constant 1 : index
    %c0_381 = arith.constant 0 : index
    %c0_382 = arith.constant 0 : index
    %489 = vector.load %arg18[%c1_380, %c0_381, %c0_382] : memref<2x1x32xf32, #tpu.memory_space<vmem>>, vector<1x1x32xf32>
    %490 = vector.shape_cast %489 : vector<1x1x32xf32> to vector<1x32xf32>
    %491 = vector.broadcast %490 : vector<1x32xf32> to vector<8x32xf32>
    %492 = arith.addf %488, %491 : vector<8x32xf32>
    %493 = arith.addf %492, %465 : vector<8x32xf32>
    %c1_383 = arith.constant 1 : index
    %c0_384 = arith.constant 0 : index
    %c0_385 = arith.constant 0 : index
    %494 = vector.load %arg19[%c1_383, %c0_384, %c0_385] : memref<2x1x32xf32, #tpu.memory_space<vmem>>, vector<1x1x32xf32>
    %495 = vector.shape_cast %494 : vector<1x1x32xf32> to vector<1x32xf32>
    %c1_386 = arith.constant 1 : index
    %c0_387 = arith.constant 0 : index
    %c0_388 = arith.constant 0 : index
    %496 = vector.load %arg20[%c1_386, %c0_387, %c0_388] : memref<2x1x32xf32, #tpu.memory_space<vmem>>, vector<1x1x32xf32>
    %497 = vector.shape_cast %496 : vector<1x1x32xf32> to vector<1x32xf32>
    %cst_389 = arith.constant dense<0.000000e+00> : vector<8xf32>
    %498 = vector.multi_reduction <add>, %493, %cst_389 [1] : vector<8x32xf32> to vector<8xf32>
    %499 = vector.shape_cast %498 : vector<8xf32> to vector<8x1xf32>
    %cst_390 = arith.constant 3.200000e+01 : f32
    %500 = vector.broadcast %cst_390 : f32 to vector<8x1xf32>
    %501 = arith.divf %499, %500 : vector<8x1xf32>
    %502 = vector.broadcast %501 : vector<8x1xf32> to vector<8x32xf32>
    %503 = arith.subf %493, %502 : vector<8x32xf32>
    %504 = arith.mulf %503, %503 : vector<8x32xf32>
    %cst_391 = arith.constant dense<0.000000e+00> : vector<8xf32>
    %505 = vector.multi_reduction <add>, %504, %cst_391 [1] : vector<8x32xf32> to vector<8xf32>
    %506 = vector.shape_cast %505 : vector<8xf32> to vector<8x1xf32>
    %cst_392 = arith.constant 3.200000e+01 : f32
    %507 = vector.broadcast %cst_392 : f32 to vector<8x1xf32>
    %508 = arith.divf %506, %507 : vector<8x1xf32>
    %509 = vector.broadcast %501 : vector<8x1xf32> to vector<8x32xf32>
    %510 = arith.subf %493, %509 : vector<8x32xf32>
    %cst_393 = arith.constant 9.99999996E-13 : f32
    %511 = vector.broadcast %cst_393 : f32 to vector<8x1xf32>
    %512 = arith.addf %508, %511 : vector<8x1xf32>
    %513 = math.rsqrt %512 : vector<8x1xf32>
    %514 = vector.broadcast %513 : vector<8x1xf32> to vector<8x32xf32>
    %515 = arith.mulf %510, %514 : vector<8x32xf32>
    %516 = vector.broadcast %495 : vector<1x32xf32> to vector<8x32xf32>
    %517 = arith.mulf %515, %516 : vector<8x32xf32>
    %518 = vector.broadcast %497 : vector<1x32xf32> to vector<8x32xf32>
    %519 = arith.addf %517, %518 : vector<8x32xf32>
    %c0_394 = arith.constant 0 : index
    %c0_395 = arith.constant 0 : index
    %520 = vector.load %arg21[%c0_394, %c0_395] : memref<32x32xf32, #tpu.memory_space<vmem>>, vector<32x32xf32>
    %cst_396 = arith.constant dense<0.000000e+00> : vector<8x32xf32>
    %521 = tpu.matmul %519, %520, %cst_396 {dimension_numbers = #tpu.dot_dimension_numbers<[1], [0], [0], [1], [0, 0, 1, 1], [], []>} : vector<8x32xf32>, vector<32x32xf32>, vector<8x32xf32> -> vector<8x32xf32>
    %c0_397 = arith.constant 0 : index
    %c0_398 = arith.constant 0 : index
    %522 = vector.load %arg22[%c0_397, %c0_398] : memref<1x32xf32, #tpu.memory_space<vmem>>, vector<1x32xf32>
    %523 = vector.broadcast %522 : vector<1x32xf32> to vector<8x32xf32>
    %524 = arith.addf %521, %523 : vector<8x32xf32>
    %525 = math.tanh %524 : vector<8x32xf32>
    %c0_399 = arith.constant 0 : index
    %c0_400 = arith.constant 0 : index
    %526 = vector.load %arg23[%c0_399, %c0_400] : memref<32x128xf32, #tpu.memory_space<vmem>>, vector<32x128xf32>
    %cst_401 = arith.constant dense<0.000000e+00> : vector<8x128xf32>
    %527 = tpu.matmul %525, %526, %cst_401 {dimension_numbers = #tpu.dot_dimension_numbers<[1], [0], [0], [1], [0, 0, 1, 1], [], []>} : vector<8x32xf32>, vector<32x128xf32>, vector<8x128xf32> -> vector<8x128xf32>
    %c0_402 = arith.constant 0 : index
    %c0_403 = arith.constant 0 : index
    %528 = vector.load %arg24[%c0_402, %c0_403] : memref<1x128xf32, #tpu.memory_space<vmem>>, vector<1x128xf32>
    %529 = vector.broadcast %528 : vector<1x128xf32> to vector<8x128xf32>
    %530 = arith.addf %527, %529 : vector<8x128xf32>
    %531 = vector.extract_strided_slice %530 {offsets = [0, 0], sizes = [1, 128], strides = [1, 1]} : vector<8x128xf32> to vector<1x128xf32>
    %c0_404 = arith.constant 0 : index
    %c0_405 = arith.constant 0 : index
    %c0_406 = arith.constant 0 : index
    %532 = vector.load %arg25[%c0_404, %c0_405, %c0_406] : memref<1x1x128xf32, #tpu.memory_space<vmem>>, vector<1x1x128xf32>
    %533 = vector.shape_cast %532 : vector<1x1x128xf32> to vector<1x128xf32>
    %534 = vector.shape_cast %531 : vector<1x128xf32> to vector<1x1x128xf32>
    tpu.vector_store %arg25[%c0_404, %c0_405, %c0_406], %534 {strides = array<i32>} : memref<1x1x128xf32, #tpu.memory_space<vmem>>, vector<1x1x128xf32>,
    return
  }
  func.func @transform_0(%arg0: i32) -> (i32, i32, i32) {
    %c0_i32 = arith.constant 0 : i32
    %c0_i32_0 = arith.constant 0 : i32
    %c0_i32_1 = arith.constant 0 : i32
    return %arg0, %c0_i32, %c0_i32_0 : i32, i32, i32
  }
  func.func @transform_1(%arg0: i32) -> (i32, i32, i32) {
    %c0_i32 = arith.constant 0 : i32
    %c0_i32_0 = arith.constant 0 : i32
    %c0_i32_1 = arith.constant 0 : i32
    return %arg0, %c0_i32, %c0_i32_0 : i32, i32, i32
  }
  func.func @transform_2(%arg0: i32) -> (i32, i32) {
    %c0_i32 = arith.constant 0 : i32
    %c0_i32_0 = arith.constant 0 : i32
    %c0_i32_1 = arith.constant 0 : i32
    return %c0_i32, %c0_i32_0 : i32, i32
  }
  func.func @transform_3(%arg0: i32) -> (i32, i32) {
    %c0_i32 = arith.constant 0 : i32
    %c0_i32_0 = arith.constant 0 : i32
    %c0_i32_1 = arith.constant 0 : i32
    return %c0_i32, %c0_i32_0 : i32, i32
  }
  func.func @transform_4(%arg0: i32) -> (i32, i32, i32, i32) {
    %c0_i32 = arith.constant 0 : i32
    %c0_i32_0 = arith.constant 0 : i32
    %c0_i32_1 = arith.constant 0 : i32
    %c0_i32_2 = arith.constant 0 : i32
    %c0_i32_3 = arith.constant 0 : i32
    return %c0_i32, %c0_i32_0, %c0_i32_1, %c0_i32_2 : i32, i32, i32, i32
  }
  func.func @transform_5(%arg0: i32) -> (i32, i32, i32, i32) {
    %c0_i32 = arith.constant 0 : i32
    %c0_i32_0 = arith.constant 0 : i32
    %c0_i32_1 = arith.constant 0 : i32
    %c0_i32_2 = arith.constant 0 : i32
    %c0_i32_3 = arith.constant 0 : i32
    return %c0_i32, %c0_i32_0, %c0_i32_1, %c0_i32_2 : i32, i32, i32, i32
  }
  func.func @transform_6(%arg0: i32) -> (i32, i32, i32, i32) {
    %c0_i32 = arith.constant 0 : i32
    %c0_i32_0 = arith.constant 0 : i32
    %c0_i32_1 = arith.constant 0 : i32
    %c0_i32_2 = arith.constant 0 : i32
    %c0_i32_3 = arith.constant 0 : i32
    return %c0_i32, %c0_i32_0, %c0_i32_1, %c0_i32_2 : i32, i32, i32, i32
  }
  func.func @transform_7(%arg0: i32) -> (i32, i32, i32, i32) {
    %c0_i32 = arith.constant 0 : i32
    %c0_i32_0 = arith.constant 0 : i32
    %c0_i32_1 = arith.constant 0 : i32
    %c0_i32_2 = arith.constant 0 : i32
    %c0_i32_3 = arith.constant 0 : i32
    return %c0_i32, %c0_i32_0, %c0_i32_1, %c0_i32_2 : i32, i32, i32, i32
  }
  func.func @transform_8(%arg0: i32) -> (i32, i32, i32, i32) {
    %c0_i32 = arith.constant 0 : i32
    %c0_i32_0 = arith.constant 0 : i32
    %c0_i32_1 = arith.constant 0 : i32
    %c0_i32_2 = arith.constant 0 : i32
    %c0_i32_3 = arith.constant 0 : i32
    return %c0_i32, %c0_i32_0, %c0_i32_1, %c0_i32_2 : i32, i32, i32, i32
  }
  func.func @transform_9(%arg0: i32) -> (i32, i32, i32, i32) {
    %c0_i32 = arith.constant 0 : i32
    %c0_i32_0 = arith.constant 0 : i32
    %c0_i32_1 = arith.constant 0 : i32
    %c0_i32_2 = arith.constant 0 : i32
    %c0_i32_3 = arith.constant 0 : i32
    return %c0_i32, %c0_i32_0, %c0_i32_1, %c0_i32_2 : i32, i32, i32, i32
  }
  func.func @transform_10(%arg0: i32) -> (i32, i32, i32, i32) {
    %c0_i32 = arith.constant 0 : i32
    %c0_i32_0 = arith.constant 0 : i32
    %c0_i32_1 = arith.constant 0 : i32
    %c0_i32_2 = arith.constant 0 : i32
    %c0_i32_3 = arith.constant 0 : i32
    return %c0_i32, %c0_i32_0, %c0_i32_1, %c0_i32_2 : i32, i32, i32, i32
  }
  func.func @transform_11(%arg0: i32) -> (i32, i32, i32) {
    %c0_i32 = arith.constant 0 : i32
    %c0_i32_0 = arith.constant 0 : i32
    %c0_i32_1 = arith.constant 0 : i32
    %c0_i32_2 = arith.constant 0 : i32
    return %c0_i32, %c0_i32_0, %c0_i32_1 : i32, i32, i32
  }
  func.func @transform_12(%arg0: i32) -> (i32, i32, i32) {
    %c0_i32 = arith.constant 0 : i32
    %c0_i32_0 = arith.constant 0 : i32
    %c0_i32_1 = arith.constant 0 : i32
    %c0_i32_2 = arith.constant 0 : i32
    return %c0_i32, %c0_i32_0, %c0_i32_1 : i32, i32, i32
  }
  func.func @transform_13(%arg0: i32) -> (i32, i32, i32) {
    %c0_i32 = arith.constant 0 : i32
    %c0_i32_0 = arith.constant 0 : i32
    %c0_i32_1 = arith.constant 0 : i32
    %c0_i32_2 = arith.constant 0 : i32
    return %c0_i32, %c0_i32_0, %c0_i32_1 : i32, i32, i32
  }
  func.func @transform_14(%arg0: i32) -> (i32, i32, i32) {
    %c0_i32 = arith.constant 0 : i32
    %c0_i32_0 = arith.constant 0 : i32
    %c0_i32_1 = arith.constant 0 : i32
    %c0_i32_2 = arith.constant 0 : i32
    return %c0_i32, %c0_i32_0, %c0_i32_1 : i32, i32, i32
  }
  func.func @transform_15(%arg0: i32) -> (i32, i32, i32) {
    %c0_i32 = arith.constant 0 : i32
    %c0_i32_0 = arith.constant 0 : i32
    %c0_i32_1 = arith.constant 0 : i32
    %c0_i32_2 = arith.constant 0 : i32
    return %c0_i32, %c0_i32_0, %c0_i32_1 : i32, i32, i32
  }
  func.func @transform_16(%arg0: i32) -> (i32, i32, i32) {
    %c0_i32 = arith.constant 0 : i32
    %c0_i32_0 = arith.constant 0 : i32
    %c0_i32_1 = arith.constant 0 : i32
    %c0_i32_2 = arith.constant 0 : i32
    return %c0_i32, %c0_i32_0, %c0_i32_1 : i32, i32, i32
  }
  func.func @transform_17(%arg0: i32) -> (i32, i32, i32) {
    %c0_i32 = arith.constant 0 : i32
    %c0_i32_0 = arith.constant 0 : i32
    %c0_i32_1 = arith.constant 0 : i32
    %c0_i32_2 = arith.constant 0 : i32
    return %c0_i32, %c0_i32_0, %c0_i32_1 : i32, i32, i32
  }
  func.func @transform_18(%arg0: i32) -> (i32, i32, i32) {
    %c0_i32 = arith.constant 0 : i32
    %c0_i32_0 = arith.constant 0 : i32
    %c0_i32_1 = arith.constant 0 : i32
    %c0_i32_2 = arith.constant 0 : i32
    return %c0_i32, %c0_i32_0, %c0_i32_1 : i32, i32, i32
  }
  func.func @transform_19(%arg0: i32) -> (i32, i32, i32) {
    %c0_i32 = arith.constant 0 : i32
    %c0_i32_0 = arith.constant 0 : i32
    %c0_i32_1 = arith.constant 0 : i32
    %c0_i32_2 = arith.constant 0 : i32
    return %c0_i32, %c0_i32_0, %c0_i32_1 : i32, i32, i32
  }
  func.func @transform_20(%arg0: i32) -> (i32, i32) {
    %c0_i32 = arith.constant 0 : i32
    %c0_i32_0 = arith.constant 0 : i32
    %c0_i32_1 = arith.constant 0 : i32
    return %c0_i32, %c0_i32_0 : i32, i32
  }
  func.func @transform_21(%arg0: i32) -> (i32, i32) {
    %c0_i32 = arith.constant 0 : i32
    %c0_i32_0 = arith.constant 0 : i32
    %c0_i32_1 = arith.constant 0 : i32
    return %c0_i32, %c0_i32_0 : i32, i32
  }
  func.func @transform_22(%arg0: i32) -> (i32, i32) {
    %c0_i32 = arith.constant 0 : i32
    %c0_i32_0 = arith.constant 0 : i32
    %c0_i32_1 = arith.constant 0 : i32
    return %c0_i32, %c0_i32_0 : i32, i32
  }
  func.func @transform_23(%arg0: i32) -> (i32, i32) {
    %c0_i32 = arith.constant 0 : i32
    %c0_i32_0 = arith.constant 0 : i32
    %c0_i32_1 = arith.constant 0 : i32
    return %c0_i32, %c0_i32_0 : i32, i32
  }
  func.func @transform_24(%arg0: i32) -> (i32, i32, i32) {
    %c0_i32 = arith.constant 0 : i32
    %c0_i32_0 = arith.constant 0 : i32
    %c0_i32_1 = arith.constant 0 : i32
    return %arg0, %c0_i32, %c0_i32_0 : i32, i32, i32
  }
}

</mosaic_0001>

<llo_original>
// kernel: tpu_custom_call.1
$region0: #{tpu_custom_call.1}
  #allocation0 [shape = 'u32[]', space=smem, size = 0x4, offset = 0x4, fixed_abs, tag = 'smem constant byte address 0x4 - core index']
  #allocation1 [shape = 'u32[144,128]{1,0:T(1,128)}', space=vmem, size = 0x12000, scoped, tag = 'internal scratch']
  %s0 = inlined_call_operand.vmem [shape: f32[2,8,32], index: 0, kind: input, shape index: {}]
  %s1 = inlined_call_operand.vmem [shape: f32[2,1,8], index: 1, kind: input, shape index: {}]
  %s2 = inlined_call_operand.vmem [shape: f32[1,32], index: 2, kind: input, shape index: {}]
  %s3 = inlined_call_operand.vmem [shape: f32[1,32], index: 3, kind: input, shape index: {}]
  %s4 = inlined_call_operand.vmem [shape: f32[2,4,32,8], index: 4, kind: input, shape index: {}]
  %s5 = inlined_call_operand.vmem [shape: f32[2,4,1,8], index: 5, kind: input, shape index: {}]
  %s6 = inlined_call_operand.vmem [shape: f32[2,4,32,8], index: 6, kind: input, shape index: {}]
  %s7 = inlined_call_operand.vmem [shape: f32[2,4,1,8], index: 7, kind: input, shape index: {}]
  %s8 = inlined_call_operand.vmem [shape: f32[2,4,32,8], index: 8, kind: input, shape index: {}]
  %s9 = inlined_call_operand.vmem [shape: f32[2,4,1,8], index: 9, kind: input, shape index: {}]
  %s10 = inlined_call_operand.vmem [shape: f32[2,4,8,32], index: 10, kind: input, shape index: {}]
  %s11 = inlined_call_operand.vmem [shape: f32[2,1,32], index: 11, kind: input, shape index: {}]
  %s12 = inlined_call_operand.vmem [shape: f32[2,1,32], index: 12, kind: input, shape index: {}]
  %s13 = inlined_call_operand.vmem [shape: f32[2,1,32], index: 13, kind: input, shape index: {}]
  %s14 = inlined_call_operand.vmem [shape: f32[2,32,64], index: 14, kind: input, shape index: {}]
  %s15 = inlined_call_operand.vmem [shape: f32[2,1,64], index: 15, kind: input, shape index: {}]
  %s16 = inlined_call_operand.vmem [shape: f32[2,64,32], index: 16, kind: input, shape index: {}]
  %s17 = inlined_call_operand.vmem [shape: f32[2,1,32], index: 17, kind: input, shape index: {}]
  %s18 = inlined_call_operand.vmem [shape: f32[2,1,32], index: 18, kind: input, shape index: {}]
  %s19 = inlined_call_operand.vmem [shape: f32[2,1,32], index: 19, kind: input, shape index: {}]
  %s20 = inlined_call_operand.vmem [shape: f32[32,32], index: 20, kind: input, shape index: {}]
  %s21 = inlined_call_operand.vmem [shape: f32[1,32], index: 21, kind: input, shape index: {}]
  %s22 = inlined_call_operand.vmem [shape: f32[32,128], index: 22, kind: input, shape index: {}]
  %s23 = inlined_call_operand.vmem [shape: f32[1,128], index: 23, kind: input, shape index: {}]
  %s24 = inlined_call_operand.hbm [shape: f32[2,1,128], index: 24, kind: output, shape index: {}]
  %s25 = sld [smem:[#allocation0]]
  $region129: #{tpu_custom_call.1} parent=0
    _
  %s27 = ssub.s32 1, %s25
  %s28 = scalar_select 0, %s27, %s25
  $region1: #{tpu_custom_call.1} parent=0
    #allocation2 [shape = 'u8[1024]{0}', space=vmem, size = 0x400, scoped, tag = 'output window, operand 0']
    #allocation3 [shape = 's32[2]{0}', space=sflag, size = 0x8, scoped, tag = 'scoped memory for tpu_custom_call.1']
    %29 = vsyncpa [#allocation3], 0
    %s30 = scalar_lea.sflag [#allocation3], 1
    %31 = vsyncpa %s30, 0
    loop: start=0, step=1, limit=4
    $region2: #{tpu_custom_call.1} parent=1 // loop_pre_header
      _
    $region3: #{tpu_custom_call.1} parent=1 // loop_header
      %s33 = sphi 0, %s37
      %p34 = scmp.ge.s32.totalorder %s33, 4
      %s43 = sphi 0, %s45
      %s46 = sphi 0, %s43
      %s47 = sphi 0, %s46
      %s63 = sphi 0, %s47
      %s69 = sphi 0, %s71
      %s72 = sphi 0, %s69
      %s73 = sphi 0, %s72
      %s89 = sphi 0, %s73
      %s93 = sphi 0, %s93
      %s95 = sphi 0, %s93
      %s96 = sphi 0, %s95
      %s110 = sphi 0, %s96
      %s114 = sphi 0, %s114
      %s116 = sphi 0, %s114
      %s117 = sphi 0, %s116
      %s131 = sphi 0, %s117
      %s135 = sphi 0, %s135
      %s137 = sphi 0, %s135
      %s138 = sphi 0, %s137
      %s152 = sphi 0, %s138
      %s156 = sphi 0, %s156
      %s158 = sphi 0, %s156
      %s159 = sphi 0, %s158
      %s173 = sphi 0, %s159
      %s177 = sphi 0, %s177
      %s179 = sphi 0, %s177
      %s180 = sphi 0, %s179
      %s194 = sphi 0, %s180
      %s198 = sphi 0, %s198
      %s200 = sphi 0, %s198
      %s201 = sphi 0, %s200
      %s215 = sphi 0, %s201
      %s219 = sphi 0, %s219
      %s221 = sphi 0, %s219
      %s222 = sphi 0, %s221
      %s236 = sphi 0, %s222
      %s240 = sphi 0, %s240
      %s242 = sphi 0, %s240
      %s243 = sphi 0, %s242
      %s257 = sphi 0, %s243
      %s261 = sphi 0, %s261
      %s263 = sphi 0, %s261
      %s264 = sphi 0, %s263
      %s278 = sphi 0, %s264
      %s282 = sphi 0, %s282
      %s284 = sphi 0, %s282
      %s285 = sphi 0, %s284
      %s299 = sphi 0, %s285
      %s303 = sphi 0, %s303
      %s305 = sphi 0, %s303
      %s306 = sphi 0, %s305
      %s320 = sphi 0, %s306
      %s324 = sphi 0, %s324
      %s326 = sphi 0, %s324
      %s327 = sphi 0, %s326
      %s341 = sphi 0, %s327
      %s345 = sphi 0, %s345
      %s347 = sphi 0, %s345
      %s348 = sphi 0, %s347
      %s362 = sphi 0, %s348
      %s366 = sphi 0, %s366
      %s368 = sphi 0, %s366
      %s369 = sphi 0, %s368
      %s383 = sphi 0, %s369
      %s387 = sphi 0, %s387
      %s389 = sphi 0, %s387
      %s390 = sphi 0, %s389
      %s404 = sphi 0, %s390
      %s408 = sphi 0, %s408
      %s410 = sphi 0, %s408
      %s411 = sphi 0, %s410
      %s425 = sphi 0, %s411
      %s429 = sphi 0, %s429
      %s431 = sphi 0, %s429
      %s432 = sphi 0, %s431
      %s446 = sphi 0, %s432
      %s450 = sphi 0, %s450
      %s452 = sphi 0, %s450
      %s453 = sphi 0, %s452
      %s467 = sphi 0, %s453
      %s471 = sphi 0, %s471
      %s473 = sphi 0, %s471
      %s474 = sphi 0, %s473
      %s488 = sphi 0, %s474
      %s492 = sphi 0, %s492
      %s494 = sphi 0, %s492
      %s495 = sphi 0, %s494
      %s509 = sphi 0, %s495
      %s513 = sphi 0, %s513
      %s515 = sphi 0, %s513
      %s516 = sphi 0, %s515
      %s530 = sphi 0, %s516
      %s534 = sphi 0, %s534
      %s536 = sphi 0, %s534
      %s537 = sphi 0, %s536
      %s551 = sphi 0, %s537
      %s557 = sphi 0, %s559
      %s560 = sphi 0, %s557
      %s561 = sphi 0, %s560
      %s577 = sphi 0, %s561
    $region4: #{tpu_custom_call.1} parent=1 // loop_header_branch
      %36 = sbr.rel (%p34) target = $region8
    $region5: #{tpu_custom_call.1} parent=1 // loop_body
      %s38 = ssub.s32 %s33, 1
      %s39 = ssub.s32 %s33, 2
      %s40 = sadd.s32 %s33, 1
      %s41 = ssub.s32 %s33, %s40
      %p42 = scmp.eq.s32.totalorder %s41, 0
      %s44 = sadd.s32 %s43, 1
      %s45 = scalar_select %p42, %s43, %s44
      %p48 = pneg %p42
      %p49 = scmp.eq.s32.totalorder %s33, 1
      %p50 = por %p48, %p49
      %p51 = scmp.ne.s32.totalorder %s43, %s46
      %p52 = scmp.eq.s32.totalorder %s33, 0
      %p53 = por %p51, %p52
      %p54 = scmp.ne.s32.totalorder %s43, %s46
      %p55 = scmp.eq.s32.totalorder %s38, 1
      %p56 = por %p54, %p55
      %p57 = scmp.ne.s32.totalorder %s46, %s47
      %p58 = scmp.eq.s32.totalorder %s38, 0
      %p59 = por %p57, %p58
      %p60 = scmp.ne.s32.totalorder %s46, %s47
      %p61 = scmp.eq.s32.totalorder %s39, 1
      %p62 = por %p60, %p61
      %p64 = scmp.ne.s32.totalorder %s47, %s63
      %p65 = scmp.eq.s32.totalorder %s39, 0
      %p66 = por %p64, %p65
      %s67 = ssub.s32 %s33, %s40
      %p68 = scmp.eq.s32.totalorder %s67, 0
      %s70 = sadd.s32 %s69, 1
      %s71 = scalar_select %p68, %s69, %s70
      %p74 = pneg %p68
      %p75 = scmp.eq.s32.totalorder %s33, 1
      %p76 = por %p74, %p75
      %p77 = scmp.ne.s32.totalorder %s69, %s72
      %p78 = scmp.eq.s32.totalorder %s33, 0
      %p79 = por %p77, %p78
      %p80 = scmp.ne.s32.totalorder %s69, %s72
      %p81 = scmp.eq.s32.totalorder %s38, 1
      %p82 = por %p80, %p81
      %p83 = scmp.ne.s32.totalorder %s72, %s73
      %p84 = scmp.eq.s32.totalorder %s38, 0
      %p85 = por %p83, %p84
      %p86 = scmp.ne.s32.totalorder %s72, %s73
      %p87 = scmp.eq.s32.totalorder %s39, 1
      %p88 = por %p86, %p87
      %p90 = scmp.ne.s32.totalorder %s73, %s89
      %p91 = scmp.eq.s32.totalorder %s39, 0
      %p92 = por %p90, %p91
      %s94 = sadd.s32 %s93, 1
      %p97 = scmp.eq.s32.totalorder %s33, 1
      %p98 = scmp.ne.s32.totalorder %s93, %s95
      %p99 = scmp.eq.s32.totalorder %s33, 0
      %p100 = por %p98, %p99
      %p101 = scmp.ne.s32.totalorder %s93, %s95
      %p102 = scmp.eq.s32.totalorder %s38, 1
      %p103 = por %p101, %p102
      %p104 = scmp.ne.s32.totalorder %s95, %s96
      %p105 = scmp.eq.s32.totalorder %s38, 0
      %p106 = por %p104, %p105
      %p107 = scmp.ne.s32.totalorder %s95, %s96
      %p108 = scmp.eq.s32.totalorder %s39, 1
      %p109 = por %p107, %p108
      %p111 = scmp.ne.s32.totalorder %s96, %s110
      %p112 = scmp.eq.s32.totalorder %s39, 0
      %p113 = por %p111, %p112
      %s115 = sadd.s32 %s114, 1
      %p118 = scmp.eq.s32.totalorder %s33, 1
      %p119 = scmp.ne.s32.totalorder %s114, %s116
      %p120 = scmp.eq.s32.totalorder %s33, 0
      %p121 = por %p119, %p120
      %p122 = scmp.ne.s32.totalorder %s114, %s116
      %p123 = scmp.eq.s32.totalorder %s38, 1
      %p124 = por %p122, %p123
      %p125 = scmp.ne.s32.totalorder %s116, %s117
      %p126 = scmp.eq.s32.totalorder %s38, 0
      %p127 = por %p125, %p126
      %p128 = scmp.ne.s32.totalorder %s116, %s117
      %p129 = scmp.eq.s32.totalorder %s39, 1
      %p130 = por %p128, %p129
      %p132 = scmp.ne.s32.totalorder %s117, %s131
      %p133 = scmp.eq.s32.totalorder %s39, 0
      %p134 = por %p132, %p133
      %s136 = sadd.s32 %s135, 1
      %p139 = scmp.eq.s32.totalorder %s33, 1
      %p140 = scmp.ne.s32.totalorder %s135, %s137
      %p141 = scmp.eq.s32.totalorder %s33, 0
      %p142 = por %p140, %p141
      %p143 = scmp.ne.s32.totalorder %s135, %s137
      %p144 = scmp.eq.s32.totalorder %s38, 1
      %p145 = por %p143, %p144
      %p146 = scmp.ne.s32.totalorder %s137, %s138
      %p147 = scmp.eq.s32.totalorder %s38, 0
      %p148 = por %p146, %p147
      %p149 = scmp.ne.s32.totalorder %s137, %s138
      %p150 = scmp.eq.s32.totalorder %s39, 1
      %p151 = por %p149, %p150
      %p153 = scmp.ne.s32.totalorder %s138, %s152
      %p154 = scmp.eq.s32.totalorder %s39, 0
      %p155 = por %p153, %p154
      %s157 = sadd.s32 %s156, 1
      %p160 = scmp.eq.s32.totalorder %s33, 1
      %p161 = scmp.ne.s32.totalorder %s156, %s158
      %p162 = scmp.eq.s32.totalorder %s33, 0
      %p163 = por %p161, %p162
      %p164 = scmp.ne.s32.totalorder %s156, %s158
      %p165 = scmp.eq.s32.totalorder %s38, 1
      %p166 = por %p164, %p165
      %p167 = scmp.ne.s32.totalorder %s158, %s159
      %p168 = scmp.eq.s32.totalorder %s38, 0
      %p169 = por %p167, %p168
      %p170 = scmp.ne.s32.totalorder %s158, %s159
      %p171 = scmp.eq.s32.totalorder %s39, 1
      %p172 = por %p170, %p171
      %p174 = scmp.ne.s32.totalorder %s159, %s173
      %p175 = scmp.eq.s32.totalorder %s39, 0
      %p176 = por %p174, %p175
      %s178 = sadd.s32 %s177, 1
      %p181 = scmp.eq.s32.totalorder %s33, 1
      %p182 = scmp.ne.s32.totalorder %s177, %s179
      %p183 = scmp.eq.s32.totalorder %s33, 0
      %p184 = por %p182, %p183
      %p185 = scmp.ne.s32.totalorder %s177, %s179
      %p186 = scmp.eq.s32.totalorder %s38, 1
      %p187 = por %p185, %p186
      %p188 = scmp.ne.s32.totalorder %s179, %s180
      %p189 = scmp.eq.s32.totalorder %s38, 0
      %p190 = por %p188, %p189
      %p191 = scmp.ne.s32.totalorder %s179, %s180
      %p192 = scmp.eq.s32.totalorder %s39, 1
      %p193 = por %p191, %p192
      %p195 = scmp.ne.s32.totalorder %s180, %s194
      %p196 = scmp.eq.s32.totalorder %s39, 0
      %p197 = por %p195, %p196
      %s199 = sadd.s32 %s198, 1
      %p202 = scmp.eq.s32.totalorder %s33, 1
      %p203 = scmp.ne.s32.totalorder %s198, %s200
      %p204 = scmp.eq.s32.totalorder %s33, 0
      %p205 = por %p203, %p204
      %p206 = scmp.ne.s32.totalorder %s198, %s200
      %p207 = scmp.eq.s32.totalorder %s38, 1
      %p208 = por %p206, %p207
      %p209 = scmp.ne.s32.totalorder %s200, %s201
      %p210 = scmp.eq.s32.totalorder %s38, 0
      %p211 = por %p209, %p210
      %p212 = scmp.ne.s32.totalorder %s200, %s201
      %p213 = scmp.eq.s32.totalorder %s39, 1
      %p214 = por %p212, %p213
      %p216 = scmp.ne.s32.totalorder %s201, %s215
      %p217 = scmp.eq.s32.totalorder %s39, 0
      %p218 = por %p216, %p217
      %s220 = sadd.s32 %s219, 1
      %p223 = scmp.eq.s32.totalorder %s33, 1
      %p224 = scmp.ne.s32.totalorder %s219, %s221
      %p225 = scmp.eq.s32.totalorder %s33, 0
      %p226 = por %p224, %p225
      %p227 = scmp.ne.s32.totalorder %s219, %s221
      %p228 = scmp.eq.s32.totalorder %s38, 1
      %p229 = por %p227, %p228
      %p230 = scmp.ne.s32.totalorder %s221, %s222
      %p231 = scmp.eq.s32.totalorder %s38, 0
      %p232 = por %p230, %p231
      %p233 = scmp.ne.s32.totalorder %s221, %s222
      %p234 = scmp.eq.s32.totalorder %s39, 1
      %p235 = por %p233, %p234
      %p237 = scmp.ne.s32.totalorder %s222, %s236
      %p238 = scmp.eq.s32.totalorder %s39, 0
      %p239 = por %p237, %p238
      %s241 = sadd.s32 %s240, 1
      %p244 = scmp.eq.s32.totalorder %s33, 1
      %p245 = scmp.ne.s32.totalorder %s240, %s242
      %p246 = scmp.eq.s32.totalorder %s33, 0
      %p247 = por %p245, %p246
      %p248 = scmp.ne.s32.totalorder %s240, %s242
      %p249 = scmp.eq.s32.totalorder %s38, 1
      %p250 = por %p248, %p249
      %p251 = scmp.ne.s32.totalorder %s242, %s243
      %p252 = scmp.eq.s32.totalorder %s38, 0
      %p253 = por %p251, %p252
      %p254 = scmp.ne.s32.totalorder %s242, %s243
      %p255 = scmp.eq.s32.totalorder %s39, 1
      %p256 = por %p254, %p255
      %p258 = scmp.ne.s32.totalorder %s243, %s257
      %p259 = scmp.eq.s32.totalorder %s39, 0
      %p260 = por %p258, %p259
      %s262 = sadd.s32 %s261, 1
      %p265 = scmp.eq.s32.totalorder %s33, 1
      %p266 = scmp.ne.s32.totalorder %s261, %s263
      %p267 = scmp.eq.s32.totalorder %s33, 0
      %p268 = por %p266, %p267
      %p269 = scmp.ne.s32.totalorder %s261, %s263
      %p270 = scmp.eq.s32.totalorder %s38, 1
      %p271 = por %p269, %p270
      %p272 = scmp.ne.s32.totalorder %s263, %s264
      %p273 = scmp.eq.s32.totalorder %s38, 0
      %p274 = por %p272, %p273
      %p275 = scmp.ne.s32.totalorder %s263, %s264
      %p276 = scmp.eq.s32.totalorder %s39, 1
      %p277 = por %p275, %p276
      %p279 = scmp.ne.s32.totalorder %s264, %s278
      %p280 = scmp.eq.s32.totalorder %s39, 0
      %p281 = por %p279, %p280
      %s283 = sadd.s32 %s282, 1
      %p286 = scmp.eq.s32.totalorder %s33, 1
      %p287 = scmp.ne.s32.totalorder %s282, %s284
      %p288 = scmp.eq.s32.totalorder %s33, 0
      %p289 = por %p287, %p288
      %p290 = scmp.ne.s32.totalorder %s282, %s284
      %p291 = scmp.eq.s32.totalorder %s38, 1
      %p292 = por %p290, %p291
      %p293 = scmp.ne.s32.totalorder %s284, %s285
      %p294 = scmp.eq.s32.totalorder %s38, 0
      %p295 = por %p293, %p294
      %p296 = scmp.ne.s32.totalorder %s284, %s285
      %p297 = scmp.eq.s32.totalorder %s39, 1
      %p298 = por %p296, %p297
      %p300 = scmp.ne.s32.totalorder %s285, %s299
      %p301 = scmp.eq.s32.totalorder %s39, 0
      %p302 = por %p300, %p301
      %s304 = sadd.s32 %s303, 1
      %p307 = scmp.eq.s32.totalorder %s33, 1
      %p308 = scmp.ne.s32.totalorder %s303, %s305
      %p309 = scmp.eq.s32.totalorder %s33, 0
      %p310 = por %p308, %p309
      %p311 = scmp.ne.s32.totalorder %s303, %s305
      %p312 = scmp.eq.s32.totalorder %s38, 1
      %p313 = por %p311, %p312
      %p314 = scmp.ne.s32.totalorder %s305, %s306
      %p315 = scmp.eq.s32.totalorder %s38, 0
      %p316 = por %p314, %p315
      %p317 = scmp.ne.s32.totalorder %s305, %s306
      %p318 = scmp.eq.s32.totalorder %s39, 1
      %p319 = por %p317, %p318
      %p321 = scmp.ne.s32.totalorder %s306, %s320
      %p322 = scmp.eq.s32.totalorder %s39, 0
      %p323 = por %p321, %p322
      %s325 = sadd.s32 %s324, 1
      %p328 = scmp.eq.s32.totalorder %s33, 1
      %p329 = scmp.ne.s32.totalorder %s324, %s326
      %p330 = scmp.eq.s32.totalorder %s33, 0
      %p331 = por %p329, %p330
      %p332 = scmp.ne.s32.totalorder %s324, %s326
      %p333 = scmp.eq.s32.totalorder %s38, 1
      %p334 = por %p332, %p333
      %p335 = scmp.ne.s32.totalorder %s326, %s327
      %p336 = scmp.eq.s32.totalorder %s38, 0
      %p337 = por %p335, %p336
      %p338 = scmp.ne.s32.totalorder %s326, %s327
      %p339 = scmp.eq.s32.totalorder %s39, 1
      %p340 = por %p338, %p339
      %p342 = scmp.ne.s32.totalorder %s327, %s341
      %p343 = scmp.eq.s32.totalorder %s39, 0
      %p344 = por %p342, %p343
      %s346 = sadd.s32 %s345, 1
      %p349 = scmp.eq.s32.totalorder %s33, 1
      %p350 = scmp.ne.s32.totalorder %s345, %s347
      %p351 = scmp.eq.s32.totalorder %s33, 0
      %p352 = por %p350, %p351
      %p353 = scmp.ne.s32.totalorder %s345, %s347
      %p354 = scmp.eq.s32.totalorder %s38, 1
      %p355 = por %p353, %p354
      %p356 = scmp.ne.s32.totalorder %s347, %s348
      %p357 = scmp.eq.s32.totalorder %s38, 0
      %p358 = por %p356, %p357
      %p359 = scmp.ne.s32.totalorder %s347, %s348
      %p360 = scmp.eq.s32.totalorder %s39, 1
      %p361 = por %p359, %p360
      %p363 = scmp.ne.s32.totalorder %s348, %s362
      %p364 = scmp.eq.s32.totalorder %s39, 0
      %p365 = por %p363, %p364
      %s367 = sadd.s32 %s366, 1
      %p370 = scmp.eq.s32.totalorder %s33, 1
      %p371 = scmp.ne.s32.totalorder %s366, %s368
      %p372 = scmp.eq.s32.totalorder %s33, 0
      %p373 = por %p371, %p372
      %p374 = scmp.ne.s32.totalorder %s366, %s368
      %p375 = scmp.eq.s32.totalorder %s38, 1
      %p376 = por %p374, %p375
      %p377 = scmp.ne.s32.totalorder %s368, %s369
      %p378 = scmp.eq.s32.totalorder %s38, 0
      %p379 = por %p377, %p378
      %p380 = scmp.ne.s32.totalorder %s368, %s369
      %p381 = scmp.eq.s32.totalorder %s39, 1
      %p382 = por %p380, %p381
      %p384 = scmp.ne.s32.totalorder %s369, %s383
      %p385 = scmp.eq.s32.totalorder %s39, 0
      %p386 = por %p384, %p385
      %s388 = sadd.s32 %s387, 1
      %p391 = scmp.eq.s32.totalorder %s33, 1
      %p392 = scmp.ne.s32.totalorder %s387, %s389
      %p393 = scmp.eq.s32.totalorder %s33, 0
      %p394 = por %p392, %p393
      %p395 = scmp.ne.s32.totalorder %s387, %s389
      %p396 = scmp.eq.s32.totalorder %s38, 1
      %p397 = por %p395, %p396
      %p398 = scmp.ne.s32.totalorder %s389, %s390
      %p399 = scmp.eq.s32.totalorder %s38, 0
      %p400 = por %p398, %p399
      %p401 = scmp.ne.s32.totalorder %s389, %s390
      %p402 = scmp.eq.s32.totalorder %s39, 1
      %p403 = por %p401, %p402
      %p405 = scmp.ne.s32.totalorder %s390, %s404
      %p406 = scmp.eq.s32.totalorder %s39, 0
      %p407 = por %p405, %p406
      %s409 = sadd.s32 %s408, 1
      %p412 = scmp.eq.s32.totalorder %s33, 1
      %p413 = scmp.ne.s32.totalorder %s408, %s410
      %p414 = scmp.eq.s32.totalorder %s33, 0
      %p415 = por %p413, %p414
      %p416 = scmp.ne.s32.totalorder %s408, %s410
      %p417 = scmp.eq.s32.totalorder %s38, 1
      %p418 = por %p416, %p417
      %p419 = scmp.ne.s32.totalorder %s410, %s411
      %p420 = scmp.eq.s32.totalorder %s38, 0
      %p421 = por %p419, %p420
      %p422 = scmp.ne.s32.totalorder %s410, %s411
      %p423 = scmp.eq.s32.totalorder %s39, 1
      %p424 = por %p422, %p423
      %p426 = scmp.ne.s32.totalorder %s411, %s425
      %p427 = scmp.eq.s32.totalorder %s39, 0
      %p428 = por %p426, %p427
      %s430 = sadd.s32 %s429, 1
      %p433 = scmp.eq.s32.totalorder %s33, 1
      %p434 = scmp.ne.s32.totalorder %s429, %s431
      %p435 = scmp.eq.s32.totalorder %s33, 0
      %p436 = por %p434, %p435
      %p437 = scmp.ne.s32.totalorder %s429, %s431
      %p438 = scmp.eq.s32.totalorder %s38, 1
      %p439 = por %p437, %p438
      %p440 = scmp.ne.s32.totalorder %s431, %s432
      %p441 = scmp.eq.s32.totalorder %s38, 0
      %p442 = por %p440, %p441
      %p443 = scmp.ne.s32.totalorder %s431, %s432
      %p444 = scmp.eq.s32.totalorder %s39, 1
      %p445 = por %p443, %p444
      %p447 = scmp.ne.s32.totalorder %s432, %s446
      %p448 = scmp.eq.s32.totalorder %s39, 0
      %p449 = por %p447, %p448
      %s451 = sadd.s32 %s450, 1
      %p454 = scmp.eq.s32.totalorder %s33, 1
      %p455 = scmp.ne.s32.totalorder %s450, %s452
      %p456 = scmp.eq.s32.totalorder %s33, 0
      %p457 = por %p455, %p456
      %p458 = scmp.ne.s32.totalorder %s450, %s452
      %p459 = scmp.eq.s32.totalorder %s38, 1
      %p460 = por %p458, %p459
      %p461 = scmp.ne.s32.totalorder %s452, %s453
      %p462 = scmp.eq.s32.totalorder %s38, 0
      %p463 = por %p461, %p462
      %p464 = scmp.ne.s32.totalorder %s452, %s453
      %p465 = scmp.eq.s32.totalorder %s39, 1
      %p466 = por %p464, %p465
      %p468 = scmp.ne.s32.totalorder %s453, %s467
      %p469 = scmp.eq.s32.totalorder %s39, 0
      %p470 = por %p468, %p469
      %s472 = sadd.s32 %s471, 1
      %p475 = scmp.eq.s32.totalorder %s33, 1
      %p476 = scmp.ne.s32.totalorder %s471, %s473
      %p477 = scmp.eq.s32.totalorder %s33, 0
      %p478 = por %p476, %p477
      %p479 = scmp.ne.s32.totalorder %s471, %s473
      %p480 = scmp.eq.s32.totalorder %s38, 1
      %p481 = por %p479, %p480
      %p482 = scmp.ne.s32.totalorder %s473, %s474
      %p483 = scmp.eq.s32.totalorder %s38, 0
      %p484 = por %p482, %p483
      %p485 = scmp.ne.s32.totalorder %s473, %s474
      %p486 = scmp.eq.s32.totalorder %s39, 1
      %p487 = por %p485, %p486
      %p489 = scmp.ne.s32.totalorder %s474, %s488
      %p490 = scmp.eq.s32.totalorder %s39, 0
      %p491 = por %p489, %p490
      %s493 = sadd.s32 %s492, 1
      %p496 = scmp.eq.s32.totalorder %s33, 1
      %p497 = scmp.ne.s32.totalorder %s492, %s494
      %p498 = scmp.eq.s32.totalorder %s33, 0
      %p499 = por %p497, %p498
      %p500 = scmp.ne.s32.totalorder %s492, %s494
      %p501 = scmp.eq.s32.totalorder %s38, 1
      %p502 = por %p500, %p501
      %p503 = scmp.ne.s32.totalorder %s494, %s495
      %p504 = scmp.eq.s32.totalorder %s38, 0
      %p505 = por %p503, %p504
      %p506 = scmp.ne.s32.totalorder %s494, %s495
      %p507 = scmp.eq.s32.totalorder %s39, 1
      %p508 = por %p506, %p507
      %p510 = scmp.ne.s32.totalorder %s495, %s509
      %p511 = scmp.eq.s32.totalorder %s39, 0
      %p512 = por %p510, %p511
      %s514 = sadd.s32 %s513, 1
      %p517 = scmp.eq.s32.totalorder %s33, 1
      %p518 = scmp.ne.s32.totalorder %s513, %s515
      %p519 = scmp.eq.s32.totalorder %s33, 0
      %p520 = por %p518, %p519
      %p521 = scmp.ne.s32.totalorder %s513, %s515
      %p522 = scmp.eq.s32.totalorder %s38, 1
      %p523 = por %p521, %p522
      %p524 = scmp.ne.s32.totalorder %s515, %s516
      %p525 = scmp.eq.s32.totalorder %s38, 0
      %p526 = por %p524, %p525
      %p527 = scmp.ne.s32.totalorder %s515, %s516
      %p528 = scmp.eq.s32.totalorder %s39, 1
      %p529 = por %p527, %p528
      %p531 = scmp.ne.s32.totalorder %s516, %s530
      %p532 = scmp.eq.s32.totalorder %s39, 0
      %p533 = por %p531, %p532
      %s535 = sadd.s32 %s534, 1
      %p538 = scmp.eq.s32.totalorder %s33, 1
      %p539 = scmp.ne.s32.totalorder %s534, %s536
      %p540 = scmp.eq.s32.totalorder %s33, 0
      %p541 = por %p539, %p540
      %p542 = scmp.ne.s32.totalorder %s534, %s536
      %p543 = scmp.eq.s32.totalorder %s38, 1
      %p544 = por %p542, %p543
      %p545 = scmp.ne.s32.totalorder %s536, %s537
      %p546 = scmp.eq.s32.totalorder %s38, 0
      %p547 = por %p545, %p546
      %p548 = scmp.ne.s32.totalorder %s536, %s537
      %p549 = scmp.eq.s32.totalorder %s39, 1
      %p550 = por %p548, %p549
      %p552 = scmp.ne.s32.totalorder %s537, %s551
      %p553 = scmp.eq.s32.totalorder %s39, 0
      %p554 = por %p552, %p553
      %s555 = ssub.s32 %s33, %s40
      %p556 = scmp.eq.s32.totalorder %s555, 0
      %s558 = sadd.s32 %s557, 1
      %s559 = scalar_select %p556, %s557, %s558
      %p562 = pneg %p556
      %p563 = scmp.eq.s32.totalorder %s33, 1
      %p564 = por %p562, %p563
      %p565 = scmp.ne.s32.totalorder %s557, %s560
      %p566 = scmp.eq.s32.totalorder %s33, 0
      %p567 = por %p565, %p566
      %p568 = scmp.ne.s32.totalorder %s557, %s560
      %p569 = scmp.eq.s32.totalorder %s38, 1
      %p570 = por %p568, %p569
      %p571 = scmp.ne.s32.totalorder %s560, %s561
      %p572 = scmp.eq.s32.totalorder %s38, 0
      %p573 = por %p571, %p572
      %p574 = scmp.ne.s32.totalorder %s560, %s561
      %p575 = scmp.eq.s32.totalorder %s39, 1
      %p576 = por %p574, %p575
      %p578 = scmp.ne.s32.totalorder %s561, %s577
      %p579 = scmp.eq.s32.totalorder %s39, 0
      %p580 = por %p578, %p579
      %p581 = scmp.le.s32.totalorder 1, %s33
      %p582 = scmp.lt.s32.totalorder %s33, 3
      %p583 = pnand %p581, %p582
      %p584 = pneg %p583
      // Predicated region
      $region9: #{tpu_custom_call.1} parent=5 // pred_check
        _
      $region10: #{tpu_custom_call.1} parent=5 // pred_check_branch
        %586 = sbr.rel (%p583) target = $region12
      $region11: #{tpu_custom_call.1} parent=5 // pred_region
        %s587 = ssub.s32 %s33, 1
        // Predicated region
        $region13: #{tpu_custom_call.1} parent=11 // pred_check
          %p588 = pneg %p106
        $region14: #{tpu_custom_call.1} parent=11 // pred_check_branch
          %590 = sbr.rel (%p588) target = $region16
        $region15: #{tpu_custom_call.1} parent=11 // pred_region
          _
        $region16: #{tpu_custom_call.1} parent=11 // pred_fallthru
          _
        // Predicated region
        $region17: #{tpu_custom_call.1} parent=11 // pred_check
          %p591 = pneg %p127
        $region18: #{tpu_custom_call.1} parent=11 // pred_check_branch
          %593 = sbr.rel (%p591) target = $region20
        $region19: #{tpu_custom_call.1} parent=11 // pred_region
          _
        $region20: #{tpu_custom_call.1} parent=11 // pred_fallthru
          _
        // Predicated region
        $region21: #{tpu_custom_call.1} parent=11 // pred_check
          %p594 = pneg %p148
        $region22: #{tpu_custom_call.1} parent=11 // pred_check_branch
          %596 = sbr.rel (%p594) target = $region24
        $region23: #{tpu_custom_call.1} parent=11 // pred_region
          _
        $region24: #{tpu_custom_call.1} parent=11 // pred_fallthru
          _
        // Predicated region
        $region25: #{tpu_custom_call.1} parent=11 // pred_check
          %p597 = pneg %p169
        $region26: #{tpu_custom_call.1} parent=11 // pred_check_branch
          %599 = sbr.rel (%p597) target = $region28
        $region27: #{tpu_custom_call.1} parent=11 // pred_region
          _
        $region28: #{tpu_custom_call.1} parent=11 // pred_fallthru
          _
        // Predicated region
        $region29: #{tpu_custom_call.1} parent=11 // pred_check
          %p600 = pneg %p190
        $region30: #{tpu_custom_call.1} parent=11 // pred_check_branch
          %602 = sbr.rel (%p600) target = $region32
        $region31: #{tpu_custom_call.1} parent=11 // pred_region
          _
        $region32: #{tpu_custom_call.1} parent=11 // pred_fallthru
          _
        // Predicated region
        $region33: #{tpu_custom_call.1} parent=11 // pred_check
          %p603 = pneg %p211
        $region34: #{tpu_custom_call.1} parent=11 // pred_check_branch
          %605 = sbr.rel (%p603) target = $region36
        $region35: #{tpu_custom_call.1} parent=11 // pred_region
          _
        $region36: #{tpu_custom_call.1} parent=11 // pred_fallthru
          _
        // Predicated region
        $region37: #{tpu_custom_call.1} parent=11 // pred_check
          %p606 = pneg %p232
        $region38: #{tpu_custom_call.1} parent=11 // pred_check_branch
          %608 = sbr.rel (%p606) target = $region40
        $region39: #{tpu_custom_call.1} parent=11 // pred_region
          _
        $region40: #{tpu_custom_call.1} parent=11 // pred_fallthru
          _
        // Predicated region
        $region41: #{tpu_custom_call.1} parent=11 // pred_check
          %p609 = pneg %p253
        $region42: #{tpu_custom_call.1} parent=11 // pred_check_branch
          %611 = sbr.rel (%p609) target = $region44
        $region43: #{tpu_custom_call.1} parent=11 // pred_region
          _
        $region44: #{tpu_custom_call.1} parent=11 // pred_fallthru
          _
        // Predicated region
        $region45: #{tpu_custom_call.1} parent=11 // pred_check
          %p612 = pneg %p274
        $region46: #{tpu_custom_call.1} parent=11 // pred_check_branch
          %614 = sbr.rel (%p612) target = $region48
        $region47: #{tpu_custom_call.1} parent=11 // pred_region
          _
        $region48: #{tpu_custom_call.1} parent=11 // pred_fallthru
          _
        // Predicated region
        $region49: #{tpu_custom_call.1} parent=11 // pred_check
          %p615 = pneg %p295
        $region50: #{tpu_custom_call.1} parent=11 // pred_check_branch
          %617 = sbr.rel (%p615) target = $region52
        $region51: #{tpu_custom_call.1} parent=11 // pred_region
          _
        $region52: #{tpu_custom_call.1} parent=11 // pred_fallthru
          _
        // Predicated region
        $region53: #{tpu_custom_call.1} parent=11 // pred_check
          %p618 = pneg %p316
        $region54: #{tpu_custom_call.1} parent=11 // pred_check_branch
          %620 = sbr.rel (%p618) target = $region56
        $region55: #{tpu_custom_call.1} parent=11 // pred_region
          _
        $region56: #{tpu_custom_call.1} parent=11 // pred_fallthru
          _
        // Predicated region
        $region57: #{tpu_custom_call.1} parent=11 // pred_check
          %p621 = pneg %p337
        $region58: #{tpu_custom_call.1} parent=11 // pred_check_branch
          %623 = sbr.rel (%p621) target = $region60
        $region59: #{tpu_custom_call.1} parent=11 // pred_region
          _
        $region60: #{tpu_custom_call.1} parent=11 // pred_fallthru
          _
        // Predicated region
        $region61: #{tpu_custom_call.1} parent=11 // pred_check
          %p624 = pneg %p358
        $region62: #{tpu_custom_call.1} parent=11 // pred_check_branch
          %626 = sbr.rel (%p624) target = $region64
        $region63: #{tpu_custom_call.1} parent=11 // pred_region
          _
        $region64: #{tpu_custom_call.1} parent=11 // pred_fallthru
          _
        // Predicated region
        $region65: #{tpu_custom_call.1} parent=11 // pred_check
          %p627 = pneg %p379
        $region66: #{tpu_custom_call.1} parent=11 // pred_check_branch
          %629 = sbr.rel (%p627) target = $region68
        $region67: #{tpu_custom_call.1} parent=11 // pred_region
          _
        $region68: #{tpu_custom_call.1} parent=11 // pred_fallthru
          _
        // Predicated region
        $region69: #{tpu_custom_call.1} parent=11 // pred_check
          %p630 = pneg %p400
        $region70: #{tpu_custom_call.1} parent=11 // pred_check_branch
          %632 = sbr.rel (%p630) target = $region72
        $region71: #{tpu_custom_call.1} parent=11 // pred_region
          _
        $region72: #{tpu_custom_call.1} parent=11 // pred_fallthru
          _
        // Predicated region
        $region73: #{tpu_custom_call.1} parent=11 // pred_check
          %p633 = pneg %p421
        $region74: #{tpu_custom_call.1} parent=11 // pred_check_branch
          %635 = sbr.rel (%p633) target = $region76
        $region75: #{tpu_custom_call.1} parent=11 // pred_region
          _
        $region76: #{tpu_custom_call.1} parent=11 // pred_fallthru
          _
        // Predicated region
        $region77: #{tpu_custom_call.1} parent=11 // pred_check
          %p636 = pneg %p442
        $region78: #{tpu_custom_call.1} parent=11 // pred_check_branch
          %638 = sbr.rel (%p636) target = $region80
        $region79: #{tpu_custom_call.1} parent=11 // pred_region
          _
        $region80: #{tpu_custom_call.1} parent=11 // pred_fallthru
          _
        // Predicated region
        $region81: #{tpu_custom_call.1} parent=11 // pred_check
          %p639 = pneg %p463
        $region82: #{tpu_custom_call.1} parent=11 // pred_check_branch
          %641 = sbr.rel (%p639) target = $region84
        $region83: #{tpu_custom_call.1} parent=11 // pred_region
          _
        $region84: #{tpu_custom_call.1} parent=11 // pred_fallthru
          _
        // Predicated region
        $region85: #{tpu_custom_call.1} parent=11 // pred_check
          %p642 = pneg %p484
        $region86: #{tpu_custom_call.1} parent=11 // pred_check_branch
          %644 = sbr.rel (%p642) target = $region88
        $region87: #{tpu_custom_call.1} parent=11 // pred_region
          _
        $region88: #{tpu_custom_call.1} parent=11 // pred_fallthru
          _
        // Predicated region
        $region89: #{tpu_custom_call.1} parent=11 // pred_check
          %p645 = pneg %p505
        $region90: #{tpu_custom_call.1} parent=11 // pred_check_branch
          %647 = sbr.rel (%p645) target = $region92
        $region91: #{tpu_custom_call.1} parent=11 // pred_region
          _
        $region92: #{tpu_custom_call.1} parent=11 // pred_fallthru
          _
        // Predicated region
        $region93: #{tpu_custom_call.1} parent=11 // pred_check
          %p648 = pneg %p526
        $region94: #{tpu_custom_call.1} parent=11 // pred_check_branch
          %650 = sbr.rel (%p648) target = $region96
        $region95: #{tpu_custom_call.1} parent=11 // pred_region
          _
        $region96: #{tpu_custom_call.1} parent=11 // pred_fallthru
          _
        // Predicated region
        $region97: #{tpu_custom_call.1} parent=11 // pred_check
          %p651 = pneg %p547
        $region98: #{tpu_custom_call.1} parent=11 // pred_check_branch
          %653 = sbr.rel (%p651) target = $region100
        $region99: #{tpu_custom_call.1} parent=11 // pred_region
          _
        $region100: #{tpu_custom_call.1} parent=11 // pred_fallthru
          _
      $region12: #{tpu_custom_call.1} parent=5 // pred_fallthru
        _
      %p654 = scmp.lt.s32.totalorder %s33, 2
      // Predicated region
      $region101: #{tpu_custom_call.1} parent=5 // pred_check
        %p655 = pneg %p654
      $region102: #{tpu_custom_call.1} parent=5 // pred_check_branch
        %657 = sbr.rel (%p655) target = $region104
      $region103: #{tpu_custom_call.1} parent=5 // pred_region
        // Predicated region
        $region105: #{tpu_custom_call.1} parent=103 // pred_check
          %p658 = pneg %p53
        $region106: #{tpu_custom_call.1} parent=103 // pred_check_branch
          %660 = sbr.rel (%p658) target = $region108
        $region107: #{tpu_custom_call.1} parent=103 // pred_region
          %p661 = scmp.lt.s32.totalorder %s33, 1
          %s662 = scalar_select %p661, %s33, 1
          %s663 = smul.addr %s662, 8
          %s664 = scalar_lea.vmem %s0, %s663
        $region108: #{tpu_custom_call.1} parent=103 // pred_fallthru
          _
        // Predicated region
        $region109: #{tpu_custom_call.1} parent=103 // pred_check
          %p665 = pneg %p79
        $region110: #{tpu_custom_call.1} parent=103 // pred_check_branch
          %667 = sbr.rel (%p665) target = $region112
        $region111: #{tpu_custom_call.1} parent=103 // pred_region
          %p668 = scmp.lt.s32.totalorder %s33, 1
          %s669 = scalar_select %p668, %s33, 1
          %s670 = scalar_lea.vmem %s1, %s669
        $region112: #{tpu_custom_call.1} parent=103 // pred_fallthru
          _
      $region104: #{tpu_custom_call.1} parent=5 // pred_fallthru
        _
      %p671 = scmp.le.s32.totalorder 1, %s33
      %p672 = scmp.lt.s32.totalorder %s33, 3
      %p673 = pnand %p671, %p672
      %p674 = pneg %p673
      // Predicated region
      $region113: #{tpu_custom_call.1} parent=5 // pred_check
        _
      $region114: #{tpu_custom_call.1} parent=5 // pred_check_branch
        %676 = sbr.rel (%p673) target = $region116
      $region115: #{tpu_custom_call.1} parent=5 // pred_region
        %s677 = ssub.s32 %s33, 1
        %p678 = scmp.lt.s32.totalorder %s38, 1
        %s679 = scalar_select %p678, %s38, 1
        %s680 = smul.addr %s679, 8
        %s681 = scalar_lea.vmem %s0, %s680
        %p682 = pneg %p59
        %p683 = pneg %p56
        %p684 = scmp.lt.s32.totalorder %s38, 1
        %s685 = scalar_select %p684, %s38, 1
        %s686 = scalar_lea.vmem %s1, %s685
        %p687 = pneg %p85
        %p688 = pneg %p82
        %p689 = pneg %p106
        %p690 = pneg %p103
        %p691 = pneg %p127
        %p692 = pneg %p124
        %p693 = pneg %p148
        %p694 = pneg %p145
        %p695 = pneg %p169
        %p696 = pneg %p166
        %p697 = pneg %p190
        %p698 = pneg %p187
        %p699 = pneg %p211
        %p700 = pneg %p208
        %p701 = pneg %p232
        %p702 = pneg %p229
        %p703 = pneg %p253
        %p704 = pneg %p250
        %p705 = pneg %p274
        %p706 = pneg %p271
        %p707 = pneg %p295
        %p708 = pneg %p292
        %p709 = pneg %p316
        %p710 = pneg %p313
        %p711 = pneg %p337
        %p712 = pneg %p334
        %p713 = pneg %p358
        %p714 = pneg %p355
        %p715 = pneg %p379
        %p716 = pneg %p376
        %p717 = pneg %p400
        %p718 = pneg %p397
        %p719 = pneg %p421
        %p720 = pneg %p418
        %p721 = pneg %p442
        %p722 = pneg %p439
        %p723 = pneg %p463
        %p724 = pneg %p460
        %p725 = pneg %p484
        %p726 = pneg %p481
        %p727 = pneg %p505
        %p728 = pneg %p502
        %p729 = pneg %p526
        %p730 = pneg %p523
        %p731 = pneg %p547
        %p732 = pneg %p544
        %p733 = pneg %p573
        %p734 = pneg %p570
        %s735 = sand.u32 %s560, 1
        %s736 = scalar_lea.sflag [#allocation3], %s735
        %s737 = sand.u32 %s560, 1
        %s738 = scalar_lea.vmem [#allocation2], %s737
        %p739 = scmp.lt.s32.totalorder %s38, 1
        %s740 = scalar_select %p739, %s38, 1
        %s741 = smul.addr %s740, 8
        %s742 = scalar_lea.vmem %s0, %s741
        %p743 = scmp.lt.s32.totalorder %s38, 1
        %s744 = scalar_select %p743, %s38, 1
        %s745 = scalar_lea.vmem %s1, %s744
        %v746 = vld [vmem:[%s745] sm:$0x1]
        %v747 = vld [vmem:[%s742] sm:$0xff]
        %v748 = vld [vmem:[%s2] sm:$0x1]
        %v749 = vld [vmem:[%s3] sm:$0x1]
        %vm750 = vcmask 261120
        %v751 = vsel %vm750, %v747, 0.0
        %752 = vadd.xlane.f32.xlu0 %v751
        %v753 = vpop.xlane.xlu0 %752
        %v754 = vrcp.pop 32.0
        %v755 = vmul.f32 %v753, %v754
        %v756 = vsub.f32 %v747, %v755
        %v757 = vmul.f32 %v756, %v756
        %v758 = vsel %vm750, %v757, 0.0
        %759 = vadd.xlane.f32.xlu0 %v758
        %v760 = vpop.xlane.xlu0 %759
        %v761 = vmul.f32 %v760, %v754
        %v762 = vadd.f32 %v761, 1e-12
        %v763 = vrsqrt.pop %v762
        %v764 = vmul.f32 %v756, %v763
        %v766 = vlaneseq
        %v767 = vshrl.u32 %v766, 7
        %v768 = vsub.s32 0, %v767
        %v769 = vrot.slane %v748, %v768
        %v771 = vmul.f32 %v764, %v769
        %v773 = vlaneseq
        %v774 = vshrl.u32 %v773, 7
        %v775 = vsub.s32 0, %v774
        %v776 = vrot.slane %v749, %v775
        %v778 = vadd.f32 %v771, %v776
        %v779 = vld [vmem:[%s4] sm:$0xff]
        %v780 = vld [vmem:[%s4 + $0x8] sm:$0xff]
        %v781 = vld [vmem:[%s4 + $0x10] sm:$0xff]
        %v782 = vld [vmem:[%s4 + $0x18] sm:$0xff]
        %v783 = vld [vmem:[%s5] sm:$0x1]
        %v785 = vlaneseq
        %v786 = vshrl.u32 %v785, 7
        %v787 = vsub.s32 0, %v786
        %v788 = vrot.slane %v783, %v787
        %v791 = vsel %vm750, %v778, 0
        %793 = vmatprep.subr.mxu0 0.0
        %794 = vmatpush1.msra.mxu0 0.0
        %795 = vmatprep.subr.mxu0 0.0
        %796 = vmatpush1.msra.mxu0 0.0
        %797 = vmatprep.subr.mxu0 0.0
        %798 = vmatpush1.msra.mxu0 0.0
        %799 = vmatprep.subr.mxu0 0.0
        %800 = vmatpush1.msra.mxu0 0.0
        %801 = vmatprep.subr.mxu0 0.0
        %802 = vmatpush1.msra.mxu0 0.0
        %803 = vmatprep.subr.mxu0 0.0
        %804 = vmatpush1.msra.mxu0 0.0
        %805 = vmatprep.subr.mxu0 0.0
        %806 = vmatpush1.msra.mxu0 0.0
        %807 = vmatprep.subr.mxu0 0.0
        %808 = vmatpush1.msra.mxu0 0.0
        %809 = vmatprep.subr.mxu0 0.0
        %810 = vmatpush1.msra.mxu0 0.0
        %811 = vmatprep.subr.mxu0 0.0
        %812 = vmatpush1.msra.mxu0 0.0
        %813 = vmatprep.subr.mxu0 0.0
        %814 = vmatpush1.msra.mxu0 0.0
        %815 = vmatprep.subr.mxu0 0.0
        %816 = vmatpush1.msra.mxu0 0.0
        %817 = vmatprep.subr.mxu0 0.0
        %818 = vmatpush1.msra.mxu0 %v782
        %819 = vmatprep.subr.mxu0 0.0
        %820 = vmatpush1.msra.mxu0 %v781
        %821 = vmatprep.subr.mxu0 0.0
        %822 = vmatpush1.msra.mxu0 %v780
        %823 = vmatprep.subr.mxu0 0.0
        %824 = vmatpush1.msra.mxu0 %v779
        %825 = vmatprep.subr.mxu0 0.0
        %826 = vmatpush2.msra.mxu0 0.0
        %827 = vmatprep.subr.mxu0 0.0
        %828 = vmatpush2.msra.mxu0 0.0
        %829 = vmatprep.subr.mxu0 0.0
        %830 = vmatpush2.msra.mxu0 0.0
        %831 = vmatprep.subr.mxu0 0.0
        %832 = vmatpush2.msra.mxu0 0.0
        %833 = vmatprep.subr.mxu0 0.0
        %834 = vmatpush2.msra.mxu0 0.0
        %835 = vmatprep.subr.mxu0 0.0
        %836 = vmatpush2.msra.mxu0 0.0
        %837 = vmatprep.subr.mxu0 0.0
        %838 = vmatpush2.msra.mxu0 0.0
        %839 = vmatprep.subr.mxu0 0.0
        %840 = vmatpush2.msra.mxu0 0.0
        %841 = vmatprep.subr.mxu0 0.0
        %842 = vmatpush2.msra.mxu0 0.0
        %843 = vmatprep.subr.mxu0 0.0
        %844 = vmatpush2.msra.mxu0 0.0
        %845 = vmatprep.subr.mxu0 0.0
        %846 = vmatpush2.msra.mxu0 0.0
        %847 = vmatprep.subr.mxu0 0.0
        %848 = vmatpush2.msra.mxu0 0.0
        %849 = vmatprep.subr.mxu0 0.0
        %850 = vmatpush2.msra.mxu0 0.0
        %851 = vmatprep.subr.mxu0 0.0
        %852 = vmatpush2.msra.mxu0 0.0
        %853 = vmatprep.subr.mxu0 0.0
        %854 = vmatpush2.msra.mxu0 0.0
        %855 = vmatprep.subr.mxu0 0.0
        %856 = vmatpush2.msra.mxu0 0.0
        %857 = vmatprep.mubr.f32.mxu0 0.0
        %858 = vmatmul.mubr.f32.gmra.mxu0 %v791
        %v859 = vpop.f32.mrf.mxu0
        %v860 = vadd.f32 %v788, %v859
        %v861 = vpop.f32.mrf.mxu0
        %862 = vdwg.mxu0
        %v863 = vld [vmem:[%s6] sm:$0xff]
        %v864 = vld [vmem:[%s6 + $0x8] sm:$0xff]
        %v865 = vld [vmem:[%s6 + $0x10] sm:$0xff]
        %v866 = vld [vmem:[%s6 + $0x18] sm:$0xff]
        %v867 = vld [vmem:[%s7] sm:$0x1]
        %v869 = vlaneseq
        %v870 = vshrl.u32 %v869, 7
        %v871 = vsub.s32 0, %v870
        %v872 = vrot.slane %v867, %v871
        %874 = vmatprep.subr.mxu0 0.0
        %875 = vmatpush1.msra.mxu0 0.0
        %876 = vmatprep.subr.mxu0 0.0
        %877 = vmatpush1.msra.mxu0 0.0
        %878 = vmatprep.subr.mxu0 0.0
        %879 = vmatpush1.msra.mxu0 0.0
        %880 = vmatprep.subr.mxu0 0.0
        %881 = vmatpush1.msra.mxu0 0.0
        %882 = vmatprep.subr.mxu0 0.0
        %883 = vmatpush1.msra.mxu0 0.0
        %884 = vmatprep.subr.mxu0 0.0
        %885 = vmatpush1.msra.mxu0 0.0
        %886 = vmatprep.subr.mxu0 0.0
        %887 = vmatpush1.msra.mxu0 0.0
        %888 = vmatprep.subr.mxu0 0.0
        %889 = vmatpush1.msra.mxu0 0.0
        %890 = vmatprep.subr.mxu0 0.0
        %891 = vmatpush1.msra.mxu0 0.0
        %892 = vmatprep.subr.mxu0 0.0
        %893 = vmatpush1.msra.mxu0 0.0
        %894 = vmatprep.subr.mxu0 0.0
        %895 = vmatpush1.msra.mxu0 0.0
        %896 = vmatprep.subr.mxu0 0.0
        %897 = vmatpush1.msra.mxu0 0.0
        %898 = vmatprep.subr.mxu0 0.0
        %899 = vmatpush1.msra.mxu0 %v866
        %900 = vmatprep.subr.mxu0 0.0
        %901 = vmatpush1.msra.mxu0 %v865
        %902 = vmatprep.subr.mxu0 0.0
        %903 = vmatpush1.msra.mxu0 %v864
        %904 = vmatprep.subr.mxu0 0.0
        %905 = vmatpush1.msra.mxu0 %v863
        %906 = vmatprep.subr.mxu0 0.0
        %907 = vmatpush2.msra.mxu0 0.0
        %908 = vmatprep.subr.mxu0 0.0
        %909 = vmatpush2.msra.mxu0 0.0
        %910 = vmatprep.subr.mxu0 0.0
        %911 = vmatpush2.msra.mxu0 0.0
        %912 = vmatprep.subr.mxu0 0.0
        %913 = vmatpush2.msra.mxu0 0.0
        %914 = vmatprep.subr.mxu0 0.0
        %915 = vmatpush2.msra.mxu0 0.0
        %916 = vmatprep.subr.mxu0 0.0
        %917 = vmatpush2.msra.mxu0 0.0
        %918 = vmatprep.subr.mxu0 0.0
        %919 = vmatpush2.msra.mxu0 0.0
        %920 = vmatprep.subr.mxu0 0.0
        %921 = vmatpush2.msra.mxu0 0.0
        %922 = vmatprep.subr.mxu0 0.0
        %923 = vmatpush2.msra.mxu0 0.0
        %924 = vmatprep.subr.mxu0 0.0
        %925 = vmatpush2.msra.mxu0 0.0
        %926 = vmatprep.subr.mxu0 0.0
        %927 = vmatpush2.msra.mxu0 0.0
        %928 = vmatprep.subr.mxu0 0.0
        %929 = vmatpush2.msra.mxu0 0.0
        %930 = vmatprep.subr.mxu0 0.0
        %931 = vmatpush2.msra.mxu0 0.0
        %932 = vmatprep.subr.mxu0 0.0
        %933 = vmatpush2.msra.mxu0 0.0
        %934 = vmatprep.subr.mxu0 0.0
        %935 = vmatpush2.msra.mxu0 0.0
        %936 = vmatprep.subr.mxu0 0.0
        %937 = vmatpush2.msra.mxu0 0.0
        %938 = vmatprep.mubr.f32.mxu0 0.0
        %939 = vmatmul.mubr.f32.gmra.mxu0 %v791
        %v940 = vpop.f32.mrf.mxu0
        %v941 = vadd.f32 %v872, %v940
        %v942 = vpop.f32.mrf.mxu0
        %943 = vdwg.mxu0
        %v944 = vld [vmem:[%s8] sm:$0xff]
        %v945 = vld [vmem:[%s8 + $0x8] sm:$0xff]
        %v946 = vld [vmem:[%s8 + $0x10] sm:$0xff]
        %v947 = vld [vmem:[%s8 + $0x18] sm:$0xff]
        %v948 = vld [vmem:[%s9] sm:$0x1]
        %v950 = vlaneseq
        %v951 = vshrl.u32 %v950, 7
        %v952 = vsub.s32 0, %v951
        %v953 = vrot.slane %v948, %v952
        %955 = vmatprep.subr.mxu0 0.0
        %956 = vmatpush1.msra.mxu0 0.0
        %957 = vmatprep.subr.mxu0 0.0
        %958 = vmatpush1.msra.mxu0 0.0
        %959 = vmatprep.subr.mxu0 0.0
        %960 = vmatpush1.msra.mxu0 0.0
        %961 = vmatprep.subr.mxu0 0.0
        %962 = vmatpush1.msra.mxu0 0.0
        %963 = vmatprep.subr.mxu0 0.0
        %964 = vmatpush1.msra.mxu0 0.0
        %965 = vmatprep.subr.mxu0 0.0
        %966 = vmatpush1.msra.mxu0 0.0
        %967 = vmatprep.subr.mxu0 0.0
        %968 = vmatpush1.msra.mxu0 0.0
        %969 = vmatprep.subr.mxu0 0.0
        %970 = vmatpush1.msra.mxu0 0.0
        %971 = vmatprep.subr.mxu0 0.0
        %972 = vmatpush1.msra.mxu0 0.0
        %973 = vmatprep.subr.mxu0 0.0
        %974 = vmatpush1.msra.mxu0 0.0
        %975 = vmatprep.subr.mxu0 0.0
        %976 = vmatpush1.msra.mxu0 0.0
        %977 = vmatprep.subr.mxu0 0.0
        %978 = vmatpush1.msra.mxu0 0.0
        %979 = vmatprep.subr.mxu0 0.0
        %980 = vmatpush1.msra.mxu0 %v947
        %981 = vmatprep.subr.mxu0 0.0
        %982 = vmatpush1.msra.mxu0 %v946
        %983 = vmatprep.subr.mxu0 0.0
        %984 = vmatpush1.msra.mxu0 %v945
        %985 = vmatprep.subr.mxu0 0.0
        %986 = vmatpush1.msra.mxu0 %v944
        %987 = vmatprep.subr.mxu0 0.0
        %988 = vmatpush2.msra.mxu0 0.0
        %989 = vmatprep.subr.mxu0 0.0
        %990 = vmatpush2.msra.mxu0 0.0
        %991 = vmatprep.subr.mxu0 0.0
        %992 = vmatpush2.msra.mxu0 0.0
        %993 = vmatprep.subr.mxu0 0.0
        %994 = vmatpush2.msra.mxu0 0.0
        %995 = vmatprep.subr.mxu0 0.0
        %996 = vmatpush2.msra.mxu0 0.0
        %997 = vmatprep.subr.mxu0 0.0
        %998 = vmatpush2.msra.mxu0 0.0
        %999 = vmatprep.subr.mxu0 0.0
        %1000 = vmatpush2.msra.mxu0 0.0
        %1001 = vmatprep.subr.mxu0 0.0
        %1002 = vmatpush2.msra.mxu0 0.0
        %1003 = vmatprep.subr.mxu0 0.0
        %1004 = vmatpush2.msra.mxu0 0.0
        %1005 = vmatprep.subr.mxu0 0.0
        %1006 = vmatpush2.msra.mxu0 0.0
        %1007 = vmatprep.subr.mxu0 0.0
        %1008 = vmatpush2.msra.mxu0 0.0
        %1009 = vmatprep.subr.mxu0 0.0
        %1010 = vmatpush2.msra.mxu0 0.0
        %1011 = vmatprep.subr.mxu0 0.0
        %1012 = vmatpush2.msra.mxu0 0.0
        %1013 = vmatprep.subr.mxu0 0.0
        %1014 = vmatpush2.msra.mxu0 0.0
        %1015 = vmatprep.subr.mxu0 0.0
        %1016 = vmatpush2.msra.mxu0 0.0
        %1017 = vmatprep.subr.mxu0 0.0
        %1018 = vmatpush2.msra.mxu0 0.0
        %1019 = vmatprep.mubr.f32.mxu0 0.0
        %1020 = vmatmul.mubr.f32.gmra.mxu0 %v791
        %v1021 = vpop.f32.mrf.mxu0
        %v1022 = vadd.f32 %v953, %v1021
        %v1023 = vpop.f32.mrf.mxu0
        %1024 = vdwg.mxu0
        %vm1025 = vcmask 64512
        %v1027 = vsel %vm1025, %v860, 0
        %v1030 = vsel %vm1025, %v941, 0
        %1032 = vmatprep.subr.mxu0 0.0
        %1033 = vmatpush1.xpose.msra.mxu0 0.0
        %1034 = vmatprep.subr.mxu0 0.0
        %1035 = vmatpush1.xpose.msra.mxu0 0.0
        %1036 = vmatprep.subr.mxu0 0.0
        %1037 = vmatpush1.xpose.msra.mxu0 0.0
        %1038 = vmatprep.subr.mxu0 0.0
        %1039 = vmatpush1.xpose.msra.mxu0 0.0
        %1040 = vmatprep.subr.mxu0 0.0
        %1041 = vmatpush1.xpose.msra.mxu0 0.0
        %1042 = vmatprep.subr.mxu0 0.0
        %1043 = vmatpush1.xpose.msra.mxu0 0.0
        %1044 = vmatprep.subr.mxu0 0.0
        %1045 = vmatpush1.xpose.msra.mxu0 0.0
        %1046 = vmatprep.subr.mxu0 0.0
        %1047 = vmatpush1.xpose.msra.mxu0 0.0
        %1048 = vmatprep.subr.mxu0 0.0
        %1049 = vmatpush1.xpose.msra.mxu0 0.0
        %1050 = vmatprep.subr.mxu0 0.0
        %1051 = vmatpush1.xpose.msra.mxu0 0.0
        %1052 = vmatprep.subr.mxu0 0.0
        %1053 = vmatpush1.xpose.msra.mxu0 0.0
        %1054 = vmatprep.subr.mxu0 0.0
        %1055 = vmatpush1.xpose.msra.mxu0 0.0
        %1056 = vmatprep.subr.mxu0 0.0
        %1057 = vmatpush1.xpose.msra.mxu0 0.0
        %1058 = vmatprep.subr.mxu0 0.0
        %1059 = vmatpush1.xpose.msra.mxu0 0.0
        %1060 = vmatprep.subr.mxu0 0.0
        %1061 = vmatpush1.xpose.msra.mxu0 0.0
        %1062 = vmatprep.subr.mxu0 0.0
        %1063 = vmatpush1.xpose.msra.mxu0 %v1030
        %1064 = vmatprep.subr.mxu0 0.0
        %1065 = vmatpush2.xpose.msra.mxu0 0.0
        %1066 = vmatprep.subr.mxu0 0.0
        %1067 = vmatpush2.xpose.msra.mxu0 0.0
        %1068 = vmatprep.subr.mxu0 0.0
        %1069 = vmatpush2.xpose.msra.mxu0 0.0
        %1070 = vmatprep.subr.mxu0 0.0
        %1071 = vmatpush2.xpose.msra.mxu0 0.0
        %1072 = vmatprep.subr.mxu0 0.0
        %1073 = vmatpush2.xpose.msra.mxu0 0.0
        %1074 = vmatprep.subr.mxu0 0.0
        %1075 = vmatpush2.xpose.msra.mxu0 0.0
        %1076 = vmatprep.subr.mxu0 0.0
        %1077 = vmatpush2.xpose.msra.mxu0 0.0
        %1078 = vmatprep.subr.mxu0 0.0
        %1079 = vmatpush2.xpose.msra.mxu0 0.0
        %1080 = vmatprep.subr.mxu0 0.0
        %1081 = vmatpush2.xpose.msra.mxu0 0.0
        %1082 = vmatprep.subr.mxu0 0.0
        %1083 = vmatpush2.xpose.msra.mxu0 0.0
        %1084 = vmatprep.subr.mxu0 0.0
        %1085 = vmatpush2.xpose.msra.mxu0 0.0
        %1086 = vmatprep.subr.mxu0 0.0
        %1087 = vmatpush2.xpose.msra.mxu0 0.0
        %1088 = vmatprep.subr.mxu0 0.0
        %1089 = vmatpush2.xpose.msra.mxu0 0.0
        %1090 = vmatprep.subr.mxu0 0.0
        %1091 = vmatpush2.xpose.msra.mxu0 0.0
        %1092 = vmatprep.subr.mxu0 0.0
        %1093 = vmatpush2.xpose.msra.mxu0 0.0
        %1094 = vmatprep.subr.mxu0 0.0
        %1095 = vmatpush2.xpose.msra.mxu0 0.0
        %1096 = vmatprep.mubr.f32.mxu0 0.0
        %1097 = vmatmul.mubr.f32.gmra.mxu0 %v1027
        %v1098 = vpop.f32.mrf.mxu0
        %v1099 = vadd.f32 0.0, %v1098
        %v1100 = vpop.f32.mrf.mxu0
        %1101 = vdwg.mxu0
        %v1102 = vmul.f32 %v1099, 0.35355338
        %v1104 = vlaneseq
        %v1105 = vshrl.u32 %v1104, 7
        %v1106 = vsub.s32 0, %v1105
        %v1107 = vrot.slane %v746, %v1106
        %v1109 = vadd.f32 %v1102, %v1107
        %v1110 = vsel %vm1025, %v1109, -inf
        %1111 = vmax.xlane.f32.xlu0 %v1110
        %v1112 = vpop.xlane.xlu0 %1111
        %v1113 = vsub.f32 %v1109, %v1112
        %v1114 = vmul.f32 %v1113, 1.442695
        %v1115 = vpow.pop %v1114
        %v1116 = vsel %vm1025, %v1115, 0.0
        %1117 = vadd.xlane.f32.xlu0 %v1116
        %v1118 = vpop.xlane.xlu0 %1117
        %v1119 = vrcp.pop %v1118
        %v1120 = vmul.f32 %v1115, %v1119
        %v1122 = vsel %vm1025, %v1120, 0
        %1124 = vmatprep.subr.mxu0 0.0
        %1125 = vmatpush1.msra.mxu0 0.0
        %1126 = vmatprep.subr.mxu0 0.0
        %1127 = vmatpush1.msra.mxu0 0.0
        %1128 = vmatprep.subr.mxu0 0.0
        %1129 = vmatpush1.msra.mxu0 0.0
        %1130 = vmatprep.subr.mxu0 0.0
        %1131 = vmatpush1.msra.mxu0 0.0
        %1132 = vmatprep.subr.mxu0 0.0
        %1133 = vmatpush1.msra.mxu0 0.0
        %1134 = vmatprep.subr.mxu0 0.0
        %1135 = vmatpush1.msra.mxu0 0.0
        %1136 = vmatprep.subr.mxu0 0.0
        %1137 = vmatpush1.msra.mxu0 0.0
        %1138 = vmatprep.subr.mxu0 0.0
        %1139 = vmatpush1.msra.mxu0 0.0
        %1140 = vmatprep.subr.mxu0 0.0
        %1141 = vmatpush1.msra.mxu0 0.0
        %1142 = vmatprep.subr.mxu0 0.0
        %1143 = vmatpush1.msra.mxu0 0.0
        %1144 = vmatprep.subr.mxu0 0.0
        %1145 = vmatpush1.msra.mxu0 0.0
        %1146 = vmatprep.subr.mxu0 0.0
        %1147 = vmatpush1.msra.mxu0 0.0
        %1148 = vmatprep.subr.mxu0 0.0
        %1149 = vmatpush1.msra.mxu0 0.0
        %1150 = vmatprep.subr.mxu0 0.0
        %1151 = vmatpush1.msra.mxu0 0.0
        %1152 = vmatprep.subr.mxu0 0.0
        %1153 = vmatpush1.msra.mxu0 0.0
        %1154 = vmatprep.subr.mxu0 0.0
        %1155 = vmatpush1.msra.mxu0 %v1022
        %1156 = vmatprep.subr.mxu0 0.0
        %1157 = vmatpush2.msra.mxu0 0.0
        %1158 = vmatprep.subr.mxu0 0.0
        %1159 = vmatpush2.msra.mxu0 0.0
        %1160 = vmatprep.subr.mxu0 0.0
        %1161 = vmatpush2.msra.mxu0 0.0
        %1162 = vmatprep.subr.mxu0 0.0
        %1163 = vmatpush2.msra.mxu0 0.0
        %1164 = vmatprep.subr.mxu0 0.0
        %1165 = vmatpush2.msra.mxu0 0.0
        %1166 = vmatprep.subr.mxu0 0.0
        %1167 = vmatpush2.msra.mxu0 0.0
        %1168 = vmatprep.subr.mxu0 0.0
        %1169 = vmatpush2.msra.mxu0 0.0
        %1170 = vmatprep.subr.mxu0 0.0
        %1171 = vmatpush2.msra.mxu0 0.0
        %1172 = vmatprep.subr.mxu0 0.0
        %1173 = vmatpush2.msra.mxu0 0.0
        %1174 = vmatprep.subr.mxu0 0.0
        %1175 = vmatpush2.msra.mxu0 0.0
        %1176 = vmatprep.subr.mxu0 0.0
        %1177 = vmatpush2.msra.mxu0 0.0
        %1178 = vmatprep.subr.mxu0 0.0
        %1179 = vmatpush2.msra.mxu0 0.0
        %1180 = vmatprep.subr.mxu0 0.0
        %1181 = vmatpush2.msra.mxu0 0.0
        %1182 = vmatprep.subr.mxu0 0.0
        %1183 = vmatpush2.msra.mxu0 0.0
        %1184 = vmatprep.subr.mxu0 0.0
        %1185 = vmatpush2.msra.mxu0 0.0
        %1186 = vmatprep.subr.mxu0 0.0
        %1187 = vmatpush2.msra.mxu0 0.0
        %1188 = vmatprep.mubr.f32.mxu0 0.0
        %1189 = vmatmul.mubr.f32.gmra.mxu0 %v1122
        %v1190 = vpop.f32.mrf.mxu0
        %v1191 = vadd.f32 0.0, %v1190
        %v1192 = vpop.f32.mrf.mxu0
        %1193 = vdwg.mxu0
        %v1194 = vld [vmem:[%s10] sm:$0xff]
        %s1195 = scalar_lea.vmem %s4, 32
        %v1196 = vld [vmem:[%s1195] sm:$0xff]
        %v1197 = vld [vmem:[%s1195 + $0x8] sm:$0xff]
        %v1198 = vld [vmem:[%s1195 + $0x10] sm:$0xff]
        %v1199 = vld [vmem:[%s1195 + $0x18] sm:$0xff]
        %s1200 = scalar_lea.vmem %s5, 1
        %v1201 = vld [vmem:[%s1200] sm:$0x1]
        %v1203 = vlaneseq
        %v1204 = vshrl.u32 %v1203, 7
        %v1205 = vsub.s32 0, %v1204
        %v1206 = vrot.slane %v1201, %v1205
        %1208 = vmatprep.subr.mxu0 0.0
        %1209 = vmatpush1.msra.mxu0 0.0
        %1210 = vmatprep.subr.mxu0 0.0
        %1211 = vmatpush1.msra.mxu0 0.0
        %1212 = vmatprep.subr.mxu0 0.0
        %1213 = vmatpush1.msra.mxu0 0.0
        %1214 = vmatprep.subr.mxu0 0.0
        %1215 = vmatpush1.msra.mxu0 0.0
        %1216 = vmatprep.subr.mxu0 0.0
        %1217 = vmatpush1.msra.mxu0 0.0
        %1218 = vmatprep.subr.mxu0 0.0
        %1219 = vmatpush1.msra.mxu0 0.0
        %1220 = vmatprep.subr.mxu0 0.0
        %1221 = vmatpush1.msra.mxu0 0.0
        %1222 = vmatprep.subr.mxu0 0.0
        %1223 = vmatpush1.msra.mxu0 0.0
        %1224 = vmatprep.subr.mxu0 0.0
        %1225 = vmatpush1.msra.mxu0 0.0
        %1226 = vmatprep.subr.mxu0 0.0
        %1227 = vmatpush1.msra.mxu0 0.0
        %1228 = vmatprep.subr.mxu0 0.0
        %1229 = vmatpush1.msra.mxu0 0.0
        %1230 = vmatprep.subr.mxu0 0.0
        %1231 = vmatpush1.msra.mxu0 0.0
        %1232 = vmatprep.subr.mxu0 0.0
        %1233 = vmatpush1.msra.mxu0 %v1199
        %1234 = vmatprep.subr.mxu0 0.0
        %1235 = vmatpush1.msra.mxu0 %v1198
        %1236 = vmatprep.subr.mxu0 0.0
        %1237 = vmatpush1.msra.mxu0 %v1197
        %1238 = vmatprep.subr.mxu0 0.0
        %1239 = vmatpush1.msra.mxu0 %v1196
        %1240 = vmatprep.subr.mxu0 0.0
        %1241 = vmatpush2.msra.mxu0 0.0
        %1242 = vmatprep.subr.mxu0 0.0
        %1243 = vmatpush2.msra.mxu0 0.0
        %1244 = vmatprep.subr.mxu0 0.0
        %1245 = vmatpush2.msra.mxu0 0.0
        %1246 = vmatprep.subr.mxu0 0.0
        %1247 = vmatpush2.msra.mxu0 0.0
        %1248 = vmatprep.subr.mxu0 0.0
        %1249 = vmatpush2.msra.mxu0 0.0
        %1250 = vmatprep.subr.mxu0 0.0
        %1251 = vmatpush2.msra.mxu0 0.0
        %1252 = vmatprep.subr.mxu0 0.0
        %1253 = vmatpush2.msra.mxu0 0.0
        %1254 = vmatprep.subr.mxu0 0.0
        %1255 = vmatpush2.msra.mxu0 0.0
        %1256 = vmatprep.subr.mxu0 0.0
        %1257 = vmatpush2.msra.mxu0 0.0
        %1258 = vmatprep.subr.mxu0 0.0
        %1259 = vmatpush2.msra.mxu0 0.0
        %1260 = vmatprep.subr.mxu0 0.0
        %1261 = vmatpush2.msra.mxu0 0.0
        %1262 = vmatprep.subr.mxu0 0.0
        %1263 = vmatpush2.msra.mxu0 0.0
        %1264 = vmatprep.subr.mxu0 0.0
        %1265 = vmatpush2.msra.mxu0 0.0
        %1266 = vmatprep.subr.mxu0 0.0
        %1267 = vmatpush2.msra.mxu0 0.0
        %1268 = vmatprep.subr.mxu0 0.0
        %1269 = vmatpush2.msra.mxu0 0.0
        %1270 = vmatprep.subr.mxu0 0.0
        %1271 = vmatpush2.msra.mxu0 0.0
        %1272 = vmatprep.mubr.f32.mxu0 0.0
        %1273 = vmatmul.mubr.f32.gmra.mxu0 %v791
        %v1274 = vpop.f32.mrf.mxu0
        %v1275 = vadd.f32 %v1206, %v1274
        %v1276 = vpop.f32.mrf.mxu0
        %1277 = vdwg.mxu0
        %s1278 = scalar_lea.vmem %s6, 32
        %v1279 = vld [vmem:[%s1278] sm:$0xff]
        %v1280 = vld [vmem:[%s1278 + $0x8] sm:$0xff]
        %v1281 = vld [vmem:[%s1278 + $0x10] sm:$0xff]
        %v1282 = vld [vmem:[%s1278 + $0x18] sm:$0xff]
        %s1283 = scalar_lea.vmem %s7, 1
        %v1284 = vld [vmem:[%s1283] sm:$0x1]
        %v1286 = vlaneseq
        %v1287 = vshrl.u32 %v1286, 7
        %v1288 = vsub.s32 0, %v1287
        %v1289 = vrot.slane %v1284, %v1288
        %1291 = vmatprep.subr.mxu0 0.0
        %1292 = vmatpush1.msra.mxu0 0.0
        %1293 = vmatprep.subr.mxu0 0.0
        %1294 = vmatpush1.msra.mxu0 0.0
        %1295 = vmatprep.subr.mxu0 0.0
        %1296 = vmatpush1.msra.mxu0 0.0
        %1297 = vmatprep.subr.mxu0 0.0
        %1298 = vmatpush1.msra.mxu0 0.0
        %1299 = vmatprep.subr.mxu0 0.0
        %1300 = vmatpush1.msra.mxu0 0.0
        %1301 = vmatprep.subr.mxu0 0.0
        %1302 = vmatpush1.msra.mxu0 0.0
        %1303 = vmatprep.subr.mxu0 0.0
        %1304 = vmatpush1.msra.mxu0 0.0
        %1305 = vmatprep.subr.mxu0 0.0
        %1306 = vmatpush1.msra.mxu0 0.0
        %1307 = vmatprep.subr.mxu0 0.0
        %1308 = vmatpush1.msra.mxu0 0.0
        %1309 = vmatprep.subr.mxu0 0.0
        %1310 = vmatpush1.msra.mxu0 0.0
        %1311 = vmatprep.subr.mxu0 0.0
        %1312 = vmatpush1.msra.mxu0 0.0
        %1313 = vmatprep.subr.mxu0 0.0
        %1314 = vmatpush1.msra.mxu0 0.0
        %1315 = vmatprep.subr.mxu0 0.0
        %1316 = vmatpush1.msra.mxu0 %v1282
        %1317 = vmatprep.subr.mxu0 0.0
        %1318 = vmatpush1.msra.mxu0 %v1281
        %1319 = vmatprep.subr.mxu0 0.0
        %1320 = vmatpush1.msra.mxu0 %v1280
        %1321 = vmatprep.subr.mxu0 0.0
        %1322 = vmatpush1.msra.mxu0 %v1279
        %1323 = vmatprep.subr.mxu0 0.0
        %1324 = vmatpush2.msra.mxu0 0.0
        %1325 = vmatprep.subr.mxu0 0.0
        %1326 = vmatpush2.msra.mxu0 0.0
        %1327 = vmatprep.subr.mxu0 0.0
        %1328 = vmatpush2.msra.mxu0 0.0
        %1329 = vmatprep.subr.mxu0 0.0
        %1330 = vmatpush2.msra.mxu0 0.0
        %1331 = vmatprep.subr.mxu0 0.0
        %1332 = vmatpush2.msra.mxu0 0.0
        %1333 = vmatprep.subr.mxu0 0.0
        %1334 = vmatpush2.msra.mxu0 0.0
        %1335 = vmatprep.subr.mxu0 0.0
        %1336 = vmatpush2.msra.mxu0 0.0
        %1337 = vmatprep.subr.mxu0 0.0
        %1338 = vmatpush2.msra.mxu0 0.0
        %1339 = vmatprep.subr.mxu0 0.0
        %1340 = vmatpush2.msra.mxu0 0.0
        %1341 = vmatprep.subr.mxu0 0.0
        %1342 = vmatpush2.msra.mxu0 0.0
        %1343 = vmatprep.subr.mxu0 0.0
        %1344 = vmatpush2.msra.mxu0 0.0
        %1345 = vmatprep.subr.mxu0 0.0
        %1346 = vmatpush2.msra.mxu0 0.0
        %1347 = vmatprep.subr.mxu0 0.0
        %1348 = vmatpush2.msra.mxu0 0.0
        %1349 = vmatprep.subr.mxu0 0.0
        %1350 = vmatpush2.msra.mxu0 0.0
        %1351 = vmatprep.subr.mxu0 0.0
        %1352 = vmatpush2.msra.mxu0 0.0
        %1353 = vmatprep.subr.mxu0 0.0
        %1354 = vmatpush2.msra.mxu0 0.0
        %1355 = vmatprep.mubr.f32.mxu0 0.0
        %1356 = vmatmul.mubr.f32.gmra.mxu0 %v791
        %v1357 = vpop.f32.mrf.mxu0
        %v1358 = vadd.f32 %v1289, %v1357
        %v1359 = vpop.f32.mrf.mxu0
        %1360 = vdwg.mxu0
        %s1361 = scalar_lea.vmem %s8, 32
        %v1362 = vld [vmem:[%s1361] sm:$0xff]
        %v1363 = vld [vmem:[%s1361 + $0x8] sm:$0xff]
        %v1364 = vld [vmem:[%s1361 + $0x10] sm:$0xff]
        %v1365 = vld [vmem:[%s1361 + $0x18] sm:$0xff]
        %s1366 = scalar_lea.vmem %s9, 1
        %v1367 = vld [vmem:[%s1366] sm:$0x1]
        %v1369 = vlaneseq
        %v1370 = vshrl.u32 %v1369, 7
        %v1371 = vsub.s32 0, %v1370
        %v1372 = vrot.slane %v1367, %v1371
        %1374 = vmatprep.subr.mxu0 0.0
        %1375 = vmatpush1.msra.mxu0 0.0
        %1376 = vmatprep.subr.mxu0 0.0
        %1377 = vmatpush1.msra.mxu0 0.0
        %1378 = vmatprep.subr.mxu0 0.0
        %1379 = vmatpush1.msra.mxu0 0.0
        %1380 = vmatprep.subr.mxu0 0.0
        %1381 = vmatpush1.msra.mxu0 0.0
        %1382 = vmatprep.subr.mxu0 0.0
        %1383 = vmatpush1.msra.mxu0 0.0
        %1384 = vmatprep.subr.mxu0 0.0
        %1385 = vmatpush1.msra.mxu0 0.0
        %1386 = vmatprep.subr.mxu0 0.0
        %1387 = vmatpush1.msra.mxu0 0.0
        %1388 = vmatprep.subr.mxu0 0.0
        %1389 = vmatpush1.msra.mxu0 0.0
        %1390 = vmatprep.subr.mxu0 0.0
        %1391 = vmatpush1.msra.mxu0 0.0
        %1392 = vmatprep.subr.mxu0 0.0
        %1393 = vmatpush1.msra.mxu0 0.0
        %1394 = vmatprep.subr.mxu0 0.0
        %1395 = vmatpush1.msra.mxu0 0.0
        %1396 = vmatprep.subr.mxu0 0.0
        %1397 = vmatpush1.msra.mxu0 0.0
        %1398 = vmatprep.subr.mxu0 0.0
        %1399 = vmatpush1.msra.mxu0 %v1365
        %1400 = vmatprep.subr.mxu0 0.0
        %1401 = vmatpush1.msra.mxu0 %v1364
        %1402 = vmatprep.subr.mxu0 0.0
        %1403 = vmatpush1.msra.mxu0 %v1363
        %1404 = vmatprep.subr.mxu0 0.0
        %1405 = vmatpush1.msra.mxu0 %v1362
        %1406 = vmatprep.subr.mxu0 0.0
        %1407 = vmatpush2.msra.mxu0 0.0
        %1408 = vmatprep.subr.mxu0 0.0
        %1409 = vmatpush2.msra.mxu0 0.0
        %1410 = vmatprep.subr.mxu0 0.0
        %1411 = vmatpush2.msra.mxu0 0.0
        %1412 = vmatprep.subr.mxu0 0.0
        %1413 = vmatpush2.msra.mxu0 0.0
        %1414 = vmatprep.subr.mxu0 0.0
        %1415 = vmatpush2.msra.mxu0 0.0
        %1416 = vmatprep.subr.mxu0 0.0
        %1417 = vmatpush2.msra.mxu0 0.0
        %1418 = vmatprep.subr.mxu0 0.0
        %1419 = vmatpush2.msra.mxu0 0.0
        %1420 = vmatprep.subr.mxu0 0.0
        %1421 = vmatpush2.msra.mxu0 0.0
        %1422 = vmatprep.subr.mxu0 0.0
        %1423 = vmatpush2.msra.mxu0 0.0
        %1424 = vmatprep.subr.mxu0 0.0
        %1425 = vmatpush2.msra.mxu0 0.0
        %1426 = vmatprep.subr.mxu0 0.0
        %1427 = vmatpush2.msra.mxu0 0.0
        %1428 = vmatprep.subr.mxu0 0.0
        %1429 = vmatpush2.msra.mxu0 0.0
        %1430 = vmatprep.subr.mxu0 0.0
        %1431 = vmatpush2.msra.mxu0 0.0
        %1432 = vmatprep.subr.mxu0 0.0
        %1433 = vmatpush2.msra.mxu0 0.0
        %1434 = vmatprep.subr.mxu0 0.0
        %1435 = vmatpush2.msra.mxu0 0.0
        %1436 = vmatprep.subr.mxu0 0.0
        %1437 = vmatpush2.msra.mxu0 0.0
        %1438 = vmatprep.mubr.f32.mxu0 0.0
        %1439 = vmatmul.mubr.f32.gmra.mxu0 %v791
        %v1440 = vpop.f32.mrf.mxu0
        %v1441 = vadd.f32 %v1372, %v1440
        %v1442 = vpop.f32.mrf.mxu0
        %1443 = vdwg.mxu0
        %v1445 = vsel %vm1025, %v1275, 0
        %v1448 = vsel %vm1025, %v1358, 0
        %1450 = vmatprep.subr.mxu0 0.0
        %1451 = vmatpush1.xpose.msra.mxu0 0.0
        %1452 = vmatprep.subr.mxu0 0.0
        %1453 = vmatpush1.xpose.msra.mxu0 0.0
        %1454 = vmatprep.subr.mxu0 0.0
        %1455 = vmatpush1.xpose.msra.mxu0 0.0
        %1456 = vmatprep.subr.mxu0 0.0
        %1457 = vmatpush1.xpose.msra.mxu0 0.0
        %1458 = vmatprep.subr.mxu0 0.0
        %1459 = vmatpush1.xpose.msra.mxu0 0.0
        %1460 = vmatprep.subr.mxu0 0.0
        %1461 = vmatpush1.xpose.msra.mxu0 0.0
        %1462 = vmatprep.subr.mxu0 0.0
        %1463 = vmatpush1.xpose.msra.mxu0 0.0
        %1464 = vmatprep.subr.mxu0 0.0
        %1465 = vmatpush1.xpose.msra.mxu0 0.0
        %1466 = vmatprep.subr.mxu0 0.0
        %1467 = vmatpush1.xpose.msra.mxu0 0.0
        %1468 = vmatprep.subr.mxu0 0.0
        %1469 = vmatpush1.xpose.msra.mxu0 0.0
        %1470 = vmatprep.subr.mxu0 0.0
        %1471 = vmatpush1.xpose.msra.mxu0 0.0
        %1472 = vmatprep.subr.mxu0 0.0
        %1473 = vmatpush1.xpose.msra.mxu0 0.0
        %1474 = vmatprep.subr.mxu0 0.0
        %1475 = vmatpush1.xpose.msra.mxu0 0.0
        %1476 = vmatprep.subr.mxu0 0.0
        %1477 = vmatpush1.xpose.msra.mxu0 0.0
        %1478 = vmatprep.subr.mxu0 0.0
        %1479 = vmatpush1.xpose.msra.mxu0 0.0
        %1480 = vmatprep.subr.mxu0 0.0
        %1481 = vmatpush1.xpose.msra.mxu0 %v1448
        %1482 = vmatprep.subr.mxu0 0.0
        %1483 = vmatpush2.xpose.msra.mxu0 0.0
        %1484 = vmatprep.subr.mxu0 0.0
        %1485 = vmatpush2.xpose.msra.mxu0 0.0
        %1486 = vmatprep.subr.mxu0 0.0
        %1487 = vmatpush2.xpose.msra.mxu0 0.0
        %1488 = vmatprep.subr.mxu0 0.0
        %1489 = vmatpush2.xpose.msra.mxu0 0.0
        %1490 = vmatprep.subr.mxu0 0.0
        %1491 = vmatpush2.xpose.msra.mxu0 0.0
        %1492 = vmatprep.subr.mxu0 0.0
        %1493 = vmatpush2.xpose.msra.mxu0 0.0
        %1494 = vmatprep.subr.mxu0 0.0
        %1495 = vmatpush2.xpose.msra.mxu0 0.0
        %1496 = vmatprep.subr.mxu0 0.0
        %1497 = vmatpush2.xpose.msra.mxu0 0.0
        %1498 = vmatprep.subr.mxu0 0.0
        %1499 = vmatpush2.xpose.msra.mxu0 0.0
        %1500 = vmatprep.subr.mxu0 0.0
        %1501 = vmatpush2.xpose.msra.mxu0 0.0
        %1502 = vmatprep.subr.mxu0 0.0
        %1503 = vmatpush2.xpose.msra.mxu0 0.0
        %1504 = vmatprep.subr.mxu0 0.0
        %1505 = vmatpush2.xpose.msra.mxu0 0.0
        %1506 = vmatprep.subr.mxu0 0.0
        %1507 = vmatpush2.xpose.msra.mxu0 0.0
        %1508 = vmatprep.subr.mxu0 0.0
        %1509 = vmatpush2.xpose.msra.mxu0 0.0
        %1510 = vmatprep.subr.mxu0 0.0
        %1511 = vmatpush2.xpose.msra.mxu0 0.0
        %1512 = vmatprep.subr.mxu0 0.0
        %1513 = vmatpush2.xpose.msra.mxu0 0.0
        %1514 = vmatprep.mubr.f32.mxu0 0.0
        %1515 = vmatmul.mubr.f32.gmra.mxu0 %v1445
        %v1516 = vpop.f32.mrf.mxu0
        %v1517 = vadd.f32 0.0, %v1516
        %v1518 = vpop.f32.mrf.mxu0
        %1519 = vdwg.mxu0
        %v1520 = vmul.f32 %v1517, 0.35355338
        %v1521 = vadd.f32 %v1520, %v1107
        %v1522 = vsel %vm1025, %v1521, -inf
        %1523 = vmax.xlane.f32.xlu0 %v1522
        %v1524 = vpop.xlane.xlu0 %1523
        %v1525 = vsub.f32 %v1521, %v1524
        %v1526 = vmul.f32 %v1525, 1.442695
        %v1527 = vpow.pop %v1526
        %v1528 = vsel %vm1025, %v1527, 0.0
        %1529 = vadd.xlane.f32.xlu0 %v1528
        %v1530 = vpop.xlane.xlu0 %1529
        %v1531 = vrcp.pop %v1530
        %v1532 = vmul.f32 %v1527, %v1531
        %v1534 = vsel %vm1025, %v1532, 0
        %1536 = vmatprep.subr.mxu0 0.0
        %1537 = vmatpush1.msra.mxu0 0.0
        %1538 = vmatprep.subr.mxu0 0.0
        %1539 = vmatpush1.msra.mxu0 0.0
        %1540 = vmatprep.subr.mxu0 0.0
        %1541 = vmatpush1.msra.mxu0 0.0
        %1542 = vmatprep.subr.mxu0 0.0
        %1543 = vmatpush1.msra.mxu0 0.0
        %1544 = vmatprep.subr.mxu0 0.0
        %1545 = vmatpush1.msra.mxu0 0.0
        %1546 = vmatprep.subr.mxu0 0.0
        %1547 = vmatpush1.msra.mxu0 0.0
        %1548 = vmatprep.subr.mxu0 0.0
        %1549 = vmatpush1.msra.mxu0 0.0
        %1550 = vmatprep.subr.mxu0 0.0
        %1551 = vmatpush1.msra.mxu0 0.0
        %1552 = vmatprep.subr.mxu0 0.0
        %1553 = vmatpush1.msra.mxu0 0.0
        %1554 = vmatprep.subr.mxu0 0.0
        %1555 = vmatpush1.msra.mxu0 0.0
        %1556 = vmatprep.subr.mxu0 0.0
        %1557 = vmatpush1.msra.mxu0 0.0
        %1558 = vmatprep.subr.mxu0 0.0
        %1559 = vmatpush1.msra.mxu0 0.0
        %1560 = vmatprep.subr.mxu0 0.0
        %1561 = vmatpush1.msra.mxu0 0.0
        %1562 = vmatprep.subr.mxu0 0.0
        %1563 = vmatpush1.msra.mxu0 0.0
        %1564 = vmatprep.subr.mxu0 0.0
        %1565 = vmatpush1.msra.mxu0 0.0
        %1566 = vmatprep.subr.mxu0 0.0
        %1567 = vmatpush1.msra.mxu0 %v1441
        %1568 = vmatprep.subr.mxu0 0.0
        %1569 = vmatpush2.msra.mxu0 0.0
        %1570 = vmatprep.subr.mxu0 0.0
        %1571 = vmatpush2.msra.mxu0 0.0
        %1572 = vmatprep.subr.mxu0 0.0
        %1573 = vmatpush2.msra.mxu0 0.0
        %1574 = vmatprep.subr.mxu0 0.0
        %1575 = vmatpush2.msra.mxu0 0.0
        %1576 = vmatprep.subr.mxu0 0.0
        %1577 = vmatpush2.msra.mxu0 0.0
        %1578 = vmatprep.subr.mxu0 0.0
        %1579 = vmatpush2.msra.mxu0 0.0
        %1580 = vmatprep.subr.mxu0 0.0
        %1581 = vmatpush2.msra.mxu0 0.0
        %1582 = vmatprep.subr.mxu0 0.0
        %1583 = vmatpush2.msra.mxu0 0.0
        %1584 = vmatprep.subr.mxu0 0.0
        %1585 = vmatpush2.msra.mxu0 0.0
        %1586 = vmatprep.subr.mxu0 0.0
        %1587 = vmatpush2.msra.mxu0 0.0
        %1588 = vmatprep.subr.mxu0 0.0
        %1589 = vmatpush2.msra.mxu0 0.0
        %1590 = vmatprep.subr.mxu0 0.0
        %1591 = vmatpush2.msra.mxu0 0.0
        %1592 = vmatprep.subr.mxu0 0.0
        %1593 = vmatpush2.msra.mxu0 0.0
        %1594 = vmatprep.subr.mxu0 0.0
        %1595 = vmatpush2.msra.mxu0 0.0
        %1596 = vmatprep.subr.mxu0 0.0
        %1597 = vmatpush2.msra.mxu0 0.0
        %1598 = vmatprep.subr.mxu0 0.0
        %1599 = vmatpush2.msra.mxu0 0.0
        %1600 = vmatprep.mubr.f32.mxu0 0.0
        %1601 = vmatmul.mubr.f32.gmra.mxu0 %v1534
        %v1602 = vpop.f32.mrf.mxu0
        %v1603 = vadd.f32 0.0, %v1602
        %v1604 = vpop.f32.mrf.mxu0
        %1605 = vdwg.mxu0
        %s1606 = scalar_lea.vmem %s10, 8
        %v1607 = vld [vmem:[%s1606] sm:$0xff]
        %v1609 = vsel %vm1025, %v1603, 0
        %1611 = vmatprep.subr.mxu0 0.0
        %1612 = vmatpush1.msra.mxu0 0.0
        %1613 = vmatprep.subr.mxu0 0.0
        %1614 = vmatpush1.msra.mxu0 0.0
        %1615 = vmatprep.subr.mxu0 0.0
        %1616 = vmatpush1.msra.mxu0 0.0
        %1617 = vmatprep.subr.mxu0 0.0
        %1618 = vmatpush1.msra.mxu0 0.0
        %1619 = vmatprep.subr.mxu0 0.0
        %1620 = vmatpush1.msra.mxu0 0.0
        %1621 = vmatprep.subr.mxu0 0.0
        %1622 = vmatpush1.msra.mxu0 0.0
        %1623 = vmatprep.subr.mxu0 0.0
        %1624 = vmatpush1.msra.mxu0 0.0
        %1625 = vmatprep.subr.mxu0 0.0
        %1626 = vmatpush1.msra.mxu0 0.0
        %1627 = vmatprep.subr.mxu0 0.0
        %1628 = vmatpush1.msra.mxu0 0.0
        %1629 = vmatprep.subr.mxu0 0.0
        %1630 = vmatpush1.msra.mxu0 0.0
        %1631 = vmatprep.subr.mxu0 0.0
        %1632 = vmatpush1.msra.mxu0 0.0
        %1633 = vmatprep.subr.mxu0 0.0
        %1634 = vmatpush1.msra.mxu0 0.0
        %1635 = vmatprep.subr.mxu0 0.0
        %1636 = vmatpush1.msra.mxu0 0.0
        %1637 = vmatprep.subr.mxu0 0.0
        %1638 = vmatpush1.msra.mxu0 0.0
        %1639 = vmatprep.subr.mxu0 0.0
        %1640 = vmatpush1.msra.mxu0 0.0
        %1641 = vmatprep.subr.mxu0 0.0
        %1642 = vmatpush1.msra.mxu0 %v1607
        %1643 = vmatprep.subr.mxu0 0.0
        %1644 = vmatpush2.msra.mxu0 0.0
        %1645 = vmatprep.subr.mxu0 0.0
        %1646 = vmatpush2.msra.mxu0 0.0
        %1647 = vmatprep.subr.mxu0 0.0
        %1648 = vmatpush2.msra.mxu0 0.0
        %1649 = vmatprep.subr.mxu0 0.0
        %1650 = vmatpush2.msra.mxu0 0.0
        %1651 = vmatprep.subr.mxu0 0.0
        %1652 = vmatpush2.msra.mxu0 0.0
        %1653 = vmatprep.subr.mxu0 0.0
        %1654 = vmatpush2.msra.mxu0 0.0
        %1655 = vmatprep.subr.mxu0 0.0
        %1656 = vmatpush2.msra.mxu0 0.0
        %1657 = vmatprep.subr.mxu0 0.0
        %1658 = vmatpush2.msra.mxu0 0.0
        %1659 = vmatprep.subr.mxu0 0.0
        %1660 = vmatpush2.msra.mxu0 0.0
        %1661 = vmatprep.subr.mxu0 0.0
        %1662 = vmatpush2.msra.mxu0 0.0
        %1663 = vmatprep.subr.mxu0 0.0
        %1664 = vmatpush2.msra.mxu0 0.0
        %1665 = vmatprep.subr.mxu0 0.0
        %1666 = vmatpush2.msra.mxu0 0.0
        %1667 = vmatprep.subr.mxu0 0.0
        %1668 = vmatpush2.msra.mxu0 0.0
        %1669 = vmatprep.subr.mxu0 0.0
        %1670 = vmatpush2.msra.mxu0 0.0
        %1671 = vmatprep.subr.mxu0 0.0
        %1672 = vmatpush2.msra.mxu0 0.0
        %1673 = vmatprep.subr.mxu0 0.0
        %1674 = vmatpush2.msra.mxu0 0.0
        %1675 = vmatprep.mubr.f32.mxu0 0.0
        %1676 = vmatmul.mubr.f32.gmra.mxu0 %v1609
        %v1677 = vpop.f32.mrf.mxu0
        %v1678 = vadd.f32 0.0, %v1677
        %v1679 = vpop.f32.mrf.mxu0
        %1680 = vdwg.mxu0
        %v1682 = vsel %vm1025, %v1191, 0
        %1684 = vmatprep.subr.mxu0 0.0
        %1685 = vmatpush1.msra.mxu0 0.0
        %1686 = vmatprep.subr.mxu0 0.0
        %1687 = vmatpush1.msra.mxu0 0.0
        %1688 = vmatprep.subr.mxu0 0.0
        %1689 = vmatpush1.msra.mxu0 0.0
        %1690 = vmatprep.subr.mxu0 0.0
        %1691 = vmatpush1.msra.mxu0 0.0
        %1692 = vmatprep.subr.mxu0 0.0
        %1693 = vmatpush1.msra.mxu0 0.0
        %1694 = vmatprep.subr.mxu0 0.0
        %1695 = vmatpush1.msra.mxu0 0.0
        %1696 = vmatprep.subr.mxu0 0.0
        %1697 = vmatpush1.msra.mxu0 0.0
        %1698 = vmatprep.subr.mxu0 0.0
        %1699 = vmatpush1.msra.mxu0 0.0
        %1700 = vmatprep.subr.mxu0 0.0
        %1701 = vmatpush1.msra.mxu0 0.0
        %1702 = vmatprep.subr.mxu0 0.0
        %1703 = vmatpush1.msra.mxu0 0.0
        %1704 = vmatprep.subr.mxu0 0.0
        %1705 = vmatpush1.msra.mxu0 0.0
        %1706 = vmatprep.subr.mxu0 0.0
        %1707 = vmatpush1.msra.mxu0 0.0
        %1708 = vmatprep.subr.mxu0 0.0
        %1709 = vmatpush1.msra.mxu0 0.0
        %1710 = vmatprep.subr.mxu0 0.0
        %1711 = vmatpush1.msra.mxu0 0.0
        %1712 = vmatprep.subr.mxu0 0.0
        %1713 = vmatpush1.msra.mxu0 0.0
        %1714 = vmatprep.subr.mxu0 0.0
        %1715 = vmatpush1.msra.mxu0 %v1194
        %1716 = vmatprep.subr.mxu0 0.0
        %1717 = vmatpush2.msra.mxu0 0.0
        %1718 = vmatprep.subr.mxu0 0.0
        %1719 = vmatpush2.msra.mxu0 0.0
        %1720 = vmatprep.subr.mxu0 0.0
        %1721 = vmatpush2.msra.mxu0 0.0
        %1722 = vmatprep.subr.mxu0 0.0
        %1723 = vmatpush2.msra.mxu0 0.0
        %1724 = vmatprep.subr.mxu0 0.0
        %1725 = vmatpush2.msra.mxu0 0.0
        %1726 = vmatprep.subr.mxu0 0.0
        %1727 = vmatpush2.msra.mxu0 0.0
        %1728 = vmatprep.subr.mxu0 0.0
        %1729 = vmatpush2.msra.mxu0 0.0
        %1730 = vmatprep.subr.mxu0 0.0
        %1731 = vmatpush2.msra.mxu0 0.0
        %1732 = vmatprep.subr.mxu0 0.0
        %1733 = vmatpush2.msra.mxu0 0.0
        %1734 = vmatprep.subr.mxu0 0.0
        %1735 = vmatpush2.msra.mxu0 0.0
        %1736 = vmatprep.subr.mxu0 0.0
        %1737 = vmatpush2.msra.mxu0 0.0
        %1738 = vmatprep.subr.mxu0 0.0
        %1739 = vmatpush2.msra.mxu0 0.0
        %1740 = vmatprep.subr.mxu0 0.0
        %1741 = vmatpush2.msra.mxu0 0.0
        %1742 = vmatprep.subr.mxu0 0.0
        %1743 = vmatpush2.msra.mxu0 0.0
        %1744 = vmatprep.subr.mxu0 0.0
        %1745 = vmatpush2.msra.mxu0 0.0
        %1746 = vmatprep.subr.mxu0 0.0
        %1747 = vmatpush2.msra.mxu0 0.0
        %1748 = vmatprep.mubr.f32.mxu0 0.0
        %1749 = vmatmul.mubr.f32.gmra.mxu0 %v1682
        %v1750 = vpop.f32.mrf.mxu0
        %v1751 = vadd.f32 %v1678, %v1750
        %v1752 = vpop.f32.mrf.mxu0
        %1753 = vdwg.mxu0
        %s1754 = scalar_lea.vmem %s4, 64
        %v1755 = vld [vmem:[%s1754] sm:$0xff]
        %v1756 = vld [vmem:[%s1754 + $0x8] sm:$0xff]
        %v1757 = vld [vmem:[%s1754 + $0x10] sm:$0xff]
        %v1758 = vld [vmem:[%s1754 + $0x18] sm:$0xff]
        %s1759 = scalar_lea.vmem %s5, 2
        %v1760 = vld [vmem:[%s1759] sm:$0x1]
        %v1762 = vlaneseq
        %v1763 = vshrl.u32 %v1762, 7
        %v1764 = vsub.s32 0, %v1763
        %v1765 = vrot.slane %v1760, %v1764
        %1767 = vmatprep.subr.mxu0 0.0
        %1768 = vmatpush1.msra.mxu0 0.0
        %1769 = vmatprep.subr.mxu0 0.0
        %1770 = vmatpush1.msra.mxu0 0.0
        %1771 = vmatprep.subr.mxu0 0.0
        %1772 = vmatpush1.msra.mxu0 0.0
        %1773 = vmatprep.subr.mxu0 0.0
        %1774 = vmatpush1.msra.mxu0 0.0
        %1775 = vmatprep.subr.mxu0 0.0
        %1776 = vmatpush1.msra.mxu0 0.0
        %1777 = vmatprep.subr.mxu0 0.0
        %1778 = vmatpush1.msra.mxu0 0.0
        %1779 = vmatprep.subr.mxu0 0.0
        %1780 = vmatpush1.msra.mxu0 0.0
        %1781 = vmatprep.subr.mxu0 0.0
        %1782 = vmatpush1.msra.mxu0 0.0
        %1783 = vmatprep.subr.mxu0 0.0
        %1784 = vmatpush1.msra.mxu0 0.0
        %1785 = vmatprep.subr.mxu0 0.0
        %1786 = vmatpush1.msra.mxu0 0.0
        %1787 = vmatprep.subr.mxu0 0.0
        %1788 = vmatpush1.msra.mxu0 0.0
        %1789 = vmatprep.subr.mxu0 0.0
        %1790 = vmatpush1.msra.mxu0 0.0
        %1791 = vmatprep.subr.mxu0 0.0
        %1792 = vmatpush1.msra.mxu0 %v1758
        %1793 = vmatprep.subr.mxu0 0.0
        %1794 = vmatpush1.msra.mxu0 %v1757
        %1795 = vmatprep.subr.mxu0 0.0
        %1796 = vmatpush1.msra.mxu0 %v1756
        %1797 = vmatprep.subr.mxu0 0.0
        %1798 = vmatpush1.msra.mxu0 %v1755
        %1799 = vmatprep.subr.mxu0 0.0
        %1800 = vmatpush2.msra.mxu0 0.0
        %1801 = vmatprep.subr.mxu0 0.0
        %1802 = vmatpush2.msra.mxu0 0.0
        %1803 = vmatprep.subr.mxu0 0.0
        %1804 = vmatpush2.msra.mxu0 0.0
        %1805 = vmatprep.subr.mxu0 0.0
        %1806 = vmatpush2.msra.mxu0 0.0
        %1807 = vmatprep.subr.mxu0 0.0
        %1808 = vmatpush2.msra.mxu0 0.0
        %1809 = vmatprep.subr.mxu0 0.0
        %1810 = vmatpush2.msra.mxu0 0.0
        %1811 = vmatprep.subr.mxu0 0.0
        %1812 = vmatpush2.msra.mxu0 0.0
        %1813 = vmatprep.subr.mxu0 0.0
        %1814 = vmatpush2.msra.mxu0 0.0
        %1815 = vmatprep.subr.mxu0 0.0
        %1816 = vmatpush2.msra.mxu0 0.0
        %1817 = vmatprep.subr.mxu0 0.0
        %1818 = vmatpush2.msra.mxu0 0.0
        %1819 = vmatprep.subr.mxu0 0.0
        %1820 = vmatpush2.msra.mxu0 0.0
        %1821 = vmatprep.subr.mxu0 0.0
        %1822 = vmatpush2.msra.mxu0 0.0
        %1823 = vmatprep.subr.mxu0 0.0
        %1824 = vmatpush2.msra.mxu0 0.0
        %1825 = vmatprep.subr.mxu0 0.0
        %1826 = vmatpush2.msra.mxu0 0.0
        %1827 = vmatprep.subr.mxu0 0.0
        %1828 = vmatpush2.msra.mxu0 0.0
        %1829 = vmatprep.subr.mxu0 0.0
        %1830 = vmatpush2.msra.mxu0 0.0
        %1831 = vmatprep.mubr.f32.mxu0 0.0
        %1832 = vmatmul.mubr.f32.gmra.mxu0 %v791
        %v1833 = vpop.f32.mrf.mxu0
        %v1834 = vadd.f32 %v1765, %v1833
        %v1835 = vpop.f32.mrf.mxu0
        %1836 = vdwg.mxu0
        %s1837 = scalar_lea.vmem %s6, 64
        %v1838 = vld [vmem:[%s1837] sm:$0xff]
        %v1839 = vld [vmem:[%s1837 + $0x8] sm:$0xff]
        %v1840 = vld [vmem:[%s1837 + $0x10] sm:$0xff]
        %v1841 = vld [vmem:[%s1837 + $0x18] sm:$0xff]
        %s1842 = scalar_lea.vmem %s7, 2
        %v1843 = vld [vmem:[%s1842] sm:$0x1]
        %v1845 = vlaneseq
        %v1846 = vshrl.u32 %v1845, 7
        %v1847 = vsub.s32 0, %v1846
        %v1848 = vrot.slane %v1843, %v1847
        %1850 = vmatprep.subr.mxu0 0.0
        %1851 = vmatpush1.msra.mxu0 0.0
        %1852 = vmatprep.subr.mxu0 0.0
        %1853 = vmatpush1.msra.mxu0 0.0
        %1854 = vmatprep.subr.mxu0 0.0
        %1855 = vmatpush1.msra.mxu0 0.0
        %1856 = vmatprep.subr.mxu0 0.0
        %1857 = vmatpush1.msra.mxu0 0.0
        %1858 = vmatprep.subr.mxu0 0.0
        %1859 = vmatpush1.msra.mxu0 0.0
        %1860 = vmatprep.subr.mxu0 0.0
        %1861 = vmatpush1.msra.mxu0 0.0
        %1862 = vmatprep.subr.mxu0 0.0
        %1863 = vmatpush1.msra.mxu0 0.0
        %1864 = vmatprep.subr.mxu0 0.0
        %1865 = vmatpush1.msra.mxu0 0.0
        %1866 = vmatprep.subr.mxu0 0.0
        %1867 = vmatpush1.msra.mxu0 0.0
        %1868 = vmatprep.subr.mxu0 0.0
        %1869 = vmatpush1.msra.mxu0 0.0
        %1870 = vmatprep.subr.mxu0 0.0
        %1871 = vmatpush1.msra.mxu0 0.0
        %1872 = vmatprep.subr.mxu0 0.0
        %1873 = vmatpush1.msra.mxu0 0.0
        %1874 = vmatprep.subr.mxu0 0.0
        %1875 = vmatpush1.msra.mxu0 %v1841
        %1876 = vmatprep.subr.mxu0 0.0
        %1877 = vmatpush1.msra.mxu0 %v1840
        %1878 = vmatprep.subr.mxu0 0.0
        %1879 = vmatpush1.msra.mxu0 %v1839
        %1880 = vmatprep.subr.mxu0 0.0
        %1881 = vmatpush1.msra.mxu0 %v1838
        %1882 = vmatprep.subr.mxu0 0.0
        %1883 = vmatpush2.msra.mxu0 0.0
        %1884 = vmatprep.subr.mxu0 0.0
        %1885 = vmatpush2.msra.mxu0 0.0
        %1886 = vmatprep.subr.mxu0 0.0
        %1887 = vmatpush2.msra.mxu0 0.0
        %1888 = vmatprep.subr.mxu0 0.0
        %1889 = vmatpush2.msra.mxu0 0.0
        %1890 = vmatprep.subr.mxu0 0.0
        %1891 = vmatpush2.msra.mxu0 0.0
        %1892 = vmatprep.subr.mxu0 0.0
        %1893 = vmatpush2.msra.mxu0 0.0
        %1894 = vmatprep.subr.mxu0 0.0
        %1895 = vmatpush2.msra.mxu0 0.0
        %1896 = vmatprep.subr.mxu0 0.0
        %1897 = vmatpush2.msra.mxu0 0.0
        %1898 = vmatprep.subr.mxu0 0.0
        %1899 = vmatpush2.msra.mxu0 0.0
        %1900 = vmatprep.subr.mxu0 0.0
        %1901 = vmatpush2.msra.mxu0 0.0
        %1902 = vmatprep.subr.mxu0 0.0
        %1903 = vmatpush2.msra.mxu0 0.0
        %1904 = vmatprep.subr.mxu0 0.0
        %1905 = vmatpush2.msra.mxu0 0.0
        %1906 = vmatprep.subr.mxu0 0.0
        %1907 = vmatpush2.msra.mxu0 0.0
        %1908 = vmatprep.subr.mxu0 0.0
        %1909 = vmatpush2.msra.mxu0 0.0
        %1910 = vmatprep.subr.mxu0 0.0
        %1911 = vmatpush2.msra.mxu0 0.0
        %1912 = vmatprep.subr.mxu0 0.0
        %1913 = vmatpush2.msra.mxu0 0.0
        %1914 = vmatprep.mubr.f32.mxu0 0.0
        %1915 = vmatmul.mubr.f32.gmra.mxu0 %v791
        %v1916 = vpop.f32.mrf.mxu0
        %v1917 = vadd.f32 %v1848, %v1916
        %v1918 = vpop.f32.mrf.mxu0
        %1919 = vdwg.mxu0
        %s1920 = scalar_lea.vmem %s8, 64
        %v1921 = vld [vmem:[%s1920] sm:$0xff]
        %v1922 = vld [vmem:[%s1920 + $0x8] sm:$0xff]
        %v1923 = vld [vmem:[%s1920 + $0x10] sm:$0xff]
        %v1924 = vld [vmem:[%s1920 + $0x18] sm:$0xff]
        %s1925 = scalar_lea.vmem %s9, 2
        %v1926 = vld [vmem:[%s1925] sm:$0x1]
        %v1928 = vlaneseq
        %v1929 = vshrl.u32 %v1928, 7
        %v1930 = vsub.s32 0, %v1929
        %v1931 = vrot.slane %v1926, %v1930
        %1933 = vmatprep.subr.mxu0 0.0
        %1934 = vmatpush1.msra.mxu0 0.0
        %1935 = vmatprep.subr.mxu0 0.0
        %1936 = vmatpush1.msra.mxu0 0.0
        %1937 = vmatprep.subr.mxu0 0.0
        %1938 = vmatpush1.msra.mxu0 0.0
        %1939 = vmatprep.subr.mxu0 0.0
        %1940 = vmatpush1.msra.mxu0 0.0
        %1941 = vmatprep.subr.mxu0 0.0
        %1942 = vmatpush1.msra.mxu0 0.0
        %1943 = vmatprep.subr.mxu0 0.0
        %1944 = vmatpush1.msra.mxu0 0.0
        %1945 = vmatprep.subr.mxu0 0.0
        %1946 = vmatpush1.msra.mxu0 0.0
        %1947 = vmatprep.subr.mxu0 0.0
        %1948 = vmatpush1.msra.mxu0 0.0
        %1949 = vmatprep.subr.mxu0 0.0
        %1950 = vmatpush1.msra.mxu0 0.0
        %1951 = vmatprep.subr.mxu0 0.0
        %1952 = vmatpush1.msra.mxu0 0.0
        %1953 = vmatprep.subr.mxu0 0.0
        %1954 = vmatpush1.msra.mxu0 0.0
        %1955 = vmatprep.subr.mxu0 0.0
        %1956 = vmatpush1.msra.mxu0 0.0
        %1957 = vmatprep.subr.mxu0 0.0
        %1958 = vmatpush1.msra.mxu0 %v1924
        %1959 = vmatprep.subr.mxu0 0.0
        %1960 = vmatpush1.msra.mxu0 %v1923
        %1961 = vmatprep.subr.mxu0 0.0
        %1962 = vmatpush1.msra.mxu0 %v1922
        %1963 = vmatprep.subr.mxu0 0.0
        %1964 = vmatpush1.msra.mxu0 %v1921
        %1965 = vmatprep.subr.mxu0 0.0
        %1966 = vmatpush2.msra.mxu0 0.0
        %1967 = vmatprep.subr.mxu0 0.0
        %1968 = vmatpush2.msra.mxu0 0.0
        %1969 = vmatprep.subr.mxu0 0.0
        %1970 = vmatpush2.msra.mxu0 0.0
        %1971 = vmatprep.subr.mxu0 0.0
        %1972 = vmatpush2.msra.mxu0 0.0
        %1973 = vmatprep.subr.mxu0 0.0
        %1974 = vmatpush2.msra.mxu0 0.0
        %1975 = vmatprep.subr.mxu0 0.0
        %1976 = vmatpush2.msra.mxu0 0.0
        %1977 = vmatprep.subr.mxu0 0.0
        %1978 = vmatpush2.msra.mxu0 0.0
        %1979 = vmatprep.subr.mxu0 0.0
        %1980 = vmatpush2.msra.mxu0 0.0
        %1981 = vmatprep.subr.mxu0 0.0
        %1982 = vmatpush2.msra.mxu0 0.0
        %1983 = vmatprep.subr.mxu0 0.0
        %1984 = vmatpush2.msra.mxu0 0.0
        %1985 = vmatprep.subr.mxu0 0.0
        %1986 = vmatpush2.msra.mxu0 0.0
        %1987 = vmatprep.subr.mxu0 0.0
        %1988 = vmatpush2.msra.mxu0 0.0
        %1989 = vmatprep.subr.mxu0 0.0
        %1990 = vmatpush2.msra.mxu0 0.0
        %1991 = vmatprep.subr.mxu0 0.0
        %1992 = vmatpush2.msra.mxu0 0.0
        %1993 = vmatprep.subr.mxu0 0.0
        %1994 = vmatpush2.msra.mxu0 0.0
        %1995 = vmatprep.subr.mxu0 0.0
        %1996 = vmatpush2.msra.mxu0 0.0
        %1997 = vmatprep.mubr.f32.mxu0 0.0
        %1998 = vmatmul.mubr.f32.gmra.mxu0 %v791
        %v1999 = vpop.f32.mrf.mxu0
        %v2000 = vadd.f32 %v1931, %v1999
        %v2001 = vpop.f32.mrf.mxu0
        %2002 = vdwg.mxu0
        %v2004 = vsel %vm1025, %v1834, 0
        %v2007 = vsel %vm1025, %v1917, 0
        %2009 = vmatprep.subr.mxu0 0.0
        %2010 = vmatpush1.xpose.msra.mxu0 0.0
        %2011 = vmatprep.subr.mxu0 0.0
        %2012 = vmatpush1.xpose.msra.mxu0 0.0
        %2013 = vmatprep.subr.mxu0 0.0
        %2014 = vmatpush1.xpose.msra.mxu0 0.0
        %2015 = vmatprep.subr.mxu0 0.0
        %2016 = vmatpush1.xpose.msra.mxu0 0.0
        %2017 = vmatprep.subr.mxu0 0.0
        %2018 = vmatpush1.xpose.msra.mxu0 0.0
        %2019 = vmatprep.subr.mxu0 0.0
        %2020 = vmatpush1.xpose.msra.mxu0 0.0
        %2021 = vmatprep.subr.mxu0 0.0
        %2022 = vmatpush1.xpose.msra.mxu0 0.0
        %2023 = vmatprep.subr.mxu0 0.0
        %2024 = vmatpush1.xpose.msra.mxu0 0.0
        %2025 = vmatprep.subr.mxu0 0.0
        %2026 = vmatpush1.xpose.msra.mxu0 0.0
        %2027 = vmatprep.subr.mxu0 0.0
        %2028 = vmatpush1.xpose.msra.mxu0 0.0
        %2029 = vmatprep.subr.mxu0 0.0
        %2030 = vmatpush1.xpose.msra.mxu0 0.0
        %2031 = vmatprep.subr.mxu0 0.0
        %2032 = vmatpush1.xpose.msra.mxu0 0.0
        %2033 = vmatprep.subr.mxu0 0.0
        %2034 = vmatpush1.xpose.msra.mxu0 0.0
        %2035 = vmatprep.subr.mxu0 0.0
        %2036 = vmatpush1.xpose.msra.mxu0 0.0
        %2037 = vmatprep.subr.mxu0 0.0
        %2038 = vmatpush1.xpose.msra.mxu0 0.0
        %2039 = vmatprep.subr.mxu0 0.0
        %2040 = vmatpush1.xpose.msra.mxu0 %v2007
        %2041 = vmatprep.subr.mxu0 0.0
        %2042 = vmatpush2.xpose.msra.mxu0 0.0
        %2043 = vmatprep.subr.mxu0 0.0
        %2044 = vmatpush2.xpose.msra.mxu0 0.0
        %2045 = vmatprep.subr.mxu0 0.0
        %2046 = vmatpush2.xpose.msra.mxu0 0.0
        %2047 = vmatprep.subr.mxu0 0.0
        %2048 = vmatpush2.xpose.msra.mxu0 0.0
        %2049 = vmatprep.subr.mxu0 0.0
        %2050 = vmatpush2.xpose.msra.mxu0 0.0
        %2051 = vmatprep.subr.mxu0 0.0
        %2052 = vmatpush2.xpose.msra.mxu0 0.0
        %2053 = vmatprep.subr.mxu0 0.0
        %2054 = vmatpush2.xpose.msra.mxu0 0.0
        %2055 = vmatprep.subr.mxu0 0.0
        %2056 = vmatpush2.xpose.msra.mxu0 0.0
        %2057 = vmatprep.subr.mxu0 0.0
        %2058 = vmatpush2.xpose.msra.mxu0 0.0
        %2059 = vmatprep.subr.mxu0 0.0
        %2060 = vmatpush2.xpose.msra.mxu0 0.0
        %2061 = vmatprep.subr.mxu0 0.0
        %2062 = vmatpush2.xpose.msra.mxu0 0.0
        %2063 = vmatprep.subr.mxu0 0.0
        %2064 = vmatpush2.xpose.msra.mxu0 0.0
        %2065 = vmatprep.subr.mxu0 0.0
        %2066 = vmatpush2.xpose.msra.mxu0 0.0
        %2067 = vmatprep.subr.mxu0 0.0
        %2068 = vmatpush2.xpose.msra.mxu0 0.0
        %2069 = vmatprep.subr.mxu0 0.0
        %2070 = vmatpush2.xpose.msra.mxu0 0.0
        %2071 = vmatprep.subr.mxu0 0.0
        %2072 = vmatpush2.xpose.msra.mxu0 0.0
        %2073 = vmatprep.mubr.f32.mxu0 0.0
        %2074 = vmatmul.mubr.f32.gmra.mxu0 %v2004
        %v2075 = vpop.f32.mrf.mxu0
        %v2076 = vadd.f32 0.0, %v2075
        %v2077 = vpop.f32.mrf.mxu0
        %2078 = vdwg.mxu0
        %v2079 = vmul.f32 %v2076, 0.35355338
        %v2080 = vadd.f32 %v2079, %v1107
        %v2081 = vsel %vm1025, %v2080, -inf
        %2082 = vmax.xlane.f32.xlu0 %v2081
        %v2083 = vpop.xlane.xlu0 %2082
        %v2084 = vsub.f32 %v2080, %v2083
        %v2085 = vmul.f32 %v2084, 1.442695
        %v2086 = vpow.pop %v2085
        %v2087 = vsel %vm1025, %v2086, 0.0
        %2088 = vadd.xlane.f32.xlu0 %v2087
        %v2089 = vpop.xlane.xlu0 %2088
        %v2090 = vrcp.pop %v2089
        %v2091 = vmul.f32 %v2086, %v2090
        %v2093 = vsel %vm1025, %v2091, 0
        %2095 = vmatprep.subr.mxu0 0.0
        %2096 = vmatpush1.msra.mxu0 0.0
        %2097 = vmatprep.subr.mxu0 0.0
        %2098 = vmatpush1.msra.mxu0 0.0
        %2099 = vmatprep.subr.mxu0 0.0
        %2100 = vmatpush1.msra.mxu0 0.0
        %2101 = vmatprep.subr.mxu0 0.0
        %2102 = vmatpush1.msra.mxu0 0.0
        %2103 = vmatprep.subr.mxu0 0.0
        %2104 = vmatpush1.msra.mxu0 0.0
        %2105 = vmatprep.subr.mxu0 0.0
        %2106 = vmatpush1.msra.mxu0 0.0
        %2107 = vmatprep.subr.mxu0 0.0
        %2108 = vmatpush1.msra.mxu0 0.0
        %2109 = vmatprep.subr.mxu0 0.0
        %2110 = vmatpush1.msra.mxu0 0.0
        %2111 = vmatprep.subr.mxu0 0.0
        %2112 = vmatpush1.msra.mxu0 0.0
        %2113 = vmatprep.subr.mxu0 0.0
        %2114 = vmatpush1.msra.mxu0 0.0
        %2115 = vmatprep.subr.mxu0 0.0
        %2116 = vmatpush1.msra.mxu0 0.0
        %2117 = vmatprep.subr.mxu0 0.0
        %2118 = vmatpush1.msra.mxu0 0.0
        %2119 = vmatprep.subr.mxu0 0.0
        %2120 = vmatpush1.msra.mxu0 0.0
        %2121 = vmatprep.subr.mxu0 0.0
        %2122 = vmatpush1.msra.mxu0 0.0
        %2123 = vmatprep.subr.mxu0 0.0
        %2124 = vmatpush1.msra.mxu0 0.0
        %2125 = vmatprep.subr.mxu0 0.0
        %2126 = vmatpush1.msra.mxu0 %v2000
        %2127 = vmatprep.subr.mxu0 0.0
        %2128 = vmatpush2.msra.mxu0 0.0
        %2129 = vmatprep.subr.mxu0 0.0
        %2130 = vmatpush2.msra.mxu0 0.0
        %2131 = vmatprep.subr.mxu0 0.0
        %2132 = vmatpush2.msra.mxu0 0.0
        %2133 = vmatprep.subr.mxu0 0.0
        %2134 = vmatpush2.msra.mxu0 0.0
        %2135 = vmatprep.subr.mxu0 0.0
        %2136 = vmatpush2.msra.mxu0 0.0
        %2137 = vmatprep.subr.mxu0 0.0
        %2138 = vmatpush2.msra.mxu0 0.0
        %2139 = vmatprep.subr.mxu0 0.0
        %2140 = vmatpush2.msra.mxu0 0.0
        %2141 = vmatprep.subr.mxu0 0.0
        %2142 = vmatpush2.msra.mxu0 0.0
        %2143 = vmatprep.subr.mxu0 0.0
        %2144 = vmatpush2.msra.mxu0 0.0
        %2145 = vmatprep.subr.mxu0 0.0
        %2146 = vmatpush2.msra.mxu0 0.0
        %2147 = vmatprep.subr.mxu0 0.0
        %2148 = vmatpush2.msra.mxu0 0.0
        %2149 = vmatprep.subr.mxu0 0.0
        %2150 = vmatpush2.msra.mxu0 0.0
        %2151 = vmatprep.subr.mxu0 0.0
        %2152 = vmatpush2.msra.mxu0 0.0
        %2153 = vmatprep.subr.mxu0 0.0
        %2154 = vmatpush2.msra.mxu0 0.0
        %2155 = vmatprep.subr.mxu0 0.0
        %2156 = vmatpush2.msra.mxu0 0.0
        %2157 = vmatprep.subr.mxu0 0.0
        %2158 = vmatpush2.msra.mxu0 0.0
        %2159 = vmatprep.mubr.f32.mxu0 0.0
        %2160 = vmatmul.mubr.f32.gmra.mxu0 %v2093
        %v2161 = vpop.f32.mrf.mxu0
        %v2162 = vadd.f32 0.0, %v2161
        %v2163 = vpop.f32.mrf.mxu0
        %2164 = vdwg.mxu0
        %s2165 = scalar_lea.vmem %s10, 16
        %v2166 = vld [vmem:[%s2165] sm:$0xff]
        %v2168 = vsel %vm1025, %v2162, 0
        %2170 = vmatprep.subr.mxu0 0.0
        %2171 = vmatpush1.msra.mxu0 0.0
        %2172 = vmatprep.subr.mxu0 0.0
        %2173 = vmatpush1.msra.mxu0 0.0
        %2174 = vmatprep.subr.mxu0 0.0
        %2175 = vmatpush1.msra.mxu0 0.0
        %2176 = vmatprep.subr.mxu0 0.0
        %2177 = vmatpush1.msra.mxu0 0.0
        %2178 = vmatprep.subr.mxu0 0.0
        %2179 = vmatpush1.msra.mxu0 0.0
        %2180 = vmatprep.subr.mxu0 0.0
        %2181 = vmatpush1.msra.mxu0 0.0
        %2182 = vmatprep.subr.mxu0 0.0
        %2183 = vmatpush1.msra.mxu0 0.0
        %2184 = vmatprep.subr.mxu0 0.0
        %2185 = vmatpush1.msra.mxu0 0.0
        %2186 = vmatprep.subr.mxu0 0.0
        %2187 = vmatpush1.msra.mxu0 0.0
        %2188 = vmatprep.subr.mxu0 0.0
        %2189 = vmatpush1.msra.mxu0 0.0
        %2190 = vmatprep.subr.mxu0 0.0
        %2191 = vmatpush1.msra.mxu0 0.0
        %2192 = vmatprep.subr.mxu0 0.0
        %2193 = vmatpush1.msra.mxu0 0.0
        %2194 = vmatprep.subr.mxu0 0.0
        %2195 = vmatpush1.msra.mxu0 0.0
        %2196 = vmatprep.subr.mxu0 0.0
        %2197 = vmatpush1.msra.mxu0 0.0
        %2198 = vmatprep.subr.mxu0 0.0
        %2199 = vmatpush1.msra.mxu0 0.0
        %2200 = vmatprep.subr.mxu0 0.0
        %2201 = vmatpush1.msra.mxu0 %v2166
        %2202 = vmatprep.subr.mxu0 0.0
        %2203 = vmatpush2.msra.mxu0 0.0
        %2204 = vmatprep.subr.mxu0 0.0
        %2205 = vmatpush2.msra.mxu0 0.0
        %2206 = vmatprep.subr.mxu0 0.0
        %2207 = vmatpush2.msra.mxu0 0.0
        %2208 = vmatprep.subr.mxu0 0.0
        %2209 = vmatpush2.msra.mxu0 0.0
        %2210 = vmatprep.subr.mxu0 0.0
        %2211 = vmatpush2.msra.mxu0 0.0
        %2212 = vmatprep.subr.mxu0 0.0
        %2213 = vmatpush2.msra.mxu0 0.0
        %2214 = vmatprep.subr.mxu0 0.0
        %2215 = vmatpush2.msra.mxu0 0.0
        %2216 = vmatprep.subr.mxu0 0.0
        %2217 = vmatpush2.msra.mxu0 0.0
        %2218 = vmatprep.subr.mxu0 0.0
        %2219 = vmatpush2.msra.mxu0 0.0
        %2220 = vmatprep.subr.mxu0 0.0
        %2221 = vmatpush2.msra.mxu0 0.0
        %2222 = vmatprep.subr.mxu0 0.0
        %2223 = vmatpush2.msra.mxu0 0.0
        %2224 = vmatprep.subr.mxu0 0.0
        %2225 = vmatpush2.msra.mxu0 0.0
        %2226 = vmatprep.subr.mxu0 0.0
        %2227 = vmatpush2.msra.mxu0 0.0
        %2228 = vmatprep.subr.mxu0 0.0
        %2229 = vmatpush2.msra.mxu0 0.0
        %2230 = vmatprep.subr.mxu0 0.0
        %2231 = vmatpush2.msra.mxu0 0.0
        %2232 = vmatprep.subr.mxu0 0.0
        %2233 = vmatpush2.msra.mxu0 0.0
        %2234 = vmatprep.mubr.f32.mxu0 0.0
        %2235 = vmatmul.mubr.f32.gmra.mxu0 %v2168
        %v2236 = vpop.f32.mrf.mxu0
        %v2237 = vadd.f32 0.0, %v2236
        %v2238 = vpop.f32.mrf.mxu0
        %2239 = vdwg.mxu0
        %v2240 = vadd.f32 %v1751, %v2237
        %s2241 = scalar_lea.vmem %s4, 96
        %v2242 = vld [vmem:[%s2241] sm:$0xff]
        %v2243 = vld [vmem:[%s2241 + $0x8] sm:$0xff]
        %v2244 = vld [vmem:[%s2241 + $0x10] sm:$0xff]
        %v2245 = vld [vmem:[%s2241 + $0x18] sm:$0xff]
        %s2246 = scalar_lea.vmem %s5, 3
        %v2247 = vld [vmem:[%s2246] sm:$0x1]
        %v2249 = vlaneseq
        %v2250 = vshrl.u32 %v2249, 7
        %v2251 = vsub.s32 0, %v2250
        %v2252 = vrot.slane %v2247, %v2251
        %2254 = vmatprep.subr.mxu0 0.0
        %2255 = vmatpush1.msra.mxu0 0.0
        %2256 = vmatprep.subr.mxu0 0.0
        %2257 = vmatpush1.msra.mxu0 0.0
        %2258 = vmatprep.subr.mxu0 0.0
        %2259 = vmatpush1.msra.mxu0 0.0
        %2260 = vmatprep.subr.mxu0 0.0
        %2261 = vmatpush1.msra.mxu0 0.0
        %2262 = vmatprep.subr.mxu0 0.0
        %2263 = vmatpush1.msra.mxu0 0.0
        %2264 = vmatprep.subr.mxu0 0.0
        %2265 = vmatpush1.msra.mxu0 0.0
        %2266 = vmatprep.subr.mxu0 0.0
        %2267 = vmatpush1.msra.mxu0 0.0
        %2268 = vmatprep.subr.mxu0 0.0
        %2269 = vmatpush1.msra.mxu0 0.0
        %2270 = vmatprep.subr.mxu0 0.0
        %2271 = vmatpush1.msra.mxu0 0.0
        %2272 = vmatprep.subr.mxu0 0.0
        %2273 = vmatpush1.msra.mxu0 0.0
        %2274 = vmatprep.subr.mxu0 0.0
        %2275 = vmatpush1.msra.mxu0 0.0
        %2276 = vmatprep.subr.mxu0 0.0
        %2277 = vmatpush1.msra.mxu0 0.0
        %2278 = vmatprep.subr.mxu0 0.0
        %2279 = vmatpush1.msra.mxu0 %v2245
        %2280 = vmatprep.subr.mxu0 0.0
        %2281 = vmatpush1.msra.mxu0 %v2244
        %2282 = vmatprep.subr.mxu0 0.0
        %2283 = vmatpush1.msra.mxu0 %v2243
        %2284 = vmatprep.subr.mxu0 0.0
        %2285 = vmatpush1.msra.mxu0 %v2242
        %2286 = vmatprep.subr.mxu0 0.0
        %2287 = vmatpush2.msra.mxu0 0.0
        %2288 = vmatprep.subr.mxu0 0.0
        %2289 = vmatpush2.msra.mxu0 0.0
        %2290 = vmatprep.subr.mxu0 0.0
        %2291 = vmatpush2.msra.mxu0 0.0
        %2292 = vmatprep.subr.mxu0 0.0
        %2293 = vmatpush2.msra.mxu0 0.0
        %2294 = vmatprep.subr.mxu0 0.0
        %2295 = vmatpush2.msra.mxu0 0.0
        %2296 = vmatprep.subr.mxu0 0.0
        %2297 = vmatpush2.msra.mxu0 0.0
        %2298 = vmatprep.subr.mxu0 0.0
        %2299 = vmatpush2.msra.mxu0 0.0
        %2300 = vmatprep.subr.mxu0 0.0
        %2301 = vmatpush2.msra.mxu0 0.0
        %2302 = vmatprep.subr.mxu0 0.0
        %2303 = vmatpush2.msra.mxu0 0.0
        %2304 = vmatprep.subr.mxu0 0.0
        %2305 = vmatpush2.msra.mxu0 0.0
        %2306 = vmatprep.subr.mxu0 0.0
        %2307 = vmatpush2.msra.mxu0 0.0
        %2308 = vmatprep.subr.mxu0 0.0
        %2309 = vmatpush2.msra.mxu0 0.0
        %2310 = vmatprep.subr.mxu0 0.0
        %2311 = vmatpush2.msra.mxu0 0.0
        %2312 = vmatprep.subr.mxu0 0.0
        %2313 = vmatpush2.msra.mxu0 0.0
        %2314 = vmatprep.subr.mxu0 0.0
        %2315 = vmatpush2.msra.mxu0 0.0
        %2316 = vmatprep.subr.mxu0 0.0
        %2317 = vmatpush2.msra.mxu0 0.0
        %2318 = vmatprep.mubr.f32.mxu0 0.0
        %2319 = vmatmul.mubr.f32.gmra.mxu0 %v791
        %v2320 = vpop.f32.mrf.mxu0
        %v2321 = vadd.f32 %v2252, %v2320
        %v2322 = vpop.f32.mrf.mxu0
        %2323 = vdwg.mxu0
        %s2324 = scalar_lea.vmem %s6, 96
        %v2325 = vld [vmem:[%s2324] sm:$0xff]
        %v2326 = vld [vmem:[%s2324 + $0x8] sm:$0xff]
        %v2327 = vld [vmem:[%s2324 + $0x10] sm:$0xff]
        %v2328 = vld [vmem:[%s2324 + $0x18] sm:$0xff]
        %s2329 = scalar_lea.vmem %s7, 3
        %v2330 = vld [vmem:[%s2329] sm:$0x1]
        %v2332 = vlaneseq
        %v2333 = vshrl.u32 %v2332, 7
        %v2334 = vsub.s32 0, %v2333
        %v2335 = vrot.slane %v2330, %v2334
        %2337 = vmatprep.subr.mxu0 0.0
        %2338 = vmatpush1.msra.mxu0 0.0
        %2339 = vmatprep.subr.mxu0 0.0
        %2340 = vmatpush1.msra.mxu0 0.0
        %2341 = vmatprep.subr.mxu0 0.0
        %2342 = vmatpush1.msra.mxu0 0.0
        %2343 = vmatprep.subr.mxu0 0.0
        %2344 = vmatpush1.msra.mxu0 0.0
        %2345 = vmatprep.subr.mxu0 0.0
        %2346 = vmatpush1.msra.mxu0 0.0
        %2347 = vmatprep.subr.mxu0 0.0
        %2348 = vmatpush1.msra.mxu0 0.0
        %2349 = vmatprep.subr.mxu0 0.0
        %2350 = vmatpush1.msra.mxu0 0.0
        %2351 = vmatprep.subr.mxu0 0.0
        %2352 = vmatpush1.msra.mxu0 0.0
        %2353 = vmatprep.subr.mxu0 0.0
        %2354 = vmatpush1.msra.mxu0 0.0
        %2355 = vmatprep.subr.mxu0 0.0
        %2356 = vmatpush1.msra.mxu0 0.0
        %2357 = vmatprep.subr.mxu0 0.0
        %2358 = vmatpush1.msra.mxu0 0.0
        %2359 = vmatprep.subr.mxu0 0.0
        %2360 = vmatpush1.msra.mxu0 0.0
        %2361 = vmatprep.subr.mxu0 0.0
        %2362 = vmatpush1.msra.mxu0 %v2328
        %2363 = vmatprep.subr.mxu0 0.0
        %2364 = vmatpush1.msra.mxu0 %v2327
        %2365 = vmatprep.subr.mxu0 0.0
        %2366 = vmatpush1.msra.mxu0 %v2326
        %2367 = vmatprep.subr.mxu0 0.0
        %2368 = vmatpush1.msra.mxu0 %v2325
        %2369 = vmatprep.subr.mxu0 0.0
        %2370 = vmatpush2.msra.mxu0 0.0
        %2371 = vmatprep.subr.mxu0 0.0
        %2372 = vmatpush2.msra.mxu0 0.0
        %2373 = vmatprep.subr.mxu0 0.0
        %2374 = vmatpush2.msra.mxu0 0.0
        %2375 = vmatprep.subr.mxu0 0.0
        %2376 = vmatpush2.msra.mxu0 0.0
        %2377 = vmatprep.subr.mxu0 0.0
        %2378 = vmatpush2.msra.mxu0 0.0
        %2379 = vmatprep.subr.mxu0 0.0
        %2380 = vmatpush2.msra.mxu0 0.0
        %2381 = vmatprep.subr.mxu0 0.0
        %2382 = vmatpush2.msra.mxu0 0.0
        %2383 = vmatprep.subr.mxu0 0.0
        %2384 = vmatpush2.msra.mxu0 0.0
        %2385 = vmatprep.subr.mxu0 0.0
        %2386 = vmatpush2.msra.mxu0 0.0
        %2387 = vmatprep.subr.mxu0 0.0
        %2388 = vmatpush2.msra.mxu0 0.0
        %2389 = vmatprep.subr.mxu0 0.0
        %2390 = vmatpush2.msra.mxu0 0.0
        %2391 = vmatprep.subr.mxu0 0.0
        %2392 = vmatpush2.msra.mxu0 0.0
        %2393 = vmatprep.subr.mxu0 0.0
        %2394 = vmatpush2.msra.mxu0 0.0
        %2395 = vmatprep.subr.mxu0 0.0
        %2396 = vmatpush2.msra.mxu0 0.0
        %2397 = vmatprep.subr.mxu0 0.0
        %2398 = vmatpush2.msra.mxu0 0.0
        %2399 = vmatprep.subr.mxu0 0.0
        %2400 = vmatpush2.msra.mxu0 0.0
        %2401 = vmatprep.mubr.f32.mxu0 0.0
        %2402 = vmatmul.mubr.f32.gmra.mxu0 %v791
        %v2403 = vpop.f32.mrf.mxu0
        %v2404 = vadd.f32 %v2335, %v2403
        %v2405 = vpop.f32.mrf.mxu0
        %2406 = vdwg.mxu0
        %s2407 = scalar_lea.vmem %s8, 96
        %v2408 = vld [vmem:[%s2407] sm:$0xff]
        %v2409 = vld [vmem:[%s2407 + $0x8] sm:$0xff]
        %v2410 = vld [vmem:[%s2407 + $0x10] sm:$0xff]
        %v2411 = vld [vmem:[%s2407 + $0x18] sm:$0xff]
        %s2412 = scalar_lea.vmem %s9, 3
        %v2413 = vld [vmem:[%s2412] sm:$0x1]
        %v2415 = vlaneseq
        %v2416 = vshrl.u32 %v2415, 7
        %v2417 = vsub.s32 0, %v2416
        %v2418 = vrot.slane %v2413, %v2417
        %2420 = vmatprep.subr.mxu0 0.0
        %2421 = vmatpush1.msra.mxu0 0.0
        %2422 = vmatprep.subr.mxu0 0.0
        %2423 = vmatpush1.msra.mxu0 0.0
        %2424 = vmatprep.subr.mxu0 0.0
        %2425 = vmatpush1.msra.mxu0 0.0
        %2426 = vmatprep.subr.mxu0 0.0
        %2427 = vmatpush1.msra.mxu0 0.0
        %2428 = vmatprep.subr.mxu0 0.0
        %2429 = vmatpush1.msra.mxu0 0.0
        %2430 = vmatprep.subr.mxu0 0.0
        %2431 = vmatpush1.msra.mxu0 0.0
        %2432 = vmatprep.subr.mxu0 0.0
        %2433 = vmatpush1.msra.mxu0 0.0
        %2434 = vmatprep.subr.mxu0 0.0
        %2435 = vmatpush1.msra.mxu0 0.0
        %2436 = vmatprep.subr.mxu0 0.0
        %2437 = vmatpush1.msra.mxu0 0.0
        %2438 = vmatprep.subr.mxu0 0.0
        %2439 = vmatpush1.msra.mxu0 0.0
        %2440 = vmatprep.subr.mxu0 0.0
        %2441 = vmatpush1.msra.mxu0 0.0
        %2442 = vmatprep.subr.mxu0 0.0
        %2443 = vmatpush1.msra.mxu0 0.0
        %2444 = vmatprep.subr.mxu0 0.0
        %2445 = vmatpush1.msra.mxu0 %v2411
        %2446 = vmatprep.subr.mxu0 0.0
        %2447 = vmatpush1.msra.mxu0 %v2410
        %2448 = vmatprep.subr.mxu0 0.0
        %2449 = vmatpush1.msra.mxu0 %v2409
        %2450 = vmatprep.subr.mxu0 0.0
        %2451 = vmatpush1.msra.mxu0 %v2408
        %2452 = vmatprep.subr.mxu0 0.0
        %2453 = vmatpush2.msra.mxu0 0.0
        %2454 = vmatprep.subr.mxu0 0.0
        %2455 = vmatpush2.msra.mxu0 0.0
        %2456 = vmatprep.subr.mxu0 0.0
        %2457 = vmatpush2.msra.mxu0 0.0
        %2458 = vmatprep.subr.mxu0 0.0
        %2459 = vmatpush2.msra.mxu0 0.0
        %2460 = vmatprep.subr.mxu0 0.0
        %2461 = vmatpush2.msra.mxu0 0.0
        %2462 = vmatprep.subr.mxu0 0.0
        %2463 = vmatpush2.msra.mxu0 0.0
        %2464 = vmatprep.subr.mxu0 0.0
        %2465 = vmatpush2.msra.mxu0 0.0
        %2466 = vmatprep.subr.mxu0 0.0
        %2467 = vmatpush2.msra.mxu0 0.0
        %2468 = vmatprep.subr.mxu0 0.0
        %2469 = vmatpush2.msra.mxu0 0.0
        %2470 = vmatprep.subr.mxu0 0.0
        %2471 = vmatpush2.msra.mxu0 0.0
        %2472 = vmatprep.subr.mxu0 0.0
        %2473 = vmatpush2.msra.mxu0 0.0
        %2474 = vmatprep.subr.mxu0 0.0
        %2475 = vmatpush2.msra.mxu0 0.0
        %2476 = vmatprep.subr.mxu0 0.0
        %2477 = vmatpush2.msra.mxu0 0.0
        %2478 = vmatprep.subr.mxu0 0.0
        %2479 = vmatpush2.msra.mxu0 0.0
        %2480 = vmatprep.subr.mxu0 0.0
        %2481 = vmatpush2.msra.mxu0 0.0
        %2482 = vmatprep.subr.mxu0 0.0
        %2483 = vmatpush2.msra.mxu0 0.0
        %2484 = vmatprep.mubr.f32.mxu0 0.0
        %2485 = vmatmul.mubr.f32.gmra.mxu0 %v791
        %v2486 = vpop.f32.mrf.mxu0
        %v2487 = vadd.f32 %v2418, %v2486
        %v2488 = vpop.f32.mrf.mxu0
        %2489 = vdwg.mxu0
        %v2491 = vsel %vm1025, %v2321, 0
        %v2494 = vsel %vm1025, %v2404, 0
        %2496 = vmatprep.subr.mxu0 0.0
        %2497 = vmatpush1.xpose.msra.mxu0 0.0
        %2498 = vmatprep.subr.mxu0 0.0
        %2499 = vmatpush1.xpose.msra.mxu0 0.0
        %2500 = vmatprep.subr.mxu0 0.0
        %2501 = vmatpush1.xpose.msra.mxu0 0.0
        %2502 = vmatprep.subr.mxu0 0.0
        %2503 = vmatpush1.xpose.msra.mxu0 0.0
        %2504 = vmatprep.subr.mxu0 0.0
        %2505 = vmatpush1.xpose.msra.mxu0 0.0
        %2506 = vmatprep.subr.mxu0 0.0
        %2507 = vmatpush1.xpose.msra.mxu0 0.0
        %2508 = vmatprep.subr.mxu0 0.0
        %2509 = vmatpush1.xpose.msra.mxu0 0.0
        %2510 = vmatprep.subr.mxu0 0.0
        %2511 = vmatpush1.xpose.msra.mxu0 0.0
        %2512 = vmatprep.subr.mxu0 0.0
        %2513 = vmatpush1.xpose.msra.mxu0 0.0
        %2514 = vmatprep.subr.mxu0 0.0
        %2515 = vmatpush1.xpose.msra.mxu0 0.0
        %2516 = vmatprep.subr.mxu0 0.0
        %2517 = vmatpush1.xpose.msra.mxu0 0.0
        %2518 = vmatprep.subr.mxu0 0.0
        %2519 = vmatpush1.xpose.msra.mxu0 0.0
        %2520 = vmatprep.subr.mxu0 0.0
        %2521 = vmatpush1.xpose.msra.mxu0 0.0
        %2522 = vmatprep.subr.mxu0 0.0
        %2523 = vmatpush1.xpose.msra.mxu0 0.0
        %2524 = vmatprep.subr.mxu0 0.0
        %2525 = vmatpush1.xpose.msra.mxu0 0.0
        %2526 = vmatprep.subr.mxu0 0.0
        %2527 = vmatpush1.xpose.msra.mxu0 %v2494
        %2528 = vmatprep.subr.mxu0 0.0
        %2529 = vmatpush2.xpose.msra.mxu0 0.0
        %2530 = vmatprep.subr.mxu0 0.0
        %2531 = vmatpush2.xpose.msra.mxu0 0.0
        %2532 = vmatprep.subr.mxu0 0.0
        %2533 = vmatpush2.xpose.msra.mxu0 0.0
        %2534 = vmatprep.subr.mxu0 0.0
        %2535 = vmatpush2.xpose.msra.mxu0 0.0
        %2536 = vmatprep.subr.mxu0 0.0
        %2537 = vmatpush2.xpose.msra.mxu0 0.0
        %2538 = vmatprep.subr.mxu0 0.0
        %2539 = vmatpush2.xpose.msra.mxu0 0.0
        %2540 = vmatprep.subr.mxu0 0.0
        %2541 = vmatpush2.xpose.msra.mxu0 0.0
        %2542 = vmatprep.subr.mxu0 0.0
        %2543 = vmatpush2.xpose.msra.mxu0 0.0
        %2544 = vmatprep.subr.mxu0 0.0
        %2545 = vmatpush2.xpose.msra.mxu0 0.0
        %2546 = vmatprep.subr.mxu0 0.0
        %2547 = vmatpush2.xpose.msra.mxu0 0.0
        %2548 = vmatprep.subr.mxu0 0.0
        %2549 = vmatpush2.xpose.msra.mxu0 0.0
        %2550 = vmatprep.subr.mxu0 0.0
        %2551 = vmatpush2.xpose.msra.mxu0 0.0
        %2552 = vmatprep.subr.mxu0 0.0
        %2553 = vmatpush2.xpose.msra.mxu0 0.0
        %2554 = vmatprep.subr.mxu0 0.0
        %2555 = vmatpush2.xpose.msra.mxu0 0.0
        %2556 = vmatprep.subr.mxu0 0.0
        %2557 = vmatpush2.xpose.msra.mxu0 0.0
        %2558 = vmatprep.subr.mxu0 0.0
        %2559 = vmatpush2.xpose.msra.mxu0 0.0
        %2560 = vmatprep.mubr.f32.mxu0 0.0
        %2561 = vmatmul.mubr.f32.gmra.mxu0 %v2491
        %v2562 = vpop.f32.mrf.mxu0
        %v2563 = vadd.f32 0.0, %v2562
        %v2564 = vpop.f32.mrf.mxu0
        %2565 = vdwg.mxu0
        %v2566 = vmul.f32 %v2563, 0.35355338
        %v2567 = vadd.f32 %v2566, %v1107
        %v2568 = vsel %vm1025, %v2567, -inf
        %2569 = vmax.xlane.f32.xlu0 %v2568
        %v2570 = vpop.xlane.xlu0 %2569
        %v2571 = vsub.f32 %v2567, %v2570
        %v2572 = vmul.f32 %v2571, 1.442695
        %v2573 = vpow.pop %v2572
        %v2574 = vsel %vm1025, %v2573, 0.0
        %2575 = vadd.xlane.f32.xlu0 %v2574
        %v2576 = vpop.xlane.xlu0 %2575
        %v2577 = vrcp.pop %v2576
        %v2578 = vmul.f32 %v2573, %v2577
        %v2580 = vsel %vm1025, %v2578, 0
        %2582 = vmatprep.subr.mxu0 0.0
        %2583 = vmatpush1.msra.mxu0 0.0
        %2584 = vmatprep.subr.mxu0 0.0
        %2585 = vmatpush1.msra.mxu0 0.0
        %2586 = vmatprep.subr.mxu0 0.0
        %2587 = vmatpush1.msra.mxu0 0.0
        %2588 = vmatprep.subr.mxu0 0.0
        %2589 = vmatpush1.msra.mxu0 0.0
        %2590 = vmatprep.subr.mxu0 0.0
        %2591 = vmatpush1.msra.mxu0 0.0
        %2592 = vmatprep.subr.mxu0 0.0
        %2593 = vmatpush1.msra.mxu0 0.0
        %2594 = vmatprep.subr.mxu0 0.0
        %2595 = vmatpush1.msra.mxu0 0.0
        %2596 = vmatprep.subr.mxu0 0.0
        %2597 = vmatpush1.msra.mxu0 0.0
        %2598 = vmatprep.subr.mxu0 0.0
        %2599 = vmatpush1.msra.mxu0 0.0
        %2600 = vmatprep.subr.mxu0 0.0
        %2601 = vmatpush1.msra.mxu0 0.0
        %2602 = vmatprep.subr.mxu0 0.0
        %2603 = vmatpush1.msra.mxu0 0.0
        %2604 = vmatprep.subr.mxu0 0.0
        %2605 = vmatpush1.msra.mxu0 0.0
        %2606 = vmatprep.subr.mxu0 0.0
        %2607 = vmatpush1.msra.mxu0 0.0
        %2608 = vmatprep.subr.mxu0 0.0
        %2609 = vmatpush1.msra.mxu0 0.0
        %2610 = vmatprep.subr.mxu0 0.0
        %2611 = vmatpush1.msra.mxu0 0.0
        %2612 = vmatprep.subr.mxu0 0.0
        %2613 = vmatpush1.msra.mxu0 %v2487
        %2614 = vmatprep.subr.mxu0 0.0
        %2615 = vmatpush2.msra.mxu0 0.0
        %2616 = vmatprep.subr.mxu0 0.0
        %2617 = vmatpush2.msra.mxu0 0.0
        %2618 = vmatprep.subr.mxu0 0.0
        %2619 = vmatpush2.msra.mxu0 0.0
        %2620 = vmatprep.subr.mxu0 0.0
        %2621 = vmatpush2.msra.mxu0 0.0
        %2622 = vmatprep.subr.mxu0 0.0
        %2623 = vmatpush2.msra.mxu0 0.0
        %2624 = vmatprep.subr.mxu0 0.0
        %2625 = vmatpush2.msra.mxu0 0.0
        %2626 = vmatprep.subr.mxu0 0.0
        %2627 = vmatpush2.msra.mxu0 0.0
        %2628 = vmatprep.subr.mxu0 0.0
        %2629 = vmatpush2.msra.mxu0 0.0
        %2630 = vmatprep.subr.mxu0 0.0
        %2631 = vmatpush2.msra.mxu0 0.0
        %2632 = vmatprep.subr.mxu0 0.0
        %2633 = vmatpush2.msra.mxu0 0.0
        %2634 = vmatprep.subr.mxu0 0.0
        %2635 = vmatpush2.msra.mxu0 0.0
        %2636 = vmatprep.subr.mxu0 0.0
        %2637 = vmatpush2.msra.mxu0 0.0
        %2638 = vmatprep.subr.mxu0 0.0
        %2639 = vmatpush2.msra.mxu0 0.0
        %2640 = vmatprep.subr.mxu0 0.0
        %2641 = vmatpush2.msra.mxu0 0.0
        %2642 = vmatprep.subr.mxu0 0.0
        %2643 = vmatpush2.msra.mxu0 0.0
        %2644 = vmatprep.subr.mxu0 0.0
        %2645 = vmatpush2.msra.mxu0 0.0
        %2646 = vmatprep.mubr.f32.mxu0 0.0
        %2647 = vmatmul.mubr.f32.gmra.mxu0 %v2580
        %v2648 = vpop.f32.mrf.mxu0
        %v2649 = vadd.f32 0.0, %v2648
        %v2650 = vpop.f32.mrf.mxu0
        %2651 = vdwg.mxu0
        %s2652 = scalar_lea.vmem %s10, 24
        %v2653 = vld [vmem:[%s2652] sm:$0xff]
        %v2655 = vsel %vm1025, %v2649, 0
        %2657 = vmatprep.subr.mxu0 0.0
        %2658 = vmatpush1.msra.mxu0 0.0
        %2659 = vmatprep.subr.mxu0 0.0
        %2660 = vmatpush1.msra.mxu0 0.0
        %2661 = vmatprep.subr.mxu0 0.0
        %2662 = vmatpush1.msra.mxu0 0.0
        %2663 = vmatprep.subr.mxu0 0.0
        %2664 = vmatpush1.msra.mxu0 0.0
        %2665 = vmatprep.subr.mxu0 0.0
        %2666 = vmatpush1.msra.mxu0 0.0
        %2667 = vmatprep.subr.mxu0 0.0
        %2668 = vmatpush1.msra.mxu0 0.0
        %2669 = vmatprep.subr.mxu0 0.0
        %2670 = vmatpush1.msra.mxu0 0.0
        %2671 = vmatprep.subr.mxu0 0.0
        %2672 = vmatpush1.msra.mxu0 0.0
        %2673 = vmatprep.subr.mxu0 0.0
        %2674 = vmatpush1.msra.mxu0 0.0
        %2675 = vmatprep.subr.mxu0 0.0
        %2676 = vmatpush1.msra.mxu0 0.0
        %2677 = vmatprep.subr.mxu0 0.0
        %2678 = vmatpush1.msra.mxu0 0.0
        %2679 = vmatprep.subr.mxu0 0.0
        %2680 = vmatpush1.msra.mxu0 0.0
        %2681 = vmatprep.subr.mxu0 0.0
        %2682 = vmatpush1.msra.mxu0 0.0
        %2683 = vmatprep.subr.mxu0 0.0
        %2684 = vmatpush1.msra.mxu0 0.0
        %2685 = vmatprep.subr.mxu0 0.0
        %2686 = vmatpush1.msra.mxu0 0.0
        %2687 = vmatprep.subr.mxu0 0.0
        %2688 = vmatpush1.msra.mxu0 %v2653
        %2689 = vmatprep.subr.mxu0 0.0
        %2690 = vmatpush2.msra.mxu0 0.0
        %2691 = vmatprep.subr.mxu0 0.0
        %2692 = vmatpush2.msra.mxu0 0.0
        %2693 = vmatprep.subr.mxu0 0.0
        %2694 = vmatpush2.msra.mxu0 0.0
        %2695 = vmatprep.subr.mxu0 0.0
        %2696 = vmatpush2.msra.mxu0 0.0
        %2697 = vmatprep.subr.mxu0 0.0
        %2698 = vmatpush2.msra.mxu0 0.0
        %2699 = vmatprep.subr.mxu0 0.0
        %2700 = vmatpush2.msra.mxu0 0.0
        %2701 = vmatprep.subr.mxu0 0.0
        %2702 = vmatpush2.msra.mxu0 0.0
        %2703 = vmatprep.subr.mxu0 0.0
        %2704 = vmatpush2.msra.mxu0 0.0
        %2705 = vmatprep.subr.mxu0 0.0
        %2706 = vmatpush2.msra.mxu0 0.0
        %2707 = vmatprep.subr.mxu0 0.0
        %2708 = vmatpush2.msra.mxu0 0.0
        %2709 = vmatprep.subr.mxu0 0.0
        %2710 = vmatpush2.msra.mxu0 0.0
        %2711 = vmatprep.subr.mxu0 0.0
        %2712 = vmatpush2.msra.mxu0 0.0
        %2713 = vmatprep.subr.mxu0 0.0
        %2714 = vmatpush2.msra.mxu0 0.0
        %2715 = vmatprep.subr.mxu0 0.0
        %2716 = vmatpush2.msra.mxu0 0.0
        %2717 = vmatprep.subr.mxu0 0.0
        %2718 = vmatpush2.msra.mxu0 0.0
        %2719 = vmatprep.subr.mxu0 0.0
        %2720 = vmatpush2.msra.mxu0 0.0
        %2721 = vmatprep.mubr.f32.mxu0 0.0
        %2722 = vmatmul.mubr.f32.gmra.mxu0 %v2655
        %v2723 = vpop.f32.mrf.mxu0
        %v2724 = vadd.f32 0.0, %v2723
        %v2725 = vpop.f32.mrf.mxu0
        %2726 = vdwg.mxu0
        %v2727 = vadd.f32 %v2240, %v2724
        %v2728 = vld [vmem:[%s11] sm:$0x1]
        %v2730 = vlaneseq
        %v2731 = vshrl.u32 %v2730, 7
        %v2732 = vsub.s32 0, %v2731
        %v2733 = vrot.slane %v2728, %v2732
        %v2735 = vadd.f32 %v2727, %v2733
        %v2736 = vadd.f32 %v2735, %v778
        %v2737 = vld [vmem:[%s12] sm:$0x1]
        %v2738 = vld [vmem:[%s13] sm:$0x1]
        %v2739 = vsel %vm750, %v2736, 0.0
        %2740 = vadd.xlane.f32.xlu0 %v2739
        %v2741 = vpop.xlane.xlu0 %2740
        %v2742 = vmul.f32 %v2741, %v754
        %v2743 = vsub.f32 %v2736, %v2742
        %v2744 = vmul.f32 %v2743, %v2743
        %v2745 = vsel %vm750, %v2744, 0.0
        %2746 = vadd.xlane.f32.xlu0 %v2745
        %v2747 = vpop.xlane.xlu0 %2746
        %v2748 = vmul.f32 %v2747, %v754
        %v2749 = vadd.f32 %v2748, 1e-12
        %v2750 = vrsqrt.pop %v2749
        %v2751 = vmul.f32 %v2743, %v2750
        %v2753 = vlaneseq
        %v2754 = vshrl.u32 %v2753, 7
        %v2755 = vsub.s32 0, %v2754
        %v2756 = vrot.slane %v2737, %v2755
        %v2758 = vmul.f32 %v2751, %v2756
        %v2760 = vlaneseq
        %v2761 = vshrl.u32 %v2760, 7
        %v2762 = vsub.s32 0, %v2761
        %v2763 = vrot.slane %v2738, %v2762
        %v2765 = vadd.f32 %v2758, %v2763
        %v2766 = vld [vmem:[%s14] sm:$0xff]
        %v2767 = vld [vmem:[%s14 + $0x8] sm:$0xff]
        %v2768 = vld [vmem:[%s14 + $0x10] sm:$0xff]
        %v2769 = vld [vmem:[%s14 + $0x18] sm:$0xff]
        %v2770 = vld [vmem:[%s15] sm:$0x1]
        %v2772 = vlaneseq
        %v2773 = vshrl.u32 %v2772, 7
        %v2774 = vsub.s32 0, %v2773
        %v2775 = vrot.slane %v2770, %v2774
        %v2778 = vsel %vm750, %v2765, 0
        %2780 = vmatprep.subr.mxu0 0.0
        %2781 = vmatpush1.msra.mxu0 0.0
        %2782 = vmatprep.subr.mxu0 0.0
        %2783 = vmatpush1.msra.mxu0 0.0
        %2784 = vmatprep.subr.mxu0 0.0
        %2785 = vmatpush1.msra.mxu0 0.0
        %2786 = vmatprep.subr.mxu0 0.0
        %2787 = vmatpush1.msra.mxu0 0.0
        %2788 = vmatprep.subr.mxu0 0.0
        %2789 = vmatpush1.msra.mxu0 0.0
        %2790 = vmatprep.subr.mxu0 0.0
        %2791 = vmatpush1.msra.mxu0 0.0
        %2792 = vmatprep.subr.mxu0 0.0
        %2793 = vmatpush1.msra.mxu0 0.0
        %2794 = vmatprep.subr.mxu0 0.0
        %2795 = vmatpush1.msra.mxu0 0.0
        %2796 = vmatprep.subr.mxu0 0.0
        %2797 = vmatpush1.msra.mxu0 0.0
        %2798 = vmatprep.subr.mxu0 0.0
        %2799 = vmatpush1.msra.mxu0 0.0
        %2800 = vmatprep.subr.mxu0 0.0
        %2801 = vmatpush1.msra.mxu0 0.0
        %2802 = vmatprep.subr.mxu0 0.0
        %2803 = vmatpush1.msra.mxu0 0.0
        %2804 = vmatprep.subr.mxu0 0.0
        %2805 = vmatpush1.msra.mxu0 %v2769
        %2806 = vmatprep.subr.mxu0 0.0
        %2807 = vmatpush1.msra.mxu0 %v2768
        %2808 = vmatprep.subr.mxu0 0.0
        %2809 = vmatpush1.msra.mxu0 %v2767
        %2810 = vmatprep.subr.mxu0 0.0
        %2811 = vmatpush1.msra.mxu0 %v2766
        %2812 = vmatprep.subr.mxu0 0.0
        %2813 = vmatpush2.msra.mxu0 0.0
        %2814 = vmatprep.subr.mxu0 0.0
        %2815 = vmatpush2.msra.mxu0 0.0
        %2816 = vmatprep.subr.mxu0 0.0
        %2817 = vmatpush2.msra.mxu0 0.0
        %2818 = vmatprep.subr.mxu0 0.0
        %2819 = vmatpush2.msra.mxu0 0.0
        %2820 = vmatprep.subr.mxu0 0.0
        %2821 = vmatpush2.msra.mxu0 0.0
        %2822 = vmatprep.subr.mxu0 0.0
        %2823 = vmatpush2.msra.mxu0 0.0
        %2824 = vmatprep.subr.mxu0 0.0
        %2825 = vmatpush2.msra.mxu0 0.0
        %2826 = vmatprep.subr.mxu0 0.0
        %2827 = vmatpush2.msra.mxu0 0.0
        %2828 = vmatprep.subr.mxu0 0.0
        %2829 = vmatpush2.msra.mxu0 0.0
        %2830 = vmatprep.subr.mxu0 0.0
        %2831 = vmatpush2.msra.mxu0 0.0
        %2832 = vmatprep.subr.mxu0 0.0
        %2833 = vmatpush2.msra.mxu0 0.0
        %2834 = vmatprep.subr.mxu0 0.0
        %2835 = vmatpush2.msra.mxu0 0.0
        %2836 = vmatprep.subr.mxu0 0.0
        %2837 = vmatpush2.msra.mxu0 0.0
        %2838 = vmatprep.subr.mxu0 0.0
        %2839 = vmatpush2.msra.mxu0 0.0
        %2840 = vmatprep.subr.mxu0 0.0
        %2841 = vmatpush2.msra.mxu0 0.0
        %2842 = vmatprep.subr.mxu0 0.0
        %2843 = vmatpush2.msra.mxu0 0.0
        %2844 = vmatprep.mubr.f32.mxu0 0.0
        %2845 = vmatmul.mubr.f32.gmra.mxu0 %v2778
        %v2846 = vpop.f32.mrf.mxu0
        %v2847 = vadd.f32 %v2775, %v2846
        %v2848 = vpop.f32.mrf.mxu0
        %2849 = vdwg.mxu0
        %v2850 = vmul.f32 %v2847, 0.5
        %v2851 = vmul.f32 %v2847, 0.044715
        %v2852 = vmul.f32 %v2851, %v2847
        %v2853 = vmul.f32 %v2852, %v2847
        %v2854 = vadd.f32 %v2847, %v2853
        %v2855 = vmul.f32 %v2854, 0.7978846
        %v2856 = vtanh.pop %v2855
        %v2857 = vadd.f32 %v2856, 1.0
        %v2858 = vmul.f32 %v2850, %v2857
        %v2859 = vld [vmem:[%s16] sm:$0xff]
        %v2860 = vld [vmem:[%s16 + $0x8] sm:$0xff]
        %v2861 = vld [vmem:[%s16 + $0x10] sm:$0xff]
        %v2862 = vld [vmem:[%s16 + $0x18] sm:$0xff]
        %v2863 = vld [vmem:[%s16 + $0x20] sm:$0xff]
        %v2864 = vld [vmem:[%s16 + $0x28] sm:$0xff]
        %v2865 = vld [vmem:[%s16 + $0x30] sm:$0xff]
        %v2866 = vld [vmem:[%s16 + $0x38] sm:$0xff]
        %v2867 = vld [vmem:[%s17] sm:$0x1]
        %v2869 = vlaneseq
        %v2870 = vshrl.u32 %v2869, 7
        %v2871 = vsub.s32 0, %v2870
        %v2872 = vrot.slane %v2867, %v2871
        %vm2874 = vcmask 523264
        %v2876 = vsel %vm2874, %v2858, 0
        %2878 = vmatprep.subr.mxu0 0.0
        %2879 = vmatpush1.msra.mxu0 0.0
        %2880 = vmatprep.subr.mxu0 0.0
        %2881 = vmatpush1.msra.mxu0 0.0
        %2882 = vmatprep.subr.mxu0 0.0
        %2883 = vmatpush1.msra.mxu0 0.0
        %2884 = vmatprep.subr.mxu0 0.0
        %2885 = vmatpush1.msra.mxu0 0.0
        %2886 = vmatprep.subr.mxu0 0.0
        %2887 = vmatpush1.msra.mxu0 0.0
        %2888 = vmatprep.subr.mxu0 0.0
        %2889 = vmatpush1.msra.mxu0 0.0
        %2890 = vmatprep.subr.mxu0 0.0
        %2891 = vmatpush1.msra.mxu0 0.0
        %2892 = vmatprep.subr.mxu0 0.0
        %2893 = vmatpush1.msra.mxu0 0.0
        %2894 = vmatprep.subr.mxu0 0.0
        %2895 = vmatpush1.msra.mxu0 %v2866
        %2896 = vmatprep.subr.mxu0 0.0
        %2897 = vmatpush1.msra.mxu0 %v2865
        %2898 = vmatprep.subr.mxu0 0.0
        %2899 = vmatpush1.msra.mxu0 %v2864
        %2900 = vmatprep.subr.mxu0 0.0
        %2901 = vmatpush1.msra.mxu0 %v2863
        %2902 = vmatprep.subr.mxu0 0.0
        %2903 = vmatpush1.msra.mxu0 %v2862
        %2904 = vmatprep.subr.mxu0 0.0
        %2905 = vmatpush1.msra.mxu0 %v2861
        %2906 = vmatprep.subr.mxu0 0.0
        %2907 = vmatpush1.msra.mxu0 %v2860
        %2908 = vmatprep.subr.mxu0 0.0
        %2909 = vmatpush1.msra.mxu0 %v2859
        %2910 = vmatprep.subr.mxu0 0.0
        %2911 = vmatpush2.msra.mxu0 0.0
        %2912 = vmatprep.subr.mxu0 0.0
        %2913 = vmatpush2.msra.mxu0 0.0
        %2914 = vmatprep.subr.mxu0 0.0
        %2915 = vmatpush2.msra.mxu0 0.0
        %2916 = vmatprep.subr.mxu0 0.0
        %2917 = vmatpush2.msra.mxu0 0.0
        %2918 = vmatprep.subr.mxu0 0.0
        %2919 = vmatpush2.msra.mxu0 0.0
        %2920 = vmatprep.subr.mxu0 0.0
        %2921 = vmatpush2.msra.mxu0 0.0
        %2922 = vmatprep.subr.mxu0 0.0
        %2923 = vmatpush2.msra.mxu0 0.0
        %2924 = vmatprep.subr.mxu0 0.0
        %2925 = vmatpush2.msra.mxu0 0.0
        %2926 = vmatprep.subr.mxu0 0.0
        %2927 = vmatpush2.msra.mxu0 0.0
        %2928 = vmatprep.subr.mxu0 0.0
        %2929 = vmatpush2.msra.mxu0 0.0
        %2930 = vmatprep.subr.mxu0 0.0
        %2931 = vmatpush2.msra.mxu0 0.0
        %2932 = vmatprep.subr.mxu0 0.0
        %2933 = vmatpush2.msra.mxu0 0.0
        %2934 = vmatprep.subr.mxu0 0.0
        %2935 = vmatpush2.msra.mxu0 0.0
        %2936 = vmatprep.subr.mxu0 0.0
        %2937 = vmatpush2.msra.mxu0 0.0
        %2938 = vmatprep.subr.mxu0 0.0
        %2939 = vmatpush2.msra.mxu0 0.0
        %2940 = vmatprep.subr.mxu0 0.0
        %2941 = vmatpush2.msra.mxu0 0.0
        %2942 = vmatprep.mubr.f32.mxu0 0.0
        %2943 = vmatmul.mubr.f32.gmra.mxu0 %v2876
        %v2944 = vpop.f32.mrf.mxu0
        %v2945 = vadd.f32 %v2872, %v2944
        %v2946 = vpop.f32.mrf.mxu0
        %2947 = vdwg.mxu0
        %v2948 = vadd.f32 %v2945, %v2765
        %v2949 = vld [vmem:[%s18] sm:$0x1]
        %v2950 = vld [vmem:[%s19] sm:$0x1]
        %v2951 = vsel %vm750, %v2948, 0.0
        %2952 = vadd.xlane.f32.xlu0 %v2951
        %v2953 = vpop.xlane.xlu0 %2952
        %v2954 = vmul.f32 %v2953, %v754
        %v2955 = vsub.f32 %v2948, %v2954
        %v2956 = vmul.f32 %v2955, %v2955
        %v2957 = vsel %vm750, %v2956, 0.0
        %2958 = vadd.xlane.f32.xlu0 %v2957
        %v2959 = vpop.xlane.xlu0 %2958
        %v2960 = vmul.f32 %v2959, %v754
        %v2961 = vadd.f32 %v2960, 1e-12
        %v2962 = vrsqrt.pop %v2961
        %v2963 = vmul.f32 %v2955, %v2962
        %v2965 = vlaneseq
        %v2966 = vshrl.u32 %v2965, 7
        %v2967 = vsub.s32 0, %v2966
        %v2968 = vrot.slane %v2949, %v2967
        %v2970 = vmul.f32 %v2963, %v2968
        %v2972 = vlaneseq
        %v2973 = vshrl.u32 %v2972, 7
        %v2974 = vsub.s32 0, %v2973
        %v2975 = vrot.slane %v2950, %v2974
        %v2977 = vadd.f32 %v2970, %v2975
        %s2978 = scalar_lea.vmem %s4, 128
        %v2979 = vld [vmem:[%s2978] sm:$0xff]
        %v2980 = vld [vmem:[%s2978 + $0x8] sm:$0xff]
        %v2981 = vld [vmem:[%s2978 + $0x10] sm:$0xff]
        %v2982 = vld [vmem:[%s2978 + $0x18] sm:$0xff]
        %s2983 = scalar_lea.vmem %s5, 4
        %v2984 = vld [vmem:[%s2983] sm:$0x1]
        %v2986 = vlaneseq
        %v2987 = vshrl.u32 %v2986, 7
        %v2988 = vsub.s32 0, %v2987
        %v2989 = vrot.slane %v2984, %v2988
        %v2992 = vsel %vm750, %v2977, 0
        %2994 = vmatprep.subr.mxu0 0.0
        %2995 = vmatpush1.msra.mxu0 0.0
        %2996 = vmatprep.subr.mxu0 0.0
        %2997 = vmatpush1.msra.mxu0 0.0
        %2998 = vmatprep.subr.mxu0 0.0
        %2999 = vmatpush1.msra.mxu0 0.0
        %3000 = vmatprep.subr.mxu0 0.0
        %3001 = vmatpush1.msra.mxu0 0.0
        %3002 = vmatprep.subr.mxu0 0.0
        %3003 = vmatpush1.msra.mxu0 0.0
        %3004 = vmatprep.subr.mxu0 0.0
        %3005 = vmatpush1.msra.mxu0 0.0
        %3006 = vmatprep.subr.mxu0 0.0
        %3007 = vmatpush1.msra.mxu0 0.0
        %3008 = vmatprep.subr.mxu0 0.0
        %3009 = vmatpush1.msra.mxu0 0.0
        %3010 = vmatprep.subr.mxu0 0.0
        %3011 = vmatpush1.msra.mxu0 0.0
        %3012 = vmatprep.subr.mxu0 0.0
        %3013 = vmatpush1.msra.mxu0 0.0
        %3014 = vmatprep.subr.mxu0 0.0
        %3015 = vmatpush1.msra.mxu0 0.0
        %3016 = vmatprep.subr.mxu0 0.0
        %3017 = vmatpush1.msra.mxu0 0.0
        %3018 = vmatprep.subr.mxu0 0.0
        %3019 = vmatpush1.msra.mxu0 %v2982
        %3020 = vmatprep.subr.mxu0 0.0
        %3021 = vmatpush1.msra.mxu0 %v2981
        %3022 = vmatprep.subr.mxu0 0.0
        %3023 = vmatpush1.msra.mxu0 %v2980
        %3024 = vmatprep.subr.mxu0 0.0
        %3025 = vmatpush1.msra.mxu0 %v2979
        %3026 = vmatprep.subr.mxu0 0.0
        %3027 = vmatpush2.msra.mxu0 0.0
        %3028 = vmatprep.subr.mxu0 0.0
        %3029 = vmatpush2.msra.mxu0 0.0
        %3030 = vmatprep.subr.mxu0 0.0
        %3031 = vmatpush2.msra.mxu0 0.0
        %3032 = vmatprep.subr.mxu0 0.0
        %3033 = vmatpush2.msra.mxu0 0.0
        %3034 = vmatprep.subr.mxu0 0.0
        %3035 = vmatpush2.msra.mxu0 0.0
        %3036 = vmatprep.subr.mxu0 0.0
        %3037 = vmatpush2.msra.mxu0 0.0
        %3038 = vmatprep.subr.mxu0 0.0
        %3039 = vmatpush2.msra.mxu0 0.0
        %3040 = vmatprep.subr.mxu0 0.0
        %3041 = vmatpush2.msra.mxu0 0.0
        %3042 = vmatprep.subr.mxu0 0.0
        %3043 = vmatpush2.msra.mxu0 0.0
        %3044 = vmatprep.subr.mxu0 0.0
        %3045 = vmatpush2.msra.mxu0 0.0
        %3046 = vmatprep.subr.mxu0 0.0
        %3047 = vmatpush2.msra.mxu0 0.0
        %3048 = vmatprep.subr.mxu0 0.0
        %3049 = vmatpush2.msra.mxu0 0.0
        %3050 = vmatprep.subr.mxu0 0.0
        %3051 = vmatpush2.msra.mxu0 0.0
        %3052 = vmatprep.subr.mxu0 0.0
        %3053 = vmatpush2.msra.mxu0 0.0
        %3054 = vmatprep.subr.mxu0 0.0
        %3055 = vmatpush2.msra.mxu0 0.0
        %3056 = vmatprep.subr.mxu0 0.0
        %3057 = vmatpush2.msra.mxu0 0.0
        %3058 = vmatprep.mubr.f32.mxu0 0.0
        %3059 = vmatmul.mubr.f32.gmra.mxu0 %v2992
        %v3060 = vpop.f32.mrf.mxu0
        %v3061 = vadd.f32 %v2989, %v3060
        %v3062 = vpop.f32.mrf.mxu0
        %3063 = vdwg.mxu0
        %s3064 = scalar_lea.vmem %s6, 128
        %v3065 = vld [vmem:[%s3064] sm:$0xff]
        %v3066 = vld [vmem:[%s3064 + $0x8] sm:$0xff]
        %v3067 = vld [vmem:[%s3064 + $0x10] sm:$0xff]
        %v3068 = vld [vmem:[%s3064 + $0x18] sm:$0xff]
        %s3069 = scalar_lea.vmem %s7, 4
        %v3070 = vld [vmem:[%s3069] sm:$0x1]
        %v3072 = vlaneseq
        %v3073 = vshrl.u32 %v3072, 7
        %v3074 = vsub.s32 0, %v3073
        %v3075 = vrot.slane %v3070, %v3074
        %3077 = vmatprep.subr.mxu0 0.0
        %3078 = vmatpush1.msra.mxu0 0.0
        %3079 = vmatprep.subr.mxu0 0.0
        %3080 = vmatpush1.msra.mxu0 0.0
        %3081 = vmatprep.subr.mxu0 0.0
        %3082 = vmatpush1.msra.mxu0 0.0
        %3083 = vmatprep.subr.mxu0 0.0
        %3084 = vmatpush1.msra.mxu0 0.0
        %3085 = vmatprep.subr.mxu0 0.0
        %3086 = vmatpush1.msra.mxu0 0.0
        %3087 = vmatprep.subr.mxu0 0.0
        %3088 = vmatpush1.msra.mxu0 0.0
        %3089 = vmatprep.subr.mxu0 0.0
        %3090 = vmatpush1.msra.mxu0 0.0
        %3091 = vmatprep.subr.mxu0 0.0
        %3092 = vmatpush1.msra.mxu0 0.0
        %3093 = vmatprep.subr.mxu0 0.0
        %3094 = vmatpush1.msra.mxu0 0.0
        %3095 = vmatprep.subr.mxu0 0.0
        %3096 = vmatpush1.msra.mxu0 0.0
        %3097 = vmatprep.subr.mxu0 0.0
        %3098 = vmatpush1.msra.mxu0 0.0
        %3099 = vmatprep.subr.mxu0 0.0
        %3100 = vmatpush1.msra.mxu0 0.0
        %3101 = vmatprep.subr.mxu0 0.0
        %3102 = vmatpush1.msra.mxu0 %v3068
        %3103 = vmatprep.subr.mxu0 0.0
        %3104 = vmatpush1.msra.mxu0 %v3067
        %3105 = vmatprep.subr.mxu0 0.0
        %3106 = vmatpush1.msra.mxu0 %v3066
        %3107 = vmatprep.subr.mxu0 0.0
        %3108 = vmatpush1.msra.mxu0 %v3065
        %3109 = vmatprep.subr.mxu0 0.0
        %3110 = vmatpush2.msra.mxu0 0.0
        %3111 = vmatprep.subr.mxu0 0.0
        %3112 = vmatpush2.msra.mxu0 0.0
        %3113 = vmatprep.subr.mxu0 0.0
        %3114 = vmatpush2.msra.mxu0 0.0
        %3115 = vmatprep.subr.mxu0 0.0
        %3116 = vmatpush2.msra.mxu0 0.0
        %3117 = vmatprep.subr.mxu0 0.0
        %3118 = vmatpush2.msra.mxu0 0.0
        %3119 = vmatprep.subr.mxu0 0.0
        %3120 = vmatpush2.msra.mxu0 0.0
        %3121 = vmatprep.subr.mxu0 0.0
        %3122 = vmatpush2.msra.mxu0 0.0
        %3123 = vmatprep.subr.mxu0 0.0
        %3124 = vmatpush2.msra.mxu0 0.0
        %3125 = vmatprep.subr.mxu0 0.0
        %3126 = vmatpush2.msra.mxu0 0.0
        %3127 = vmatprep.subr.mxu0 0.0
        %3128 = vmatpush2.msra.mxu0 0.0
        %3129 = vmatprep.subr.mxu0 0.0
        %3130 = vmatpush2.msra.mxu0 0.0
        %3131 = vmatprep.subr.mxu0 0.0
        %3132 = vmatpush2.msra.mxu0 0.0
        %3133 = vmatprep.subr.mxu0 0.0
        %3134 = vmatpush2.msra.mxu0 0.0
        %3135 = vmatprep.subr.mxu0 0.0
        %3136 = vmatpush2.msra.mxu0 0.0
        %3137 = vmatprep.subr.mxu0 0.0
        %3138 = vmatpush2.msra.mxu0 0.0
        %3139 = vmatprep.subr.mxu0 0.0
        %3140 = vmatpush2.msra.mxu0 0.0
        %3141 = vmatprep.mubr.f32.mxu0 0.0
        %3142 = vmatmul.mubr.f32.gmra.mxu0 %v2992
        %v3143 = vpop.f32.mrf.mxu0
        %v3144 = vadd.f32 %v3075, %v3143
        %v3145 = vpop.f32.mrf.mxu0
        %3146 = vdwg.mxu0
        %s3147 = scalar_lea.vmem %s8, 128
        %v3148 = vld [vmem:[%s3147] sm:$0xff]
        %v3149 = vld [vmem:[%s3147 + $0x8] sm:$0xff]
        %v3150 = vld [vmem:[%s3147 + $0x10] sm:$0xff]
        %v3151 = vld [vmem:[%s3147 + $0x18] sm:$0xff]
        %s3152 = scalar_lea.vmem %s9, 4
        %v3153 = vld [vmem:[%s3152] sm:$0x1]
        %v3155 = vlaneseq
        %v3156 = vshrl.u32 %v3155, 7
        %v3157 = vsub.s32 0, %v3156
        %v3158 = vrot.slane %v3153, %v3157
        %3160 = vmatprep.subr.mxu0 0.0
        %3161 = vmatpush1.msra.mxu0 0.0
        %3162 = vmatprep.subr.mxu0 0.0
        %3163 = vmatpush1.msra.mxu0 0.0
        %3164 = vmatprep.subr.mxu0 0.0
        %3165 = vmatpush1.msra.mxu0 0.0
        %3166 = vmatprep.subr.mxu0 0.0
        %3167 = vmatpush1.msra.mxu0 0.0
        %3168 = vmatprep.subr.mxu0 0.0
        %3169 = vmatpush1.msra.mxu0 0.0
        %3170 = vmatprep.subr.mxu0 0.0
        %3171 = vmatpush1.msra.mxu0 0.0
        %3172 = vmatprep.subr.mxu0 0.0
        %3173 = vmatpush1.msra.mxu0 0.0
        %3174 = vmatprep.subr.mxu0 0.0
        %3175 = vmatpush1.msra.mxu0 0.0
        %3176 = vmatprep.subr.mxu0 0.0
        %3177 = vmatpush1.msra.mxu0 0.0
        %3178 = vmatprep.subr.mxu0 0.0
        %3179 = vmatpush1.msra.mxu0 0.0
        %3180 = vmatprep.subr.mxu0 0.0
        %3181 = vmatpush1.msra.mxu0 0.0
        %3182 = vmatprep.subr.mxu0 0.0
        %3183 = vmatpush1.msra.mxu0 0.0
        %3184 = vmatprep.subr.mxu0 0.0
        %3185 = vmatpush1.msra.mxu0 %v3151
        %3186 = vmatprep.subr.mxu0 0.0
        %3187 = vmatpush1.msra.mxu0 %v3150
        %3188 = vmatprep.subr.mxu0 0.0
        %3189 = vmatpush1.msra.mxu0 %v3149
        %3190 = vmatprep.subr.mxu0 0.0
        %3191 = vmatpush1.msra.mxu0 %v3148
        %3192 = vmatprep.subr.mxu0 0.0
        %3193 = vmatpush2.msra.mxu0 0.0
        %3194 = vmatprep.subr.mxu0 0.0
        %3195 = vmatpush2.msra.mxu0 0.0
        %3196 = vmatprep.subr.mxu0 0.0
        %3197 = vmatpush2.msra.mxu0 0.0
        %3198 = vmatprep.subr.mxu0 0.0
        %3199 = vmatpush2.msra.mxu0 0.0
        %3200 = vmatprep.subr.mxu0 0.0
        %3201 = vmatpush2.msra.mxu0 0.0
        %3202 = vmatprep.subr.mxu0 0.0
        %3203 = vmatpush2.msra.mxu0 0.0
        %3204 = vmatprep.subr.mxu0 0.0
        %3205 = vmatpush2.msra.mxu0 0.0
        %3206 = vmatprep.subr.mxu0 0.0
        %3207 = vmatpush2.msra.mxu0 0.0
        %3208 = vmatprep.subr.mxu0 0.0
        %3209 = vmatpush2.msra.mxu0 0.0
        %3210 = vmatprep.subr.mxu0 0.0
        %3211 = vmatpush2.msra.mxu0 0.0
        %3212 = vmatprep.subr.mxu0 0.0
        %3213 = vmatpush2.msra.mxu0 0.0
        %3214 = vmatprep.subr.mxu0 0.0
        %3215 = vmatpush2.msra.mxu0 0.0
        %3216 = vmatprep.subr.mxu0 0.0
        %3217 = vmatpush2.msra.mxu0 0.0
        %3218 = vmatprep.subr.mxu0 0.0
        %3219 = vmatpush2.msra.mxu0 0.0
        %3220 = vmatprep.subr.mxu0 0.0
        %3221 = vmatpush2.msra.mxu0 0.0
        %3222 = vmatprep.subr.mxu0 0.0
        %3223 = vmatpush2.msra.mxu0 0.0
        %3224 = vmatprep.mubr.f32.mxu0 0.0
        %3225 = vmatmul.mubr.f32.gmra.mxu0 %v2992
        %v3226 = vpop.f32.mrf.mxu0
        %v3227 = vadd.f32 %v3158, %v3226
        %v3228 = vpop.f32.mrf.mxu0
        %3229 = vdwg.mxu0
        %v3231 = vsel %vm1025, %v3061, 0
        %v3234 = vsel %vm1025, %v3144, 0
        %3236 = vmatprep.subr.mxu0 0.0
        %3237 = vmatpush1.xpose.msra.mxu0 0.0
        %3238 = vmatprep.subr.mxu0 0.0
        %3239 = vmatpush1.xpose.msra.mxu0 0.0
        %3240 = vmatprep.subr.mxu0 0.0
        %3241 = vmatpush1.xpose.msra.mxu0 0.0
        %3242 = vmatprep.subr.mxu0 0.0
        %3243 = vmatpush1.xpose.msra.mxu0 0.0
        %3244 = vmatprep.subr.mxu0 0.0
        %3245 = vmatpush1.xpose.msra.mxu0 0.0
        %3246 = vmatprep.subr.mxu0 0.0
        %3247 = vmatpush1.xpose.msra.mxu0 0.0
        %3248 = vmatprep.subr.mxu0 0.0
        %3249 = vmatpush1.xpose.msra.mxu0 0.0
        %3250 = vmatprep.subr.mxu0 0.0
        %3251 = vmatpush1.xpose.msra.mxu0 0.0
        %3252 = vmatprep.subr.mxu0 0.0
        %3253 = vmatpush1.xpose.msra.mxu0 0.0
        %3254 = vmatprep.subr.mxu0 0.0
        %3255 = vmatpush1.xpose.msra.mxu0 0.0
        %3256 = vmatprep.subr.mxu0 0.0
        %3257 = vmatpush1.xpose.msra.mxu0 0.0
        %3258 = vmatprep.subr.mxu0 0.0
        %3259 = vmatpush1.xpose.msra.mxu0 0.0
        %3260 = vmatprep.subr.mxu0 0.0
        %3261 = vmatpush1.xpose.msra.mxu0 0.0
        %3262 = vmatprep.subr.mxu0 0.0
        %3263 = vmatpush1.xpose.msra.mxu0 0.0
        %3264 = vmatprep.subr.mxu0 0.0
        %3265 = vmatpush1.xpose.msra.mxu0 0.0
        %3266 = vmatprep.subr.mxu0 0.0
        %3267 = vmatpush1.xpose.msra.mxu0 %v3234
        %3268 = vmatprep.subr.mxu0 0.0
        %3269 = vmatpush2.xpose.msra.mxu0 0.0
        %3270 = vmatprep.subr.mxu0 0.0
        %3271 = vmatpush2.xpose.msra.mxu0 0.0
        %3272 = vmatprep.subr.mxu0 0.0
        %3273 = vmatpush2.xpose.msra.mxu0 0.0
        %3274 = vmatprep.subr.mxu0 0.0
        %3275 = vmatpush2.xpose.msra.mxu0 0.0
        %3276 = vmatprep.subr.mxu0 0.0
        %3277 = vmatpush2.xpose.msra.mxu0 0.0
        %3278 = vmatprep.subr.mxu0 0.0
        %3279 = vmatpush2.xpose.msra.mxu0 0.0
        %3280 = vmatprep.subr.mxu0 0.0
        %3281 = vmatpush2.xpose.msra.mxu0 0.0
        %3282 = vmatprep.subr.mxu0 0.0
        %3283 = vmatpush2.xpose.msra.mxu0 0.0
        %3284 = vmatprep.subr.mxu0 0.0
        %3285 = vmatpush2.xpose.msra.mxu0 0.0
        %3286 = vmatprep.subr.mxu0 0.0
        %3287 = vmatpush2.xpose.msra.mxu0 0.0
        %3288 = vmatprep.subr.mxu0 0.0
        %3289 = vmatpush2.xpose.msra.mxu0 0.0
        %3290 = vmatprep.subr.mxu0 0.0
        %3291 = vmatpush2.xpose.msra.mxu0 0.0
        %3292 = vmatprep.subr.mxu0 0.0
        %3293 = vmatpush2.xpose.msra.mxu0 0.0
        %3294 = vmatprep.subr.mxu0 0.0
        %3295 = vmatpush2.xpose.msra.mxu0 0.0
        %3296 = vmatprep.subr.mxu0 0.0
        %3297 = vmatpush2.xpose.msra.mxu0 0.0
        %3298 = vmatprep.subr.mxu0 0.0
        %3299 = vmatpush2.xpose.msra.mxu0 0.0
        %3300 = vmatprep.mubr.f32.mxu0 0.0
        %3301 = vmatmul.mubr.f32.gmra.mxu0 %v3231
        %v3302 = vpop.f32.mrf.mxu0
        %v3303 = vadd.f32 0.0, %v3302
        %v3304 = vpop.f32.mrf.mxu0
        %3305 = vdwg.mxu0
        %v3306 = vmul.f32 %v3303, 0.35355338
        %v3307 = vadd.f32 %v3306, %v1107
        %v3308 = vsel %vm1025, %v3307, -inf
        %3309 = vmax.xlane.f32.xlu0 %v3308
        %v3310 = vpop.xlane.xlu0 %3309
        %v3311 = vsub.f32 %v3307, %v3310
        %v3312 = vmul.f32 %v3311, 1.442695
        %v3313 = vpow.pop %v3312
        %v3314 = vsel %vm1025, %v3313, 0.0
        %3315 = vadd.xlane.f32.xlu0 %v3314
        %v3316 = vpop.xlane.xlu0 %3315
        %v3317 = vrcp.pop %v3316
        %v3318 = vmul.f32 %v3313, %v3317
        %v3320 = vsel %vm1025, %v3318, 0
        %3322 = vmatprep.subr.mxu0 0.0
        %3323 = vmatpush1.msra.mxu0 0.0
        %3324 = vmatprep.subr.mxu0 0.0
        %3325 = vmatpush1.msra.mxu0 0.0
        %3326 = vmatprep.subr.mxu0 0.0
        %3327 = vmatpush1.msra.mxu0 0.0
        %3328 = vmatprep.subr.mxu0 0.0
        %3329 = vmatpush1.msra.mxu0 0.0
        %3330 = vmatprep.subr.mxu0 0.0
        %3331 = vmatpush1.msra.mxu0 0.0
        %3332 = vmatprep.subr.mxu0 0.0
        %3333 = vmatpush1.msra.mxu0 0.0
        %3334 = vmatprep.subr.mxu0 0.0
        %3335 = vmatpush1.msra.mxu0 0.0
        %3336 = vmatprep.subr.mxu0 0.0
        %3337 = vmatpush1.msra.mxu0 0.0
        %3338 = vmatprep.subr.mxu0 0.0
        %3339 = vmatpush1.msra.mxu0 0.0
        %3340 = vmatprep.subr.mxu0 0.0
        %3341 = vmatpush1.msra.mxu0 0.0
        %3342 = vmatprep.subr.mxu0 0.0
        %3343 = vmatpush1.msra.mxu0 0.0
        %3344 = vmatprep.subr.mxu0 0.0
        %3345 = vmatpush1.msra.mxu0 0.0
        %3346 = vmatprep.subr.mxu0 0.0
        %3347 = vmatpush1.msra.mxu0 0.0
        %3348 = vmatprep.subr.mxu0 0.0
        %3349 = vmatpush1.msra.mxu0 0.0
        %3350 = vmatprep.subr.mxu0 0.0
        %3351 = vmatpush1.msra.mxu0 0.0
        %3352 = vmatprep.subr.mxu0 0.0
        %3353 = vmatpush1.msra.mxu0 %v3227
        %3354 = vmatprep.subr.mxu0 0.0
        %3355 = vmatpush2.msra.mxu0 0.0
        %3356 = vmatprep.subr.mxu0 0.0
        %3357 = vmatpush2.msra.mxu0 0.0
        %3358 = vmatprep.subr.mxu0 0.0
        %3359 = vmatpush2.msra.mxu0 0.0
        %3360 = vmatprep.subr.mxu0 0.0
        %3361 = vmatpush2.msra.mxu0 0.0
        %3362 = vmatprep.subr.mxu0 0.0
        %3363 = vmatpush2.msra.mxu0 0.0
        %3364 = vmatprep.subr.mxu0 0.0
        %3365 = vmatpush2.msra.mxu0 0.0
        %3366 = vmatprep.subr.mxu0 0.0
        %3367 = vmatpush2.msra.mxu0 0.0
        %3368 = vmatprep.subr.mxu0 0.0
        %3369 = vmatpush2.msra.mxu0 0.0
        %3370 = vmatprep.subr.mxu0 0.0
        %3371 = vmatpush2.msra.mxu0 0.0
        %3372 = vmatprep.subr.mxu0 0.0
        %3373 = vmatpush2.msra.mxu0 0.0
        %3374 = vmatprep.subr.mxu0 0.0
        %3375 = vmatpush2.msra.mxu0 0.0
        %3376 = vmatprep.subr.mxu0 0.0
        %3377 = vmatpush2.msra.mxu0 0.0
        %3378 = vmatprep.subr.mxu0 0.0
        %3379 = vmatpush2.msra.mxu0 0.0
        %3380 = vmatprep.subr.mxu0 0.0
        %3381 = vmatpush2.msra.mxu0 0.0
        %3382 = vmatprep.subr.mxu0 0.0
        %3383 = vmatpush2.msra.mxu0 0.0
        %3384 = vmatprep.subr.mxu0 0.0
        %3385 = vmatpush2.msra.mxu0 0.0
        %3386 = vmatprep.mubr.f32.mxu0 0.0
        %3387 = vmatmul.mubr.f32.gmra.mxu0 %v3320
        %v3388 = vpop.f32.mrf.mxu0
        %v3389 = vadd.f32 0.0, %v3388
        %v3390 = vpop.f32.mrf.mxu0
        %3391 = vdwg.mxu0
        %s3392 = scalar_lea.vmem %s10, 32
        %v3393 = vld [vmem:[%s3392] sm:$0xff]
        %s3394 = scalar_lea.vmem %s4, 160
        %v3395 = vld [vmem:[%s3394] sm:$0xff]
        %v3396 = vld [vmem:[%s3394 + $0x8] sm:$0xff]
        %v3397 = vld [vmem:[%s3394 + $0x10] sm:$0xff]
        %v3398 = vld [vmem:[%s3394 + $0x18] sm:$0xff]
        %s3399 = scalar_lea.vmem %s5, 5
        %v3400 = vld [vmem:[%s3399] sm:$0x1]
        %v3402 = vlaneseq
        %v3403 = vshrl.u32 %v3402, 7
        %v3404 = vsub.s32 0, %v3403
        %v3405 = vrot.slane %v3400, %v3404
        %3407 = vmatprep.subr.mxu0 0.0
        %3408 = vmatpush1.msra.mxu0 0.0
        %3409 = vmatprep.subr.mxu0 0.0
        %3410 = vmatpush1.msra.mxu0 0.0
        %3411 = vmatprep.subr.mxu0 0.0
        %3412 = vmatpush1.msra.mxu0 0.0
        %3413 = vmatprep.subr.mxu0 0.0
        %3414 = vmatpush1.msra.mxu0 0.0
        %3415 = vmatprep.subr.mxu0 0.0
        %3416 = vmatpush1.msra.mxu0 0.0
        %3417 = vmatprep.subr.mxu0 0.0
        %3418 = vmatpush1.msra.mxu0 0.0
        %3419 = vmatprep.subr.mxu0 0.0
        %3420 = vmatpush1.msra.mxu0 0.0
        %3421 = vmatprep.subr.mxu0 0.0
        %3422 = vmatpush1.msra.mxu0 0.0
        %3423 = vmatprep.subr.mxu0 0.0
        %3424 = vmatpush1.msra.mxu0 0.0
        %3425 = vmatprep.subr.mxu0 0.0
        %3426 = vmatpush1.msra.mxu0 0.0
        %3427 = vmatprep.subr.mxu0 0.0
        %3428 = vmatpush1.msra.mxu0 0.0
        %3429 = vmatprep.subr.mxu0 0.0
        %3430 = vmatpush1.msra.mxu0 0.0
        %3431 = vmatprep.subr.mxu0 0.0
        %3432 = vmatpush1.msra.mxu0 %v3398
        %3433 = vmatprep.subr.mxu0 0.0
        %3434 = vmatpush1.msra.mxu0 %v3397
        %3435 = vmatprep.subr.mxu0 0.0
        %3436 = vmatpush1.msra.mxu0 %v3396
        %3437 = vmatprep.subr.mxu0 0.0
        %3438 = vmatpush1.msra.mxu0 %v3395
        %3439 = vmatprep.subr.mxu0 0.0
        %3440 = vmatpush2.msra.mxu0 0.0
        %3441 = vmatprep.subr.mxu0 0.0
        %3442 = vmatpush2.msra.mxu0 0.0
        %3443 = vmatprep.subr.mxu0 0.0
        %3444 = vmatpush2.msra.mxu0 0.0
        %3445 = vmatprep.subr.mxu0 0.0
        %3446 = vmatpush2.msra.mxu0 0.0
        %3447 = vmatprep.subr.mxu0 0.0
        %3448 = vmatpush2.msra.mxu0 0.0
        %3449 = vmatprep.subr.mxu0 0.0
        %3450 = vmatpush2.msra.mxu0 0.0
        %3451 = vmatprep.subr.mxu0 0.0
        %3452 = vmatpush2.msra.mxu0 0.0
        %3453 = vmatprep.subr.mxu0 0.0
        %3454 = vmatpush2.msra.mxu0 0.0
        %3455 = vmatprep.subr.mxu0 0.0
        %3456 = vmatpush2.msra.mxu0 0.0
        %3457 = vmatprep.subr.mxu0 0.0
        %3458 = vmatpush2.msra.mxu0 0.0
        %3459 = vmatprep.subr.mxu0 0.0
        %3460 = vmatpush2.msra.mxu0 0.0
        %3461 = vmatprep.subr.mxu0 0.0
        %3462 = vmatpush2.msra.mxu0 0.0
        %3463 = vmatprep.subr.mxu0 0.0
        %3464 = vmatpush2.msra.mxu0 0.0
        %3465 = vmatprep.subr.mxu0 0.0
        %3466 = vmatpush2.msra.mxu0 0.0
        %3467 = vmatprep.subr.mxu0 0.0
        %3468 = vmatpush2.msra.mxu0 0.0
        %3469 = vmatprep.subr.mxu0 0.0
        %3470 = vmatpush2.msra.mxu0 0.0
        %3471 = vmatprep.mubr.f32.mxu0 0.0
        %3472 = vmatmul.mubr.f32.gmra.mxu0 %v2992
        %v3473 = vpop.f32.mrf.mxu0
        %v3474 = vadd.f32 %v3405, %v3473
        %v3475 = vpop.f32.mrf.mxu0
        %3476 = vdwg.mxu0
        %s3477 = scalar_lea.vmem %s6, 160
        %v3478 = vld [vmem:[%s3477] sm:$0xff]
        %v3479 = vld [vmem:[%s3477 + $0x8] sm:$0xff]
        %v3480 = vld [vmem:[%s3477 + $0x10] sm:$0xff]
        %v3481 = vld [vmem:[%s3477 + $0x18] sm:$0xff]
        %s3482 = scalar_lea.vmem %s7, 5
        %v3483 = vld [vmem:[%s3482] sm:$0x1]
        %v3485 = vlaneseq
        %v3486 = vshrl.u32 %v3485, 7
        %v3487 = vsub.s32 0, %v3486
        %v3488 = vrot.slane %v3483, %v3487
        %3490 = vmatprep.subr.mxu0 0.0
        %3491 = vmatpush1.msra.mxu0 0.0
        %3492 = vmatprep.subr.mxu0 0.0
        %3493 = vmatpush1.msra.mxu0 0.0
        %3494 = vmatprep.subr.mxu0 0.0
        %3495 = vmatpush1.msra.mxu0 0.0
        %3496 = vmatprep.subr.mxu0 0.0
        %3497 = vmatpush1.msra.mxu0 0.0
        %3498 = vmatprep.subr.mxu0 0.0
        %3499 = vmatpush1.msra.mxu0 0.0
        %3500 = vmatprep.subr.mxu0 0.0
        %3501 = vmatpush1.msra.mxu0 0.0
        %3502 = vmatprep.subr.mxu0 0.0
        %3503 = vmatpush1.msra.mxu0 0.0
        %3504 = vmatprep.subr.mxu0 0.0
        %3505 = vmatpush1.msra.mxu0 0.0
        %3506 = vmatprep.subr.mxu0 0.0
        %3507 = vmatpush1.msra.mxu0 0.0
        %3508 = vmatprep.subr.mxu0 0.0
        %3509 = vmatpush1.msra.mxu0 0.0
        %3510 = vmatprep.subr.mxu0 0.0
        %3511 = vmatpush1.msra.mxu0 0.0
        %3512 = vmatprep.subr.mxu0 0.0
        %3513 = vmatpush1.msra.mxu0 0.0
        %3514 = vmatprep.subr.mxu0 0.0
        %3515 = vmatpush1.msra.mxu0 %v3481
        %3516 = vmatprep.subr.mxu0 0.0
        %3517 = vmatpush1.msra.mxu0 %v3480
        %3518 = vmatprep.subr.mxu0 0.0
        %3519 = vmatpush1.msra.mxu0 %v3479
        %3520 = vmatprep.subr.mxu0 0.0
        %3521 = vmatpush1.msra.mxu0 %v3478
        %3522 = vmatprep.subr.mxu0 0.0
        %3523 = vmatpush2.msra.mxu0 0.0
        %3524 = vmatprep.subr.mxu0 0.0
        %3525 = vmatpush2.msra.mxu0 0.0
        %3526 = vmatprep.subr.mxu0 0.0
        %3527 = vmatpush2.msra.mxu0 0.0
        %3528 = vmatprep.subr.mxu0 0.0
        %3529 = vmatpush2.msra.mxu0 0.0
        %3530 = vmatprep.subr.mxu0 0.0
        %3531 = vmatpush2.msra.mxu0 0.0
        %3532 = vmatprep.subr.mxu0 0.0
        %3533 = vmatpush2.msra.mxu0 0.0
        %3534 = vmatprep.subr.mxu0 0.0
        %3535 = vmatpush2.msra.mxu0 0.0
        %3536 = vmatprep.subr.mxu0 0.0
        %3537 = vmatpush2.msra.mxu0 0.0
        %3538 = vmatprep.subr.mxu0 0.0
        %3539 = vmatpush2.msra.mxu0 0.0
        %3540 = vmatprep.subr.mxu0 0.0
        %3541 = vmatpush2.msra.mxu0 0.0
        %3542 = vmatprep.subr.mxu0 0.0
        %3543 = vmatpush2.msra.mxu0 0.0
        %3544 = vmatprep.subr.mxu0 0.0
        %3545 = vmatpush2.msra.mxu0 0.0
        %3546 = vmatprep.subr.mxu0 0.0
        %3547 = vmatpush2.msra.mxu0 0.0
        %3548 = vmatprep.subr.mxu0 0.0
        %3549 = vmatpush2.msra.mxu0 0.0
        %3550 = vmatprep.subr.mxu0 0.0
        %3551 = vmatpush2.msra.mxu0 0.0
        %3552 = vmatprep.subr.mxu0 0.0
        %3553 = vmatpush2.msra.mxu0 0.0
        %3554 = vmatprep.mubr.f32.mxu0 0.0
        %3555 = vmatmul.mubr.f32.gmra.mxu0 %v2992
        %v3556 = vpop.f32.mrf.mxu0
        %v3557 = vadd.f32 %v3488, %v3556
        %v3558 = vpop.f32.mrf.mxu0
        %3559 = vdwg.mxu0
        %s3560 = scalar_lea.vmem %s8, 160
        %v3561 = vld [vmem:[%s3560] sm:$0xff]
        %v3562 = vld [vmem:[%s3560 + $0x8] sm:$0xff]
        %v3563 = vld [vmem:[%s3560 + $0x10] sm:$0xff]
        %v3564 = vld [vmem:[%s3560 + $0x18] sm:$0xff]
        %s3565 = scalar_lea.vmem %s9, 5
        %v3566 = vld [vmem:[%s3565] sm:$0x1]
        %v3568 = vlaneseq
        %v3569 = vshrl.u32 %v3568, 7
        %v3570 = vsub.s32 0, %v3569
        %v3571 = vrot.slane %v3566, %v3570
        %3573 = vmatprep.subr.mxu0 0.0
        %3574 = vmatpush1.msra.mxu0 0.0
        %3575 = vmatprep.subr.mxu0 0.0
        %3576 = vmatpush1.msra.mxu0 0.0
        %3577 = vmatprep.subr.mxu0 0.0
        %3578 = vmatpush1.msra.mxu0 0.0
        %3579 = vmatprep.subr.mxu0 0.0
        %3580 = vmatpush1.msra.mxu0 0.0
        %3581 = vmatprep.subr.mxu0 0.0
        %3582 = vmatpush1.msra.mxu0 0.0
        %3583 = vmatprep.subr.mxu0 0.0
        %3584 = vmatpush1.msra.mxu0 0.0
        %3585 = vmatprep.subr.mxu0 0.0
        %3586 = vmatpush1.msra.mxu0 0.0
        %3587 = vmatprep.subr.mxu0 0.0
        %3588 = vmatpush1.msra.mxu0 0.0
        %3589 = vmatprep.subr.mxu0 0.0
        %3590 = vmatpush1.msra.mxu0 0.0
        %3591 = vmatprep.subr.mxu0 0.0
        %3592 = vmatpush1.msra.mxu0 0.0
        %3593 = vmatprep.subr.mxu0 0.0
        %3594 = vmatpush1.msra.mxu0 0.0
        %3595 = vmatprep.subr.mxu0 0.0
        %3596 = vmatpush1.msra.mxu0 0.0
        %3597 = vmatprep.subr.mxu0 0.0
        %3598 = vmatpush1.msra.mxu0 %v3564
        %3599 = vmatprep.subr.mxu0 0.0
        %3600 = vmatpush1.msra.mxu0 %v3563
        %3601 = vmatprep.subr.mxu0 0.0
        %3602 = vmatpush1.msra.mxu0 %v3562
        %3603 = vmatprep.subr.mxu0 0.0
        %3604 = vmatpush1.msra.mxu0 %v3561
        %3605 = vmatprep.subr.mxu0 0.0
        %3606 = vmatpush2.msra.mxu0 0.0
        %3607 = vmatprep.subr.mxu0 0.0
        %3608 = vmatpush2.msra.mxu0 0.0
        %3609 = vmatprep.subr.mxu0 0.0
        %3610 = vmatpush2.msra.mxu0 0.0
        %3611 = vmatprep.subr.mxu0 0.0
        %3612 = vmatpush2.msra.mxu0 0.0
        %3613 = vmatprep.subr.mxu0 0.0
        %3614 = vmatpush2.msra.mxu0 0.0
        %3615 = vmatprep.subr.mxu0 0.0
        %3616 = vmatpush2.msra.mxu0 0.0
        %3617 = vmatprep.subr.mxu0 0.0
        %3618 = vmatpush2.msra.mxu0 0.0
        %3619 = vmatprep.subr.mxu0 0.0
        %3620 = vmatpush2.msra.mxu0 0.0
        %3621 = vmatprep.subr.mxu0 0.0
        %3622 = vmatpush2.msra.mxu0 0.0
        %3623 = vmatprep.subr.mxu0 0.0
        %3624 = vmatpush2.msra.mxu0 0.0
        %3625 = vmatprep.subr.mxu0 0.0
        %3626 = vmatpush2.msra.mxu0 0.0
        %3627 = vmatprep.subr.mxu0 0.0
        %3628 = vmatpush2.msra.mxu0 0.0
        %3629 = vmatprep.subr.mxu0 0.0
        %3630 = vmatpush2.msra.mxu0 0.0
        %3631 = vmatprep.subr.mxu0 0.0
        %3632 = vmatpush2.msra.mxu0 0.0
        %3633 = vmatprep.subr.mxu0 0.0
        %3634 = vmatpush2.msra.mxu0 0.0
        %3635 = vmatprep.subr.mxu0 0.0
        %3636 = vmatpush2.msra.mxu0 0.0
        %3637 = vmatprep.mubr.f32.mxu0 0.0
        %3638 = vmatmul.mubr.f32.gmra.mxu0 %v2992
        %v3639 = vpop.f32.mrf.mxu0
        %v3640 = vadd.f32 %v3571, %v3639
        %v3641 = vpop.f32.mrf.mxu0
        %3642 = vdwg.mxu0
        %v3644 = vsel %vm1025, %v3474, 0
        %v3647 = vsel %vm1025, %v3557, 0
        %3649 = vmatprep.subr.mxu0 0.0
        %3650 = vmatpush1.xpose.msra.mxu0 0.0
        %3651 = vmatprep.subr.mxu0 0.0
        %3652 = vmatpush1.xpose.msra.mxu0 0.0
        %3653 = vmatprep.subr.mxu0 0.0
        %3654 = vmatpush1.xpose.msra.mxu0 0.0
        %3655 = vmatprep.subr.mxu0 0.0
        %3656 = vmatpush1.xpose.msra.mxu0 0.0
        %3657 = vmatprep.subr.mxu0 0.0
        %3658 = vmatpush1.xpose.msra.mxu0 0.0
        %3659 = vmatprep.subr.mxu0 0.0
        %3660 = vmatpush1.xpose.msra.mxu0 0.0
        %3661 = vmatprep.subr.mxu0 0.0
        %3662 = vmatpush1.xpose.msra.mxu0 0.0
        %3663 = vmatprep.subr.mxu0 0.0
        %3664 = vmatpush1.xpose.msra.mxu0 0.0
        %3665 = vmatprep.subr.mxu0 0.0
        %3666 = vmatpush1.xpose.msra.mxu0 0.0
        %3667 = vmatprep.subr.mxu0 0.0
        %3668 = vmatpush1.xpose.msra.mxu0 0.0
        %3669 = vmatprep.subr.mxu0 0.0
        %3670 = vmatpush1.xpose.msra.mxu0 0.0
        %3671 = vmatprep.subr.mxu0 0.0
        %3672 = vmatpush1.xpose.msra.mxu0 0.0
        %3673 = vmatprep.subr.mxu0 0.0
        %3674 = vmatpush1.xpose.msra.mxu0 0.0
        %3675 = vmatprep.subr.mxu0 0.0
        %3676 = vmatpush1.xpose.msra.mxu0 0.0
        %3677 = vmatprep.subr.mxu0 0.0
        %3678 = vmatpush1.xpose.msra.mxu0 0.0
        %3679 = vmatprep.subr.mxu0 0.0
        %3680 = vmatpush1.xpose.msra.mxu0 %v3647
        %3681 = vmatprep.subr.mxu0 0.0
        %3682 = vmatpush2.xpose.msra.mxu0 0.0
        %3683 = vmatprep.subr.mxu0 0.0
        %3684 = vmatpush2.xpose.msra.mxu0 0.0
        %3685 = vmatprep.subr.mxu0 0.0
        %3686 = vmatpush2.xpose.msra.mxu0 0.0
        %3687 = vmatprep.subr.mxu0 0.0
        %3688 = vmatpush2.xpose.msra.mxu0 0.0
        %3689 = vmatprep.subr.mxu0 0.0
        %3690 = vmatpush2.xpose.msra.mxu0 0.0
        %3691 = vmatprep.subr.mxu0 0.0
        %3692 = vmatpush2.xpose.msra.mxu0 0.0
        %3693 = vmatprep.subr.mxu0 0.0
        %3694 = vmatpush2.xpose.msra.mxu0 0.0
        %3695 = vmatprep.subr.mxu0 0.0
        %3696 = vmatpush2.xpose.msra.mxu0 0.0
        %3697 = vmatprep.subr.mxu0 0.0
        %3698 = vmatpush2.xpose.msra.mxu0 0.0
        %3699 = vmatprep.subr.mxu0 0.0
        %3700 = vmatpush2.xpose.msra.mxu0 0.0
        %3701 = vmatprep.subr.mxu0 0.0
        %3702 = vmatpush2.xpose.msra.mxu0 0.0
        %3703 = vmatprep.subr.mxu0 0.0
        %3704 = vmatpush2.xpose.msra.mxu0 0.0
        %3705 = vmatprep.subr.mxu0 0.0
        %3706 = vmatpush2.xpose.msra.mxu0 0.0
        %3707 = vmatprep.subr.mxu0 0.0
        %3708 = vmatpush2.xpose.msra.mxu0 0.0
        %3709 = vmatprep.subr.mxu0 0.0
        %3710 = vmatpush2.xpose.msra.mxu0 0.0
        %3711 = vmatprep.subr.mxu0 0.0
        %3712 = vmatpush2.xpose.msra.mxu0 0.0
        %3713 = vmatprep.mubr.f32.mxu0 0.0
        %3714 = vmatmul.mubr.f32.gmra.mxu0 %v3644
        %v3715 = vpop.f32.mrf.mxu0
        %v3716 = vadd.f32 0.0, %v3715
        %v3717 = vpop.f32.mrf.mxu0
        %3718 = vdwg.mxu0
        %v3719 = vmul.f32 %v3716, 0.35355338
        %v3720 = vadd.f32 %v3719, %v1107
        %v3721 = vsel %vm1025, %v3720, -inf
        %3722 = vmax.xlane.f32.xlu0 %v3721
        %v3723 = vpop.xlane.xlu0 %3722
        %v3724 = vsub.f32 %v3720, %v3723
        %v3725 = vmul.f32 %v3724, 1.442695
        %v3726 = vpow.pop %v3725
        %v3727 = vsel %vm1025, %v3726, 0.0
        %3728 = vadd.xlane.f32.xlu0 %v3727
        %v3729 = vpop.xlane.xlu0 %3728
        %v3730 = vrcp.pop %v3729
        %v3731 = vmul.f32 %v3726, %v3730
        %v3733 = vsel %vm1025, %v3731, 0
        %3735 = vmatprep.subr.mxu0 0.0
        %3736 = vmatpush1.msra.mxu0 0.0
        %3737 = vmatprep.subr.mxu0 0.0
        %3738 = vmatpush1.msra.mxu0 0.0
        %3739 = vmatprep.subr.mxu0 0.0
        %3740 = vmatpush1.msra.mxu0 0.0
        %3741 = vmatprep.subr.mxu0 0.0
        %3742 = vmatpush1.msra.mxu0 0.0
        %3743 = vmatprep.subr.mxu0 0.0
        %3744 = vmatpush1.msra.mxu0 0.0
        %3745 = vmatprep.subr.mxu0 0.0
        %3746 = vmatpush1.msra.mxu0 0.0
        %3747 = vmatprep.subr.mxu0 0.0
        %3748 = vmatpush1.msra.mxu0 0.0
        %3749 = vmatprep.subr.mxu0 0.0
        %3750 = vmatpush1.msra.mxu0 0.0
        %3751 = vmatprep.subr.mxu0 0.0
        %3752 = vmatpush1.msra.mxu0 0.0
        %3753 = vmatprep.subr.mxu0 0.0
        %3754 = vmatpush1.msra.mxu0 0.0
        %3755 = vmatprep.subr.mxu0 0.0
        %3756 = vmatpush1.msra.mxu0 0.0
        %3757 = vmatprep.subr.mxu0 0.0
        %3758 = vmatpush1.msra.mxu0 0.0
        %3759 = vmatprep.subr.mxu0 0.0
        %3760 = vmatpush1.msra.mxu0 0.0
        %3761 = vmatprep.subr.mxu0 0.0
        %3762 = vmatpush1.msra.mxu0 0.0
        %3763 = vmatprep.subr.mxu0 0.0
        %3764 = vmatpush1.msra.mxu0 0.0
        %3765 = vmatprep.subr.mxu0 0.0
        %3766 = vmatpush1.msra.mxu0 %v3640
        %3767 = vmatprep.subr.mxu0 0.0
        %3768 = vmatpush2.msra.mxu0 0.0
        %3769 = vmatprep.subr.mxu0 0.0
        %3770 = vmatpush2.msra.mxu0 0.0
        %3771 = vmatprep.subr.mxu0 0.0
        %3772 = vmatpush2.msra.mxu0 0.0
        %3773 = vmatprep.subr.mxu0 0.0
        %3774 = vmatpush2.msra.mxu0 0.0
        %3775 = vmatprep.subr.mxu0 0.0
        %3776 = vmatpush2.msra.mxu0 0.0
        %3777 = vmatprep.subr.mxu0 0.0
        %3778 = vmatpush2.msra.mxu0 0.0
        %3779 = vmatprep.subr.mxu0 0.0
        %3780 = vmatpush2.msra.mxu0 0.0
        %3781 = vmatprep.subr.mxu0 0.0
        %3782 = vmatpush2.msra.mxu0 0.0
        %3783 = vmatprep.subr.mxu0 0.0
        %3784 = vmatpush2.msra.mxu0 0.0
        %3785 = vmatprep.subr.mxu0 0.0
        %3786 = vmatpush2.msra.mxu0 0.0
        %3787 = vmatprep.subr.mxu0 0.0
        %3788 = vmatpush2.msra.mxu0 0.0
        %3789 = vmatprep.subr.mxu0 0.0
        %3790 = vmatpush2.msra.mxu0 0.0
        %3791 = vmatprep.subr.mxu0 0.0
        %3792 = vmatpush2.msra.mxu0 0.0
        %3793 = vmatprep.subr.mxu0 0.0
        %3794 = vmatpush2.msra.mxu0 0.0
        %3795 = vmatprep.subr.mxu0 0.0
        %3796 = vmatpush2.msra.mxu0 0.0
        %3797 = vmatprep.subr.mxu0 0.0
        %3798 = vmatpush2.msra.mxu0 0.0
        %3799 = vmatprep.mubr.f32.mxu0 0.0
        %3800 = vmatmul.mubr.f32.gmra.mxu0 %v3733
        %v3801 = vpop.f32.mrf.mxu0
        %v3802 = vadd.f32 0.0, %v3801
        %v3803 = vpop.f32.mrf.mxu0
        %3804 = vdwg.mxu0
        %s3805 = scalar_lea.vmem %s10, 40
        %v3806 = vld [vmem:[%s3805] sm:$0xff]
        %v3808 = vsel %vm1025, %v3802, 0
        %3810 = vmatprep.subr.mxu0 0.0
        %3811 = vmatpush1.msra.mxu0 0.0
        %3812 = vmatprep.subr.mxu0 0.0
        %3813 = vmatpush1.msra.mxu0 0.0
        %3814 = vmatprep.subr.mxu0 0.0
        %3815 = vmatpush1.msra.mxu0 0.0
        %3816 = vmatprep.subr.mxu0 0.0
        %3817 = vmatpush1.msra.mxu0 0.0
        %3818 = vmatprep.subr.mxu0 0.0
        %3819 = vmatpush1.msra.mxu0 0.0
        %3820 = vmatprep.subr.mxu0 0.0
        %3821 = vmatpush1.msra.mxu0 0.0
        %3822 = vmatprep.subr.mxu0 0.0
        %3823 = vmatpush1.msra.mxu0 0.0
        %3824 = vmatprep.subr.mxu0 0.0
        %3825 = vmatpush1.msra.mxu0 0.0
        %3826 = vmatprep.subr.mxu0 0.0
        %3827 = vmatpush1.msra.mxu0 0.0
        %3828 = vmatprep.subr.mxu0 0.0
        %3829 = vmatpush1.msra.mxu0 0.0
        %3830 = vmatprep.subr.mxu0 0.0
        %3831 = vmatpush1.msra.mxu0 0.0
        %3832 = vmatprep.subr.mxu0 0.0
        %3833 = vmatpush1.msra.mxu0 0.0
        %3834 = vmatprep.subr.mxu0 0.0
        %3835 = vmatpush1.msra.mxu0 0.0
        %3836 = vmatprep.subr.mxu0 0.0
        %3837 = vmatpush1.msra.mxu0 0.0
        %3838 = vmatprep.subr.mxu0 0.0
        %3839 = vmatpush1.msra.mxu0 0.0
        %3840 = vmatprep.subr.mxu0 0.0
        %3841 = vmatpush1.msra.mxu0 %v3806
        %3842 = vmatprep.subr.mxu0 0.0
        %3843 = vmatpush2.msra.mxu0 0.0
        %3844 = vmatprep.subr.mxu0 0.0
        %3845 = vmatpush2.msra.mxu0 0.0
        %3846 = vmatprep.subr.mxu0 0.0
        %3847 = vmatpush2.msra.mxu0 0.0
        %3848 = vmatprep.subr.mxu0 0.0
        %3849 = vmatpush2.msra.mxu0 0.0
        %3850 = vmatprep.subr.mxu0 0.0
        %3851 = vmatpush2.msra.mxu0 0.0
        %3852 = vmatprep.subr.mxu0 0.0
        %3853 = vmatpush2.msra.mxu0 0.0
        %3854 = vmatprep.subr.mxu0 0.0
        %3855 = vmatpush2.msra.mxu0 0.0
        %3856 = vmatprep.subr.mxu0 0.0
        %3857 = vmatpush2.msra.mxu0 0.0
        %3858 = vmatprep.subr.mxu0 0.0
        %3859 = vmatpush2.msra.mxu0 0.0
        %3860 = vmatprep.subr.mxu0 0.0
        %3861 = vmatpush2.msra.mxu0 0.0
        %3862 = vmatprep.subr.mxu0 0.0
        %3863 = vmatpush2.msra.mxu0 0.0
        %3864 = vmatprep.subr.mxu0 0.0
        %3865 = vmatpush2.msra.mxu0 0.0
        %3866 = vmatprep.subr.mxu0 0.0
        %3867 = vmatpush2.msra.mxu0 0.0
        %3868 = vmatprep.subr.mxu0 0.0
        %3869 = vmatpush2.msra.mxu0 0.0
        %3870 = vmatprep.subr.mxu0 0.0
        %3871 = vmatpush2.msra.mxu0 0.0
        %3872 = vmatprep.subr.mxu0 0.0
        %3873 = vmatpush2.msra.mxu0 0.0
        %3874 = vmatprep.mubr.f32.mxu0 0.0
        %3875 = vmatmul.mubr.f32.gmra.mxu0 %v3808
        %v3876 = vpop.f32.mrf.mxu0
        %v3877 = vadd.f32 0.0, %v3876
        %v3878 = vpop.f32.mrf.mxu0
        %3879 = vdwg.mxu0
        %v3881 = vsel %vm1025, %v3389, 0
        %3883 = vmatprep.subr.mxu0 0.0
        %3884 = vmatpush1.msra.mxu0 0.0
        %3885 = vmatprep.subr.mxu0 0.0
        %3886 = vmatpush1.msra.mxu0 0.0
        %3887 = vmatprep.subr.mxu0 0.0
        %3888 = vmatpush1.msra.mxu0 0.0
        %3889 = vmatprep.subr.mxu0 0.0
        %3890 = vmatpush1.msra.mxu0 0.0
        %3891 = vmatprep.subr.mxu0 0.0
        %3892 = vmatpush1.msra.mxu0 0.0
        %3893 = vmatprep.subr.mxu0 0.0
        %3894 = vmatpush1.msra.mxu0 0.0
        %3895 = vmatprep.subr.mxu0 0.0
        %3896 = vmatpush1.msra.mxu0 0.0
        %3897 = vmatprep.subr.mxu0 0.0
        %3898 = vmatpush1.msra.mxu0 0.0
        %3899 = vmatprep.subr.mxu0 0.0
        %3900 = vmatpush1.msra.mxu0 0.0
        %3901 = vmatprep.subr.mxu0 0.0
        %3902 = vmatpush1.msra.mxu0 0.0
        %3903 = vmatprep.subr.mxu0 0.0
        %3904 = vmatpush1.msra.mxu0 0.0
        %3905 = vmatprep.subr.mxu0 0.0
        %3906 = vmatpush1.msra.mxu0 0.0
        %3907 = vmatprep.subr.mxu0 0.0
        %3908 = vmatpush1.msra.mxu0 0.0
        %3909 = vmatprep.subr.mxu0 0.0
        %3910 = vmatpush1.msra.mxu0 0.0
        %3911 = vmatprep.subr.mxu0 0.0
        %3912 = vmatpush1.msra.mxu0 0.0
        %3913 = vmatprep.subr.mxu0 0.0
        %3914 = vmatpush1.msra.mxu0 %v3393
        %3915 = vmatprep.subr.mxu0 0.0
        %3916 = vmatpush2.msra.mxu0 0.0
        %3917 = vmatprep.subr.mxu0 0.0
        %3918 = vmatpush2.msra.mxu0 0.0
        %3919 = vmatprep.subr.mxu0 0.0
        %3920 = vmatpush2.msra.mxu0 0.0
        %3921 = vmatprep.subr.mxu0 0.0
        %3922 = vmatpush2.msra.mxu0 0.0
        %3923 = vmatprep.subr.mxu0 0.0
        %3924 = vmatpush2.msra.mxu0 0.0
        %3925 = vmatprep.subr.mxu0 0.0
        %3926 = vmatpush2.msra.mxu0 0.0
        %3927 = vmatprep.subr.mxu0 0.0
        %3928 = vmatpush2.msra.mxu0 0.0
        %3929 = vmatprep.subr.mxu0 0.0
        %3930 = vmatpush2.msra.mxu0 0.0
        %3931 = vmatprep.subr.mxu0 0.0
        %3932 = vmatpush2.msra.mxu0 0.0
        %3933 = vmatprep.subr.mxu0 0.0
        %3934 = vmatpush2.msra.mxu0 0.0
        %3935 = vmatprep.subr.mxu0 0.0
        %3936 = vmatpush2.msra.mxu0 0.0
        %3937 = vmatprep.subr.mxu0 0.0
        %3938 = vmatpush2.msra.mxu0 0.0
        %3939 = vmatprep.subr.mxu0 0.0
        %3940 = vmatpush2.msra.mxu0 0.0
        %3941 = vmatprep.subr.mxu0 0.0
        %3942 = vmatpush2.msra.mxu0 0.0
        %3943 = vmatprep.subr.mxu0 0.0
        %3944 = vmatpush2.msra.mxu0 0.0
        %3945 = vmatprep.subr.mxu0 0.0
        %3946 = vmatpush2.msra.mxu0 0.0
        %3947 = vmatprep.mubr.f32.mxu0 0.0
        %3948 = vmatmul.mubr.f32.gmra.mxu0 %v3881
        %v3949 = vpop.f32.mrf.mxu0
        %v3950 = vadd.f32 %v3877, %v3949
        %v3951 = vpop.f32.mrf.mxu0
        %3952 = vdwg.mxu0
        %s3953 = scalar_lea.vmem %s4, 192
        %v3954 = vld [vmem:[%s3953] sm:$0xff]
        %v3955 = vld [vmem:[%s3953 + $0x8] sm:$0xff]
        %v3956 = vld [vmem:[%s3953 + $0x10] sm:$0xff]
        %v3957 = vld [vmem:[%s3953 + $0x18] sm:$0xff]
        %s3958 = scalar_lea.vmem %s5, 6
        %v3959 = vld [vmem:[%s3958] sm:$0x1]
        %v3961 = vlaneseq
        %v3962 = vshrl.u32 %v3961, 7
        %v3963 = vsub.s32 0, %v3962
        %v3964 = vrot.slane %v3959, %v3963
        %3966 = vmatprep.subr.mxu0 0.0
        %3967 = vmatpush1.msra.mxu0 0.0
        %3968 = vmatprep.subr.mxu0 0.0
        %3969 = vmatpush1.msra.mxu0 0.0
        %3970 = vmatprep.subr.mxu0 0.0
        %3971 = vmatpush1.msra.mxu0 0.0
        %3972 = vmatprep.subr.mxu0 0.0
        %3973 = vmatpush1.msra.mxu0 0.0
        %3974 = vmatprep.subr.mxu0 0.0
        %3975 = vmatpush1.msra.mxu0 0.0
        %3976 = vmatprep.subr.mxu0 0.0
        %3977 = vmatpush1.msra.mxu0 0.0
        %3978 = vmatprep.subr.mxu0 0.0
        %3979 = vmatpush1.msra.mxu0 0.0
        %3980 = vmatprep.subr.mxu0 0.0
        %3981 = vmatpush1.msra.mxu0 0.0
        %3982 = vmatprep.subr.mxu0 0.0
        %3983 = vmatpush1.msra.mxu0 0.0
        %3984 = vmatprep.subr.mxu0 0.0
        %3985 = vmatpush1.msra.mxu0 0.0
        %3986 = vmatprep.subr.mxu0 0.0
        %3987 = vmatpush1.msra.mxu0 0.0
        %3988 = vmatprep.subr.mxu0 0.0
        %3989 = vmatpush1.msra.mxu0 0.0
        %3990 = vmatprep.subr.mxu0 0.0
        %3991 = vmatpush1.msra.mxu0 %v3957
        %3992 = vmatprep.subr.mxu0 0.0
        %3993 = vmatpush1.msra.mxu0 %v3956
        %3994 = vmatprep.subr.mxu0 0.0
        %3995 = vmatpush1.msra.mxu0 %v3955
        %3996 = vmatprep.subr.mxu0 0.0
        %3997 = vmatpush1.msra.mxu0 %v3954
        %3998 = vmatprep.subr.mxu0 0.0
        %3999 = vmatpush2.msra.mxu0 0.0
        %4000 = vmatprep.subr.mxu0 0.0
        %4001 = vmatpush2.msra.mxu0 0.0
        %4002 = vmatprep.subr.mxu0 0.0
        %4003 = vmatpush2.msra.mxu0 0.0
        %4004 = vmatprep.subr.mxu0 0.0
        %4005 = vmatpush2.msra.mxu0 0.0
        %4006 = vmatprep.subr.mxu0 0.0
        %4007 = vmatpush2.msra.mxu0 0.0
        %4008 = vmatprep.subr.mxu0 0.0
        %4009 = vmatpush2.msra.mxu0 0.0
        %4010 = vmatprep.subr.mxu0 0.0
        %4011 = vmatpush2.msra.mxu0 0.0
        %4012 = vmatprep.subr.mxu0 0.0
        %4013 = vmatpush2.msra.mxu0 0.0
        %4014 = vmatprep.subr.mxu0 0.0
        %4015 = vmatpush2.msra.mxu0 0.0
        %4016 = vmatprep.subr.mxu0 0.0
        %4017 = vmatpush2.msra.mxu0 0.0
        %4018 = vmatprep.subr.mxu0 0.0
        %4019 = vmatpush2.msra.mxu0 0.0
        %4020 = vmatprep.subr.mxu0 0.0
        %4021 = vmatpush2.msra.mxu0 0.0
        %4022 = vmatprep.subr.mxu0 0.0
        %4023 = vmatpush2.msra.mxu0 0.0
        %4024 = vmatprep.subr.mxu0 0.0
        %4025 = vmatpush2.msra.mxu0 0.0
        %4026 = vmatprep.subr.mxu0 0.0
        %4027 = vmatpush2.msra.mxu0 0.0
        %4028 = vmatprep.subr.mxu0 0.0
        %4029 = vmatpush2.msra.mxu0 0.0
        %4030 = vmatprep.mubr.f32.mxu0 0.0
        %4031 = vmatmul.mubr.f32.gmra.mxu0 %v2992
        %v4032 = vpop.f32.mrf.mxu0
        %v4033 = vadd.f32 %v3964, %v4032
        %v4034 = vpop.f32.mrf.mxu0
        %4035 = vdwg.mxu0
        %s4036 = scalar_lea.vmem %s6, 192
        %v4037 = vld [vmem:[%s4036] sm:$0xff]
        %v4038 = vld [vmem:[%s4036 + $0x8] sm:$0xff]
        %v4039 = vld [vmem:[%s4036 + $0x10] sm:$0xff]
        %v4040 = vld [vmem:[%s4036 + $0x18] sm:$0xff]
        %s4041 = scalar_lea.vmem %s7, 6
        %v4042 = vld [vmem:[%s4041] sm:$0x1]
        %v4044 = vlaneseq
        %v4045 = vshrl.u32 %v4044, 7
        %v4046 = vsub.s32 0, %v4045
        %v4047 = vrot.slane %v4042, %v4046
        %4049 = vmatprep.subr.mxu0 0.0
        %4050 = vmatpush1.msra.mxu0 0.0
        %4051 = vmatprep.subr.mxu0 0.0
        %4052 = vmatpush1.msra.mxu0 0.0
        %4053 = vmatprep.subr.mxu0 0.0
        %4054 = vmatpush1.msra.mxu0 0.0
        %4055 = vmatprep.subr.mxu0 0.0
        %4056 = vmatpush1.msra.mxu0 0.0
        %4057 = vmatprep.subr.mxu0 0.0
        %4058 = vmatpush1.msra.mxu0 0.0
        %4059 = vmatprep.subr.mxu0 0.0
        %4060 = vmatpush1.msra.mxu0 0.0
        %4061 = vmatprep.subr.mxu0 0.0
        %4062 = vmatpush1.msra.mxu0 0.0
        %4063 = vmatprep.subr.mxu0 0.0
        %4064 = vmatpush1.msra.mxu0 0.0
        %4065 = vmatprep.subr.mxu0 0.0
        %4066 = vmatpush1.msra.mxu0 0.0
        %4067 = vmatprep.subr.mxu0 0.0
        %4068 = vmatpush1.msra.mxu0 0.0
        %4069 = vmatprep.subr.mxu0 0.0
        %4070 = vmatpush1.msra.mxu0 0.0
        %4071 = vmatprep.subr.mxu0 0.0
        %4072 = vmatpush1.msra.mxu0 0.0
        %4073 = vmatprep.subr.mxu0 0.0
        %4074 = vmatpush1.msra.mxu0 %v4040
        %4075 = vmatprep.subr.mxu0 0.0
        %4076 = vmatpush1.msra.mxu0 %v4039
        %4077 = vmatprep.subr.mxu0 0.0
        %4078 = vmatpush1.msra.mxu0 %v4038
        %4079 = vmatprep.subr.mxu0 0.0
        %4080 = vmatpush1.msra.mxu0 %v4037
        %4081 = vmatprep.subr.mxu0 0.0
        %4082 = vmatpush2.msra.mxu0 0.0
        %4083 = vmatprep.subr.mxu0 0.0
        %4084 = vmatpush2.msra.mxu0 0.0
        %4085 = vmatprep.subr.mxu0 0.0
        %4086 = vmatpush2.msra.mxu0 0.0
        %4087 = vmatprep.subr.mxu0 0.0
        %4088 = vmatpush2.msra.mxu0 0.0
        %4089 = vmatprep.subr.mxu0 0.0
        %4090 = vmatpush2.msra.mxu0 0.0
        %4091 = vmatprep.subr.mxu0 0.0
        %4092 = vmatpush2.msra.mxu0 0.0
        %4093 = vmatprep.subr.mxu0 0.0
        %4094 = vmatpush2.msra.mxu0 0.0
        %4095 = vmatprep.subr.mxu0 0.0
        %4096 = vmatpush2.msra.mxu0 0.0
        %4097 = vmatprep.subr.mxu0 0.0
        %4098 = vmatpush2.msra.mxu0 0.0
        %4099 = vmatprep.subr.mxu0 0.0
        %4100 = vmatpush2.msra.mxu0 0.0
        %4101 = vmatprep.subr.mxu0 0.0
        %4102 = vmatpush2.msra.mxu0 0.0
        %4103 = vmatprep.subr.mxu0 0.0
        %4104 = vmatpush2.msra.mxu0 0.0
        %4105 = vmatprep.subr.mxu0 0.0
        %4106 = vmatpush2.msra.mxu0 0.0
        %4107 = vmatprep.subr.mxu0 0.0
        %4108 = vmatpush2.msra.mxu0 0.0
        %4109 = vmatprep.subr.mxu0 0.0
        %4110 = vmatpush2.msra.mxu0 0.0
        %4111 = vmatprep.subr.mxu0 0.0
        %4112 = vmatpush2.msra.mxu0 0.0
        %4113 = vmatprep.mubr.f32.mxu0 0.0
        %4114 = vmatmul.mubr.f32.gmra.mxu0 %v2992
        %v4115 = vpop.f32.mrf.mxu0
        %v4116 = vadd.f32 %v4047, %v4115
        %v4117 = vpop.f32.mrf.mxu0
        %4118 = vdwg.mxu0
        %s4119 = scalar_lea.vmem %s8, 192
        %v4120 = vld [vmem:[%s4119] sm:$0xff]
        %v4121 = vld [vmem:[%s4119 + $0x8] sm:$0xff]
        %v4122 = vld [vmem:[%s4119 + $0x10] sm:$0xff]
        %v4123 = vld [vmem:[%s4119 + $0x18] sm:$0xff]
        %s4124 = scalar_lea.vmem %s9, 6
        %v4125 = vld [vmem:[%s4124] sm:$0x1]
        %v4127 = vlaneseq
        %v4128 = vshrl.u32 %v4127, 7
        %v4129 = vsub.s32 0, %v4128
        %v4130 = vrot.slane %v4125, %v4129
        %4132 = vmatprep.subr.mxu0 0.0
        %4133 = vmatpush1.msra.mxu0 0.0
        %4134 = vmatprep.subr.mxu0 0.0
        %4135 = vmatpush1.msra.mxu0 0.0
        %4136 = vmatprep.subr.mxu0 0.0
        %4137 = vmatpush1.msra.mxu0 0.0
        %4138 = vmatprep.subr.mxu0 0.0
        %4139 = vmatpush1.msra.mxu0 0.0
        %4140 = vmatprep.subr.mxu0 0.0
        %4141 = vmatpush1.msra.mxu0 0.0
        %4142 = vmatprep.subr.mxu0 0.0
        %4143 = vmatpush1.msra.mxu0 0.0
        %4144 = vmatprep.subr.mxu0 0.0
        %4145 = vmatpush1.msra.mxu0 0.0
        %4146 = vmatprep.subr.mxu0 0.0
        %4147 = vmatpush1.msra.mxu0 0.0
        %4148 = vmatprep.subr.mxu0 0.0
        %4149 = vmatpush1.msra.mxu0 0.0
        %4150 = vmatprep.subr.mxu0 0.0
        %4151 = vmatpush1.msra.mxu0 0.0
        %4152 = vmatprep.subr.mxu0 0.0
        %4153 = vmatpush1.msra.mxu0 0.0
        %4154 = vmatprep.subr.mxu0 0.0
        %4155 = vmatpush1.msra.mxu0 0.0
        %4156 = vmatprep.subr.mxu0 0.0
        %4157 = vmatpush1.msra.mxu0 %v4123
        %4158 = vmatprep.subr.mxu0 0.0
        %4159 = vmatpush1.msra.mxu0 %v4122
        %4160 = vmatprep.subr.mxu0 0.0
        %4161 = vmatpush1.msra.mxu0 %v4121
        %4162 = vmatprep.subr.mxu0 0.0
        %4163 = vmatpush1.msra.mxu0 %v4120
        %4164 = vmatprep.subr.mxu0 0.0
        %4165 = vmatpush2.msra.mxu0 0.0
        %4166 = vmatprep.subr.mxu0 0.0
        %4167 = vmatpush2.msra.mxu0 0.0
        %4168 = vmatprep.subr.mxu0 0.0
        %4169 = vmatpush2.msra.mxu0 0.0
        %4170 = vmatprep.subr.mxu0 0.0
        %4171 = vmatpush2.msra.mxu0 0.0
        %4172 = vmatprep.subr.mxu0 0.0
        %4173 = vmatpush2.msra.mxu0 0.0
        %4174 = vmatprep.subr.mxu0 0.0
        %4175 = vmatpush2.msra.mxu0 0.0
        %4176 = vmatprep.subr.mxu0 0.0
        %4177 = vmatpush2.msra.mxu0 0.0
        %4178 = vmatprep.subr.mxu0 0.0
        %4179 = vmatpush2.msra.mxu0 0.0
        %4180 = vmatprep.subr.mxu0 0.0
        %4181 = vmatpush2.msra.mxu0 0.0
        %4182 = vmatprep.subr.mxu0 0.0
        %4183 = vmatpush2.msra.mxu0 0.0
        %4184 = vmatprep.subr.mxu0 0.0
        %4185 = vmatpush2.msra.mxu0 0.0
        %4186 = vmatprep.subr.mxu0 0.0
        %4187 = vmatpush2.msra.mxu0 0.0
        %4188 = vmatprep.subr.mxu0 0.0
        %4189 = vmatpush2.msra.mxu0 0.0
        %4190 = vmatprep.subr.mxu0 0.0
        %4191 = vmatpush2.msra.mxu0 0.0
        %4192 = vmatprep.subr.mxu0 0.0
        %4193 = vmatpush2.msra.mxu0 0.0
        %4194 = vmatprep.subr.mxu0 0.0
        %4195 = vmatpush2.msra.mxu0 0.0
        %4196 = vmatprep.mubr.f32.mxu0 0.0
        %4197 = vmatmul.mubr.f32.gmra.mxu0 %v2992
        %v4198 = vpop.f32.mrf.mxu0
        %v4199 = vadd.f32 %v4130, %v4198
        %v4200 = vpop.f32.mrf.mxu0
        %4201 = vdwg.mxu0
        %v4203 = vsel %vm1025, %v4033, 0
        %v4206 = vsel %vm1025, %v4116, 0
        %4208 = vmatprep.subr.mxu0 0.0
        %4209 = vmatpush1.xpose.msra.mxu0 0.0
        %4210 = vmatprep.subr.mxu0 0.0
        %4211 = vmatpush1.xpose.msra.mxu0 0.0
        %4212 = vmatprep.subr.mxu0 0.0
        %4213 = vmatpush1.xpose.msra.mxu0 0.0
        %4214 = vmatprep.subr.mxu0 0.0
        %4215 = vmatpush1.xpose.msra.mxu0 0.0
        %4216 = vmatprep.subr.mxu0 0.0
        %4217 = vmatpush1.xpose.msra.mxu0 0.0
        %4218 = vmatprep.subr.mxu0 0.0
        %4219 = vmatpush1.xpose.msra.mxu0 0.0
        %4220 = vmatprep.subr.mxu0 0.0
        %4221 = vmatpush1.xpose.msra.mxu0 0.0
        %4222 = vmatprep.subr.mxu0 0.0
        %4223 = vmatpush1.xpose.msra.mxu0 0.0
        %4224 = vmatprep.subr.mxu0 0.0
        %4225 = vmatpush1.xpose.msra.mxu0 0.0
        %4226 = vmatprep.subr.mxu0 0.0
        %4227 = vmatpush1.xpose.msra.mxu0 0.0
        %4228 = vmatprep.subr.mxu0 0.0
        %4229 = vmatpush1.xpose.msra.mxu0 0.0
        %4230 = vmatprep.subr.mxu0 0.0
        %4231 = vmatpush1.xpose.msra.mxu0 0.0
        %4232 = vmatprep.subr.mxu0 0.0
        %4233 = vmatpush1.xpose.msra.mxu0 0.0
        %4234 = vmatprep.subr.mxu0 0.0
        %4235 = vmatpush1.xpose.msra.mxu0 0.0
        %4236 = vmatprep.subr.mxu0 0.0
        %4237 = vmatpush1.xpose.msra.mxu0 0.0
        %4238 = vmatprep.subr.mxu0 0.0
        %4239 = vmatpush1.xpose.msra.mxu0 %v4206
        %4240 = vmatprep.subr.mxu0 0.0
        %4241 = vmatpush2.xpose.msra.mxu0 0.0
        %4242 = vmatprep.subr.mxu0 0.0
        %4243 = vmatpush2.xpose.msra.mxu0 0.0
        %4244 = vmatprep.subr.mxu0 0.0
        %4245 = vmatpush2.xpose.msra.mxu0 0.0
        %4246 = vmatprep.subr.mxu0 0.0
        %4247 = vmatpush2.xpose.msra.mxu0 0.0
        %4248 = vmatprep.subr.mxu0 0.0
        %4249 = vmatpush2.xpose.msra.mxu0 0.0
        %4250 = vmatprep.subr.mxu0 0.0
        %4251 = vmatpush2.xpose.msra.mxu0 0.0
        %4252 = vmatprep.subr.mxu0 0.0
        %4253 = vmatpush2.xpose.msra.mxu0 0.0
        %4254 = vmatprep.subr.mxu0 0.0
        %4255 = vmatpush2.xpose.msra.mxu0 0.0
        %4256 = vmatprep.subr.mxu0 0.0
        %4257 = vmatpush2.xpose.msra.mxu0 0.0
        %4258 = vmatprep.subr.mxu0 0.0
        %4259 = vmatpush2.xpose.msra.mxu0 0.0
        %4260 = vmatprep.subr.mxu0 0.0
        %4261 = vmatpush2.xpose.msra.mxu0 0.0
        %4262 = vmatprep.subr.mxu0 0.0
        %4263 = vmatpush2.xpose.msra.mxu0 0.0
        %4264 = vmatprep.subr.mxu0 0.0
        %4265 = vmatpush2.xpose.msra.mxu0 0.0
        %4266 = vmatprep.subr.mxu0 0.0
        %4267 = vmatpush2.xpose.msra.mxu0 0.0
        %4268 = vmatprep.subr.mxu0 0.0
        %4269 = vmatpush2.xpose.msra.mxu0 0.0
        %4270 = vmatprep.subr.mxu0 0.0
        %4271 = vmatpush2.xpose.msra.mxu0 0.0
        %4272 = vmatprep.mubr.f32.mxu0 0.0
        %4273 = vmatmul.mubr.f32.gmra.mxu0 %v4203
        %v4274 = vpop.f32.mrf.mxu0
        %v4275 = vadd.f32 0.0, %v4274
        %v4276 = vpop.f32.mrf.mxu0
        %4277 = vdwg.mxu0
        %v4278 = vmul.f32 %v4275, 0.35355338
        %v4279 = vadd.f32 %v4278, %v1107
        %v4280 = vsel %vm1025, %v4279, -inf
        %4281 = vmax.xlane.f32.xlu0 %v4280
        %v4282 = vpop.xlane.xlu0 %4281
        %v4283 = vsub.f32 %v4279, %v4282
        %v4284 = vmul.f32 %v4283, 1.442695
        %v4285 = vpow.pop %v4284
        %v4286 = vsel %vm1025, %v4285, 0.0
        %4287 = vadd.xlane.f32.xlu0 %v4286
        %v4288 = vpop.xlane.xlu0 %4287
        %v4289 = vrcp.pop %v4288
        %v4290 = vmul.f32 %v4285, %v4289
        %v4292 = vsel %vm1025, %v4290, 0
        %4294 = vmatprep.subr.mxu0 0.0
        %4295 = vmatpush1.msra.mxu0 0.0
        %4296 = vmatprep.subr.mxu0 0.0
        %4297 = vmatpush1.msra.mxu0 0.0
        %4298 = vmatprep.subr.mxu0 0.0
        %4299 = vmatpush1.msra.mxu0 0.0
        %4300 = vmatprep.subr.mxu0 0.0
        %4301 = vmatpush1.msra.mxu0 0.0
        %4302 = vmatprep.subr.mxu0 0.0
        %4303 = vmatpush1.msra.mxu0 0.0
        %4304 = vmatprep.subr.mxu0 0.0
        %4305 = vmatpush1.msra.mxu0 0.0
        %4306 = vmatprep.subr.mxu0 0.0
        %4307 = vmatpush1.msra.mxu0 0.0
        %4308 = vmatprep.subr.mxu0 0.0
        %4309 = vmatpush1.msra.mxu0 0.0
        %4310 = vmatprep.subr.mxu0 0.0
        %4311 = vmatpush1.msra.mxu0 0.0
        %4312 = vmatprep.subr.mxu0 0.0
        %4313 = vmatpush1.msra.mxu0 0.0
        %4314 = vmatprep.subr.mxu0 0.0
        %4315 = vmatpush1.msra.mxu0 0.0
        %4316 = vmatprep.subr.mxu0 0.0
        %4317 = vmatpush1.msra.mxu0 0.0
        %4318 = vmatprep.subr.mxu0 0.0
        %4319 = vmatpush1.msra.mxu0 0.0
        %4320 = vmatprep.subr.mxu0 0.0
        %4321 = vmatpush1.msra.mxu0 0.0
        %4322 = vmatprep.subr.mxu0 0.0
        %4323 = vmatpush1.msra.mxu0 0.0
        %4324 = vmatprep.subr.mxu0 0.0
        %4325 = vmatpush1.msra.mxu0 %v4199
        %4326 = vmatprep.subr.mxu0 0.0
        %4327 = vmatpush2.msra.mxu0 0.0
        %4328 = vmatprep.subr.mxu0 0.0
        %4329 = vmatpush2.msra.mxu0 0.0
        %4330 = vmatprep.subr.mxu0 0.0
        %4331 = vmatpush2.msra.mxu0 0.0
        %4332 = vmatprep.subr.mxu0 0.0
        %4333 = vmatpush2.msra.mxu0 0.0
        %4334 = vmatprep.subr.mxu0 0.0
        %4335 = vmatpush2.msra.mxu0 0.0
        %4336 = vmatprep.subr.mxu0 0.0
        %4337 = vmatpush2.msra.mxu0 0.0
        %4338 = vmatprep.subr.mxu0 0.0
        %4339 = vmatpush2.msra.mxu0 0.0
        %4340 = vmatprep.subr.mxu0 0.0
        %4341 = vmatpush2.msra.mxu0 0.0
        %4342 = vmatprep.subr.mxu0 0.0
        %4343 = vmatpush2.msra.mxu0 0.0
        %4344 = vmatprep.subr.mxu0 0.0
        %4345 = vmatpush2.msra.mxu0 0.0
        %4346 = vmatprep.subr.mxu0 0.0
        %4347 = vmatpush2.msra.mxu0 0.0
        %4348 = vmatprep.subr.mxu0 0.0
        %4349 = vmatpush2.msra.mxu0 0.0
        %4350 = vmatprep.subr.mxu0 0.0
        %4351 = vmatpush2.msra.mxu0 0.0
        %4352 = vmatprep.subr.mxu0 0.0
        %4353 = vmatpush2.msra.mxu0 0.0
        %4354 = vmatprep.subr.mxu0 0.0
        %4355 = vmatpush2.msra.mxu0 0.0
        %4356 = vmatprep.subr.mxu0 0.0
        %4357 = vmatpush2.msra.mxu0 0.0
        %4358 = vmatprep.mubr.f32.mxu0 0.0
        %4359 = vmatmul.mubr.f32.gmra.mxu0 %v4292
        %v4360 = vpop.f32.mrf.mxu0
        %v4361 = vadd.f32 0.0, %v4360
        %v4362 = vpop.f32.mrf.mxu0
        %4363 = vdwg.mxu0
        %s4364 = scalar_lea.vmem %s10, 48
        %v4365 = vld [vmem:[%s4364] sm:$0xff]
        %v4367 = vsel %vm1025, %v4361, 0
        %4369 = vmatprep.subr.mxu0 0.0
        %4370 = vmatpush1.msra.mxu0 0.0
        %4371 = vmatprep.subr.mxu0 0.0
        %4372 = vmatpush1.msra.mxu0 0.0
        %4373 = vmatprep.subr.mxu0 0.0
        %4374 = vmatpush1.msra.mxu0 0.0
        %4375 = vmatprep.subr.mxu0 0.0
        %4376 = vmatpush1.msra.mxu0 0.0
        %4377 = vmatprep.subr.mxu0 0.0
        %4378 = vmatpush1.msra.mxu0 0.0
        %4379 = vmatprep.subr.mxu0 0.0
        %4380 = vmatpush1.msra.mxu0 0.0
        %4381 = vmatprep.subr.mxu0 0.0
        %4382 = vmatpush1.msra.mxu0 0.0
        %4383 = vmatprep.subr.mxu0 0.0
        %4384 = vmatpush1.msra.mxu0 0.0
        %4385 = vmatprep.subr.mxu0 0.0
        %4386 = vmatpush1.msra.mxu0 0.0
        %4387 = vmatprep.subr.mxu0 0.0
        %4388 = vmatpush1.msra.mxu0 0.0
        %4389 = vmatprep.subr.mxu0 0.0
        %4390 = vmatpush1.msra.mxu0 0.0
        %4391 = vmatprep.subr.mxu0 0.0
        %4392 = vmatpush1.msra.mxu0 0.0
        %4393 = vmatprep.subr.mxu0 0.0
        %4394 = vmatpush1.msra.mxu0 0.0
        %4395 = vmatprep.subr.mxu0 0.0
        %4396 = vmatpush1.msra.mxu0 0.0
        %4397 = vmatprep.subr.mxu0 0.0
        %4398 = vmatpush1.msra.mxu0 0.0
        %4399 = vmatprep.subr.mxu0 0.0
        %4400 = vmatpush1.msra.mxu0 %v4365
        %4401 = vmatprep.subr.mxu0 0.0
        %4402 = vmatpush2.msra.mxu0 0.0
        %4403 = vmatprep.subr.mxu0 0.0
        %4404 = vmatpush2.msra.mxu0 0.0
        %4405 = vmatprep.subr.mxu0 0.0
        %4406 = vmatpush2.msra.mxu0 0.0
        %4407 = vmatprep.subr.mxu0 0.0
        %4408 = vmatpush2.msra.mxu0 0.0
        %4409 = vmatprep.subr.mxu0 0.0
        %4410 = vmatpush2.msra.mxu0 0.0
        %4411 = vmatprep.subr.mxu0 0.0
        %4412 = vmatpush2.msra.mxu0 0.0
        %4413 = vmatprep.subr.mxu0 0.0
        %4414 = vmatpush2.msra.mxu0 0.0
        %4415 = vmatprep.subr.mxu0 0.0
        %4416 = vmatpush2.msra.mxu0 0.0
        %4417 = vmatprep.subr.mxu0 0.0
        %4418 = vmatpush2.msra.mxu0 0.0
        %4419 = vmatprep.subr.mxu0 0.0
        %4420 = vmatpush2.msra.mxu0 0.0
        %4421 = vmatprep.subr.mxu0 0.0
        %4422 = vmatpush2.msra.mxu0 0.0
        %4423 = vmatprep.subr.mxu0 0.0
        %4424 = vmatpush2.msra.mxu0 0.0
        %4425 = vmatprep.subr.mxu0 0.0
        %4426 = vmatpush2.msra.mxu0 0.0
        %4427 = vmatprep.subr.mxu0 0.0
        %4428 = vmatpush2.msra.mxu0 0.0
        %4429 = vmatprep.subr.mxu0 0.0
        %4430 = vmatpush2.msra.mxu0 0.0
        %4431 = vmatprep.subr.mxu0 0.0
        %4432 = vmatpush2.msra.mxu0 0.0
        %4433 = vmatprep.mubr.f32.mxu0 0.0
        %4434 = vmatmul.mubr.f32.gmra.mxu0 %v4367
        %v4435 = vpop.f32.mrf.mxu0
        %v4436 = vadd.f32 0.0, %v4435
        %v4437 = vpop.f32.mrf.mxu0
        %4438 = vdwg.mxu0
        %v4439 = vadd.f32 %v3950, %v4436
        %s4440 = scalar_lea.vmem %s4, 224
        %v4441 = vld [vmem:[%s4440] sm:$0xff]
        %v4442 = vld [vmem:[%s4440 + $0x8] sm:$0xff]
        %v4443 = vld [vmem:[%s4440 + $0x10] sm:$0xff]
        %v4444 = vld [vmem:[%s4440 + $0x18] sm:$0xff]
        %s4445 = scalar_lea.vmem %s5, 7
        %v4446 = vld [vmem:[%s4445] sm:$0x1]
        %v4448 = vlaneseq
        %v4449 = vshrl.u32 %v4448, 7
        %v4450 = vsub.s32 0, %v4449
        %v4451 = vrot.slane %v4446, %v4450
        %4453 = vmatprep.subr.mxu0 0.0
        %4454 = vmatpush1.msra.mxu0 0.0
        %4455 = vmatprep.subr.mxu0 0.0
        %4456 = vmatpush1.msra.mxu0 0.0
        %4457 = vmatprep.subr.mxu0 0.0
        %4458 = vmatpush1.msra.mxu0 0.0
        %4459 = vmatprep.subr.mxu0 0.0
        %4460 = vmatpush1.msra.mxu0 0.0
        %4461 = vmatprep.subr.mxu0 0.0
        %4462 = vmatpush1.msra.mxu0 0.0
        %4463 = vmatprep.subr.mxu0 0.0
        %4464 = vmatpush1.msra.mxu0 0.0
        %4465 = vmatprep.subr.mxu0 0.0
        %4466 = vmatpush1.msra.mxu0 0.0
        %4467 = vmatprep.subr.mxu0 0.0
        %4468 = vmatpush1.msra.mxu0 0.0
        %4469 = vmatprep.subr.mxu0 0.0
        %4470 = vmatpush1.msra.mxu0 0.0
        %4471 = vmatprep.subr.mxu0 0.0
        %4472 = vmatpush1.msra.mxu0 0.0
        %4473 = vmatprep.subr.mxu0 0.0
        %4474 = vmatpush1.msra.mxu0 0.0
        %4475 = vmatprep.subr.mxu0 0.0
        %4476 = vmatpush1.msra.mxu0 0.0
        %4477 = vmatprep.subr.mxu0 0.0
        %4478 = vmatpush1.msra.mxu0 %v4444
        %4479 = vmatprep.subr.mxu0 0.0
        %4480 = vmatpush1.msra.mxu0 %v4443
        %4481 = vmatprep.subr.mxu0 0.0
        %4482 = vmatpush1.msra.mxu0 %v4442
        %4483 = vmatprep.subr.mxu0 0.0
        %4484 = vmatpush1.msra.mxu0 %v4441
        %4485 = vmatprep.subr.mxu0 0.0
        %4486 = vmatpush2.msra.mxu0 0.0
        %4487 = vmatprep.subr.mxu0 0.0
        %4488 = vmatpush2.msra.mxu0 0.0
        %4489 = vmatprep.subr.mxu0 0.0
        %4490 = vmatpush2.msra.mxu0 0.0
        %4491 = vmatprep.subr.mxu0 0.0
        %4492 = vmatpush2.msra.mxu0 0.0
        %4493 = vmatprep.subr.mxu0 0.0
        %4494 = vmatpush2.msra.mxu0 0.0
        %4495 = vmatprep.subr.mxu0 0.0
        %4496 = vmatpush2.msra.mxu0 0.0
        %4497 = vmatprep.subr.mxu0 0.0
        %4498 = vmatpush2.msra.mxu0 0.0
        %4499 = vmatprep.subr.mxu0 0.0
        %4500 = vmatpush2.msra.mxu0 0.0
        %4501 = vmatprep.subr.mxu0 0.0
        %4502 = vmatpush2.msra.mxu0 0.0
        %4503 = vmatprep.subr.mxu0 0.0
        %4504 = vmatpush2.msra.mxu0 0.0
        %4505 = vmatprep.subr.mxu0 0.0
        %4506 = vmatpush2.msra.mxu0 0.0
        %4507 = vmatprep.subr.mxu0 0.0
        %4508 = vmatpush2.msra.mxu0 0.0
        %4509 = vmatprep.subr.mxu0 0.0
        %4510 = vmatpush2.msra.mxu0 0.0
        %4511 = vmatprep.subr.mxu0 0.0
        %4512 = vmatpush2.msra.mxu0 0.0
        %4513 = vmatprep.subr.mxu0 0.0
        %4514 = vmatpush2.msra.mxu0 0.0
        %4515 = vmatprep.subr.mxu0 0.0
        %4516 = vmatpush2.msra.mxu0 0.0
        %4517 = vmatprep.mubr.f32.mxu0 0.0
        %4518 = vmatmul.mubr.f32.gmra.mxu0 %v2992
        %v4519 = vpop.f32.mrf.mxu0
        %v4520 = vadd.f32 %v4451, %v4519
        %v4521 = vpop.f32.mrf.mxu0
        %4522 = vdwg.mxu0
        %s4523 = scalar_lea.vmem %s6, 224
        %v4524 = vld [vmem:[%s4523] sm:$0xff]
        %v4525 = vld [vmem:[%s4523 + $0x8] sm:$0xff]
        %v4526 = vld [vmem:[%s4523 + $0x10] sm:$0xff]
        %v4527 = vld [vmem:[%s4523 + $0x18] sm:$0xff]
        %s4528 = scalar_lea.vmem %s7, 7
        %v4529 = vld [vmem:[%s4528] sm:$0x1]
        %v4531 = vlaneseq
        %v4532 = vshrl.u32 %v4531, 7
        %v4533 = vsub.s32 0, %v4532
        %v4534 = vrot.slane %v4529, %v4533
        %4536 = vmatprep.subr.mxu0 0.0
        %4537 = vmatpush1.msra.mxu0 0.0
        %4538 = vmatprep.subr.mxu0 0.0
        %4539 = vmatpush1.msra.mxu0 0.0
        %4540 = vmatprep.subr.mxu0 0.0
        %4541 = vmatpush1.msra.mxu0 0.0
        %4542 = vmatprep.subr.mxu0 0.0
        %4543 = vmatpush1.msra.mxu0 0.0
        %4544 = vmatprep.subr.mxu0 0.0
        %4545 = vmatpush1.msra.mxu0 0.0
        %4546 = vmatprep.subr.mxu0 0.0
        %4547 = vmatpush1.msra.mxu0 0.0
        %4548 = vmatprep.subr.mxu0 0.0
        %4549 = vmatpush1.msra.mxu0 0.0
        %4550 = vmatprep.subr.mxu0 0.0
        %4551 = vmatpush1.msra.mxu0 0.0
        %4552 = vmatprep.subr.mxu0 0.0
        %4553 = vmatpush1.msra.mxu0 0.0
        %4554 = vmatprep.subr.mxu0 0.0
        %4555 = vmatpush1.msra.mxu0 0.0
        %4556 = vmatprep.subr.mxu0 0.0
        %4557 = vmatpush1.msra.mxu0 0.0
        %4558 = vmatprep.subr.mxu0 0.0
        %4559 = vmatpush1.msra.mxu0 0.0
        %4560 = vmatprep.subr.mxu0 0.0
        %4561 = vmatpush1.msra.mxu0 %v4527
        %4562 = vmatprep.subr.mxu0 0.0
        %4563 = vmatpush1.msra.mxu0 %v4526
        %4564 = vmatprep.subr.mxu0 0.0
        %4565 = vmatpush1.msra.mxu0 %v4525
        %4566 = vmatprep.subr.mxu0 0.0
        %4567 = vmatpush1.msra.mxu0 %v4524
        %4568 = vmatprep.subr.mxu0 0.0
        %4569 = vmatpush2.msra.mxu0 0.0
        %4570 = vmatprep.subr.mxu0 0.0
        %4571 = vmatpush2.msra.mxu0 0.0
        %4572 = vmatprep.subr.mxu0 0.0
        %4573 = vmatpush2.msra.mxu0 0.0
        %4574 = vmatprep.subr.mxu0 0.0
        %4575 = vmatpush2.msra.mxu0 0.0
        %4576 = vmatprep.subr.mxu0 0.0
        %4577 = vmatpush2.msra.mxu0 0.0
        %4578 = vmatprep.subr.mxu0 0.0
        %4579 = vmatpush2.msra.mxu0 0.0
        %4580 = vmatprep.subr.mxu0 0.0
        %4581 = vmatpush2.msra.mxu0 0.0
        %4582 = vmatprep.subr.mxu0 0.0
        %4583 = vmatpush2.msra.mxu0 0.0
        %4584 = vmatprep.subr.mxu0 0.0
        %4585 = vmatpush2.msra.mxu0 0.0
        %4586 = vmatprep.subr.mxu0 0.0
        %4587 = vmatpush2.msra.mxu0 0.0
        %4588 = vmatprep.subr.mxu0 0.0
        %4589 = vmatpush2.msra.mxu0 0.0
        %4590 = vmatprep.subr.mxu0 0.0
        %4591 = vmatpush2.msra.mxu0 0.0
        %4592 = vmatprep.subr.mxu0 0.0
        %4593 = vmatpush2.msra.mxu0 0.0
        %4594 = vmatprep.subr.mxu0 0.0
        %4595 = vmatpush2.msra.mxu0 0.0
        %4596 = vmatprep.subr.mxu0 0.0
        %4597 = vmatpush2.msra.mxu0 0.0
        %4598 = vmatprep.subr.mxu0 0.0
        %4599 = vmatpush2.msra.mxu0 0.0
        %4600 = vmatprep.mubr.f32.mxu0 0.0
        %4601 = vmatmul.mubr.f32.gmra.mxu0 %v2992
        %v4602 = vpop.f32.mrf.mxu0
        %v4603 = vadd.f32 %v4534, %v4602
        %v4604 = vpop.f32.mrf.mxu0
        %4605 = vdwg.mxu0
        %s4606 = scalar_lea.vmem %s8, 224
        %v4607 = vld [vmem:[%s4606] sm:$0xff]
        %v4608 = vld [vmem:[%s4606 + $0x8] sm:$0xff]
        %v4609 = vld [vmem:[%s4606 + $0x10] sm:$0xff]
        %v4610 = vld [vmem:[%s4606 + $0x18] sm:$0xff]
        %s4611 = scalar_lea.vmem %s9, 7
        %v4612 = vld [vmem:[%s4611] sm:$0x1]
        %v4614 = vlaneseq
        %v4615 = vshrl.u32 %v4614, 7
        %v4616 = vsub.s32 0, %v4615
        %v4617 = vrot.slane %v4612, %v4616
        %4619 = vmatprep.subr.mxu0 0.0
        %4620 = vmatpush1.msra.mxu0 0.0
        %4621 = vmatprep.subr.mxu0 0.0
        %4622 = vmatpush1.msra.mxu0 0.0
        %4623 = vmatprep.subr.mxu0 0.0
        %4624 = vmatpush1.msra.mxu0 0.0
        %4625 = vmatprep.subr.mxu0 0.0
        %4626 = vmatpush1.msra.mxu0 0.0
        %4627 = vmatprep.subr.mxu0 0.0
        %4628 = vmatpush1.msra.mxu0 0.0
        %4629 = vmatprep.subr.mxu0 0.0
        %4630 = vmatpush1.msra.mxu0 0.0
        %4631 = vmatprep.subr.mxu0 0.0
        %4632 = vmatpush1.msra.mxu0 0.0
        %4633 = vmatprep.subr.mxu0 0.0
        %4634 = vmatpush1.msra.mxu0 0.0
        %4635 = vmatprep.subr.mxu0 0.0
        %4636 = vmatpush1.msra.mxu0 0.0
        %4637 = vmatprep.subr.mxu0 0.0
        %4638 = vmatpush1.msra.mxu0 0.0
        %4639 = vmatprep.subr.mxu0 0.0
        %4640 = vmatpush1.msra.mxu0 0.0
        %4641 = vmatprep.subr.mxu0 0.0
        %4642 = vmatpush1.msra.mxu0 0.0
        %4643 = vmatprep.subr.mxu0 0.0
        %4644 = vmatpush1.msra.mxu0 %v4610
        %4645 = vmatprep.subr.mxu0 0.0
        %4646 = vmatpush1.msra.mxu0 %v4609
        %4647 = vmatprep.subr.mxu0 0.0
        %4648 = vmatpush1.msra.mxu0 %v4608
        %4649 = vmatprep.subr.mxu0 0.0
        %4650 = vmatpush1.msra.mxu0 %v4607
        %4651 = vmatprep.subr.mxu0 0.0
        %4652 = vmatpush2.msra.mxu0 0.0
        %4653 = vmatprep.subr.mxu0 0.0
        %4654 = vmatpush2.msra.mxu0 0.0
        %4655 = vmatprep.subr.mxu0 0.0
        %4656 = vmatpush2.msra.mxu0 0.0
        %4657 = vmatprep.subr.mxu0 0.0
        %4658 = vmatpush2.msra.mxu0 0.0
        %4659 = vmatprep.subr.mxu0 0.0
        %4660 = vmatpush2.msra.mxu0 0.0
        %4661 = vmatprep.subr.mxu0 0.0
        %4662 = vmatpush2.msra.mxu0 0.0
        %4663 = vmatprep.subr.mxu0 0.0
        %4664 = vmatpush2.msra.mxu0 0.0
        %4665 = vmatprep.subr.mxu0 0.0
        %4666 = vmatpush2.msra.mxu0 0.0
        %4667 = vmatprep.subr.mxu0 0.0
        %4668 = vmatpush2.msra.mxu0 0.0
        %4669 = vmatprep.subr.mxu0 0.0
        %4670 = vmatpush2.msra.mxu0 0.0
        %4671 = vmatprep.subr.mxu0 0.0
        %4672 = vmatpush2.msra.mxu0 0.0
        %4673 = vmatprep.subr.mxu0 0.0
        %4674 = vmatpush2.msra.mxu0 0.0
        %4675 = vmatprep.subr.mxu0 0.0
        %4676 = vmatpush2.msra.mxu0 0.0
        %4677 = vmatprep.subr.mxu0 0.0
        %4678 = vmatpush2.msra.mxu0 0.0
        %4679 = vmatprep.subr.mxu0 0.0
        %4680 = vmatpush2.msra.mxu0 0.0
        %4681 = vmatprep.subr.mxu0 0.0
        %4682 = vmatpush2.msra.mxu0 0.0
        %4683 = vmatprep.mubr.f32.mxu0 0.0
        %4684 = vmatmul.mubr.f32.gmra.mxu0 %v2992
        %v4685 = vpop.f32.mrf.mxu0
        %v4686 = vadd.f32 %v4617, %v4685
        %v4687 = vpop.f32.mrf.mxu0
        %4688 = vdwg.mxu0
        %v4690 = vsel %vm1025, %v4520, 0
        %v4693 = vsel %vm1025, %v4603, 0
        %4695 = vmatprep.subr.mxu0 0.0
        %4696 = vmatpush1.xpose.msra.mxu0 0.0
        %4697 = vmatprep.subr.mxu0 0.0
        %4698 = vmatpush1.xpose.msra.mxu0 0.0
        %4699 = vmatprep.subr.mxu0 0.0
        %4700 = vmatpush1.xpose.msra.mxu0 0.0
        %4701 = vmatprep.subr.mxu0 0.0
        %4702 = vmatpush1.xpose.msra.mxu0 0.0
        %4703 = vmatprep.subr.mxu0 0.0
        %4704 = vmatpush1.xpose.msra.mxu0 0.0
        %4705 = vmatprep.subr.mxu0 0.0
        %4706 = vmatpush1.xpose.msra.mxu0 0.0
        %4707 = vmatprep.subr.mxu0 0.0
        %4708 = vmatpush1.xpose.msra.mxu0 0.0
        %4709 = vmatprep.subr.mxu0 0.0
        %4710 = vmatpush1.xpose.msra.mxu0 0.0
        %4711 = vmatprep.subr.mxu0 0.0
        %4712 = vmatpush1.xpose.msra.mxu0 0.0
        %4713 = vmatprep.subr.mxu0 0.0
        %4714 = vmatpush1.xpose.msra.mxu0 0.0
        %4715 = vmatprep.subr.mxu0 0.0
        %4716 = vmatpush1.xpose.msra.mxu0 0.0
        %4717 = vmatprep.subr.mxu0 0.0
        %4718 = vmatpush1.xpose.msra.mxu0 0.0
        %4719 = vmatprep.subr.mxu0 0.0
        %4720 = vmatpush1.xpose.msra.mxu0 0.0
        %4721 = vmatprep.subr.mxu0 0.0
        %4722 = vmatpush1.xpose.msra.mxu0 0.0
        %4723 = vmatprep.subr.mxu0 0.0
        %4724 = vmatpush1.xpose.msra.mxu0 0.0
        %4725 = vmatprep.subr.mxu0 0.0
        %4726 = vmatpush1.xpose.msra.mxu0 %v4693
        %4727 = vmatprep.subr.mxu0 0.0
        %4728 = vmatpush2.xpose.msra.mxu0 0.0
        %4729 = vmatprep.subr.mxu0 0.0
        %4730 = vmatpush2.xpose.msra.mxu0 0.0
        %4731 = vmatprep.subr.mxu0 0.0
        %4732 = vmatpush2.xpose.msra.mxu0 0.0
        %4733 = vmatprep.subr.mxu0 0.0
        %4734 = vmatpush2.xpose.msra.mxu0 0.0
        %4735 = vmatprep.subr.mxu0 0.0
        %4736 = vmatpush2.xpose.msra.mxu0 0.0
        %4737 = vmatprep.subr.mxu0 0.0
        %4738 = vmatpush2.xpose.msra.mxu0 0.0
        %4739 = vmatprep.subr.mxu0 0.0
        %4740 = vmatpush2.xpose.msra.mxu0 0.0
        %4741 = vmatprep.subr.mxu0 0.0
        %4742 = vmatpush2.xpose.msra.mxu0 0.0
        %4743 = vmatprep.subr.mxu0 0.0
        %4744 = vmatpush2.xpose.msra.mxu0 0.0
        %4745 = vmatprep.subr.mxu0 0.0
        %4746 = vmatpush2.xpose.msra.mxu0 0.0
        %4747 = vmatprep.subr.mxu0 0.0
        %4748 = vmatpush2.xpose.msra.mxu0 0.0
        %4749 = vmatprep.subr.mxu0 0.0
        %4750 = vmatpush2.xpose.msra.mxu0 0.0
        %4751 = vmatprep.subr.mxu0 0.0
        %4752 = vmatpush2.xpose.msra.mxu0 0.0
        %4753 = vmatprep.subr.mxu0 0.0
        %4754 = vmatpush2.xpose.msra.mxu0 0.0
        %4755 = vmatprep.subr.mxu0 0.0
        %4756 = vmatpush2.xpose.msra.mxu0 0.0
        %4757 = vmatprep.subr.mxu0 0.0
        %4758 = vmatpush2.xpose.msra.mxu0 0.0
        %4759 = vmatprep.mubr.f32.mxu0 0.0
        %4760 = vmatmul.mubr.f32.gmra.mxu0 %v4690
        %v4761 = vpop.f32.mrf.mxu0
        %v4762 = vadd.f32 0.0, %v4761
        %v4763 = vpop.f32.mrf.mxu0
        %4764 = vdwg.mxu0
        %v4765 = vmul.f32 %v4762, 0.35355338
        %v4766 = vadd.f32 %v4765, %v1107
        %v4767 = vsel %vm1025, %v4766, -inf
        %4768 = vmax.xlane.f32.xlu0 %v4767
        %v4769 = vpop.xlane.xlu0 %4768
        %v4770 = vsub.f32 %v4766, %v4769
        %v4771 = vmul.f32 %v4770, 1.442695
        %v4772 = vpow.pop %v4771
        %v4773 = vsel %vm1025, %v4772, 0.0
        %4774 = vadd.xlane.f32.xlu0 %v4773
        %v4775 = vpop.xlane.xlu0 %4774
        %v4776 = vrcp.pop %v4775
        %v4777 = vmul.f32 %v4772, %v4776
        %v4779 = vsel %vm1025, %v4777, 0
        %4781 = vmatprep.subr.mxu0 0.0
        %4782 = vmatpush1.msra.mxu0 0.0
        %4783 = vmatprep.subr.mxu0 0.0
        %4784 = vmatpush1.msra.mxu0 0.0
        %4785 = vmatprep.subr.mxu0 0.0
        %4786 = vmatpush1.msra.mxu0 0.0
        %4787 = vmatprep.subr.mxu0 0.0
        %4788 = vmatpush1.msra.mxu0 0.0
        %4789 = vmatprep.subr.mxu0 0.0
        %4790 = vmatpush1.msra.mxu0 0.0
        %4791 = vmatprep.subr.mxu0 0.0
        %4792 = vmatpush1.msra.mxu0 0.0
        %4793 = vmatprep.subr.mxu0 0.0
        %4794 = vmatpush1.msra.mxu0 0.0
        %4795 = vmatprep.subr.mxu0 0.0
        %4796 = vmatpush1.msra.mxu0 0.0
        %4797 = vmatprep.subr.mxu0 0.0
        %4798 = vmatpush1.msra.mxu0 0.0
        %4799 = vmatprep.subr.mxu0 0.0
        %4800 = vmatpush1.msra.mxu0 0.0
        %4801 = vmatprep.subr.mxu0 0.0
        %4802 = vmatpush1.msra.mxu0 0.0
        %4803 = vmatprep.subr.mxu0 0.0
        %4804 = vmatpush1.msra.mxu0 0.0
        %4805 = vmatprep.subr.mxu0 0.0
        %4806 = vmatpush1.msra.mxu0 0.0
        %4807 = vmatprep.subr.mxu0 0.0
        %4808 = vmatpush1.msra.mxu0 0.0
        %4809 = vmatprep.subr.mxu0 0.0
        %4810 = vmatpush1.msra.mxu0 0.0
        %4811 = vmatprep.subr.mxu0 0.0
        %4812 = vmatpush1.msra.mxu0 %v4686
        %4813 = vmatprep.subr.mxu0 0.0
        %4814 = vmatpush2.msra.mxu0 0.0
        %4815 = vmatprep.subr.mxu0 0.0
        %4816 = vmatpush2.msra.mxu0 0.0
        %4817 = vmatprep.subr.mxu0 0.0
        %4818 = vmatpush2.msra.mxu0 0.0
        %4819 = vmatprep.subr.mxu0 0.0
        %4820 = vmatpush2.msra.mxu0 0.0
        %4821 = vmatprep.subr.mxu0 0.0
        %4822 = vmatpush2.msra.mxu0 0.0
        %4823 = vmatprep.subr.mxu0 0.0
        %4824 = vmatpush2.msra.mxu0 0.0
        %4825 = vmatprep.subr.mxu0 0.0
        %4826 = vmatpush2.msra.mxu0 0.0
        %4827 = vmatprep.subr.mxu0 0.0
        %4828 = vmatpush2.msra.mxu0 0.0
        %4829 = vmatprep.subr.mxu0 0.0
        %4830 = vmatpush2.msra.mxu0 0.0
        %4831 = vmatprep.subr.mxu0 0.0
        %4832 = vmatpush2.msra.mxu0 0.0
        %4833 = vmatprep.subr.mxu0 0.0
        %4834 = vmatpush2.msra.mxu0 0.0
        %4835 = vmatprep.subr.mxu0 0.0
        %4836 = vmatpush2.msra.mxu0 0.0
        %4837 = vmatprep.subr.mxu0 0.0
        %4838 = vmatpush2.msra.mxu0 0.0
        %4839 = vmatprep.subr.mxu0 0.0
        %4840 = vmatpush2.msra.mxu0 0.0
        %4841 = vmatprep.subr.mxu0 0.0
        %4842 = vmatpush2.msra.mxu0 0.0
        %4843 = vmatprep.subr.mxu0 0.0
        %4844 = vmatpush2.msra.mxu0 0.0
        %4845 = vmatprep.mubr.f32.mxu0 0.0
        %4846 = vmatmul.mubr.f32.gmra.mxu0 %v4779
        %v4847 = vpop.f32.mrf.mxu0
        %v4848 = vadd.f32 0.0, %v4847
        %v4849 = vpop.f32.mrf.mxu0
        %4850 = vdwg.mxu0
        %s4851 = scalar_lea.vmem %s10, 56
        %v4852 = vld [vmem:[%s4851] sm:$0xff]
        %v4854 = vsel %vm1025, %v4848, 0
        %4856 = vmatprep.subr.mxu0 0.0
        %4857 = vmatpush1.msra.mxu0 0.0
        %4858 = vmatprep.subr.mxu0 0.0
        %4859 = vmatpush1.msra.mxu0 0.0
        %4860 = vmatprep.subr.mxu0 0.0
        %4861 = vmatpush1.msra.mxu0 0.0
        %4862 = vmatprep.subr.mxu0 0.0
        %4863 = vmatpush1.msra.mxu0 0.0
        %4864 = vmatprep.subr.mxu0 0.0
        %4865 = vmatpush1.msra.mxu0 0.0
        %4866 = vmatprep.subr.mxu0 0.0
        %4867 = vmatpush1.msra.mxu0 0.0
        %4868 = vmatprep.subr.mxu0 0.0
        %4869 = vmatpush1.msra.mxu0 0.0
        %4870 = vmatprep.subr.mxu0 0.0
        %4871 = vmatpush1.msra.mxu0 0.0
        %4872 = vmatprep.subr.mxu0 0.0
        %4873 = vmatpush1.msra.mxu0 0.0
        %4874 = vmatprep.subr.mxu0 0.0
        %4875 = vmatpush1.msra.mxu0 0.0
        %4876 = vmatprep.subr.mxu0 0.0
        %4877 = vmatpush1.msra.mxu0 0.0
        %4878 = vmatprep.subr.mxu0 0.0
        %4879 = vmatpush1.msra.mxu0 0.0
        %4880 = vmatprep.subr.mxu0 0.0
        %4881 = vmatpush1.msra.mxu0 0.0
        %4882 = vmatprep.subr.mxu0 0.0
        %4883 = vmatpush1.msra.mxu0 0.0
        %4884 = vmatprep.subr.mxu0 0.0
        %4885 = vmatpush1.msra.mxu0 0.0
        %4886 = vmatprep.subr.mxu0 0.0
        %4887 = vmatpush1.msra.mxu0 %v4852
        %4888 = vmatprep.subr.mxu0 0.0
        %4889 = vmatpush2.msra.mxu0 0.0
        %4890 = vmatprep.subr.mxu0 0.0
        %4891 = vmatpush2.msra.mxu0 0.0
        %4892 = vmatprep.subr.mxu0 0.0
        %4893 = vmatpush2.msra.mxu0 0.0
        %4894 = vmatprep.subr.mxu0 0.0
        %4895 = vmatpush2.msra.mxu0 0.0
        %4896 = vmatprep.subr.mxu0 0.0
        %4897 = vmatpush2.msra.mxu0 0.0
        %4898 = vmatprep.subr.mxu0 0.0
        %4899 = vmatpush2.msra.mxu0 0.0
        %4900 = vmatprep.subr.mxu0 0.0
        %4901 = vmatpush2.msra.mxu0 0.0
        %4902 = vmatprep.subr.mxu0 0.0
        %4903 = vmatpush2.msra.mxu0 0.0
        %4904 = vmatprep.subr.mxu0 0.0
        %4905 = vmatpush2.msra.mxu0 0.0
        %4906 = vmatprep.subr.mxu0 0.0
        %4907 = vmatpush2.msra.mxu0 0.0
        %4908 = vmatprep.subr.mxu0 0.0
        %4909 = vmatpush2.msra.mxu0 0.0
        %4910 = vmatprep.subr.mxu0 0.0
        %4911 = vmatpush2.msra.mxu0 0.0
        %4912 = vmatprep.subr.mxu0 0.0
        %4913 = vmatpush2.msra.mxu0 0.0
        %4914 = vmatprep.subr.mxu0 0.0
        %4915 = vmatpush2.msra.mxu0 0.0
        %4916 = vmatprep.subr.mxu0 0.0
        %4917 = vmatpush2.msra.mxu0 0.0
        %4918 = vmatprep.subr.mxu0 0.0
        %4919 = vmatpush2.msra.mxu0 0.0
        %4920 = vmatprep.mubr.f32.mxu0 0.0
        %4921 = vmatmul.mubr.f32.gmra.mxu0 %v4854
        %v4922 = vpop.f32.mrf.mxu0
        %v4923 = vadd.f32 0.0, %v4922
        %v4924 = vpop.f32.mrf.mxu0
        %4925 = vdwg.mxu0
        %v4926 = vadd.f32 %v4439, %v4923
        %s4927 = scalar_lea.vmem %s11, 1
        %v4928 = vld [vmem:[%s4927] sm:$0x1]
        %v4930 = vlaneseq
        %v4931 = vshrl.u32 %v4930, 7
        %v4932 = vsub.s32 0, %v4931
        %v4933 = vrot.slane %v4928, %v4932
        %v4935 = vadd.f32 %v4926, %v4933
        %v4936 = vadd.f32 %v4935, %v2977
        %s4937 = scalar_lea.vmem %s12, 1
        %v4938 = vld [vmem:[%s4937] sm:$0x1]
        %s4939 = scalar_lea.vmem %s13, 1
        %v4940 = vld [vmem:[%s4939] sm:$0x1]
        %v4941 = vsel %vm750, %v4936, 0.0
        %4942 = vadd.xlane.f32.xlu0 %v4941
        %v4943 = vpop.xlane.xlu0 %4942
        %v4944 = vmul.f32 %v4943, %v754
        %v4945 = vsub.f32 %v4936, %v4944
        %v4946 = vmul.f32 %v4945, %v4945
        %v4947 = vsel %vm750, %v4946, 0.0
        %4948 = vadd.xlane.f32.xlu0 %v4947
        %v4949 = vpop.xlane.xlu0 %4948
        %v4950 = vmul.f32 %v4949, %v754
        %v4951 = vadd.f32 %v4950, 1e-12
        %v4952 = vrsqrt.pop %v4951
        %v4953 = vmul.f32 %v4945, %v4952
        %v4955 = vlaneseq
        %v4956 = vshrl.u32 %v4955, 7
        %v4957 = vsub.s32 0, %v4956
        %v4958 = vrot.slane %v4938, %v4957
        %v4960 = vmul.f32 %v4953, %v4958
        %v4962 = vlaneseq
        %v4963 = vshrl.u32 %v4962, 7
        %v4964 = vsub.s32 0, %v4963
        %v4965 = vrot.slane %v4940, %v4964
        %v4967 = vadd.f32 %v4960, %v4965
        %s4968 = scalar_lea.vmem %s14, 32
        %v4969 = vld [vmem:[%s4968] sm:$0xff]
        %v4970 = vld [vmem:[%s4968 + $0x8] sm:$0xff]
        %v4971 = vld [vmem:[%s4968 + $0x10] sm:$0xff]
        %v4972 = vld [vmem:[%s4968 + $0x18] sm:$0xff]
        %s4973 = scalar_lea.vmem %s15, 1
        %v4974 = vld [vmem:[%s4973] sm:$0x1]
        %v4976 = vlaneseq
        %v4977 = vshrl.u32 %v4976, 7
        %v4978 = vsub.s32 0, %v4977
        %v4979 = vrot.slane %v4974, %v4978
        %v4982 = vsel %vm750, %v4967, 0
        %4984 = vmatprep.subr.mxu0 0.0
        %4985 = vmatpush1.msra.mxu0 0.0
        %4986 = vmatprep.subr.mxu0 0.0
        %4987 = vmatpush1.msra.mxu0 0.0
        %4988 = vmatprep.subr.mxu0 0.0
        %4989 = vmatpush1.msra.mxu0 0.0
        %4990 = vmatprep.subr.mxu0 0.0
        %4991 = vmatpush1.msra.mxu0 0.0
        %4992 = vmatprep.subr.mxu0 0.0
        %4993 = vmatpush1.msra.mxu0 0.0
        %4994 = vmatprep.subr.mxu0 0.0
        %4995 = vmatpush1.msra.mxu0 0.0
        %4996 = vmatprep.subr.mxu0 0.0
        %4997 = vmatpush1.msra.mxu0 0.0
        %4998 = vmatprep.subr.mxu0 0.0
        %4999 = vmatpush1.msra.mxu0 0.0
        %5000 = vmatprep.subr.mxu0 0.0
        %5001 = vmatpush1.msra.mxu0 0.0
        %5002 = vmatprep.subr.mxu0 0.0
        %5003 = vmatpush1.msra.mxu0 0.0
        %5004 = vmatprep.subr.mxu0 0.0
        %5005 = vmatpush1.msra.mxu0 0.0
        %5006 = vmatprep.subr.mxu0 0.0
        %5007 = vmatpush1.msra.mxu0 0.0
        %5008 = vmatprep.subr.mxu0 0.0
        %5009 = vmatpush1.msra.mxu0 %v4972
        %5010 = vmatprep.subr.mxu0 0.0
        %5011 = vmatpush1.msra.mxu0 %v4971
        %5012 = vmatprep.subr.mxu0 0.0
        %5013 = vmatpush1.msra.mxu0 %v4970
        %5014 = vmatprep.subr.mxu0 0.0
        %5015 = vmatpush1.msra.mxu0 %v4969
        %5016 = vmatprep.subr.mxu0 0.0
        %5017 = vmatpush2.msra.mxu0 0.0
        %5018 = vmatprep.subr.mxu0 0.0
        %5019 = vmatpush2.msra.mxu0 0.0
        %5020 = vmatprep.subr.mxu0 0.0
        %5021 = vmatpush2.msra.mxu0 0.0
        %5022 = vmatprep.subr.mxu0 0.0
        %5023 = vmatpush2.msra.mxu0 0.0
        %5024 = vmatprep.subr.mxu0 0.0
        %5025 = vmatpush2.msra.mxu0 0.0
        %5026 = vmatprep.subr.mxu0 0.0
        %5027 = vmatpush2.msra.mxu0 0.0
        %5028 = vmatprep.subr.mxu0 0.0
        %5029 = vmatpush2.msra.mxu0 0.0
        %5030 = vmatprep.subr.mxu0 0.0
        %5031 = vmatpush2.msra.mxu0 0.0
        %5032 = vmatprep.subr.mxu0 0.0
        %5033 = vmatpush2.msra.mxu0 0.0
        %5034 = vmatprep.subr.mxu0 0.0
        %5035 = vmatpush2.msra.mxu0 0.0
        %5036 = vmatprep.subr.mxu0 0.0
        %5037 = vmatpush2.msra.mxu0 0.0
        %5038 = vmatprep.subr.mxu0 0.0
        %5039 = vmatpush2.msra.mxu0 0.0
        %5040 = vmatprep.subr.mxu0 0.0
        %5041 = vmatpush2.msra.mxu0 0.0
        %5042 = vmatprep.subr.mxu0 0.0
        %5043 = vmatpush2.msra.mxu0 0.0
        %5044 = vmatprep.subr.mxu0 0.0
        %5045 = vmatpush2.msra.mxu0 0.0
        %5046 = vmatprep.subr.mxu0 0.0
        %5047 = vmatpush2.msra.mxu0 0.0
        %5048 = vmatprep.mubr.f32.mxu0 0.0
        %5049 = vmatmul.mubr.f32.gmra.mxu0 %v4982
        %v5050 = vpop.f32.mrf.mxu0
        %v5051 = vadd.f32 %v4979, %v5050
        %v5052 = vpop.f32.mrf.mxu0
        %5053 = vdwg.mxu0
        %v5054 = vmul.f32 %v5051, 0.5
        %v5055 = vmul.f32 %v5051, 0.044715
        %v5056 = vmul.f32 %v5055, %v5051
        %v5057 = vmul.f32 %v5056, %v5051
        %v5058 = vadd.f32 %v5051, %v5057
        %v5059 = vmul.f32 %v5058, 0.7978846
        %v5060 = vtanh.pop %v5059
        %v5061 = vadd.f32 %v5060, 1.0
        %v5062 = vmul.f32 %v5054, %v5061
        %s5063 = scalar_lea.vmem %s16, 64
        %v5064 = vld [vmem:[%s5063] sm:$0xff]
        %v5065 = vld [vmem:[%s5063 + $0x8] sm:$0xff]
        %v5066 = vld [vmem:[%s5063 + $0x10] sm:$0xff]
        %v5067 = vld [vmem:[%s5063 + $0x18] sm:$0xff]
        %v5068 = vld [vmem:[%s5063 + $0x20] sm:$0xff]
        %v5069 = vld [vmem:[%s5063 + $0x28] sm:$0xff]
        %v5070 = vld [vmem:[%s5063 + $0x30] sm:$0xff]
        %v5071 = vld [vmem:[%s5063 + $0x38] sm:$0xff]
        %s5072 = scalar_lea.vmem %s17, 1
        %v5073 = vld [vmem:[%s5072] sm:$0x1]
        %v5075 = vlaneseq
        %v5076 = vshrl.u32 %v5075, 7
        %v5077 = vsub.s32 0, %v5076
        %v5078 = vrot.slane %v5073, %v5077
        %v5081 = vsel %vm2874, %v5062, 0
        %5083 = vmatprep.subr.mxu0 0.0
        %5084 = vmatpush1.msra.mxu0 0.0
        %5085 = vmatprep.subr.mxu0 0.0
        %5086 = vmatpush1.msra.mxu0 0.0
        %5087 = vmatprep.subr.mxu0 0.0
        %5088 = vmatpush1.msra.mxu0 0.0
        %5089 = vmatprep.subr.mxu0 0.0
        %5090 = vmatpush1.msra.mxu0 0.0
        %5091 = vmatprep.subr.mxu0 0.0
        %5092 = vmatpush1.msra.mxu0 0.0
        %5093 = vmatprep.subr.mxu0 0.0
        %5094 = vmatpush1.msra.mxu0 0.0
        %5095 = vmatprep.subr.mxu0 0.0
        %5096 = vmatpush1.msra.mxu0 0.0
        %5097 = vmatprep.subr.mxu0 0.0
        %5098 = vmatpush1.msra.mxu0 0.0
        %5099 = vmatprep.subr.mxu0 0.0
        %5100 = vmatpush1.msra.mxu0 %v5071
        %5101 = vmatprep.subr.mxu0 0.0
        %5102 = vmatpush1.msra.mxu0 %v5070
        %5103 = vmatprep.subr.mxu0 0.0
        %5104 = vmatpush1.msra.mxu0 %v5069
        %5105 = vmatprep.subr.mxu0 0.0
        %5106 = vmatpush1.msra.mxu0 %v5068
        %5107 = vmatprep.subr.mxu0 0.0
        %5108 = vmatpush1.msra.mxu0 %v5067
        %5109 = vmatprep.subr.mxu0 0.0
        %5110 = vmatpush1.msra.mxu0 %v5066
        %5111 = vmatprep.subr.mxu0 0.0
        %5112 = vmatpush1.msra.mxu0 %v5065
        %5113 = vmatprep.subr.mxu0 0.0
        %5114 = vmatpush1.msra.mxu0 %v5064
        %5115 = vmatprep.subr.mxu0 0.0
        %5116 = vmatpush2.msra.mxu0 0.0
        %5117 = vmatprep.subr.mxu0 0.0
        %5118 = vmatpush2.msra.mxu0 0.0
        %5119 = vmatprep.subr.mxu0 0.0
        %5120 = vmatpush2.msra.mxu0 0.0
        %5121 = vmatprep.subr.mxu0 0.0
        %5122 = vmatpush2.msra.mxu0 0.0
        %5123 = vmatprep.subr.mxu0 0.0
        %5124 = vmatpush2.msra.mxu0 0.0
        %5125 = vmatprep.subr.mxu0 0.0
        %5126 = vmatpush2.msra.mxu0 0.0
        %5127 = vmatprep.subr.mxu0 0.0
        %5128 = vmatpush2.msra.mxu0 0.0
        %5129 = vmatprep.subr.mxu0 0.0
        %5130 = vmatpush2.msra.mxu0 0.0
        %5131 = vmatprep.subr.mxu0 0.0
        %5132 = vmatpush2.msra.mxu0 0.0
        %5133 = vmatprep.subr.mxu0 0.0
        %5134 = vmatpush2.msra.mxu0 0.0
        %5135 = vmatprep.subr.mxu0 0.0
        %5136 = vmatpush2.msra.mxu0 0.0
        %5137 = vmatprep.subr.mxu0 0.0
        %5138 = vmatpush2.msra.mxu0 0.0
        %5139 = vmatprep.subr.mxu0 0.0
        %5140 = vmatpush2.msra.mxu0 0.0
        %5141 = vmatprep.subr.mxu0 0.0
        %5142 = vmatpush2.msra.mxu0 0.0
        %5143 = vmatprep.subr.mxu0 0.0
        %5144 = vmatpush2.msra.mxu0 0.0
        %5145 = vmatprep.subr.mxu0 0.0
        %5146 = vmatpush2.msra.mxu0 0.0
        %5147 = vmatprep.mubr.f32.mxu0 0.0
        %5148 = vmatmul.mubr.f32.gmra.mxu0 %v5081
        %v5149 = vpop.f32.mrf.mxu0
        %v5150 = vadd.f32 %v5078, %v5149
        %v5151 = vpop.f32.mrf.mxu0
        %5152 = vdwg.mxu0
        %v5153 = vadd.f32 %v5150, %v4967
        %s5154 = scalar_lea.vmem %s18, 1
        %v5155 = vld [vmem:[%s5154] sm:$0x1]
        %s5156 = scalar_lea.vmem %s19, 1
        %v5157 = vld [vmem:[%s5156] sm:$0x1]
        %v5158 = vsel %vm750, %v5153, 0.0
        %5159 = vadd.xlane.f32.xlu0 %v5158
        %v5160 = vpop.xlane.xlu0 %5159
        %v5161 = vmul.f32 %v5160, %v754
        %v5162 = vsub.f32 %v5153, %v5161
        %v5163 = vmul.f32 %v5162, %v5162
        %v5164 = vsel %vm750, %v5163, 0.0
        %5165 = vadd.xlane.f32.xlu0 %v5164
        %v5166 = vpop.xlane.xlu0 %5165
        %v5167 = vmul.f32 %v5166, %v754
        %v5168 = vadd.f32 %v5167, 1e-12
        %v5169 = vrsqrt.pop %v5168
        %v5170 = vmul.f32 %v5162, %v5169
        %v5172 = vlaneseq
        %v5173 = vshrl.u32 %v5172, 7
        %v5174 = vsub.s32 0, %v5173
        %v5175 = vrot.slane %v5155, %v5174
        %v5177 = vmul.f32 %v5170, %v5175
        %v5179 = vlaneseq
        %v5180 = vshrl.u32 %v5179, 7
        %v5181 = vsub.s32 0, %v5180
        %v5182 = vrot.slane %v5157, %v5181
        %v5184 = vadd.f32 %v5177, %v5182
        %v5185 = vld [vmem:[%s20] sm:$0xff]
        %v5186 = vld [vmem:[%s20 + $0x8] sm:$0xff]
        %v5187 = vld [vmem:[%s20 + $0x10] sm:$0xff]
        %v5188 = vld [vmem:[%s20 + $0x18] sm:$0xff]
        %v5189 = vld [vmem:[%s21] sm:$0x1]
        %v5191 = vlaneseq
        %v5192 = vshrl.u32 %v5191, 7
        %v5193 = vsub.s32 0, %v5192
        %v5194 = vrot.slane %v5189, %v5193
        %v5197 = vsel %vm750, %v5184, 0
        %5199 = vmatprep.subr.mxu0 0.0
        %5200 = vmatpush1.msra.mxu0 0.0
        %5201 = vmatprep.subr.mxu0 0.0
        %5202 = vmatpush1.msra.mxu0 0.0
        %5203 = vmatprep.subr.mxu0 0.0
        %5204 = vmatpush1.msra.mxu0 0.0
        %5205 = vmatprep.subr.mxu0 0.0
        %5206 = vmatpush1.msra.mxu0 0.0
        %5207 = vmatprep.subr.mxu0 0.0
        %5208 = vmatpush1.msra.mxu0 0.0
        %5209 = vmatprep.subr.mxu0 0.0
        %5210 = vmatpush1.msra.mxu0 0.0
        %5211 = vmatprep.subr.mxu0 0.0
        %5212 = vmatpush1.msra.mxu0 0.0
        %5213 = vmatprep.subr.mxu0 0.0
        %5214 = vmatpush1.msra.mxu0 0.0
        %5215 = vmatprep.subr.mxu0 0.0
        %5216 = vmatpush1.msra.mxu0 0.0
        %5217 = vmatprep.subr.mxu0 0.0
        %5218 = vmatpush1.msra.mxu0 0.0
        %5219 = vmatprep.subr.mxu0 0.0
        %5220 = vmatpush1.msra.mxu0 0.0
        %5221 = vmatprep.subr.mxu0 0.0
        %5222 = vmatpush1.msra.mxu0 0.0
        %5223 = vmatprep.subr.mxu0 0.0
        %5224 = vmatpush1.msra.mxu0 %v5188
        %5225 = vmatprep.subr.mxu0 0.0
        %5226 = vmatpush1.msra.mxu0 %v5187
        %5227 = vmatprep.subr.mxu0 0.0
        %5228 = vmatpush1.msra.mxu0 %v5186
        %5229 = vmatprep.subr.mxu0 0.0
        %5230 = vmatpush1.msra.mxu0 %v5185
        %5231 = vmatprep.subr.mxu0 0.0
        %5232 = vmatpush2.msra.mxu0 0.0
        %5233 = vmatprep.subr.mxu0 0.0
        %5234 = vmatpush2.msra.mxu0 0.0
        %5235 = vmatprep.subr.mxu0 0.0
        %5236 = vmatpush2.msra.mxu0 0.0
        %5237 = vmatprep.subr.mxu0 0.0
        %5238 = vmatpush2.msra.mxu0 0.0
        %5239 = vmatprep.subr.mxu0 0.0
        %5240 = vmatpush2.msra.mxu0 0.0
        %5241 = vmatprep.subr.mxu0 0.0
        %5242 = vmatpush2.msra.mxu0 0.0
        %5243 = vmatprep.subr.mxu0 0.0
        %5244 = vmatpush2.msra.mxu0 0.0
        %5245 = vmatprep.subr.mxu0 0.0
        %5246 = vmatpush2.msra.mxu0 0.0
        %5247 = vmatprep.subr.mxu0 0.0
        %5248 = vmatpush2.msra.mxu0 0.0
        %5249 = vmatprep.subr.mxu0 0.0
        %5250 = vmatpush2.msra.mxu0 0.0
        %5251 = vmatprep.subr.mxu0 0.0
        %5252 = vmatpush2.msra.mxu0 0.0
        %5253 = vmatprep.subr.mxu0 0.0
        %5254 = vmatpush2.msra.mxu0 0.0
        %5255 = vmatprep.subr.mxu0 0.0
        %5256 = vmatpush2.msra.mxu0 0.0
        %5257 = vmatprep.subr.mxu0 0.0
        %5258 = vmatpush2.msra.mxu0 0.0
        %5259 = vmatprep.subr.mxu0 0.0
        %5260 = vmatpush2.msra.mxu0 0.0
        %5261 = vmatprep.subr.mxu0 0.0
        %5262 = vmatpush2.msra.mxu0 0.0
        %5263 = vmatprep.mubr.f32.mxu0 0.0
        %5264 = vmatmul.mubr.f32.gmra.mxu0 %v5197
        %v5265 = vpop.f32.mrf.mxu0
        %v5266 = vadd.f32 %v5194, %v5265
        %v5267 = vpop.f32.mrf.mxu0
        %5268 = vdwg.mxu0
        %v5269 = vtanh.pop %v5266
        %v5270 = vld [vmem:[%s22] sm:$0xff]
        %v5271 = vld [vmem:[%s22 + $0x8] sm:$0xff]
        %v5272 = vld [vmem:[%s22 + $0x10] sm:$0xff]
        %v5273 = vld [vmem:[%s22 + $0x18] sm:$0xff]
        %v5274 = vld [vmem:[%s23] sm:$0x1]
        %v5276 = vlaneseq
        %v5277 = vshrl.u32 %v5276, 7
        %v5278 = vsub.s32 0, %v5277
        %v5279 = vrot.slane %v5274, %v5278
        %v5282 = vsel %vm750, %v5269, 0
        %5284 = vmatprep.subr.mxu0 0.0
        %5285 = vmatpush1.msra.mxu0 0.0
        %5286 = vmatprep.subr.mxu0 0.0
        %5287 = vmatpush1.msra.mxu0 0.0
        %5288 = vmatprep.subr.mxu0 0.0
        %5289 = vmatpush1.msra.mxu0 0.0
        %5290 = vmatprep.subr.mxu0 0.0
        %5291 = vmatpush1.msra.mxu0 0.0
        %5292 = vmatprep.subr.mxu0 0.0
        %5293 = vmatpush1.msra.mxu0 0.0
        %5294 = vmatprep.subr.mxu0 0.0
        %5295 = vmatpush1.msra.mxu0 0.0
        %5296 = vmatprep.subr.mxu0 0.0
        %5297 = vmatpush1.msra.mxu0 0.0
        %5298 = vmatprep.subr.mxu0 0.0
        %5299 = vmatpush1.msra.mxu0 0.0
        %5300 = vmatprep.subr.mxu0 0.0
        %5301 = vmatpush1.msra.mxu0 0.0
        %5302 = vmatprep.subr.mxu0 0.0
        %5303 = vmatpush1.msra.mxu0 0.0
        %5304 = vmatprep.subr.mxu0 0.0
        %5305 = vmatpush1.msra.mxu0 0.0
        %5306 = vmatprep.subr.mxu0 0.0
        %5307 = vmatpush1.msra.mxu0 0.0
        %5308 = vmatprep.subr.mxu0 0.0
        %5309 = vmatpush1.msra.mxu0 %v5273
        %5310 = vmatprep.subr.mxu0 0.0
        %5311 = vmatpush1.msra.mxu0 %v5272
        %5312 = vmatprep.subr.mxu0 0.0
        %5313 = vmatpush1.msra.mxu0 %v5271
        %5314 = vmatprep.subr.mxu0 0.0
        %5315 = vmatpush1.msra.mxu0 %v5270
        %5316 = vmatprep.subr.mxu0 0.0
        %5317 = vmatpush2.msra.mxu0 0.0
        %5318 = vmatprep.subr.mxu0 0.0
        %5319 = vmatpush2.msra.mxu0 0.0
        %5320 = vmatprep.subr.mxu0 0.0
        %5321 = vmatpush2.msra.mxu0 0.0
        %5322 = vmatprep.subr.mxu0 0.0
        %5323 = vmatpush2.msra.mxu0 0.0
        %5324 = vmatprep.subr.mxu0 0.0
        %5325 = vmatpush2.msra.mxu0 0.0
        %5326 = vmatprep.subr.mxu0 0.0
        %5327 = vmatpush2.msra.mxu0 0.0
        %5328 = vmatprep.subr.mxu0 0.0
        %5329 = vmatpush2.msra.mxu0 0.0
        %5330 = vmatprep.subr.mxu0 0.0
        %5331 = vmatpush2.msra.mxu0 0.0
        %5332 = vmatprep.subr.mxu0 0.0
        %5333 = vmatpush2.msra.mxu0 0.0
        %5334 = vmatprep.subr.mxu0 0.0
        %5335 = vmatpush2.msra.mxu0 0.0
        %5336 = vmatprep.subr.mxu0 0.0
        %5337 = vmatpush2.msra.mxu0 0.0
        %5338 = vmatprep.subr.mxu0 0.0
        %5339 = vmatpush2.msra.mxu0 0.0
        %5340 = vmatprep.subr.mxu0 0.0
        %5341 = vmatpush2.msra.mxu0 0.0
        %5342 = vmatprep.subr.mxu0 0.0
        %5343 = vmatpush2.msra.mxu0 0.0
        %5344 = vmatprep.subr.mxu0 0.0
        %5345 = vmatpush2.msra.mxu0 0.0
        %5346 = vmatprep.subr.mxu0 0.0
        %5347 = vmatpush2.msra.mxu0 0.0
        %5348 = vmatprep.mubr.f32.mxu0 0.0
        %5349 = vmatmul.mubr.f32.gmra.mxu0 %v5282
        %v5350 = vpop.f32.mrf.mxu0
        %v5351 = vadd.f32 %v5279, %v5350
        %v5352 = vpop.f32.mrf.mxu0
        %5353 = vdwg.mxu0
        %5354 = vst [vmem:[%s738] sm:$0x1] %v5351
        %s5355 = sand.u32 %s560, 1
        %s5356 = scalar_lea.sflag [#allocation3], %s5355
        %s5357 = sand.u32 %s560, 1
        %s5358 = scalar_lea.vmem [#allocation2], %s5357
        // Predicated region
        $region117: #{tpu_custom_call.1} parent=115 // pred_check
          %p5359 = pneg %p570
        $region118: #{tpu_custom_call.1} parent=115 // pred_check_branch
          %5361 = sbr.rel (%p5359) target = $region120
        $region119: #{tpu_custom_call.1} parent=115 // pred_region
          %s5363 = ssub.s32 16, 16
          %5364 = vsyncadd %s5356, %s5363
          %s5365 = smul.addr %s38, 16
          %s5366 = scalar_lea.hbm %s24, %s5365
          %s5368 = sshll.u32 %s5358, 4
          %s5369 = int_to_ptr.vmem [resolvable:$true] %s5368
          %5371 = dma.vmem_to_hbm [thread:$0]  %s5369, 16, %s5366, %s5356
        $region120: #{tpu_custom_call.1} parent=115 // pred_fallthru
          _
      $region116: #{tpu_custom_call.1} parent=5 // pred_fallthru
        _
      %p5372 = scmp.le.s32.totalorder 2, %s33
      // Predicated region
      $region121: #{tpu_custom_call.1} parent=5 // pred_check
        %p5373 = pneg %p5372
      $region122: #{tpu_custom_call.1} parent=5 // pred_check_branch
        %5375 = sbr.rel (%p5373) target = $region124
      $region123: #{tpu_custom_call.1} parent=5 // pred_region
        %s5376 = ssub.s32 %s33, 2
        // Predicated region
        $region125: #{tpu_custom_call.1} parent=123 // pred_check
          %p5377 = pneg %p576
        $region126: #{tpu_custom_call.1} parent=123 // pred_check_branch
          %5379 = sbr.rel (%p5377) target = $region128
        $region127: #{tpu_custom_call.1} parent=123 // pred_region
          %s5380 = sand.u32 %s561, 1
          %s5381 = scalar_lea.sflag [#allocation3], %s5380
          %s5382 = sand.u32 %s561, 1
          %s5383 = scalar_lea.vmem [#allocation2], %s5382
          %5384 = dma.done %s5381, 16
        $region128: #{tpu_custom_call.1} parent=123 // pred_fallthru
          _
      $region124: #{tpu_custom_call.1} parent=5 // pred_fallthru
        _
    $region6: #{tpu_custom_call.1} parent=1 // loop_footer
      %s37 = sadd.s32 1, %s33
    $region7: #{tpu_custom_call.1} parent=1 // loop_footer_branch
      %32 = sbr.rel target = $region3
    $region8: #{tpu_custom_call.1} parent=1 // loop_exit
      _
    %5385 = vsyncpa [#allocation3], 1
    %s5386 = scalar_lea.sflag [#allocation3], 1
    %5387 = vsyncpa %s5386, 1

</llo_original>
